<compile_context>
chip_gen: v5e
topology: v5e:2x2
jax: 0.10.0
libtpu: 0.0.40
codegen_flags: <defaults>
</compile_context>

<pallas_src>
import functools

import jax
import jax.numpy as jnp
import numpy as np
from jax.experimental import pallas as pl
from jax.experimental.pallas import tpu as pltpu

EMBEDDING_SIZE = 128
NUM_LAYERS = 3
SUBLANE = 8
LANE = 128


def _pad_to(n, m):
    return ((n + m - 1) // m) * m


def _olstm_kernel(data_ref, we_ref, be_ref, wih0_ref, whh0_ref, wstk_ref, b_ref,
                  wo_ref, bo_ref, h0_ref, c0_ref,
                  out_ref, hn_ref, cn_ref, pre_ref):
    L, Bp, H = h0_ref.shape
    T = out_ref.shape[0]
    H3 = 3 * H

    # ---- input embedding + ReLU (dropout == eval-mode identity) ----
    emb = jnp.dot(data_ref[...], we_ref[...],
                  preferred_element_type=jnp.float32) + be_ref[...]
    emb_bf = jnp.maximum(emb, 0.0).astype(jnp.bfloat16)           # (T*Bp, H)

    # ---- layer-0 input-to-hidden GEMM hoisted for ALL timesteps, bias folded ----
    pre_ref[...] = (
        jnp.dot(emb_bf, wih0_ref[...], preferred_element_type=jnp.float32)
        + b_ref[0]
    ).reshape(T, Bp, 4 * H)

    # Small constants hoisted once (avoid re-loading inside the unrolled waves).
    biases = [b_ref[l] for l in range(1, L)]                      # (1, 4H) f32
    bo = bo_ref[...]                                              # (1, O_pad) f32

    h_state = [h0_ref[l] for l in range(L)]                       # f32 (Bp, H)
    c_state = [c0_ref[l] for l in range(L)]
    feed = [None] * L          # feed[l] = h of layer l-1 at the t layer l runs next

    def lstm_gates(gates, c_prev):
        # gate order is [i, f, o, g] (reordered once in prepare_weights)
        sig = jax.nn.sigmoid(gates[:, :H3])       # one wide EUP push for i, f, o
        i_g = sig[:, 0:H]
        f_g = sig[:, H:2 * H]
        o_g = sig[:, 2 * H:H3]
        g_g = jnp.tanh(gates[:, H3:])
        c_new = f_g * c_prev + i_g * g_g
        h_new = o_g * jnp.tanh(c_new)
        return h_new, c_new

    # ---- wavefront over (layer, time): cells inside a wave are independent ----
    for w in range(T + L - 1):
        new_feed = list(feed)
        for l in range(L):
            t = w - l
            if not (0 <= t < T):
                continue
            if l == 0:
                gates = pre_ref[t] + jnp.dot(
                    h_state[0].astype(jnp.bfloat16), whh0_ref[...],
                    preferred_element_type=jnp.float32)
            else:
                # fused input + recurrent GEMM: (Bp, 2H) @ (2H, 4H)
                hc = jnp.concatenate([feed[l], h_state[l]],
                                     axis=-1).astype(jnp.bfloat16)
                gates = jnp.dot(hc, wstk_ref[l - 1],
                                preferred_element_type=jnp.float32) + biases[l - 1]
            h_new, c_new = lstm_gates(gates, c_state[l])
            h_state[l] = h_new
            c_state[l] = c_new
            if l + 1 < L:
                new_feed[l + 1] = h_new               # feeds layer l+1 next wave
            else:
                # per-step output projection: off the recurrence chain, overlaps
                # later waves; lane-dense store (O padded to 128 in the wrapper).
                out_ref[t] = jnp.dot(
                    h_new.astype(jnp.bfloat16), wo_ref[...],
                    preferred_element_type=jnp.float32) + bo
        feed = new_feed

    for l in range(L):
        hn_ref[l] = h_state[l]
        cn_ref[l] = c_state[l]


def prepare_weights(params):
    """One-time prep: transpose, gate-reorder [i,f,g,o]->[i,f,o,g], stack the
    per-step fused weights for layers 1..L-1, bf16 cast, pad O to the lane width."""
    H = params["whh"].shape[-1]
    O = params["wo"].shape[0]
    O_pad = _pad_to(O, LANE)

    def reorder(w):  # last axis is 4H in PyTorch order [i, f, g, o] -> [i, f, o, g]
        return jnp.concatenate(
            [w[..., :2 * H], w[..., 3 * H:4 * H], w[..., 2 * H:3 * H]], axis=-1)

    we_t = params["we"].T.astype(jnp.bfloat16)                         # (I, E)
    be = params["be"].reshape(1, -1).astype(jnp.float32)               # (1, E)

    wih_t = reorder(jnp.transpose(params["wih"], (0, 2, 1)))           # (L, H, 4H) f32
    whh_t = reorder(jnp.transpose(params["whh"], (0, 2, 1)))           # (L, H, 4H) f32
    b = reorder(params["bih"] + params["bhh"]).reshape(
        NUM_LAYERS, 1, 4 * H).astype(jnp.float32)

    wih0_t = wih_t[0].astype(jnp.bfloat16)                             # (H, 4H)
    whh0_t = whh_t[0].astype(jnp.bfloat16)                             # (H, 4H)
    # layers 1..L-1: per-step fused [x_t ; h_{t-1}] @ [wih ; whh]
    wstk_t = jnp.concatenate([wih_t[1:], whh_t[1:]],
                             axis=1).astype(jnp.bfloat16)              # (L-1, 2H, 4H)

    wo_t = jnp.pad(params["wo"].T, ((0, 0), (0, O_pad - O))).astype(jnp.bfloat16)
    bo = jnp.pad(params["bo"], (0, O_pad - O)).reshape(1, -1).astype(jnp.float32)
    return {"we_t": we_t, "be": be, "wih0_t": wih0_t, "whh0_t": whh0_t,
            "wstk_t": wstk_t, "b": b, "wo_t": wo_t, "bo": bo}


@functools.partial(jax.jit, static_argnames=("out_size",))
def olstm_forward(data, prep, h0, c0, *, out_size):
    """data: (B, T, input_size); h0, c0: (L, B, rnn_size). Returns (out, hn, cn)."""
    B, T, I = data.shape
    L, _, H = h0.shape
    assert H == EMBEDDING_SIZE, (
        "OLSTM applies Linear(embedding_size, out) to the LSTM output, so "
        "rnn_size must equal embedding_size (128).")
    O_pad = prep["wo_t"].shape[1]

    # Pad batch to the f32 sublane granule (8) so VPU/EUP/MXU ops are dense.
    Bp = max(SUBLANE, _pad_to(B, SUBLANE))
    pad_b = Bp - B

    # Time-major, batch-padded, flattened, bf16 — one small fused XLA prologue.
    data_t = jnp.transpose(data, (1, 0, 2)).astype(jnp.bfloat16)       # (T, B, I)
    data_t = jnp.pad(data_t, ((0, 0), (0, pad_b), (0, 0)))
    data_2d = data_t.reshape(T * Bp, I)
    h0p = jnp.pad(h0.astype(jnp.float32), ((0, 0), (0, pad_b), (0, 0)))
    c0p = jnp.pad(c0.astype(jnp.float32), ((0, 0), (0, pad_b), (0, 0)))

    vmem = pl.BlockSpec(memory_space=pltpu.MemorySpace.VMEM)
    out_t, hn, cn = pl.pallas_call(
        _olstm_kernel,
        out_shape=(
            jax.ShapeDtypeStruct((T, Bp, O_pad), jnp.float32),
            jax.ShapeDtypeStruct((L, Bp, H), jnp.float32),
            jax.ShapeDtypeStruct((L, Bp, H), jnp.float32),
        ),
        in_specs=[vmem] * 11,
        out_specs=(vmem, vmem, vmem),
        scratch_shapes=[
            pltpu.VMEM((T, Bp, 4 * EMBEDDING_SIZE), jnp.float32),  # layer-0 pre-gates
        ],
        compiler_params=pltpu.CompilerParams(
            vmem_limit_bytes=32 * 1024 * 1024),   # ~1.3 MiB footprint; fits v7x 64 MiB
    )(data_2d, prep["we_t"], prep["be"], prep["wih0_t"], prep["whh0_t"],
      prep["wstk_t"], prep["b"], prep["wo_t"], prep["bo"], h0p, c0p)

    out = jnp.transpose(out_t[:, :B, :out_size], (1, 0, 2))
    return out, hn[:, :B, :], cn[:, :B, :]


def init_params(key, input_size, output_size, rnn_size):
    assert rnn_size == EMBEDDING_SIZE
    E, H, L = EMBEDDING_SIZE, rnn_size, NUM_LAYERS
    ks = jax.random.split(key, 8)

    def u(k, shape, bound):
        return jax.random.uniform(k, shape, jnp.float32, -bound, bound)

    return {
        "we": u(ks[0], (E, input_size), 1.0 / np.sqrt(input_size)),
        "be": u(ks[1], (E,), 1.0 / np.sqrt(input_size)),
        "wih": u(ks[2], (L, 4 * H, E), 1.0 / np.sqrt(H)),   # layer0 in=E; layers>0 in=H (E==H)
        "whh": u(ks[3], (L, 4 * H, H), 1.0 / np.sqrt(H)),
        "bih": u(ks[4], (L, 4 * H), 1.0 / np.sqrt(H)),
        "bhh": u(ks[5], (L, 4 * H), 1.0 / np.sqrt(H)),
        "wo": u(ks[6], (output_size, E), 1.0 / np.sqrt(E)),
        "bo": u(ks[7], (output_size,), 1.0 / np.sqrt(E)),
    }


def olstm_reference(data, params, h0, c0):
    """Pure-JAX f32 reference matching torch semantics (eval mode)."""
    H = h0.shape[-1]
    seq = jnp.maximum(jnp.einsum("bti,ei->bte", data, params["we"]) + params["be"], 0.0)
    hn, cn = [], []
    for l in range(h0.shape[0]):
        wih, whh = params["wih"][l], params["whh"][l]
        b = params["bih"][l] + params["bhh"][l]
        h, c = h0[l], c0[l]
        outs = []
        for t in range(seq.shape[1]):
            g = seq[:, t, :] @ wih.T + h @ whh.T + b
            i_g = jax.nn.sigmoid(g[:, :H])
            f_g = jax.nn.sigmoid(g[:, H:2 * H])
            g_g = jnp.tanh(g[:, 2 * H:3 * H])
            o_g = jax.nn.sigmoid(g[:, 3 * H:])
            c = f_g * c + i_g * g_g
            h = o_g * jnp.tanh(c)
            outs.append(h)
        seq = jnp.stack(outs, axis=1)
        hn.append(h)
        cn.append(c)
    out = jnp.einsum("bth,oh->bto", seq, params["wo"]) + params["bo"]
    return out, jnp.stack(hn), jnp.stack(cn)


if __name__ == "__main__":
    B, T = 2, 8
    input_size, output_size, rnn_size = 8, 8, 128

    key = jax.random.PRNGKey(0)
    kp, kd, kh, kc = jax.random.split(key, 4)
    params = init_params(kp, input_size, output_size, rnn_size)
    data = jax.random.normal(kd, (B, T, input_size), jnp.float32)
    h0 = 0.1 * jax.random.normal(kh, (NUM_LAYERS, B, rnn_size), jnp.float32)
    c0 = 0.1 * jax.random.normal(kc, (NUM_LAYERS, B, rnn_size), jnp.float32)

    prep = prepare_weights(params)   # one-time weight prep (no per-call transposes)
    out, hn, cn = olstm_forward(data, prep, h0, c0, out_size=output_size)
    jax.block_until_ready((out, hn, cn))

    ref_out, ref_hn, ref_cn = olstm_reference(data, params, h0, c0)
    np.testing.assert_allclose(np.asarray(out), np.asarray(ref_out), rtol=2e-2, atol=2e-2)
    np.testing.assert_allclose(np.asarray(hn), np.asarray(ref_hn), rtol=2e-2, atol=2e-2)
    np.testing.assert_allclose(np.asarray(cn), np.asarray(ref_cn), rtol=2e-2, atol=2e-2)
    print("KERNEL_OK")
</pallas_src>

<mosaic_0001>
module attributes {stable_mosaic.version = 11 : i64} {
  func.func @_olstm_kernel(%arg0: memref<64x8xbf16, #tpu.memory_space<vmem>>, %arg1: memref<8x128xbf16, #tpu.memory_space<vmem>>, %arg2: memref<1x128xf32, #tpu.memory_space<vmem>>, %arg3: memref<128x512xbf16, #tpu.memory_space<vmem>>, %arg4: memref<128x512xbf16, #tpu.memory_space<vmem>>, %arg5: memref<2x256x512xbf16, #tpu.memory_space<vmem>>, %arg6: memref<3x1x512xf32, #tpu.memory_space<vmem>>, %arg7: memref<128x128xbf16, #tpu.memory_space<vmem>>, %arg8: memref<1x128xf32, #tpu.memory_space<vmem>>, %arg9: memref<3x8x128xf32, #tpu.memory_space<vmem>>, %arg10: memref<3x8x128xf32, #tpu.memory_space<vmem>>, %arg11: memref<8x8x128xf32, #tpu.memory_space<vmem>>, %arg12: memref<3x8x128xf32, #tpu.memory_space<vmem>>, %arg13: memref<3x8x128xf32, #tpu.memory_space<vmem>>, %arg14: memref<8x8x512xf32, #tpu.memory_space<vmem>>) attributes {dimension_semantics = [], scalar_prefetch = 0 : i64, scratch_operands = 1 : i64, tpu.core_type = #tpu.core_type<tc>} {
    %c0 = arith.constant 0 : index
    %c0_0 = arith.constant 0 : index
    %0 = vector.load %arg0[%c0, %c0_0] : memref<64x8xbf16, #tpu.memory_space<vmem>>, vector<64x8xbf16>
    %c0_1 = arith.constant 0 : index
    %c0_2 = arith.constant 0 : index
    %1 = vector.load %arg1[%c0_1, %c0_2] : memref<8x128xbf16, #tpu.memory_space<vmem>>, vector<8x128xbf16>
    %cst = arith.constant dense<0.000000e+00> : vector<64x128xf32>
    %2 = tpu.matmul %0, %1, %cst {dimension_numbers = #tpu.dot_dimension_numbers<[1], [0], [0], [1], [0, 0, 1, 1], [], []>} : vector<64x8xbf16>, vector<8x128xbf16>, vector<64x128xf32> -> vector<64x128xf32>
    %c0_3 = arith.constant 0 : index
    %c0_4 = arith.constant 0 : index
    %3 = vector.load %arg2[%c0_3, %c0_4] : memref<1x128xf32, #tpu.memory_space<vmem>>, vector<1x128xf32>
    %4 = vector.broadcast %3 : vector<1x128xf32> to vector<64x128xf32>
    %5 = arith.addf %2, %4 : vector<64x128xf32>
    %cst_5 = arith.constant 0.000000e+00 : f32
    %6 = vector.broadcast %cst_5 : f32 to vector<64x128xf32>
    %7 = arith.maximumf %5, %6 : vector<64x128xf32>
    %8 = arith.truncf %7 : vector<64x128xf32> to vector<64x128xbf16>
    %c0_6 = arith.constant 0 : index
    %c0_7 = arith.constant 0 : index
    %9 = vector.load %arg3[%c0_6, %c0_7] : memref<128x512xbf16, #tpu.memory_space<vmem>>, vector<128x512xbf16>
    %cst_8 = arith.constant dense<0.000000e+00> : vector<64x512xf32>
    %10 = tpu.matmul %8, %9, %cst_8 {dimension_numbers = #tpu.dot_dimension_numbers<[1], [0], [0], [1], [0, 0, 1, 1], [], []>} : vector<64x128xbf16>, vector<128x512xbf16>, vector<64x512xf32> -> vector<64x512xf32>
    %c0_9 = arith.constant 0 : index
    %c0_10 = arith.constant 0 : index
    %c0_11 = arith.constant 0 : index
    %11 = vector.load %arg6[%c0_9, %c0_10, %c0_11] : memref<3x1x512xf32, #tpu.memory_space<vmem>>, vector<1x1x512xf32>
    %12 = vector.shape_cast %11 : vector<1x1x512xf32> to vector<1x512xf32>
    %13 = vector.broadcast %12 : vector<1x512xf32> to vector<64x512xf32>
    %14 = arith.addf %10, %13 : vector<64x512xf32>
    %15 = vector.shape_cast %14 : vector<64x512xf32> to vector<8x8x512xf32>
    %c0_12 = arith.constant 0 : index
    %c0_13 = arith.constant 0 : index
    %c0_14 = arith.constant 0 : index
    %16 = vector.load %arg14[%c0_12, %c0_13, %c0_14] : memref<8x8x512xf32, #tpu.memory_space<vmem>>, vector<8x8x512xf32>
    tpu.vector_store %arg14[%c0_12, %c0_13, %c0_14], %15 {strides = array<i32>} : memref<8x8x512xf32, #tpu.memory_space<vmem>>, vector<8x8x512xf32>,
    %c1 = arith.constant 1 : index
    %c0_15 = arith.constant 0 : index
    %c0_16 = arith.constant 0 : index
    %17 = vector.load %arg6[%c1, %c0_15, %c0_16] : memref<3x1x512xf32, #tpu.memory_space<vmem>>, vector<1x1x512xf32>
    %18 = vector.shape_cast %17 : vector<1x1x512xf32> to vector<1x512xf32>
    %c2 = arith.constant 2 : index
    %c0_17 = arith.constant 0 : index
    %c0_18 = arith.constant 0 : index
    %19 = vector.load %arg6[%c2, %c0_17, %c0_18] : memref<3x1x512xf32, #tpu.memory_space<vmem>>, vector<1x1x512xf32>
    %20 = vector.shape_cast %19 : vector<1x1x512xf32> to vector<1x512xf32>
    %c0_19 = arith.constant 0 : index
    %c0_20 = arith.constant 0 : index
    %21 = vector.load %arg8[%c0_19, %c0_20] : memref<1x128xf32, #tpu.memory_space<vmem>>, vector<1x128xf32>
    %c0_21 = arith.constant 0 : index
    %c0_22 = arith.constant 0 : index
    %c0_23 = arith.constant 0 : index
    %22 = vector.load %arg9[%c0_21, %c0_22, %c0_23] : memref<3x8x128xf32, #tpu.memory_space<vmem>>, vector<1x8x128xf32>
    %23 = vector.shape_cast %22 : vector<1x8x128xf32> to vector<8x128xf32>
    %c1_24 = arith.constant 1 : index
    %c0_25 = arith.constant 0 : index
    %c0_26 = arith.constant 0 : index
    %24 = vector.load %arg9[%c1_24, %c0_25, %c0_26] : memref<3x8x128xf32, #tpu.memory_space<vmem>>, vector<1x8x128xf32>
    %25 = vector.shape_cast %24 : vector<1x8x128xf32> to vector<8x128xf32>
    %c2_27 = arith.constant 2 : index
    %c0_28 = arith.constant 0 : index
    %c0_29 = arith.constant 0 : index
    %26 = vector.load %arg9[%c2_27, %c0_28, %c0_29] : memref<3x8x128xf32, #tpu.memory_space<vmem>>, vector<1x8x128xf32>
    %27 = vector.shape_cast %26 : vector<1x8x128xf32> to vector<8x128xf32>
    %c0_30 = arith.constant 0 : index
    %c0_31 = arith.constant 0 : index
    %c0_32 = arith.constant 0 : index
    %28 = vector.load %arg10[%c0_30, %c0_31, %c0_32] : memref<3x8x128xf32, #tpu.memory_space<vmem>>, vector<1x8x128xf32>
    %29 = vector.shape_cast %28 : vector<1x8x128xf32> to vector<8x128xf32>
    %c1_33 = arith.constant 1 : index
    %c0_34 = arith.constant 0 : index
    %c0_35 = arith.constant 0 : index
    %30 = vector.load %arg10[%c1_33, %c0_34, %c0_35] : memref<3x8x128xf32, #tpu.memory_space<vmem>>, vector<1x8x128xf32>
    %31 = vector.shape_cast %30 : vector<1x8x128xf32> to vector<8x128xf32>
    %c2_36 = arith.constant 2 : index
    %c0_37 = arith.constant 0 : index
    %c0_38 = arith.constant 0 : index
    %32 = vector.load %arg10[%c2_36, %c0_37, %c0_38] : memref<3x8x128xf32, #tpu.memory_space<vmem>>, vector<1x8x128xf32>
    %33 = vector.shape_cast %32 : vector<1x8x128xf32> to vector<8x128xf32>
    %c0_39 = arith.constant 0 : index
    %c0_40 = arith.constant 0 : index
    %c0_41 = arith.constant 0 : index
    %34 = vector.load %arg14[%c0_39, %c0_40, %c0_41] : memref<8x8x512xf32, #tpu.memory_space<vmem>>, vector<1x8x512xf32>
    %35 = vector.shape_cast %34 : vector<1x8x512xf32> to vector<8x512xf32>
    %36 = arith.truncf %23 : vector<8x128xf32> to vector<8x128xbf16>
    %c0_42 = arith.constant 0 : index
    %c0_43 = arith.constant 0 : index
    %37 = vector.load %arg4[%c0_42, %c0_43] : memref<128x512xbf16, #tpu.memory_space<vmem>>, vector<128x512xbf16>
    %cst_44 = arith.constant dense<0.000000e+00> : vector<8x512xf32>
    %38 = tpu.matmul %36, %37, %cst_44 {dimension_numbers = #tpu.dot_dimension_numbers<[1], [0], [0], [1], [0, 0, 1, 1], [], []>} : vector<8x128xbf16>, vector<128x512xbf16>, vector<8x512xf32> -> vector<8x512xf32>
    %39 = arith.addf %35, %38 : vector<8x512xf32>
    %40 = vector.extract_strided_slice %39 {offsets = [0, 0], sizes = [8, 384], strides = [1, 1]} : vector<8x512xf32> to vector<8x384xf32>
    %41 = arith.negf %40 : vector<8x384xf32>
    %42 = math.exp %41 : vector<8x384xf32>
    %cst_45 = arith.constant 1.000000e+00 : f32
    %43 = vector.broadcast %cst_45 : f32 to vector<8x384xf32>
    %44 = arith.addf %43, %42 : vector<8x384xf32>
    %45 = arith.divf %43, %44 : vector<8x384xf32>
    %46 = vector.extract_strided_slice %45 {offsets = [0, 0], sizes = [8, 128], strides = [1, 1]} : vector<8x384xf32> to vector<8x128xf32>
    %47 = vector.extract_strided_slice %45 {offsets = [0, 128], sizes = [8, 128], strides = [1, 1]} : vector<8x384xf32> to vector<8x128xf32>
    %48 = vector.extract_strided_slice %45 {offsets = [0, 256], sizes = [8, 128], strides = [1, 1]} : vector<8x384xf32> to vector<8x128xf32>
    %49 = vector.extract_strided_slice %39 {offsets = [0, 384], sizes = [8, 128], strides = [1, 1]} : vector<8x512xf32> to vector<8x128xf32>
    %50 = math.tanh %49 : vector<8x128xf32>
    %51 = arith.mulf %47, %29 : vector<8x128xf32>
    %52 = arith.mulf %46, %50 : vector<8x128xf32>
    %53 = arith.addf %51, %52 : vector<8x128xf32>
    %54 = math.tanh %53 : vector<8x128xf32>
    %55 = arith.mulf %48, %54 : vector<8x128xf32>
    %c1_46 = arith.constant 1 : index
    %c0_47 = arith.constant 0 : index
    %c0_48 = arith.constant 0 : index
    %56 = vector.load %arg14[%c1_46, %c0_47, %c0_48] : memref<8x8x512xf32, #tpu.memory_space<vmem>>, vector<1x8x512xf32>
    %57 = vector.shape_cast %56 : vector<1x8x512xf32> to vector<8x512xf32>
    %58 = arith.truncf %55 : vector<8x128xf32> to vector<8x128xbf16>
    %c0_49 = arith.constant 0 : index
    %c0_50 = arith.constant 0 : index
    %59 = vector.load %arg4[%c0_49, %c0_50] : memref<128x512xbf16, #tpu.memory_space<vmem>>, vector<128x512xbf16>
    %cst_51 = arith.constant dense<0.000000e+00> : vector<8x512xf32>
    %60 = tpu.matmul %58, %59, %cst_51 {dimension_numbers = #tpu.dot_dimension_numbers<[1], [0], [0], [1], [0, 0, 1, 1], [], []>} : vector<8x128xbf16>, vector<128x512xbf16>, vector<8x512xf32> -> vector<8x512xf32>
    %61 = arith.addf %57, %60 : vector<8x512xf32>
    %62 = vector.extract_strided_slice %61 {offsets = [0, 0], sizes = [8, 384], strides = [1, 1]} : vector<8x512xf32> to vector<8x384xf32>
    %63 = arith.negf %62 : vector<8x384xf32>
    %64 = math.exp %63 : vector<8x384xf32>
    %cst_52 = arith.constant 1.000000e+00 : f32
    %65 = vector.broadcast %cst_52 : f32 to vector<8x384xf32>
    %66 = arith.addf %65, %64 : vector<8x384xf32>
    %67 = arith.divf %65, %66 : vector<8x384xf32>
    %68 = vector.extract_strided_slice %67 {offsets = [0, 0], sizes = [8, 128], strides = [1, 1]} : vector<8x384xf32> to vector<8x128xf32>
    %69 = vector.extract_strided_slice %67 {offsets = [0, 128], sizes = [8, 128], strides = [1, 1]} : vector<8x384xf32> to vector<8x128xf32>
    %70 = vector.extract_strided_slice %67 {offsets = [0, 256], sizes = [8, 128], strides = [1, 1]} : vector<8x384xf32> to vector<8x128xf32>
    %71 = vector.extract_strided_slice %61 {offsets = [0, 384], sizes = [8, 128], strides = [1, 1]} : vector<8x512xf32> to vector<8x128xf32>
    %72 = math.tanh %71 : vector<8x128xf32>
    %73 = arith.mulf %69, %53 : vector<8x128xf32>
    %74 = arith.mulf %68, %72 : vector<8x128xf32>
    %75 = arith.addf %73, %74 : vector<8x128xf32>
    %76 = math.tanh %75 : vector<8x128xf32>
    %77 = arith.mulf %70, %76 : vector<8x128xf32>
    %78 = tpu.concatenate %55, %25 in 1 : vector<8x128xf32>, vector<8x128xf32> -> vector<8x256xf32>
    %79 = arith.truncf %78 : vector<8x256xf32> to vector<8x256xbf16>
    %c0_53 = arith.constant 0 : index
    %c0_54 = arith.constant 0 : index
    %c0_55 = arith.constant 0 : index
    %80 = vector.load %arg5[%c0_53, %c0_54, %c0_55] : memref<2x256x512xbf16, #tpu.memory_space<vmem>>, vector<1x256x512xbf16>
    %81 = vector.shape_cast %80 : vector<1x256x512xbf16> to vector<256x512xbf16>
    %cst_56 = arith.constant dense<0.000000e+00> : vector<8x512xf32>
    %82 = tpu.matmul %79, %81, %cst_56 {dimension_numbers = #tpu.dot_dimension_numbers<[1], [0], [0], [1], [0, 0, 1, 1], [], []>} : vector<8x256xbf16>, vector<256x512xbf16>, vector<8x512xf32> -> vector<8x512xf32>
    %83 = vector.broadcast %18 : vector<1x512xf32> to vector<8x512xf32>
    %84 = arith.addf %82, %83 : vector<8x512xf32>
    %85 = vector.extract_strided_slice %84 {offsets = [0, 0], sizes = [8, 384], strides = [1, 1]} : vector<8x512xf32> to vector<8x384xf32>
    %86 = arith.negf %85 : vector<8x384xf32>
    %87 = math.exp %86 : vector<8x384xf32>
    %cst_57 = arith.constant 1.000000e+00 : f32
    %88 = vector.broadcast %cst_57 : f32 to vector<8x384xf32>
    %89 = arith.addf %88, %87 : vector<8x384xf32>
    %90 = arith.divf %88, %89 : vector<8x384xf32>
    %91 = vector.extract_strided_slice %90 {offsets = [0, 0], sizes = [8, 128], strides = [1, 1]} : vector<8x384xf32> to vector<8x128xf32>
    %92 = vector.extract_strided_slice %90 {offsets = [0, 128], sizes = [8, 128], strides = [1, 1]} : vector<8x384xf32> to vector<8x128xf32>
    %93 = vector.extract_strided_slice %90 {offsets = [0, 256], sizes = [8, 128], strides = [1, 1]} : vector<8x384xf32> to vector<8x128xf32>
    %94 = vector.extract_strided_slice %84 {offsets = [0, 384], sizes = [8, 128], strides = [1, 1]} : vector<8x512xf32> to vector<8x128xf32>
    %95 = math.tanh %94 : vector<8x128xf32>
    %96 = arith.mulf %92, %31 : vector<8x128xf32>
    %97 = arith.mulf %91, %95 : vector<8x128xf32>
    %98 = arith.addf %96, %97 : vector<8x128xf32>
    %99 = math.tanh %98 : vector<8x128xf32>
    %100 = arith.mulf %93, %99 : vector<8x128xf32>
    %c2_58 = arith.constant 2 : index
    %c0_59 = arith.constant 0 : index
    %c0_60 = arith.constant 0 : index
    %101 = vector.load %arg14[%c2_58, %c0_59, %c0_60] : memref<8x8x512xf32, #tpu.memory_space<vmem>>, vector<1x8x512xf32>
    %102 = vector.shape_cast %101 : vector<1x8x512xf32> to vector<8x512xf32>
    %103 = arith.truncf %77 : vector<8x128xf32> to vector<8x128xbf16>
    %c0_61 = arith.constant 0 : index
    %c0_62 = arith.constant 0 : index
    %104 = vector.load %arg4[%c0_61, %c0_62] : memref<128x512xbf16, #tpu.memory_space<vmem>>, vector<128x512xbf16>
    %cst_63 = arith.constant dense<0.000000e+00> : vector<8x512xf32>
    %105 = tpu.matmul %103, %104, %cst_63 {dimension_numbers = #tpu.dot_dimension_numbers<[1], [0], [0], [1], [0, 0, 1, 1], [], []>} : vector<8x128xbf16>, vector<128x512xbf16>, vector<8x512xf32> -> vector<8x512xf32>
    %106 = arith.addf %102, %105 : vector<8x512xf32>
    %107 = vector.extract_strided_slice %106 {offsets = [0, 0], sizes = [8, 384], strides = [1, 1]} : vector<8x512xf32> to vector<8x384xf32>
    %108 = arith.negf %107 : vector<8x384xf32>
    %109 = math.exp %108 : vector<8x384xf32>
    %cst_64 = arith.constant 1.000000e+00 : f32
    %110 = vector.broadcast %cst_64 : f32 to vector<8x384xf32>
    %111 = arith.addf %110, %109 : vector<8x384xf32>
    %112 = arith.divf %110, %111 : vector<8x384xf32>
    %113 = vector.extract_strided_slice %112 {offsets = [0, 0], sizes = [8, 128], strides = [1, 1]} : vector<8x384xf32> to vector<8x128xf32>
    %114 = vector.extract_strided_slice %112 {offsets = [0, 128], sizes = [8, 128], strides = [1, 1]} : vector<8x384xf32> to vector<8x128xf32>
    %115 = vector.extract_strided_slice %112 {offsets = [0, 256], sizes = [8, 128], strides = [1, 1]} : vector<8x384xf32> to vector<8x128xf32>
    %116 = vector.extract_strided_slice %106 {offsets = [0, 384], sizes = [8, 128], strides = [1, 1]} : vector<8x512xf32> to vector<8x128xf32>
    %117 = math.tanh %116 : vector<8x128xf32>
    %118 = arith.mulf %114, %75 : vector<8x128xf32>
    %119 = arith.mulf %113, %117 : vector<8x128xf32>
    %120 = arith.addf %118, %119 : vector<8x128xf32>
    %121 = math.tanh %120 : vector<8x128xf32>
    %122 = arith.mulf %115, %121 : vector<8x128xf32>
    %123 = tpu.concatenate %77, %100 in 1 : vector<8x128xf32>, vector<8x128xf32> -> vector<8x256xf32>
    %124 = arith.truncf %123 : vector<8x256xf32> to vector<8x256xbf16>
    %c0_65 = arith.constant 0 : index
    %c0_66 = arith.constant 0 : index
    %c0_67 = arith.constant 0 : index
    %125 = vector.load %arg5[%c0_65, %c0_66, %c0_67] : memref<2x256x512xbf16, #tpu.memory_space<vmem>>, vector<1x256x512xbf16>
    %126 = vector.shape_cast %125 : vector<1x256x512xbf16> to vector<256x512xbf16>
    %cst_68 = arith.constant dense<0.000000e+00> : vector<8x512xf32>
    %127 = tpu.matmul %124, %126, %cst_68 {dimension_numbers = #tpu.dot_dimension_numbers<[1], [0], [0], [1], [0, 0, 1, 1], [], []>} : vector<8x256xbf16>, vector<256x512xbf16>, vector<8x512xf32> -> vector<8x512xf32>
    %128 = vector.broadcast %18 : vector<1x512xf32> to vector<8x512xf32>
    %129 = arith.addf %127, %128 : vector<8x512xf32>
    %130 = vector.extract_strided_slice %129 {offsets = [0, 0], sizes = [8, 384], strides = [1, 1]} : vector<8x512xf32> to vector<8x384xf32>
    %131 = arith.negf %130 : vector<8x384xf32>
    %132 = math.exp %131 : vector<8x384xf32>
    %cst_69 = arith.constant 1.000000e+00 : f32
    %133 = vector.broadcast %cst_69 : f32 to vector<8x384xf32>
    %134 = arith.addf %133, %132 : vector<8x384xf32>
    %135 = arith.divf %133, %134 : vector<8x384xf32>
    %136 = vector.extract_strided_slice %135 {offsets = [0, 0], sizes = [8, 128], strides = [1, 1]} : vector<8x384xf32> to vector<8x128xf32>
    %137 = vector.extract_strided_slice %135 {offsets = [0, 128], sizes = [8, 128], strides = [1, 1]} : vector<8x384xf32> to vector<8x128xf32>
    %138 = vector.extract_strided_slice %135 {offsets = [0, 256], sizes = [8, 128], strides = [1, 1]} : vector<8x384xf32> to vector<8x128xf32>
    %139 = vector.extract_strided_slice %129 {offsets = [0, 384], sizes = [8, 128], strides = [1, 1]} : vector<8x512xf32> to vector<8x128xf32>
    %140 = math.tanh %139 : vector<8x128xf32>
    %141 = arith.mulf %137, %98 : vector<8x128xf32>
    %142 = arith.mulf %136, %140 : vector<8x128xf32>
    %143 = arith.addf %141, %142 : vector<8x128xf32>
    %144 = math.tanh %143 : vector<8x128xf32>
    %145 = arith.mulf %138, %144 : vector<8x128xf32>
    %146 = tpu.concatenate %100, %27 in 1 : vector<8x128xf32>, vector<8x128xf32> -> vector<8x256xf32>
    %147 = arith.truncf %146 : vector<8x256xf32> to vector<8x256xbf16>
    %c1_70 = arith.constant 1 : index
    %c0_71 = arith.constant 0 : index
    %c0_72 = arith.constant 0 : index
    %148 = vector.load %arg5[%c1_70, %c0_71, %c0_72] : memref<2x256x512xbf16, #tpu.memory_space<vmem>>, vector<1x256x512xbf16>
    %149 = vector.shape_cast %148 : vector<1x256x512xbf16> to vector<256x512xbf16>
    %cst_73 = arith.constant dense<0.000000e+00> : vector<8x512xf32>
    %150 = tpu.matmul %147, %149, %cst_73 {dimension_numbers = #tpu.dot_dimension_numbers<[1], [0], [0], [1], [0, 0, 1, 1], [], []>} : vector<8x256xbf16>, vector<256x512xbf16>, vector<8x512xf32> -> vector<8x512xf32>
    %151 = vector.broadcast %20 : vector<1x512xf32> to vector<8x512xf32>
    %152 = arith.addf %150, %151 : vector<8x512xf32>
    %153 = vector.extract_strided_slice %152 {offsets = [0, 0], sizes = [8, 384], strides = [1, 1]} : vector<8x512xf32> to vector<8x384xf32>
    %154 = arith.negf %153 : vector<8x384xf32>
    %155 = math.exp %154 : vector<8x384xf32>
    %cst_74 = arith.constant 1.000000e+00 : f32
    %156 = vector.broadcast %cst_74 : f32 to vector<8x384xf32>
    %157 = arith.addf %156, %155 : vector<8x384xf32>
    %158 = arith.divf %156, %157 : vector<8x384xf32>
    %159 = vector.extract_strided_slice %158 {offsets = [0, 0], sizes = [8, 128], strides = [1, 1]} : vector<8x384xf32> to vector<8x128xf32>
    %160 = vector.extract_strided_slice %158 {offsets = [0, 128], sizes = [8, 128], strides = [1, 1]} : vector<8x384xf32> to vector<8x128xf32>
    %161 = vector.extract_strided_slice %158 {offsets = [0, 256], sizes = [8, 128], strides = [1, 1]} : vector<8x384xf32> to vector<8x128xf32>
    %162 = vector.extract_strided_slice %152 {offsets = [0, 384], sizes = [8, 128], strides = [1, 1]} : vector<8x512xf32> to vector<8x128xf32>
    %163 = math.tanh %162 : vector<8x128xf32>
    %164 = arith.mulf %160, %33 : vector<8x128xf32>
    %165 = arith.mulf %159, %163 : vector<8x128xf32>
    %166 = arith.addf %164, %165 : vector<8x128xf32>
    %167 = math.tanh %166 : vector<8x128xf32>
    %168 = arith.mulf %161, %167 : vector<8x128xf32>
    %169 = arith.truncf %168 : vector<8x128xf32> to vector<8x128xbf16>
    %c0_75 = arith.constant 0 : index
    %c0_76 = arith.constant 0 : index
    %170 = vector.load %arg7[%c0_75, %c0_76] : memref<128x128xbf16, #tpu.memory_space<vmem>>, vector<128x128xbf16>
    %cst_77 = arith.constant dense<0.000000e+00> : vector<8x128xf32>
    %171 = tpu.matmul %169, %170, %cst_77 {dimension_numbers = #tpu.dot_dimension_numbers<[1], [0], [0], [1], [0, 0, 1, 1], [], []>} : vector<8x128xbf16>, vector<128x128xbf16>, vector<8x128xf32> -> vector<8x128xf32>
    %172 = vector.broadcast %21 : vector<1x128xf32> to vector<8x128xf32>
    %173 = arith.addf %171, %172 : vector<8x128xf32>
    %c0_78 = arith.constant 0 : index
    %c0_79 = arith.constant 0 : index
    %c0_80 = arith.constant 0 : index
    %174 = vector.load %arg11[%c0_78, %c0_79, %c0_80] : memref<8x8x128xf32, #tpu.memory_space<vmem>>, vector<1x8x128xf32>
    %175 = vector.shape_cast %174 : vector<1x8x128xf32> to vector<8x128xf32>
    %176 = vector.shape_cast %173 : vector<8x128xf32> to vector<1x8x128xf32>
    tpu.vector_store %arg11[%c0_78, %c0_79, %c0_80], %176 {strides = array<i32>} : memref<8x8x128xf32, #tpu.memory_space<vmem>>, vector<1x8x128xf32>,
    %c3 = arith.constant 3 : index
    %c0_81 = arith.constant 0 : index
    %c0_82 = arith.constant 0 : index
    %177 = vector.load %arg14[%c3, %c0_81, %c0_82] : memref<8x8x512xf32, #tpu.memory_space<vmem>>, vector<1x8x512xf32>
    %178 = vector.shape_cast %177 : vector<1x8x512xf32> to vector<8x512xf32>
    %179 = arith.truncf %122 : vector<8x128xf32> to vector<8x128xbf16>
    %c0_83 = arith.constant 0 : index
    %c0_84 = arith.constant 0 : index
    %180 = vector.load %arg4[%c0_83, %c0_84] : memref<128x512xbf16, #tpu.memory_space<vmem>>, vector<128x512xbf16>
    %cst_85 = arith.constant dense<0.000000e+00> : vector<8x512xf32>
    %181 = tpu.matmul %179, %180, %cst_85 {dimension_numbers = #tpu.dot_dimension_numbers<[1], [0], [0], [1], [0, 0, 1, 1], [], []>} : vector<8x128xbf16>, vector<128x512xbf16>, vector<8x512xf32> -> vector<8x512xf32>
    %182 = arith.addf %178, %181 : vector<8x512xf32>
    %183 = vector.extract_strided_slice %182 {offsets = [0, 0], sizes = [8, 384], strides = [1, 1]} : vector<8x512xf32> to vector<8x384xf32>
    %184 = arith.negf %183 : vector<8x384xf32>
    %185 = math.exp %184 : vector<8x384xf32>
    %cst_86 = arith.constant 1.000000e+00 : f32
    %186 = vector.broadcast %cst_86 : f32 to vector<8x384xf32>
    %187 = arith.addf %186, %185 : vector<8x384xf32>
    %188 = arith.divf %186, %187 : vector<8x384xf32>
    %189 = vector.extract_strided_slice %188 {offsets = [0, 0], sizes = [8, 128], strides = [1, 1]} : vector<8x384xf32> to vector<8x128xf32>
    %190 = vector.extract_strided_slice %188 {offsets = [0, 128], sizes = [8, 128], strides = [1, 1]} : vector<8x384xf32> to vector<8x128xf32>
    %191 = vector.extract_strided_slice %188 {offsets = [0, 256], sizes = [8, 128], strides = [1, 1]} : vector<8x384xf32> to vector<8x128xf32>
    %192 = vector.extract_strided_slice %182 {offsets = [0, 384], sizes = [8, 128], strides = [1, 1]} : vector<8x512xf32> to vector<8x128xf32>
    %193 = math.tanh %192 : vector<8x128xf32>
    %194 = arith.mulf %190, %120 : vector<8x128xf32>
    %195 = arith.mulf %189, %193 : vector<8x128xf32>
    %196 = arith.addf %194, %195 : vector<8x128xf32>
    %197 = math.tanh %196 : vector<8x128xf32>
    %198 = arith.mulf %191, %197 : vector<8x128xf32>
    %199 = tpu.concatenate %122, %145 in 1 : vector<8x128xf32>, vector<8x128xf32> -> vector<8x256xf32>
    %200 = arith.truncf %199 : vector<8x256xf32> to vector<8x256xbf16>
    %c0_87 = arith.constant 0 : index
    %c0_88 = arith.constant 0 : index
    %c0_89 = arith.constant 0 : index
    %201 = vector.load %arg5[%c0_87, %c0_88, %c0_89] : memref<2x256x512xbf16, #tpu.memory_space<vmem>>, vector<1x256x512xbf16>
    %202 = vector.shape_cast %201 : vector<1x256x512xbf16> to vector<256x512xbf16>
    %cst_90 = arith.constant dense<0.000000e+00> : vector<8x512xf32>
    %203 = tpu.matmul %200, %202, %cst_90 {dimension_numbers = #tpu.dot_dimension_numbers<[1], [0], [0], [1], [0, 0, 1, 1], [], []>} : vector<8x256xbf16>, vector<256x512xbf16>, vector<8x512xf32> -> vector<8x512xf32>
    %204 = vector.broadcast %18 : vector<1x512xf32> to vector<8x512xf32>
    %205 = arith.addf %203, %204 : vector<8x512xf32>
    %206 = vector.extract_strided_slice %205 {offsets = [0, 0], sizes = [8, 384], strides = [1, 1]} : vector<8x512xf32> to vector<8x384xf32>
    %207 = arith.negf %206 : vector<8x384xf32>
    %208 = math.exp %207 : vector<8x384xf32>
    %cst_91 = arith.constant 1.000000e+00 : f32
    %209 = vector.broadcast %cst_91 : f32 to vector<8x384xf32>
    %210 = arith.addf %209, %208 : vector<8x384xf32>
    %211 = arith.divf %209, %210 : vector<8x384xf32>
    %212 = vector.extract_strided_slice %211 {offsets = [0, 0], sizes = [8, 128], strides = [1, 1]} : vector<8x384xf32> to vector<8x128xf32>
    %213 = vector.extract_strided_slice %211 {offsets = [0, 128], sizes = [8, 128], strides = [1, 1]} : vector<8x384xf32> to vector<8x128xf32>
    %214 = vector.extract_strided_slice %211 {offsets = [0, 256], sizes = [8, 128], strides = [1, 1]} : vector<8x384xf32> to vector<8x128xf32>
    %215 = vector.extract_strided_slice %205 {offsets = [0, 384], sizes = [8, 128], strides = [1, 1]} : vector<8x512xf32> to vector<8x128xf32>
    %216 = math.tanh %215 : vector<8x128xf32>
    %217 = arith.mulf %213, %143 : vector<8x128xf32>
    %218 = arith.mulf %212, %216 : vector<8x128xf32>
    %219 = arith.addf %217, %218 : vector<8x128xf32>
    %220 = math.tanh %219 : vector<8x128xf32>
    %221 = arith.mulf %214, %220 : vector<8x128xf32>
    %222 = tpu.concatenate %145, %168 in 1 : vector<8x128xf32>, vector<8x128xf32> -> vector<8x256xf32>
    %223 = arith.truncf %222 : vector<8x256xf32> to vector<8x256xbf16>
    %c1_92 = arith.constant 1 : index
    %c0_93 = arith.constant 0 : index
    %c0_94 = arith.constant 0 : index
    %224 = vector.load %arg5[%c1_92, %c0_93, %c0_94] : memref<2x256x512xbf16, #tpu.memory_space<vmem>>, vector<1x256x512xbf16>
    %225 = vector.shape_cast %224 : vector<1x256x512xbf16> to vector<256x512xbf16>
    %cst_95 = arith.constant dense<0.000000e+00> : vector<8x512xf32>
    %226 = tpu.matmul %223, %225, %cst_95 {dimension_numbers = #tpu.dot_dimension_numbers<[1], [0], [0], [1], [0, 0, 1, 1], [], []>} : vector<8x256xbf16>, vector<256x512xbf16>, vector<8x512xf32> -> vector<8x512xf32>
    %227 = vector.broadcast %20 : vector<1x512xf32> to vector<8x512xf32>
    %228 = arith.addf %226, %227 : vector<8x512xf32>
    %229 = vector.extract_strided_slice %228 {offsets = [0, 0], sizes = [8, 384], strides = [1, 1]} : vector<8x512xf32> to vector<8x384xf32>
    %230 = arith.negf %229 : vector<8x384xf32>
    %231 = math.exp %230 : vector<8x384xf32>
    %cst_96 = arith.constant 1.000000e+00 : f32
    %232 = vector.broadcast %cst_96 : f32 to vector<8x384xf32>
    %233 = arith.addf %232, %231 : vector<8x384xf32>
    %234 = arith.divf %232, %233 : vector<8x384xf32>
    %235 = vector.extract_strided_slice %234 {offsets = [0, 0], sizes = [8, 128], strides = [1, 1]} : vector<8x384xf32> to vector<8x128xf32>
    %236 = vector.extract_strided_slice %234 {offsets = [0, 128], sizes = [8, 128], strides = [1, 1]} : vector<8x384xf32> to vector<8x128xf32>
    %237 = vector.extract_strided_slice %234 {offsets = [0, 256], sizes = [8, 128], strides = [1, 1]} : vector<8x384xf32> to vector<8x128xf32>
    %238 = vector.extract_strided_slice %228 {offsets = [0, 384], sizes = [8, 128], strides = [1, 1]} : vector<8x512xf32> to vector<8x128xf32>
    %239 = math.tanh %238 : vector<8x128xf32>
    %240 = arith.mulf %236, %166 : vector<8x128xf32>
    %241 = arith.mulf %235, %239 : vector<8x128xf32>
    %242 = arith.addf %240, %241 : vector<8x128xf32>
    %243 = math.tanh %242 : vector<8x128xf32>
    %244 = arith.mulf %237, %243 : vector<8x128xf32>
    %245 = arith.truncf %244 : vector<8x128xf32> to vector<8x128xbf16>
    %c0_97 = arith.constant 0 : index
    %c0_98 = arith.constant 0 : index
    %246 = vector.load %arg7[%c0_97, %c0_98] : memref<128x128xbf16, #tpu.memory_space<vmem>>, vector<128x128xbf16>
    %cst_99 = arith.constant dense<0.000000e+00> : vector<8x128xf32>
    %247 = tpu.matmul %245, %246, %cst_99 {dimension_numbers = #tpu.dot_dimension_numbers<[1], [0], [0], [1], [0, 0, 1, 1], [], []>} : vector<8x128xbf16>, vector<128x128xbf16>, vector<8x128xf32> -> vector<8x128xf32>
    %248 = vector.broadcast %21 : vector<1x128xf32> to vector<8x128xf32>
    %249 = arith.addf %247, %248 : vector<8x128xf32>
    %c1_100 = arith.constant 1 : index
    %c0_101 = arith.constant 0 : index
    %c0_102 = arith.constant 0 : index
    %250 = vector.load %arg11[%c1_100, %c0_101, %c0_102] : memref<8x8x128xf32, #tpu.memory_space<vmem>>, vector<1x8x128xf32>
    %251 = vector.shape_cast %250 : vector<1x8x128xf32> to vector<8x128xf32>
    %252 = vector.shape_cast %249 : vector<8x128xf32> to vector<1x8x128xf32>
    tpu.vector_store %arg11[%c1_100, %c0_101, %c0_102], %252 {strides = array<i32>} : memref<8x8x128xf32, #tpu.memory_space<vmem>>, vector<1x8x128xf32>,
    %c4 = arith.constant 4 : index
    %c0_103 = arith.constant 0 : index
    %c0_104 = arith.constant 0 : index
    %253 = vector.load %arg14[%c4, %c0_103, %c0_104] : memref<8x8x512xf32, #tpu.memory_space<vmem>>, vector<1x8x512xf32>
    %254 = vector.shape_cast %253 : vector<1x8x512xf32> to vector<8x512xf32>
    %255 = arith.truncf %198 : vector<8x128xf32> to vector<8x128xbf16>
    %c0_105 = arith.constant 0 : index
    %c0_106 = arith.constant 0 : index
    %256 = vector.load %arg4[%c0_105, %c0_106] : memref<128x512xbf16, #tpu.memory_space<vmem>>, vector<128x512xbf16>
    %cst_107 = arith.constant dense<0.000000e+00> : vector<8x512xf32>
    %257 = tpu.matmul %255, %256, %cst_107 {dimension_numbers = #tpu.dot_dimension_numbers<[1], [0], [0], [1], [0, 0, 1, 1], [], []>} : vector<8x128xbf16>, vector<128x512xbf16>, vector<8x512xf32> -> vector<8x512xf32>
    %258 = arith.addf %254, %257 : vector<8x512xf32>
    %259 = vector.extract_strided_slice %258 {offsets = [0, 0], sizes = [8, 384], strides = [1, 1]} : vector<8x512xf32> to vector<8x384xf32>
    %260 = arith.negf %259 : vector<8x384xf32>
    %261 = math.exp %260 : vector<8x384xf32>
    %cst_108 = arith.constant 1.000000e+00 : f32
    %262 = vector.broadcast %cst_108 : f32 to vector<8x384xf32>
    %263 = arith.addf %262, %261 : vector<8x384xf32>
    %264 = arith.divf %262, %263 : vector<8x384xf32>
    %265 = vector.extract_strided_slice %264 {offsets = [0, 0], sizes = [8, 128], strides = [1, 1]} : vector<8x384xf32> to vector<8x128xf32>
    %266 = vector.extract_strided_slice %264 {offsets = [0, 128], sizes = [8, 128], strides = [1, 1]} : vector<8x384xf32> to vector<8x128xf32>
    %267 = vector.extract_strided_slice %264 {offsets = [0, 256], sizes = [8, 128], strides = [1, 1]} : vector<8x384xf32> to vector<8x128xf32>
    %268 = vector.extract_strided_slice %258 {offsets = [0, 384], sizes = [8, 128], strides = [1, 1]} : vector<8x512xf32> to vector<8x128xf32>
    %269 = math.tanh %268 : vector<8x128xf32>
    %270 = arith.mulf %266, %196 : vector<8x128xf32>
    %271 = arith.mulf %265, %269 : vector<8x128xf32>
    %272 = arith.addf %270, %271 : vector<8x128xf32>
    %273 = math.tanh %272 : vector<8x128xf32>
    %274 = arith.mulf %267, %273 : vector<8x128xf32>
    %275 = tpu.concatenate %198, %221 in 1 : vector<8x128xf32>, vector<8x128xf32> -> vector<8x256xf32>
    %276 = arith.truncf %275 : vector<8x256xf32> to vector<8x256xbf16>
    %c0_109 = arith.constant 0 : index
    %c0_110 = arith.constant 0 : index
    %c0_111 = arith.constant 0 : index
    %277 = vector.load %arg5[%c0_109, %c0_110, %c0_111] : memref<2x256x512xbf16, #tpu.memory_space<vmem>>, vector<1x256x512xbf16>
    %278 = vector.shape_cast %277 : vector<1x256x512xbf16> to vector<256x512xbf16>
    %cst_112 = arith.constant dense<0.000000e+00> : vector<8x512xf32>
    %279 = tpu.matmul %276, %278, %cst_112 {dimension_numbers = #tpu.dot_dimension_numbers<[1], [0], [0], [1], [0, 0, 1, 1], [], []>} : vector<8x256xbf16>, vector<256x512xbf16>, vector<8x512xf32> -> vector<8x512xf32>
    %280 = vector.broadcast %18 : vector<1x512xf32> to vector<8x512xf32>
    %281 = arith.addf %279, %280 : vector<8x512xf32>
    %282 = vector.extract_strided_slice %281 {offsets = [0, 0], sizes = [8, 384], strides = [1, 1]} : vector<8x512xf32> to vector<8x384xf32>
    %283 = arith.negf %282 : vector<8x384xf32>
    %284 = math.exp %283 : vector<8x384xf32>
    %cst_113 = arith.constant 1.000000e+00 : f32
    %285 = vector.broadcast %cst_113 : f32 to vector<8x384xf32>
    %286 = arith.addf %285, %284 : vector<8x384xf32>
    %287 = arith.divf %285, %286 : vector<8x384xf32>
    %288 = vector.extract_strided_slice %287 {offsets = [0, 0], sizes = [8, 128], strides = [1, 1]} : vector<8x384xf32> to vector<8x128xf32>
    %289 = vector.extract_strided_slice %287 {offsets = [0, 128], sizes = [8, 128], strides = [1, 1]} : vector<8x384xf32> to vector<8x128xf32>
    %290 = vector.extract_strided_slice %287 {offsets = [0, 256], sizes = [8, 128], strides = [1, 1]} : vector<8x384xf32> to vector<8x128xf32>
    %291 = vector.extract_strided_slice %281 {offsets = [0, 384], sizes = [8, 128], strides = [1, 1]} : vector<8x512xf32> to vector<8x128xf32>
    %292 = math.tanh %291 : vector<8x128xf32>
    %293 = arith.mulf %289, %219 : vector<8x128xf32>
    %294 = arith.mulf %288, %292 : vector<8x128xf32>
    %295 = arith.addf %293, %294 : vector<8x128xf32>
    %296 = math.tanh %295 : vector<8x128xf32>
    %297 = arith.mulf %290, %296 : vector<8x128xf32>
    %298 = tpu.concatenate %221, %244 in 1 : vector<8x128xf32>, vector<8x128xf32> -> vector<8x256xf32>
    %299 = arith.truncf %298 : vector<8x256xf32> to vector<8x256xbf16>
    %c1_114 = arith.constant 1 : index
    %c0_115 = arith.constant 0 : index
    %c0_116 = arith.constant 0 : index
    %300 = vector.load %arg5[%c1_114, %c0_115, %c0_116] : memref<2x256x512xbf16, #tpu.memory_space<vmem>>, vector<1x256x512xbf16>
    %301 = vector.shape_cast %300 : vector<1x256x512xbf16> to vector<256x512xbf16>
    %cst_117 = arith.constant dense<0.000000e+00> : vector<8x512xf32>
    %302 = tpu.matmul %299, %301, %cst_117 {dimension_numbers = #tpu.dot_dimension_numbers<[1], [0], [0], [1], [0, 0, 1, 1], [], []>} : vector<8x256xbf16>, vector<256x512xbf16>, vector<8x512xf32> -> vector<8x512xf32>
    %303 = vector.broadcast %20 : vector<1x512xf32> to vector<8x512xf32>
    %304 = arith.addf %302, %303 : vector<8x512xf32>
    %305 = vector.extract_strided_slice %304 {offsets = [0, 0], sizes = [8, 384], strides = [1, 1]} : vector<8x512xf32> to vector<8x384xf32>
    %306 = arith.negf %305 : vector<8x384xf32>
    %307 = math.exp %306 : vector<8x384xf32>
    %cst_118 = arith.constant 1.000000e+00 : f32
    %308 = vector.broadcast %cst_118 : f32 to vector<8x384xf32>
    %309 = arith.addf %308, %307 : vector<8x384xf32>
    %310 = arith.divf %308, %309 : vector<8x384xf32>
    %311 = vector.extract_strided_slice %310 {offsets = [0, 0], sizes = [8, 128], strides = [1, 1]} : vector<8x384xf32> to vector<8x128xf32>
    %312 = vector.extract_strided_slice %310 {offsets = [0, 128], sizes = [8, 128], strides = [1, 1]} : vector<8x384xf32> to vector<8x128xf32>
    %313 = vector.extract_strided_slice %310 {offsets = [0, 256], sizes = [8, 128], strides = [1, 1]} : vector<8x384xf32> to vector<8x128xf32>
    %314 = vector.extract_strided_slice %304 {offsets = [0, 384], sizes = [8, 128], strides = [1, 1]} : vector<8x512xf32> to vector<8x128xf32>
    %315 = math.tanh %314 : vector<8x128xf32>
    %316 = arith.mulf %312, %242 : vector<8x128xf32>
    %317 = arith.mulf %311, %315 : vector<8x128xf32>
    %318 = arith.addf %316, %317 : vector<8x128xf32>
    %319 = math.tanh %318 : vector<8x128xf32>
    %320 = arith.mulf %313, %319 : vector<8x128xf32>
    %321 = arith.truncf %320 : vector<8x128xf32> to vector<8x128xbf16>
    %c0_119 = arith.constant 0 : index
    %c0_120 = arith.constant 0 : index
    %322 = vector.load %arg7[%c0_119, %c0_120] : memref<128x128xbf16, #tpu.memory_space<vmem>>, vector<128x128xbf16>
    %cst_121 = arith.constant dense<0.000000e+00> : vector<8x128xf32>
    %323 = tpu.matmul %321, %322, %cst_121 {dimension_numbers = #tpu.dot_dimension_numbers<[1], [0], [0], [1], [0, 0, 1, 1], [], []>} : vector<8x128xbf16>, vector<128x128xbf16>, vector<8x128xf32> -> vector<8x128xf32>
    %324 = vector.broadcast %21 : vector<1x128xf32> to vector<8x128xf32>
    %325 = arith.addf %323, %324 : vector<8x128xf32>
    %c2_122 = arith.constant 2 : index
    %c0_123 = arith.constant 0 : index
    %c0_124 = arith.constant 0 : index
    %326 = vector.load %arg11[%c2_122, %c0_123, %c0_124] : memref<8x8x128xf32, #tpu.memory_space<vmem>>, vector<1x8x128xf32>
    %327 = vector.shape_cast %326 : vector<1x8x128xf32> to vector<8x128xf32>
    %328 = vector.shape_cast %325 : vector<8x128xf32> to vector<1x8x128xf32>
    tpu.vector_store %arg11[%c2_122, %c0_123, %c0_124], %328 {strides = array<i32>} : memref<8x8x128xf32, #tpu.memory_space<vmem>>, vector<1x8x128xf32>,
    %c5 = arith.constant 5 : index
    %c0_125 = arith.constant 0 : index
    %c0_126 = arith.constant 0 : index
    %329 = vector.load %arg14[%c5, %c0_125, %c0_126] : memref<8x8x512xf32, #tpu.memory_space<vmem>>, vector<1x8x512xf32>
    %330 = vector.shape_cast %329 : vector<1x8x512xf32> to vector<8x512xf32>
    %331 = arith.truncf %274 : vector<8x128xf32> to vector<8x128xbf16>
    %c0_127 = arith.constant 0 : index
    %c0_128 = arith.constant 0 : index
    %332 = vector.load %arg4[%c0_127, %c0_128] : memref<128x512xbf16, #tpu.memory_space<vmem>>, vector<128x512xbf16>
    %cst_129 = arith.constant dense<0.000000e+00> : vector<8x512xf32>
    %333 = tpu.matmul %331, %332, %cst_129 {dimension_numbers = #tpu.dot_dimension_numbers<[1], [0], [0], [1], [0, 0, 1, 1], [], []>} : vector<8x128xbf16>, vector<128x512xbf16>, vector<8x512xf32> -> vector<8x512xf32>
    %334 = arith.addf %330, %333 : vector<8x512xf32>
    %335 = vector.extract_strided_slice %334 {offsets = [0, 0], sizes = [8, 384], strides = [1, 1]} : vector<8x512xf32> to vector<8x384xf32>
    %336 = arith.negf %335 : vector<8x384xf32>
    %337 = math.exp %336 : vector<8x384xf32>
    %cst_130 = arith.constant 1.000000e+00 : f32
    %338 = vector.broadcast %cst_130 : f32 to vector<8x384xf32>
    %339 = arith.addf %338, %337 : vector<8x384xf32>
    %340 = arith.divf %338, %339 : vector<8x384xf32>
    %341 = vector.extract_strided_slice %340 {offsets = [0, 0], sizes = [8, 128], strides = [1, 1]} : vector<8x384xf32> to vector<8x128xf32>
    %342 = vector.extract_strided_slice %340 {offsets = [0, 128], sizes = [8, 128], strides = [1, 1]} : vector<8x384xf32> to vector<8x128xf32>
    %343 = vector.extract_strided_slice %340 {offsets = [0, 256], sizes = [8, 128], strides = [1, 1]} : vector<8x384xf32> to vector<8x128xf32>
    %344 = vector.extract_strided_slice %334 {offsets = [0, 384], sizes = [8, 128], strides = [1, 1]} : vector<8x512xf32> to vector<8x128xf32>
    %345 = math.tanh %344 : vector<8x128xf32>
    %346 = arith.mulf %342, %272 : vector<8x128xf32>
    %347 = arith.mulf %341, %345 : vector<8x128xf32>
    %348 = arith.addf %346, %347 : vector<8x128xf32>
    %349 = math.tanh %348 : vector<8x128xf32>
    %350 = arith.mulf %343, %349 : vector<8x128xf32>
    %351 = tpu.concatenate %274, %297 in 1 : vector<8x128xf32>, vector<8x128xf32> -> vector<8x256xf32>
    %352 = arith.truncf %351 : vector<8x256xf32> to vector<8x256xbf16>
    %c0_131 = arith.constant 0 : index
    %c0_132 = arith.constant 0 : index
    %c0_133 = arith.constant 0 : index
    %353 = vector.load %arg5[%c0_131, %c0_132, %c0_133] : memref<2x256x512xbf16, #tpu.memory_space<vmem>>, vector<1x256x512xbf16>
    %354 = vector.shape_cast %353 : vector<1x256x512xbf16> to vector<256x512xbf16>
    %cst_134 = arith.constant dense<0.000000e+00> : vector<8x512xf32>
    %355 = tpu.matmul %352, %354, %cst_134 {dimension_numbers = #tpu.dot_dimension_numbers<[1], [0], [0], [1], [0, 0, 1, 1], [], []>} : vector<8x256xbf16>, vector<256x512xbf16>, vector<8x512xf32> -> vector<8x512xf32>
    %356 = vector.broadcast %18 : vector<1x512xf32> to vector<8x512xf32>
    %357 = arith.addf %355, %356 : vector<8x512xf32>
    %358 = vector.extract_strided_slice %357 {offsets = [0, 0], sizes = [8, 384], strides = [1, 1]} : vector<8x512xf32> to vector<8x384xf32>
    %359 = arith.negf %358 : vector<8x384xf32>
    %360 = math.exp %359 : vector<8x384xf32>
    %cst_135 = arith.constant 1.000000e+00 : f32
    %361 = vector.broadcast %cst_135 : f32 to vector<8x384xf32>
    %362 = arith.addf %361, %360 : vector<8x384xf32>
    %363 = arith.divf %361, %362 : vector<8x384xf32>
    %364 = vector.extract_strided_slice %363 {offsets = [0, 0], sizes = [8, 128], strides = [1, 1]} : vector<8x384xf32> to vector<8x128xf32>
    %365 = vector.extract_strided_slice %363 {offsets = [0, 128], sizes = [8, 128], strides = [1, 1]} : vector<8x384xf32> to vector<8x128xf32>
    %366 = vector.extract_strided_slice %363 {offsets = [0, 256], sizes = [8, 128], strides = [1, 1]} : vector<8x384xf32> to vector<8x128xf32>
    %367 = vector.extract_strided_slice %357 {offsets = [0, 384], sizes = [8, 128], strides = [1, 1]} : vector<8x512xf32> to vector<8x128xf32>
    %368 = math.tanh %367 : vector<8x128xf32>
    %369 = arith.mulf %365, %295 : vector<8x128xf32>
    %370 = arith.mulf %364, %368 : vector<8x128xf32>
    %371 = arith.addf %369, %370 : vector<8x128xf32>
    %372 = math.tanh %371 : vector<8x128xf32>
    %373 = arith.mulf %366, %372 : vector<8x128xf32>
    %374 = tpu.concatenate %297, %320 in 1 : vector<8x128xf32>, vector<8x128xf32> -> vector<8x256xf32>
    %375 = arith.truncf %374 : vector<8x256xf32> to vector<8x256xbf16>
    %c1_136 = arith.constant 1 : index
    %c0_137 = arith.constant 0 : index
    %c0_138 = arith.constant 0 : index
    %376 = vector.load %arg5[%c1_136, %c0_137, %c0_138] : memref<2x256x512xbf16, #tpu.memory_space<vmem>>, vector<1x256x512xbf16>
    %377 = vector.shape_cast %376 : vector<1x256x512xbf16> to vector<256x512xbf16>
    %cst_139 = arith.constant dense<0.000000e+00> : vector<8x512xf32>
    %378 = tpu.matmul %375, %377, %cst_139 {dimension_numbers = #tpu.dot_dimension_numbers<[1], [0], [0], [1], [0, 0, 1, 1], [], []>} : vector<8x256xbf16>, vector<256x512xbf16>, vector<8x512xf32> -> vector<8x512xf32>
    %379 = vector.broadcast %20 : vector<1x512xf32> to vector<8x512xf32>
    %380 = arith.addf %378, %379 : vector<8x512xf32>
    %381 = vector.extract_strided_slice %380 {offsets = [0, 0], sizes = [8, 384], strides = [1, 1]} : vector<8x512xf32> to vector<8x384xf32>
    %382 = arith.negf %381 : vector<8x384xf32>
    %383 = math.exp %382 : vector<8x384xf32>
    %cst_140 = arith.constant 1.000000e+00 : f32
    %384 = vector.broadcast %cst_140 : f32 to vector<8x384xf32>
    %385 = arith.addf %384, %383 : vector<8x384xf32>
    %386 = arith.divf %384, %385 : vector<8x384xf32>
    %387 = vector.extract_strided_slice %386 {offsets = [0, 0], sizes = [8, 128], strides = [1, 1]} : vector<8x384xf32> to vector<8x128xf32>
    %388 = vector.extract_strided_slice %386 {offsets = [0, 128], sizes = [8, 128], strides = [1, 1]} : vector<8x384xf32> to vector<8x128xf32>
    %389 = vector.extract_strided_slice %386 {offsets = [0, 256], sizes = [8, 128], strides = [1, 1]} : vector<8x384xf32> to vector<8x128xf32>
    %390 = vector.extract_strided_slice %380 {offsets = [0, 384], sizes = [8, 128], strides = [1, 1]} : vector<8x512xf32> to vector<8x128xf32>
    %391 = math.tanh %390 : vector<8x128xf32>
    %392 = arith.mulf %388, %318 : vector<8x128xf32>
    %393 = arith.mulf %387, %391 : vector<8x128xf32>
    %394 = arith.addf %392, %393 : vector<8x128xf32>
    %395 = math.tanh %394 : vector<8x128xf32>
    %396 = arith.mulf %389, %395 : vector<8x128xf32>
    %397 = arith.truncf %396 : vector<8x128xf32> to vector<8x128xbf16>
    %c0_141 = arith.constant 0 : index
    %c0_142 = arith.constant 0 : index
    %398 = vector.load %arg7[%c0_141, %c0_142] : memref<128x128xbf16, #tpu.memory_space<vmem>>, vector<128x128xbf16>
    %cst_143 = arith.constant dense<0.000000e+00> : vector<8x128xf32>
    %399 = tpu.matmul %397, %398, %cst_143 {dimension_numbers = #tpu.dot_dimension_numbers<[1], [0], [0], [1], [0, 0, 1, 1], [], []>} : vector<8x128xbf16>, vector<128x128xbf16>, vector<8x128xf32> -> vector<8x128xf32>
    %400 = vector.broadcast %21 : vector<1x128xf32> to vector<8x128xf32>
    %401 = arith.addf %399, %400 : vector<8x128xf32>
    %c3_144 = arith.constant 3 : index
    %c0_145 = arith.constant 0 : index
    %c0_146 = arith.constant 0 : index
    %402 = vector.load %arg11[%c3_144, %c0_145, %c0_146] : memref<8x8x128xf32, #tpu.memory_space<vmem>>, vector<1x8x128xf32>
    %403 = vector.shape_cast %402 : vector<1x8x128xf32> to vector<8x128xf32>
    %404 = vector.shape_cast %401 : vector<8x128xf32> to vector<1x8x128xf32>
    tpu.vector_store %arg11[%c3_144, %c0_145, %c0_146], %404 {strides = array<i32>} : memref<8x8x128xf32, #tpu.memory_space<vmem>>, vector<1x8x128xf32>,
    %c6 = arith.constant 6 : index
    %c0_147 = arith.constant 0 : index
    %c0_148 = arith.constant 0 : index
    %405 = vector.load %arg14[%c6, %c0_147, %c0_148] : memref<8x8x512xf32, #tpu.memory_space<vmem>>, vector<1x8x512xf32>
    %406 = vector.shape_cast %405 : vector<1x8x512xf32> to vector<8x512xf32>
    %407 = arith.truncf %350 : vector<8x128xf32> to vector<8x128xbf16>
    %c0_149 = arith.constant 0 : index
    %c0_150 = arith.constant 0 : index
    %408 = vector.load %arg4[%c0_149, %c0_150] : memref<128x512xbf16, #tpu.memory_space<vmem>>, vector<128x512xbf16>
    %cst_151 = arith.constant dense<0.000000e+00> : vector<8x512xf32>
    %409 = tpu.matmul %407, %408, %cst_151 {dimension_numbers = #tpu.dot_dimension_numbers<[1], [0], [0], [1], [0, 0, 1, 1], [], []>} : vector<8x128xbf16>, vector<128x512xbf16>, vector<8x512xf32> -> vector<8x512xf32>
    %410 = arith.addf %406, %409 : vector<8x512xf32>
    %411 = vector.extract_strided_slice %410 {offsets = [0, 0], sizes = [8, 384], strides = [1, 1]} : vector<8x512xf32> to vector<8x384xf32>
    %412 = arith.negf %411 : vector<8x384xf32>
    %413 = math.exp %412 : vector<8x384xf32>
    %cst_152 = arith.constant 1.000000e+00 : f32
    %414 = vector.broadcast %cst_152 : f32 to vector<8x384xf32>
    %415 = arith.addf %414, %413 : vector<8x384xf32>
    %416 = arith.divf %414, %415 : vector<8x384xf32>
    %417 = vector.extract_strided_slice %416 {offsets = [0, 0], sizes = [8, 128], strides = [1, 1]} : vector<8x384xf32> to vector<8x128xf32>
    %418 = vector.extract_strided_slice %416 {offsets = [0, 128], sizes = [8, 128], strides = [1, 1]} : vector<8x384xf32> to vector<8x128xf32>
    %419 = vector.extract_strided_slice %416 {offsets = [0, 256], sizes = [8, 128], strides = [1, 1]} : vector<8x384xf32> to vector<8x128xf32>
    %420 = vector.extract_strided_slice %410 {offsets = [0, 384], sizes = [8, 128], strides = [1, 1]} : vector<8x512xf32> to vector<8x128xf32>
    %421 = math.tanh %420 : vector<8x128xf32>
    %422 = arith.mulf %418, %348 : vector<8x128xf32>
    %423 = arith.mulf %417, %421 : vector<8x128xf32>
    %424 = arith.addf %422, %423 : vector<8x128xf32>
    %425 = math.tanh %424 : vector<8x128xf32>
    %426 = arith.mulf %419, %425 : vector<8x128xf32>
    %427 = tpu.concatenate %350, %373 in 1 : vector<8x128xf32>, vector<8x128xf32> -> vector<8x256xf32>
    %428 = arith.truncf %427 : vector<8x256xf32> to vector<8x256xbf16>
    %c0_153 = arith.constant 0 : index
    %c0_154 = arith.constant 0 : index
    %c0_155 = arith.constant 0 : index
    %429 = vector.load %arg5[%c0_153, %c0_154, %c0_155] : memref<2x256x512xbf16, #tpu.memory_space<vmem>>, vector<1x256x512xbf16>
    %430 = vector.shape_cast %429 : vector<1x256x512xbf16> to vector<256x512xbf16>
    %cst_156 = arith.constant dense<0.000000e+00> : vector<8x512xf32>
    %431 = tpu.matmul %428, %430, %cst_156 {dimension_numbers = #tpu.dot_dimension_numbers<[1], [0], [0], [1], [0, 0, 1, 1], [], []>} : vector<8x256xbf16>, vector<256x512xbf16>, vector<8x512xf32> -> vector<8x512xf32>
    %432 = vector.broadcast %18 : vector<1x512xf32> to vector<8x512xf32>
    %433 = arith.addf %431, %432 : vector<8x512xf32>
    %434 = vector.extract_strided_slice %433 {offsets = [0, 0], sizes = [8, 384], strides = [1, 1]} : vector<8x512xf32> to vector<8x384xf32>
    %435 = arith.negf %434 : vector<8x384xf32>
    %436 = math.exp %435 : vector<8x384xf32>
    %cst_157 = arith.constant 1.000000e+00 : f32
    %437 = vector.broadcast %cst_157 : f32 to vector<8x384xf32>
    %438 = arith.addf %437, %436 : vector<8x384xf32>
    %439 = arith.divf %437, %438 : vector<8x384xf32>
    %440 = vector.extract_strided_slice %439 {offsets = [0, 0], sizes = [8, 128], strides = [1, 1]} : vector<8x384xf32> to vector<8x128xf32>
    %441 = vector.extract_strided_slice %439 {offsets = [0, 128], sizes = [8, 128], strides = [1, 1]} : vector<8x384xf32> to vector<8x128xf32>
    %442 = vector.extract_strided_slice %439 {offsets = [0, 256], sizes = [8, 128], strides = [1, 1]} : vector<8x384xf32> to vector<8x128xf32>
    %443 = vector.extract_strided_slice %433 {offsets = [0, 384], sizes = [8, 128], strides = [1, 1]} : vector<8x512xf32> to vector<8x128xf32>
    %444 = math.tanh %443 : vector<8x128xf32>
    %445 = arith.mulf %441, %371 : vector<8x128xf32>
    %446 = arith.mulf %440, %444 : vector<8x128xf32>
    %447 = arith.addf %445, %446 : vector<8x128xf32>
    %448 = math.tanh %447 : vector<8x128xf32>
    %449 = arith.mulf %442, %448 : vector<8x128xf32>
    %450 = tpu.concatenate %373, %396 in 1 : vector<8x128xf32>, vector<8x128xf32> -> vector<8x256xf32>
    %451 = arith.truncf %450 : vector<8x256xf32> to vector<8x256xbf16>
    %c1_158 = arith.constant 1 : index
    %c0_159 = arith.constant 0 : index
    %c0_160 = arith.constant 0 : index
    %452 = vector.load %arg5[%c1_158, %c0_159, %c0_160] : memref<2x256x512xbf16, #tpu.memory_space<vmem>>, vector<1x256x512xbf16>
    %453 = vector.shape_cast %452 : vector<1x256x512xbf16> to vector<256x512xbf16>
    %cst_161 = arith.constant dense<0.000000e+00> : vector<8x512xf32>
    %454 = tpu.matmul %451, %453, %cst_161 {dimension_numbers = #tpu.dot_dimension_numbers<[1], [0], [0], [1], [0, 0, 1, 1], [], []>} : vector<8x256xbf16>, vector<256x512xbf16>, vector<8x512xf32> -> vector<8x512xf32>
    %455 = vector.broadcast %20 : vector<1x512xf32> to vector<8x512xf32>
    %456 = arith.addf %454, %455 : vector<8x512xf32>
    %457 = vector.extract_strided_slice %456 {offsets = [0, 0], sizes = [8, 384], strides = [1, 1]} : vector<8x512xf32> to vector<8x384xf32>
    %458 = arith.negf %457 : vector<8x384xf32>
    %459 = math.exp %458 : vector<8x384xf32>
    %cst_162 = arith.constant 1.000000e+00 : f32
    %460 = vector.broadcast %cst_162 : f32 to vector<8x384xf32>
    %461 = arith.addf %460, %459 : vector<8x384xf32>
    %462 = arith.divf %460, %461 : vector<8x384xf32>
    %463 = vector.extract_strided_slice %462 {offsets = [0, 0], sizes = [8, 128], strides = [1, 1]} : vector<8x384xf32> to vector<8x128xf32>
    %464 = vector.extract_strided_slice %462 {offsets = [0, 128], sizes = [8, 128], strides = [1, 1]} : vector<8x384xf32> to vector<8x128xf32>
    %465 = vector.extract_strided_slice %462 {offsets = [0, 256], sizes = [8, 128], strides = [1, 1]} : vector<8x384xf32> to vector<8x128xf32>
    %466 = vector.extract_strided_slice %456 {offsets = [0, 384], sizes = [8, 128], strides = [1, 1]} : vector<8x512xf32> to vector<8x128xf32>
    %467 = math.tanh %466 : vector<8x128xf32>
    %468 = arith.mulf %464, %394 : vector<8x128xf32>
    %469 = arith.mulf %463, %467 : vector<8x128xf32>
    %470 = arith.addf %468, %469 : vector<8x128xf32>
    %471 = math.tanh %470 : vector<8x128xf32>
    %472 = arith.mulf %465, %471 : vector<8x128xf32>
    %473 = arith.truncf %472 : vector<8x128xf32> to vector<8x128xbf16>
    %c0_163 = arith.constant 0 : index
    %c0_164 = arith.constant 0 : index
    %474 = vector.load %arg7[%c0_163, %c0_164] : memref<128x128xbf16, #tpu.memory_space<vmem>>, vector<128x128xbf16>
    %cst_165 = arith.constant dense<0.000000e+00> : vector<8x128xf32>
    %475 = tpu.matmul %473, %474, %cst_165 {dimension_numbers = #tpu.dot_dimension_numbers<[1], [0], [0], [1], [0, 0, 1, 1], [], []>} : vector<8x128xbf16>, vector<128x128xbf16>, vector<8x128xf32> -> vector<8x128xf32>
    %476 = vector.broadcast %21 : vector<1x128xf32> to vector<8x128xf32>
    %477 = arith.addf %475, %476 : vector<8x128xf32>
    %c4_166 = arith.constant 4 : index
    %c0_167 = arith.constant 0 : index
    %c0_168 = arith.constant 0 : index
    %478 = vector.load %arg11[%c4_166, %c0_167, %c0_168] : memref<8x8x128xf32, #tpu.memory_space<vmem>>, vector<1x8x128xf32>
    %479 = vector.shape_cast %478 : vector<1x8x128xf32> to vector<8x128xf32>
    %480 = vector.shape_cast %477 : vector<8x128xf32> to vector<1x8x128xf32>
    tpu.vector_store %arg11[%c4_166, %c0_167, %c0_168], %480 {strides = array<i32>} : memref<8x8x128xf32, #tpu.memory_space<vmem>>, vector<1x8x128xf32>,
    %c7 = arith.constant 7 : index
    %c0_169 = arith.constant 0 : index
    %c0_170 = arith.constant 0 : index
    %481 = vector.load %arg14[%c7, %c0_169, %c0_170] : memref<8x8x512xf32, #tpu.memory_space<vmem>>, vector<1x8x512xf32>
    %482 = vector.shape_cast %481 : vector<1x8x512xf32> to vector<8x512xf32>
    %483 = arith.truncf %426 : vector<8x128xf32> to vector<8x128xbf16>
    %c0_171 = arith.constant 0 : index
    %c0_172 = arith.constant 0 : index
    %484 = vector.load %arg4[%c0_171, %c0_172] : memref<128x512xbf16, #tpu.memory_space<vmem>>, vector<128x512xbf16>
    %cst_173 = arith.constant dense<0.000000e+00> : vector<8x512xf32>
    %485 = tpu.matmul %483, %484, %cst_173 {dimension_numbers = #tpu.dot_dimension_numbers<[1], [0], [0], [1], [0, 0, 1, 1], [], []>} : vector<8x128xbf16>, vector<128x512xbf16>, vector<8x512xf32> -> vector<8x512xf32>
    %486 = arith.addf %482, %485 : vector<8x512xf32>
    %487 = vector.extract_strided_slice %486 {offsets = [0, 0], sizes = [8, 384], strides = [1, 1]} : vector<8x512xf32> to vector<8x384xf32>
    %488 = arith.negf %487 : vector<8x384xf32>
    %489 = math.exp %488 : vector<8x384xf32>
    %cst_174 = arith.constant 1.000000e+00 : f32
    %490 = vector.broadcast %cst_174 : f32 to vector<8x384xf32>
    %491 = arith.addf %490, %489 : vector<8x384xf32>
    %492 = arith.divf %490, %491 : vector<8x384xf32>
    %493 = vector.extract_strided_slice %492 {offsets = [0, 0], sizes = [8, 128], strides = [1, 1]} : vector<8x384xf32> to vector<8x128xf32>
    %494 = vector.extract_strided_slice %492 {offsets = [0, 128], sizes = [8, 128], strides = [1, 1]} : vector<8x384xf32> to vector<8x128xf32>
    %495 = vector.extract_strided_slice %492 {offsets = [0, 256], sizes = [8, 128], strides = [1, 1]} : vector<8x384xf32> to vector<8x128xf32>
    %496 = vector.extract_strided_slice %486 {offsets = [0, 384], sizes = [8, 128], strides = [1, 1]} : vector<8x512xf32> to vector<8x128xf32>
    %497 = math.tanh %496 : vector<8x128xf32>
    %498 = arith.mulf %494, %424 : vector<8x128xf32>
    %499 = arith.mulf %493, %497 : vector<8x128xf32>
    %500 = arith.addf %498, %499 : vector<8x128xf32>
    %501 = math.tanh %500 : vector<8x128xf32>
    %502 = arith.mulf %495, %501 : vector<8x128xf32>
    %503 = tpu.concatenate %426, %449 in 1 : vector<8x128xf32>, vector<8x128xf32> -> vector<8x256xf32>
    %504 = arith.truncf %503 : vector<8x256xf32> to vector<8x256xbf16>
    %c0_175 = arith.constant 0 : index
    %c0_176 = arith.constant 0 : index
    %c0_177 = arith.constant 0 : index
    %505 = vector.load %arg5[%c0_175, %c0_176, %c0_177] : memref<2x256x512xbf16, #tpu.memory_space<vmem>>, vector<1x256x512xbf16>
    %506 = vector.shape_cast %505 : vector<1x256x512xbf16> to vector<256x512xbf16>
    %cst_178 = arith.constant dense<0.000000e+00> : vector<8x512xf32>
    %507 = tpu.matmul %504, %506, %cst_178 {dimension_numbers = #tpu.dot_dimension_numbers<[1], [0], [0], [1], [0, 0, 1, 1], [], []>} : vector<8x256xbf16>, vector<256x512xbf16>, vector<8x512xf32> -> vector<8x512xf32>
    %508 = vector.broadcast %18 : vector<1x512xf32> to vector<8x512xf32>
    %509 = arith.addf %507, %508 : vector<8x512xf32>
    %510 = vector.extract_strided_slice %509 {offsets = [0, 0], sizes = [8, 384], strides = [1, 1]} : vector<8x512xf32> to vector<8x384xf32>
    %511 = arith.negf %510 : vector<8x384xf32>
    %512 = math.exp %511 : vector<8x384xf32>
    %cst_179 = arith.constant 1.000000e+00 : f32
    %513 = vector.broadcast %cst_179 : f32 to vector<8x384xf32>
    %514 = arith.addf %513, %512 : vector<8x384xf32>
    %515 = arith.divf %513, %514 : vector<8x384xf32>
    %516 = vector.extract_strided_slice %515 {offsets = [0, 0], sizes = [8, 128], strides = [1, 1]} : vector<8x384xf32> to vector<8x128xf32>
    %517 = vector.extract_strided_slice %515 {offsets = [0, 128], sizes = [8, 128], strides = [1, 1]} : vector<8x384xf32> to vector<8x128xf32>
    %518 = vector.extract_strided_slice %515 {offsets = [0, 256], sizes = [8, 128], strides = [1, 1]} : vector<8x384xf32> to vector<8x128xf32>
    %519 = vector.extract_strided_slice %509 {offsets = [0, 384], sizes = [8, 128], strides = [1, 1]} : vector<8x512xf32> to vector<8x128xf32>
    %520 = math.tanh %519 : vector<8x128xf32>
    %521 = arith.mulf %517, %447 : vector<8x128xf32>
    %522 = arith.mulf %516, %520 : vector<8x128xf32>
    %523 = arith.addf %521, %522 : vector<8x128xf32>
    %524 = math.tanh %523 : vector<8x128xf32>
    %525 = arith.mulf %518, %524 : vector<8x128xf32>
    %526 = tpu.concatenate %449, %472 in 1 : vector<8x128xf32>, vector<8x128xf32> -> vector<8x256xf32>
    %527 = arith.truncf %526 : vector<8x256xf32> to vector<8x256xbf16>
    %c1_180 = arith.constant 1 : index
    %c0_181 = arith.constant 0 : index
    %c0_182 = arith.constant 0 : index
    %528 = vector.load %arg5[%c1_180, %c0_181, %c0_182] : memref<2x256x512xbf16, #tpu.memory_space<vmem>>, vector<1x256x512xbf16>
    %529 = vector.shape_cast %528 : vector<1x256x512xbf16> to vector<256x512xbf16>
    %cst_183 = arith.constant dense<0.000000e+00> : vector<8x512xf32>
    %530 = tpu.matmul %527, %529, %cst_183 {dimension_numbers = #tpu.dot_dimension_numbers<[1], [0], [0], [1], [0, 0, 1, 1], [], []>} : vector<8x256xbf16>, vector<256x512xbf16>, vector<8x512xf32> -> vector<8x512xf32>
    %531 = vector.broadcast %20 : vector<1x512xf32> to vector<8x512xf32>
    %532 = arith.addf %530, %531 : vector<8x512xf32>
    %533 = vector.extract_strided_slice %532 {offsets = [0, 0], sizes = [8, 384], strides = [1, 1]} : vector<8x512xf32> to vector<8x384xf32>
    %534 = arith.negf %533 : vector<8x384xf32>
    %535 = math.exp %534 : vector<8x384xf32>
    %cst_184 = arith.constant 1.000000e+00 : f32
    %536 = vector.broadcast %cst_184 : f32 to vector<8x384xf32>
    %537 = arith.addf %536, %535 : vector<8x384xf32>
    %538 = arith.divf %536, %537 : vector<8x384xf32>
    %539 = vector.extract_strided_slice %538 {offsets = [0, 0], sizes = [8, 128], strides = [1, 1]} : vector<8x384xf32> to vector<8x128xf32>
    %540 = vector.extract_strided_slice %538 {offsets = [0, 128], sizes = [8, 128], strides = [1, 1]} : vector<8x384xf32> to vector<8x128xf32>
    %541 = vector.extract_strided_slice %538 {offsets = [0, 256], sizes = [8, 128], strides = [1, 1]} : vector<8x384xf32> to vector<8x128xf32>
    %542 = vector.extract_strided_slice %532 {offsets = [0, 384], sizes = [8, 128], strides = [1, 1]} : vector<8x512xf32> to vector<8x128xf32>
    %543 = math.tanh %542 : vector<8x128xf32>
    %544 = arith.mulf %540, %470 : vector<8x128xf32>
    %545 = arith.mulf %539, %543 : vector<8x128xf32>
    %546 = arith.addf %544, %545 : vector<8x128xf32>
    %547 = math.tanh %546 : vector<8x128xf32>
    %548 = arith.mulf %541, %547 : vector<8x128xf32>
    %549 = arith.truncf %548 : vector<8x128xf32> to vector<8x128xbf16>
    %c0_185 = arith.constant 0 : index
    %c0_186 = arith.constant 0 : index
    %550 = vector.load %arg7[%c0_185, %c0_186] : memref<128x128xbf16, #tpu.memory_space<vmem>>, vector<128x128xbf16>
    %cst_187 = arith.constant dense<0.000000e+00> : vector<8x128xf32>
    %551 = tpu.matmul %549, %550, %cst_187 {dimension_numbers = #tpu.dot_dimension_numbers<[1], [0], [0], [1], [0, 0, 1, 1], [], []>} : vector<8x128xbf16>, vector<128x128xbf16>, vector<8x128xf32> -> vector<8x128xf32>
    %552 = vector.broadcast %21 : vector<1x128xf32> to vector<8x128xf32>
    %553 = arith.addf %551, %552 : vector<8x128xf32>
    %c5_188 = arith.constant 5 : index
    %c0_189 = arith.constant 0 : index
    %c0_190 = arith.constant 0 : index
    %554 = vector.load %arg11[%c5_188, %c0_189, %c0_190] : memref<8x8x128xf32, #tpu.memory_space<vmem>>, vector<1x8x128xf32>
    %555 = vector.shape_cast %554 : vector<1x8x128xf32> to vector<8x128xf32>
    %556 = vector.shape_cast %553 : vector<8x128xf32> to vector<1x8x128xf32>
    tpu.vector_store %arg11[%c5_188, %c0_189, %c0_190], %556 {strides = array<i32>} : memref<8x8x128xf32, #tpu.memory_space<vmem>>, vector<1x8x128xf32>,
    %557 = tpu.concatenate %502, %525 in 1 : vector<8x128xf32>, vector<8x128xf32> -> vector<8x256xf32>
    %558 = arith.truncf %557 : vector<8x256xf32> to vector<8x256xbf16>
    %c0_191 = arith.constant 0 : index
    %c0_192 = arith.constant 0 : index
    %c0_193 = arith.constant 0 : index
    %559 = vector.load %arg5[%c0_191, %c0_192, %c0_193] : memref<2x256x512xbf16, #tpu.memory_space<vmem>>, vector<1x256x512xbf16>
    %560 = vector.shape_cast %559 : vector<1x256x512xbf16> to vector<256x512xbf16>
    %cst_194 = arith.constant dense<0.000000e+00> : vector<8x512xf32>
    %561 = tpu.matmul %558, %560, %cst_194 {dimension_numbers = #tpu.dot_dimension_numbers<[1], [0], [0], [1], [0, 0, 1, 1], [], []>} : vector<8x256xbf16>, vector<256x512xbf16>, vector<8x512xf32> -> vector<8x512xf32>
    %562 = vector.broadcast %18 : vector<1x512xf32> to vector<8x512xf32>
    %563 = arith.addf %561, %562 : vector<8x512xf32>
    %564 = vector.extract_strided_slice %563 {offsets = [0, 0], sizes = [8, 384], strides = [1, 1]} : vector<8x512xf32> to vector<8x384xf32>
    %565 = arith.negf %564 : vector<8x384xf32>
    %566 = math.exp %565 : vector<8x384xf32>
    %cst_195 = arith.constant 1.000000e+00 : f32
    %567 = vector.broadcast %cst_195 : f32 to vector<8x384xf32>
    %568 = arith.addf %567, %566 : vector<8x384xf32>
    %569 = arith.divf %567, %568 : vector<8x384xf32>
    %570 = vector.extract_strided_slice %569 {offsets = [0, 0], sizes = [8, 128], strides = [1, 1]} : vector<8x384xf32> to vector<8x128xf32>
    %571 = vector.extract_strided_slice %569 {offsets = [0, 128], sizes = [8, 128], strides = [1, 1]} : vector<8x384xf32> to vector<8x128xf32>
    %572 = vector.extract_strided_slice %569 {offsets = [0, 256], sizes = [8, 128], strides = [1, 1]} : vector<8x384xf32> to vector<8x128xf32>
    %573 = vector.extract_strided_slice %563 {offsets = [0, 384], sizes = [8, 128], strides = [1, 1]} : vector<8x512xf32> to vector<8x128xf32>
    %574 = math.tanh %573 : vector<8x128xf32>
    %575 = arith.mulf %571, %523 : vector<8x128xf32>
    %576 = arith.mulf %570, %574 : vector<8x128xf32>
    %577 = arith.addf %575, %576 : vector<8x128xf32>
    %578 = math.tanh %577 : vector<8x128xf32>
    %579 = arith.mulf %572, %578 : vector<8x128xf32>
    %580 = tpu.concatenate %525, %548 in 1 : vector<8x128xf32>, vector<8x128xf32> -> vector<8x256xf32>
    %581 = arith.truncf %580 : vector<8x256xf32> to vector<8x256xbf16>
    %c1_196 = arith.constant 1 : index
    %c0_197 = arith.constant 0 : index
    %c0_198 = arith.constant 0 : index
    %582 = vector.load %arg5[%c1_196, %c0_197, %c0_198] : memref<2x256x512xbf16, #tpu.memory_space<vmem>>, vector<1x256x512xbf16>
    %583 = vector.shape_cast %582 : vector<1x256x512xbf16> to vector<256x512xbf16>
    %cst_199 = arith.constant dense<0.000000e+00> : vector<8x512xf32>
    %584 = tpu.matmul %581, %583, %cst_199 {dimension_numbers = #tpu.dot_dimension_numbers<[1], [0], [0], [1], [0, 0, 1, 1], [], []>} : vector<8x256xbf16>, vector<256x512xbf16>, vector<8x512xf32> -> vector<8x512xf32>
    %585 = vector.broadcast %20 : vector<1x512xf32> to vector<8x512xf32>
    %586 = arith.addf %584, %585 : vector<8x512xf32>
    %587 = vector.extract_strided_slice %586 {offsets = [0, 0], sizes = [8, 384], strides = [1, 1]} : vector<8x512xf32> to vector<8x384xf32>
    %588 = arith.negf %587 : vector<8x384xf32>
    %589 = math.exp %588 : vector<8x384xf32>
    %cst_200 = arith.constant 1.000000e+00 : f32
    %590 = vector.broadcast %cst_200 : f32 to vector<8x384xf32>
    %591 = arith.addf %590, %589 : vector<8x384xf32>
    %592 = arith.divf %590, %591 : vector<8x384xf32>
    %593 = vector.extract_strided_slice %592 {offsets = [0, 0], sizes = [8, 128], strides = [1, 1]} : vector<8x384xf32> to vector<8x128xf32>
    %594 = vector.extract_strided_slice %592 {offsets = [0, 128], sizes = [8, 128], strides = [1, 1]} : vector<8x384xf32> to vector<8x128xf32>
    %595 = vector.extract_strided_slice %592 {offsets = [0, 256], sizes = [8, 128], strides = [1, 1]} : vector<8x384xf32> to vector<8x128xf32>
    %596 = vector.extract_strided_slice %586 {offsets = [0, 384], sizes = [8, 128], strides = [1, 1]} : vector<8x512xf32> to vector<8x128xf32>
    %597 = math.tanh %596 : vector<8x128xf32>
    %598 = arith.mulf %594, %546 : vector<8x128xf32>
    %599 = arith.mulf %593, %597 : vector<8x128xf32>
    %600 = arith.addf %598, %599 : vector<8x128xf32>
    %601 = math.tanh %600 : vector<8x128xf32>
    %602 = arith.mulf %595, %601 : vector<8x128xf32>
    %603 = arith.truncf %602 : vector<8x128xf32> to vector<8x128xbf16>
    %c0_201 = arith.constant 0 : index
    %c0_202 = arith.constant 0 : index
    %604 = vector.load %arg7[%c0_201, %c0_202] : memref<128x128xbf16, #tpu.memory_space<vmem>>, vector<128x128xbf16>
    %cst_203 = arith.constant dense<0.000000e+00> : vector<8x128xf32>
    %605 = tpu.matmul %603, %604, %cst_203 {dimension_numbers = #tpu.dot_dimension_numbers<[1], [0], [0], [1], [0, 0, 1, 1], [], []>} : vector<8x128xbf16>, vector<128x128xbf16>, vector<8x128xf32> -> vector<8x128xf32>
    %606 = vector.broadcast %21 : vector<1x128xf32> to vector<8x128xf32>
    %607 = arith.addf %605, %606 : vector<8x128xf32>
    %c6_204 = arith.constant 6 : index
    %c0_205 = arith.constant 0 : index
    %c0_206 = arith.constant 0 : index
    %608 = vector.load %arg11[%c6_204, %c0_205, %c0_206] : memref<8x8x128xf32, #tpu.memory_space<vmem>>, vector<1x8x128xf32>
    %609 = vector.shape_cast %608 : vector<1x8x128xf32> to vector<8x128xf32>
    %610 = vector.shape_cast %607 : vector<8x128xf32> to vector<1x8x128xf32>
    tpu.vector_store %arg11[%c6_204, %c0_205, %c0_206], %610 {strides = array<i32>} : memref<8x8x128xf32, #tpu.memory_space<vmem>>, vector<1x8x128xf32>,
    %611 = tpu.concatenate %579, %602 in 1 : vector<8x128xf32>, vector<8x128xf32> -> vector<8x256xf32>
    %612 = arith.truncf %611 : vector<8x256xf32> to vector<8x256xbf16>
    %c1_207 = arith.constant 1 : index
    %c0_208 = arith.constant 0 : index
    %c0_209 = arith.constant 0 : index
    %613 = vector.load %arg5[%c1_207, %c0_208, %c0_209] : memref<2x256x512xbf16, #tpu.memory_space<vmem>>, vector<1x256x512xbf16>
    %614 = vector.shape_cast %613 : vector<1x256x512xbf16> to vector<256x512xbf16>
    %cst_210 = arith.constant dense<0.000000e+00> : vector<8x512xf32>
    %615 = tpu.matmul %612, %614, %cst_210 {dimension_numbers = #tpu.dot_dimension_numbers<[1], [0], [0], [1], [0, 0, 1, 1], [], []>} : vector<8x256xbf16>, vector<256x512xbf16>, vector<8x512xf32> -> vector<8x512xf32>
    %616 = vector.broadcast %20 : vector<1x512xf32> to vector<8x512xf32>
    %617 = arith.addf %615, %616 : vector<8x512xf32>
    %618 = vector.extract_strided_slice %617 {offsets = [0, 0], sizes = [8, 384], strides = [1, 1]} : vector<8x512xf32> to vector<8x384xf32>
    %619 = arith.negf %618 : vector<8x384xf32>
    %620 = math.exp %619 : vector<8x384xf32>
    %cst_211 = arith.constant 1.000000e+00 : f32
    %621 = vector.broadcast %cst_211 : f32 to vector<8x384xf32>
    %622 = arith.addf %621, %620 : vector<8x384xf32>
    %623 = arith.divf %621, %622 : vector<8x384xf32>
    %624 = vector.extract_strided_slice %623 {offsets = [0, 0], sizes = [8, 128], strides = [1, 1]} : vector<8x384xf32> to vector<8x128xf32>
    %625 = vector.extract_strided_slice %623 {offsets = [0, 128], sizes = [8, 128], strides = [1, 1]} : vector<8x384xf32> to vector<8x128xf32>
    %626 = vector.extract_strided_slice %623 {offsets = [0, 256], sizes = [8, 128], strides = [1, 1]} : vector<8x384xf32> to vector<8x128xf32>
    %627 = vector.extract_strided_slice %617 {offsets = [0, 384], sizes = [8, 128], strides = [1, 1]} : vector<8x512xf32> to vector<8x128xf32>
    %628 = math.tanh %627 : vector<8x128xf32>
    %629 = arith.mulf %625, %600 : vector<8x128xf32>
    %630 = arith.mulf %624, %628 : vector<8x128xf32>
    %631 = arith.addf %629, %630 : vector<8x128xf32>
    %632 = math.tanh %631 : vector<8x128xf32>
    %633 = arith.mulf %626, %632 : vector<8x128xf32>
    %634 = arith.truncf %633 : vector<8x128xf32> to vector<8x128xbf16>
    %c0_212 = arith.constant 0 : index
    %c0_213 = arith.constant 0 : index
    %635 = vector.load %arg7[%c0_212, %c0_213] : memref<128x128xbf16, #tpu.memory_space<vmem>>, vector<128x128xbf16>
    %cst_214 = arith.constant dense<0.000000e+00> : vector<8x128xf32>
    %636 = tpu.matmul %634, %635, %cst_214 {dimension_numbers = #tpu.dot_dimension_numbers<[1], [0], [0], [1], [0, 0, 1, 1], [], []>} : vector<8x128xbf16>, vector<128x128xbf16>, vector<8x128xf32> -> vector<8x128xf32>
    %637 = vector.broadcast %21 : vector<1x128xf32> to vector<8x128xf32>
    %638 = arith.addf %636, %637 : vector<8x128xf32>
    %c7_215 = arith.constant 7 : index
    %c0_216 = arith.constant 0 : index
    %c0_217 = arith.constant 0 : index
    %639 = vector.load %arg11[%c7_215, %c0_216, %c0_217] : memref<8x8x128xf32, #tpu.memory_space<vmem>>, vector<1x8x128xf32>
    %640 = vector.shape_cast %639 : vector<1x8x128xf32> to vector<8x128xf32>
    %641 = vector.shape_cast %638 : vector<8x128xf32> to vector<1x8x128xf32>
    tpu.vector_store %arg11[%c7_215, %c0_216, %c0_217], %641 {strides = array<i32>} : memref<8x8x128xf32, #tpu.memory_space<vmem>>, vector<1x8x128xf32>,
    %c0_218 = arith.constant 0 : index
    %c0_219 = arith.constant 0 : index
    %c0_220 = arith.constant 0 : index
    %642 = vector.load %arg12[%c0_218, %c0_219, %c0_220] : memref<3x8x128xf32, #tpu.memory_space<vmem>>, vector<1x8x128xf32>
    %643 = vector.shape_cast %642 : vector<1x8x128xf32> to vector<8x128xf32>
    %644 = vector.shape_cast %502 : vector<8x128xf32> to vector<1x8x128xf32>
    tpu.vector_store %arg12[%c0_218, %c0_219, %c0_220], %644 {strides = array<i32>} : memref<3x8x128xf32, #tpu.memory_space<vmem>>, vector<1x8x128xf32>,
    %c0_221 = arith.constant 0 : index
    %c0_222 = arith.constant 0 : index
    %c0_223 = arith.constant 0 : index
    %645 = vector.load %arg13[%c0_221, %c0_222, %c0_223] : memref<3x8x128xf32, #tpu.memory_space<vmem>>, vector<1x8x128xf32>
    %646 = vector.shape_cast %645 : vector<1x8x128xf32> to vector<8x128xf32>
    %647 = vector.shape_cast %500 : vector<8x128xf32> to vector<1x8x128xf32>
    tpu.vector_store %arg13[%c0_221, %c0_222, %c0_223], %647 {strides = array<i32>} : memref<3x8x128xf32, #tpu.memory_space<vmem>>, vector<1x8x128xf32>,
    %c1_224 = arith.constant 1 : index
    %c0_225 = arith.constant 0 : index
    %c0_226 = arith.constant 0 : index
    %648 = vector.load %arg12[%c1_224, %c0_225, %c0_226] : memref<3x8x128xf32, #tpu.memory_space<vmem>>, vector<1x8x128xf32>
    %649 = vector.shape_cast %648 : vector<1x8x128xf32> to vector<8x128xf32>
    %650 = vector.shape_cast %579 : vector<8x128xf32> to vector<1x8x128xf32>
    tpu.vector_store %arg12[%c1_224, %c0_225, %c0_226], %650 {strides = array<i32>} : memref<3x8x128xf32, #tpu.memory_space<vmem>>, vector<1x8x128xf32>,
    %c1_227 = arith.constant 1 : index
    %c0_228 = arith.constant 0 : index
    %c0_229 = arith.constant 0 : index
    %651 = vector.load %arg13[%c1_227, %c0_228, %c0_229] : memref<3x8x128xf32, #tpu.memory_space<vmem>>, vector<1x8x128xf32>
    %652 = vector.shape_cast %651 : vector<1x8x128xf32> to vector<8x128xf32>
    %653 = vector.shape_cast %577 : vector<8x128xf32> to vector<1x8x128xf32>
    tpu.vector_store %arg13[%c1_227, %c0_228, %c0_229], %653 {strides = array<i32>} : memref<3x8x128xf32, #tpu.memory_space<vmem>>, vector<1x8x128xf32>,
    %c2_230 = arith.constant 2 : index
    %c0_231 = arith.constant 0 : index
    %c0_232 = arith.constant 0 : index
    %654 = vector.load %arg12[%c2_230, %c0_231, %c0_232] : memref<3x8x128xf32, #tpu.memory_space<vmem>>, vector<1x8x128xf32>
    %655 = vector.shape_cast %654 : vector<1x8x128xf32> to vector<8x128xf32>
    %656 = vector.shape_cast %633 : vector<8x128xf32> to vector<1x8x128xf32>
    tpu.vector_store %arg12[%c2_230, %c0_231, %c0_232], %656 {strides = array<i32>} : memref<3x8x128xf32, #tpu.memory_space<vmem>>, vector<1x8x128xf32>,
    %c2_233 = arith.constant 2 : index
    %c0_234 = arith.constant 0 : index
    %c0_235 = arith.constant 0 : index
    %657 = vector.load %arg13[%c2_233, %c0_234, %c0_235] : memref<3x8x128xf32, #tpu.memory_space<vmem>>, vector<1x8x128xf32>
    %658 = vector.shape_cast %657 : vector<1x8x128xf32> to vector<8x128xf32>
    %659 = vector.shape_cast %631 : vector<8x128xf32> to vector<1x8x128xf32>
    tpu.vector_store %arg13[%c2_233, %c0_234, %c0_235], %659 {strides = array<i32>} : memref<3x8x128xf32, #tpu.memory_space<vmem>>, vector<1x8x128xf32>,
    return
  }
}

</mosaic_0001>

<llo_original>
// kernel: olstm_forward.1
$region0: #{olstm_forward.1}
  #allocation0 [shape = 'u32[]', space=smem, size = 0x4, offset = 0x4, fixed_abs, tag = 'smem constant byte address 0x4 - core index']
  #allocation1 [shape = 'u32[72,128]{1,0:T(1,128)}', space=vmem, size = 0x9000, scoped, tag = 'internal scratch']
  #allocation2 [shape = 'f32[8,8,512]{2,1,0:T(8,128)}', space=vmem, size = 0x20000, scoped, tag = 'scratch operand']
  %s0 = inlined_call_operand.vmem [shape: bf16[64,8], index: 0, kind: input, shape index: {}]
  %s1 = inlined_call_operand.vmem [shape: bf16[8,128], index: 1, kind: input, shape index: {}]
  %s2 = inlined_call_operand.vmem [shape: f32[1,128], index: 2, kind: input, shape index: {}]
  %s3 = inlined_call_operand.hbm [shape: bf16[128,512], index: 3, kind: input, shape index: {}]
  %s4 = inlined_call_operand.hbm [shape: bf16[128,512], index: 4, kind: input, shape index: {}]
  %s5 = inlined_call_operand.hbm [shape: bf16[2,256,512], index: 5, kind: input, shape index: {}]
  %s6 = inlined_call_operand.vmem [shape: f32[3,1,512], index: 6, kind: input, shape index: {}]
  %s7 = inlined_call_operand.vmem [shape: bf16[128,128], index: 7, kind: input, shape index: {}]
  %s8 = inlined_call_operand.vmem [shape: f32[1,128], index: 8, kind: input, shape index: {}]
  %s9 = inlined_call_operand.vmem [shape: f32[3,8,128], index: 9, kind: input, shape index: {}]
  %s10 = inlined_call_operand.vmem [shape: f32[3,8,128], index: 10, kind: input, shape index: {}]
  %s11 = inlined_call_operand.vmem [shape: f32[8,8,128], index: 11, kind: output, shape index: {0}]
  %s12 = inlined_call_operand.vmem [shape: f32[3,8,128], index: 12, kind: output, shape index: {1}]
  %s13 = inlined_call_operand.vmem [shape: f32[3,8,128], index: 13, kind: output, shape index: {2}]
  %14 = xla_tuple %s11, %s12, %s13
  %s15 = sld [smem:[#allocation0]]
  $region82: #{olstm_forward.1} parent=0
    _
  %s17 = ssub.s32 1, %s15
  %s18 = scalar_select 0, %s17, %s15
  $region1: #{olstm_forward.1} parent=0
    #allocation3 [shape = 'u8[131072]{0}', space=vmem, size = 0x20000, scoped, tag = 'input window, operand 3, single buffered']
    #allocation4 [shape = 's32[1]{0}', space=sflag, size = 0x4, scoped, tag = 'scoped memory for olstm_forward.1']
    #allocation5 [shape = 'u8[131072]{0}', space=vmem, size = 0x20000, scoped, tag = 'input window, operand 4, single buffered']
    #allocation6 [shape = 's32[1]{0}', space=sflag, size = 0x4, scoped, tag = 'scoped memory for olstm_forward.1']
    #allocation7 [shape = 'u8[524288]{0}', space=vmem, size = 0x80000, scoped, tag = 'input window, operand 5, single buffered']
    %19 = vsyncpa [#allocation4], 0
    %20 = vsyncpa [#allocation6], 0
    // Predicated region
    $region2: #{olstm_forward.1} parent=1 // pred_check
      _
    $region3: #{olstm_forward.1} parent=1 // pred_check_branch
      %22 = sbr.rel (0) target = $region5
    $region4: #{olstm_forward.1} parent=1 // pred_region
      _
    $region5: #{olstm_forward.1} parent=1 // pred_fallthru
      _
    // Predicated region
    $region6: #{olstm_forward.1} parent=1 // pred_check
      _
    $region7: #{olstm_forward.1} parent=1 // pred_check_branch
      %24 = sbr.rel (0) target = $region9
    $region8: #{olstm_forward.1} parent=1 // pred_region
      _
    $region9: #{olstm_forward.1} parent=1 // pred_fallthru
      _
    // Predicated region
    $region10: #{olstm_forward.1} parent=1 // pred_check
      _
    $region11: #{olstm_forward.1} parent=1 // pred_check_branch
      %26 = sbr.rel (0) target = $region13
    $region12: #{olstm_forward.1} parent=1 // pred_region
      _
    $region13: #{olstm_forward.1} parent=1 // pred_fallthru
      _
    // Predicated region
    $region14: #{olstm_forward.1} parent=1 // pred_check
      _
    $region15: #{olstm_forward.1} parent=1 // pred_check_branch
      %28 = sbr.rel (0) target = $region17
    $region16: #{olstm_forward.1} parent=1 // pred_region
      %30 = vsyncadd [#allocation4], 0
      %s31 = sshll.u32 %s3, 4
      %s32 = int_to_ptr.hbm [resolvable:$true] %s31
      %s33 = sshll.u32 [#allocation3], 4
      %s34 = int_to_ptr.vmem [resolvable:$true] %s33
      %39 = dma.hbm_to_vmem [thread:$0]  %s32, 4096, %s34, [#allocation4], 256, 256, 16
    $region17: #{olstm_forward.1} parent=1 // pred_fallthru
      _
    // Predicated region
    $region18: #{olstm_forward.1} parent=1 // pred_check
      _
    $region19: #{olstm_forward.1} parent=1 // pred_check_branch
      %41 = sbr.rel (0) target = $region21
    $region20: #{olstm_forward.1} parent=1 // pred_region
      %43 = vsyncadd [#allocation6], 0
      %s44 = sshll.u32 %s4, 4
      %s45 = int_to_ptr.hbm [resolvable:$true] %s44
      %s46 = sshll.u32 [#allocation5], 4
      %s47 = int_to_ptr.vmem [resolvable:$true] %s46
      %52 = dma.hbm_to_vmem [thread:$0]  %s45, 4096, %s47, [#allocation6], 256, 256, 16
    $region21: #{olstm_forward.1} parent=1 // pred_fallthru
      _
    // Predicated region
    $region22: #{olstm_forward.1} parent=1 // pred_check
      _
    $region23: #{olstm_forward.1} parent=1 // pred_check_branch
      %54 = sbr.rel (0) target = $region25
    $region24: #{olstm_forward.1} parent=1 // pred_region
      %56 = vsyncadd [#allocation6], 0
      %s57 = sshll.u32 %s5, 4
      %s58 = int_to_ptr.hbm [resolvable:$true] %s57
      %s59 = sshll.u32 [#allocation7], 4
      %s60 = int_to_ptr.vmem [resolvable:$true] %s59
      %65 = dma.hbm_to_vmem [thread:$0]  %s58, 16384, %s60, [#allocation6], 256, 256, 16
    $region25: #{olstm_forward.1} parent=1 // pred_fallthru
      _
    // Predicated region
    $region26: #{olstm_forward.1} parent=1 // pred_check
      _
    $region27: #{olstm_forward.1} parent=1 // pred_check_branch
      %67 = sbr.rel (0) target = $region29
    $region28: #{olstm_forward.1} parent=1 // pred_region
      _
    $region29: #{olstm_forward.1} parent=1 // pred_fallthru
      _
    // Predicated region
    $region30: #{olstm_forward.1} parent=1 // pred_check
      _
    $region31: #{olstm_forward.1} parent=1 // pred_check_branch
      %69 = sbr.rel (0) target = $region33
    $region32: #{olstm_forward.1} parent=1 // pred_region
      _
    $region33: #{olstm_forward.1} parent=1 // pred_fallthru
      _
    // Predicated region
    $region34: #{olstm_forward.1} parent=1 // pred_check
      _
    $region35: #{olstm_forward.1} parent=1 // pred_check_branch
      %71 = sbr.rel (0) target = $region37
    $region36: #{olstm_forward.1} parent=1 // pred_region
      _
    $region37: #{olstm_forward.1} parent=1 // pred_fallthru
      _
    // Predicated region
    $region38: #{olstm_forward.1} parent=1 // pred_check
      _
    $region39: #{olstm_forward.1} parent=1 // pred_check_branch
      %73 = sbr.rel (0) target = $region41
    $region40: #{olstm_forward.1} parent=1 // pred_region
      _
    $region41: #{olstm_forward.1} parent=1 // pred_fallthru
      _
    // Predicated region
    $region42: #{olstm_forward.1} parent=1 // pred_check
      _
    $region43: #{olstm_forward.1} parent=1 // pred_check_branch
      %75 = sbr.rel (0) target = $region45
    $region44: #{olstm_forward.1} parent=1 // pred_region
      _
    $region45: #{olstm_forward.1} parent=1 // pred_fallthru
      _
    // Predicated region
    $region46: #{olstm_forward.1} parent=1 // pred_check
      _
    $region47: #{olstm_forward.1} parent=1 // pred_check_branch
      %77 = sbr.rel (0) target = $region49
    $region48: #{olstm_forward.1} parent=1 // pred_region
      %79 = dma.done [#allocation4], 4096
    $region49: #{olstm_forward.1} parent=1 // pred_fallthru
      _
    // Predicated region
    $region50: #{olstm_forward.1} parent=1 // pred_check
      _
    $region51: #{olstm_forward.1} parent=1 // pred_check_branch
      %81 = sbr.rel (0) target = $region53
    $region52: #{olstm_forward.1} parent=1 // pred_region
      %83 = dma.done [#allocation6], 4096
    $region53: #{olstm_forward.1} parent=1 // pred_fallthru
      _
    // Predicated region
    $region54: #{olstm_forward.1} parent=1 // pred_check
      _
    $region55: #{olstm_forward.1} parent=1 // pred_check_branch
      %85 = sbr.rel (0) target = $region57
    $region56: #{olstm_forward.1} parent=1 // pred_region
      %87 = dma.done [#allocation6], 16384
    $region57: #{olstm_forward.1} parent=1 // pred_fallthru
      _
    %v89 = vld [vmem:[%s0] sm:$0xf]
    %v90 = vld [vmem:[%s0 + $0x4] sm:$0xf]
    %v91 = vld [vmem:[%s0 + $0x8] sm:$0xf]
    %v92 = vld [vmem:[%s0 + $0xc] sm:$0xf]
    %v93 = vld [vmem:[%s0 + $0x10] sm:$0xf]
    %v94 = vld [vmem:[%s0 + $0x14] sm:$0xf]
    %v95 = vld [vmem:[%s0 + $0x18] sm:$0xf]
    %v96 = vld [vmem:[%s0 + $0x1c] sm:$0xf]
    %v97 = vld [vmem:[%s1] sm:$0xf]
    %v98 = vld [vmem:[%s2] sm:$0x1]
    %v100 = vperm.slane %v98, 0
    %v110 = vunpack.c.l.b16 %v89
    %v111 = vunpack.c.l.b16 %v90
    %v112 = vunpack.c.l.b16 %v91
    %v113 = vunpack.c.l.b16 %v92
    %v114 = vunpack.c.l.b16 %v93
    %v115 = vunpack.c.l.b16 %v94
    %v116 = vunpack.c.l.b16 %v95
    %v117 = vunpack.c.l.b16 %v96
    %v118 = vpack.c.b16 %v111, %v110
    %v119 = vpack.c.b16 %v113, %v112
    %v120 = vpack.c.b16 %v115, %v114
    %v121 = vpack.c.b16 %v117, %v116
    %vm122 = vcmask 64512
    %v124 = vsel %vm122, %v118, 0
    %v127 = vsel %vm122, %v119, 0
    %v130 = vsel %vm122, %v120, 0
    %v133 = vsel %vm122, %v121, 0
    %vm135 = vcmask 1043456
    %v137 = vsel %vm135, %v97, 0
    %139 = vmatpush.bf16.msra.mxu0 0
    %140 = vmatpush.bf16.msra.mxu0 0
    %141 = vmatpush.bf16.msra.mxu0 0
    %142 = vmatpush.bf16.msra.mxu0 0
    %143 = vmatpush.bf16.msra.mxu0 0
    %144 = vmatpush.bf16.msra.mxu0 0
    %145 = vmatpush.bf16.msra.mxu0 0
    %146 = vmatpush.bf16.msra.mxu0 %v137
    %147 = vmatmul.bf16.gmra.mxu0 %v124
    %v148 = vpop.f32.mrf.mxu0
    %v149 = vadd.f32 %v100, %v148
    %v150 = vpop.f32.mrf.mxu0
    %v151 = vadd.f32 %v100, %v150
    %152 = vmatmul.bf16.gmra.mxu0 %v127
    %v153 = vpop.f32.mrf.mxu0
    %v154 = vadd.f32 %v100, %v153
    %v155 = vpop.f32.mrf.mxu0
    %v156 = vadd.f32 %v100, %v155
    %157 = vmatmul.bf16.gmra.mxu0 %v130
    %v158 = vpop.f32.mrf.mxu0
    %v159 = vadd.f32 %v100, %v158
    %v160 = vpop.f32.mrf.mxu0
    %v161 = vadd.f32 %v100, %v160
    %162 = vmatmul.bf16.gmra.mxu0 %v133
    %v163 = vpop.f32.mrf.mxu0
    %v164 = vadd.f32 %v100, %v163
    %v165 = vpop.f32.mrf.mxu0
    %v166 = vadd.f32 %v100, %v165
    %167 = vdwg.mxu0
    %v168 = vmax.f32 %v149, 0.0
    %v169 = vmax.f32 %v151, 0.0
    %v170 = vmax.f32 %v154, 0.0
    %v171 = vmax.f32 %v156, 0.0
    %v172 = vmax.f32 %v159, 0.0
    %v173 = vmax.f32 %v161, 0.0
    %v174 = vmax.f32 %v164, 0.0
    %v175 = vmax.f32 %v166, 0.0
    %v176 = vpack.c.bf16 %v169, %v168
    %v177 = vpack.c.bf16 %v171, %v170
    %v178 = vpack.c.bf16 %v173, %v172
    %v179 = vpack.c.bf16 %v175, %v174
    %v180 = vld [vmem:[#allocation3] sm:$0xff]
    %v181 = vld [vmem:[#allocation3 + $0x8] sm:$0xff]
    %v182 = vld [vmem:[#allocation3 + $0x10] sm:$0xff]
    %v183 = vld [vmem:[#allocation3 + $0x18] sm:$0xff]
    %v184 = vld [vmem:[#allocation3 + $0x20] sm:$0xff]
    %v185 = vld [vmem:[#allocation3 + $0x28] sm:$0xff]
    %v186 = vld [vmem:[#allocation3 + $0x30] sm:$0xff]
    %v187 = vld [vmem:[#allocation3 + $0x38] sm:$0xff]
    %v188 = vld [vmem:[#allocation3 + $0x40] sm:$0xff]
    %v189 = vld [vmem:[#allocation3 + $0x48] sm:$0xff]
    %v190 = vld [vmem:[#allocation3 + $0x50] sm:$0xff]
    %v191 = vld [vmem:[#allocation3 + $0x58] sm:$0xff]
    %v192 = vld [vmem:[#allocation3 + $0x60] sm:$0xff]
    %v193 = vld [vmem:[#allocation3 + $0x68] sm:$0xff]
    %v194 = vld [vmem:[#allocation3 + $0x70] sm:$0xff]
    %v195 = vld [vmem:[#allocation3 + $0x78] sm:$0xff]
    %v196 = vld [vmem:[#allocation3 + $0x80] sm:$0xff]
    %v197 = vld [vmem:[#allocation3 + $0x88] sm:$0xff]
    %v198 = vld [vmem:[#allocation3 + $0x90] sm:$0xff]
    %v199 = vld [vmem:[#allocation3 + $0x98] sm:$0xff]
    %v200 = vld [vmem:[#allocation3 + $0xa0] sm:$0xff]
    %v201 = vld [vmem:[#allocation3 + $0xa8] sm:$0xff]
    %v202 = vld [vmem:[#allocation3 + $0xb0] sm:$0xff]
    %v203 = vld [vmem:[#allocation3 + $0xb8] sm:$0xff]
    %v204 = vld [vmem:[#allocation3 + $0xc0] sm:$0xff]
    %v205 = vld [vmem:[#allocation3 + $0xc8] sm:$0xff]
    %v206 = vld [vmem:[#allocation3 + $0xd0] sm:$0xff]
    %v207 = vld [vmem:[#allocation3 + $0xd8] sm:$0xff]
    %v208 = vld [vmem:[#allocation3 + $0xe0] sm:$0xff]
    %v209 = vld [vmem:[#allocation3 + $0xe8] sm:$0xff]
    %v210 = vld [vmem:[#allocation3 + $0xf0] sm:$0xff]
    %v211 = vld [vmem:[#allocation3 + $0xf8] sm:$0xff]
    %v212 = vld [vmem:[%s6] sm:$0xf]
    %v214 = vperm.slane %v212, 0
    %v215 = vperm.slane %v212, 1
    %v216 = vperm.slane %v212, 2
    %v217 = vperm.slane %v212, 3
    %v254 = vunpack.c.l.b16 %v180
    %v255 = vunpack.c.h.b16 %v180
    %v256 = vunpack.c.l.b16 %v181
    %v257 = vunpack.c.h.b16 %v181
    %v258 = vunpack.c.l.b16 %v182
    %v259 = vunpack.c.h.b16 %v182
    %v260 = vunpack.c.l.b16 %v183
    %v261 = vunpack.c.h.b16 %v183
    %v262 = vunpack.c.l.b16 %v184
    %v263 = vunpack.c.h.b16 %v184
    %v264 = vunpack.c.l.b16 %v185
    %v265 = vunpack.c.h.b16 %v185
    %v266 = vunpack.c.l.b16 %v186
    %v267 = vunpack.c.h.b16 %v186
    %v268 = vunpack.c.l.b16 %v187
    %v269 = vunpack.c.h.b16 %v187
    %v270 = vunpack.c.l.b16 %v188
    %v271 = vunpack.c.h.b16 %v188
    %v272 = vunpack.c.l.b16 %v189
    %v273 = vunpack.c.h.b16 %v189
    %v274 = vunpack.c.l.b16 %v190
    %v275 = vunpack.c.h.b16 %v190
    %v276 = vunpack.c.l.b16 %v191
    %v277 = vunpack.c.h.b16 %v191
    %v278 = vunpack.c.l.b16 %v192
    %v279 = vunpack.c.h.b16 %v192
    %v280 = vunpack.c.l.b16 %v193
    %v281 = vunpack.c.h.b16 %v193
    %v282 = vunpack.c.l.b16 %v194
    %v283 = vunpack.c.h.b16 %v194
    %v284 = vunpack.c.l.b16 %v195
    %v285 = vunpack.c.h.b16 %v195
    %v286 = vunpack.c.l.b16 %v196
    %v287 = vunpack.c.h.b16 %v196
    %v288 = vunpack.c.l.b16 %v197
    %v289 = vunpack.c.h.b16 %v197
    %v290 = vunpack.c.l.b16 %v198
    %v291 = vunpack.c.h.b16 %v198
    %v292 = vunpack.c.l.b16 %v199
    %v293 = vunpack.c.h.b16 %v199
    %v294 = vunpack.c.l.b16 %v200
    %v295 = vunpack.c.h.b16 %v200
    %v296 = vunpack.c.l.b16 %v201
    %v297 = vunpack.c.h.b16 %v201
    %v298 = vunpack.c.l.b16 %v202
    %v299 = vunpack.c.h.b16 %v202
    %v300 = vunpack.c.l.b16 %v203
    %v301 = vunpack.c.h.b16 %v203
    %v302 = vunpack.c.l.b16 %v204
    %v303 = vunpack.c.h.b16 %v204
    %v304 = vunpack.c.l.b16 %v205
    %v305 = vunpack.c.h.b16 %v205
    %v306 = vunpack.c.l.b16 %v206
    %v307 = vunpack.c.h.b16 %v206
    %v308 = vunpack.c.l.b16 %v207
    %v309 = vunpack.c.h.b16 %v207
    %v310 = vunpack.c.l.b16 %v208
    %v311 = vunpack.c.h.b16 %v208
    %v312 = vunpack.c.l.b16 %v209
    %v313 = vunpack.c.h.b16 %v209
    %v314 = vunpack.c.l.b16 %v210
    %v315 = vunpack.c.h.b16 %v210
    %v316 = vunpack.c.l.b16 %v211
    %v317 = vunpack.c.h.b16 %v211
    %v318 = vpack.c.b16 %v258, %v254
    %v319 = vpack.c.b16 %v259, %v255
    %v320 = vpack.c.b16 %v260, %v256
    %v321 = vpack.c.b16 %v261, %v257
    %v322 = vpack.c.b16 %v266, %v262
    %v323 = vpack.c.b16 %v267, %v263
    %v324 = vpack.c.b16 %v268, %v264
    %v325 = vpack.c.b16 %v269, %v265
    %v326 = vpack.c.b16 %v274, %v270
    %v327 = vpack.c.b16 %v275, %v271
    %v328 = vpack.c.b16 %v276, %v272
    %v329 = vpack.c.b16 %v277, %v273
    %v330 = vpack.c.b16 %v282, %v278
    %v331 = vpack.c.b16 %v283, %v279
    %v332 = vpack.c.b16 %v284, %v280
    %v333 = vpack.c.b16 %v285, %v281
    %v334 = vpack.c.b16 %v290, %v286
    %v335 = vpack.c.b16 %v291, %v287
    %v336 = vpack.c.b16 %v292, %v288
    %v337 = vpack.c.b16 %v293, %v289
    %v338 = vpack.c.b16 %v298, %v294
    %v339 = vpack.c.b16 %v299, %v295
    %v340 = vpack.c.b16 %v300, %v296
    %v341 = vpack.c.b16 %v301, %v297
    %v342 = vpack.c.b16 %v306, %v302
    %v343 = vpack.c.b16 %v307, %v303
    %v344 = vpack.c.b16 %v308, %v304
    %v345 = vpack.c.b16 %v309, %v305
    %v346 = vpack.c.b16 %v314, %v310
    %v347 = vpack.c.b16 %v315, %v311
    %v348 = vpack.c.b16 %v316, %v312
    %v349 = vpack.c.b16 %v317, %v313
    %382 = vmatpush.bf16.msra.mxu0 %v346
    %383 = vmatpush.bf16.msra.mxu0 %v342
    %384 = vmatpush.bf16.msra.mxu0 %v338
    %385 = vmatpush.bf16.msra.mxu0 %v334
    %386 = vmatpush.bf16.msra.mxu0 %v330
    %387 = vmatpush.bf16.msra.mxu0 %v326
    %388 = vmatpush.bf16.msra.mxu0 %v322
    %389 = vmatpush.bf16.msra.mxu0 %v318
    %390 = vmatmul.bf16.gmra.mxu0 %v176
    %v391 = vpop.f32.mrf.mxu0
    %v392 = vadd.f32 %v214, %v391
    %v393 = vpop.f32.mrf.mxu0
    %v394 = vadd.f32 %v214, %v393
    %395 = vmatmul.bf16.gmra.mxu0 %v177
    %v396 = vpop.f32.mrf.mxu0
    %v397 = vadd.f32 %v214, %v396
    %v398 = vpop.f32.mrf.mxu0
    %v399 = vadd.f32 %v214, %v398
    %400 = vmatmul.bf16.gmra.mxu0 %v178
    %v401 = vpop.f32.mrf.mxu0
    %v402 = vadd.f32 %v214, %v401
    %v403 = vpop.f32.mrf.mxu0
    %v404 = vadd.f32 %v214, %v403
    %405 = vmatmul.bf16.gmra.mxu0 %v179
    %v406 = vpop.f32.mrf.mxu0
    %v407 = vadd.f32 %v214, %v406
    %v408 = vpop.f32.mrf.mxu0
    %v409 = vadd.f32 %v214, %v408
    %410 = vdwg.mxu0
    %411 = vmatpush.bf16.msra.mxu0 %v347
    %412 = vmatpush.bf16.msra.mxu0 %v343
    %413 = vmatpush.bf16.msra.mxu0 %v339
    %414 = vmatpush.bf16.msra.mxu0 %v335
    %415 = vmatpush.bf16.msra.mxu0 %v331
    %416 = vmatpush.bf16.msra.mxu0 %v327
    %417 = vmatpush.bf16.msra.mxu0 %v323
    %418 = vmatpush.bf16.msra.mxu0 %v319
    %419 = vmatmul.bf16.gmra.mxu0 %v176
    %v420 = vpop.f32.mrf.mxu0
    %v421 = vadd.f32 %v215, %v420
    %v422 = vpop.f32.mrf.mxu0
    %v423 = vadd.f32 %v215, %v422
    %424 = vmatmul.bf16.gmra.mxu0 %v177
    %v425 = vpop.f32.mrf.mxu0
    %v426 = vadd.f32 %v215, %v425
    %v427 = vpop.f32.mrf.mxu0
    %v428 = vadd.f32 %v215, %v427
    %429 = vmatmul.bf16.gmra.mxu0 %v178
    %v430 = vpop.f32.mrf.mxu0
    %v431 = vadd.f32 %v215, %v430
    %v432 = vpop.f32.mrf.mxu0
    %v433 = vadd.f32 %v215, %v432
    %434 = vmatmul.bf16.gmra.mxu0 %v179
    %v435 = vpop.f32.mrf.mxu0
    %v436 = vadd.f32 %v215, %v435
    %v437 = vpop.f32.mrf.mxu0
    %v438 = vadd.f32 %v215, %v437
    %439 = vdwg.mxu0
    %440 = vmatpush.bf16.msra.mxu0 %v348
    %441 = vmatpush.bf16.msra.mxu0 %v344
    %442 = vmatpush.bf16.msra.mxu0 %v340
    %443 = vmatpush.bf16.msra.mxu0 %v336
    %444 = vmatpush.bf16.msra.mxu0 %v332
    %445 = vmatpush.bf16.msra.mxu0 %v328
    %446 = vmatpush.bf16.msra.mxu0 %v324
    %447 = vmatpush.bf16.msra.mxu0 %v320
    %448 = vmatmul.bf16.gmra.mxu0 %v176
    %v449 = vpop.f32.mrf.mxu0
    %v450 = vadd.f32 %v216, %v449
    %v451 = vpop.f32.mrf.mxu0
    %v452 = vadd.f32 %v216, %v451
    %453 = vmatmul.bf16.gmra.mxu0 %v177
    %v454 = vpop.f32.mrf.mxu0
    %v455 = vadd.f32 %v216, %v454
    %v456 = vpop.f32.mrf.mxu0
    %v457 = vadd.f32 %v216, %v456
    %458 = vmatmul.bf16.gmra.mxu0 %v178
    %v459 = vpop.f32.mrf.mxu0
    %v460 = vadd.f32 %v216, %v459
    %v461 = vpop.f32.mrf.mxu0
    %v462 = vadd.f32 %v216, %v461
    %463 = vmatmul.bf16.gmra.mxu0 %v179
    %v464 = vpop.f32.mrf.mxu0
    %v465 = vadd.f32 %v216, %v464
    %v466 = vpop.f32.mrf.mxu0
    %v467 = vadd.f32 %v216, %v466
    %468 = vdwg.mxu0
    %469 = vmatpush.bf16.msra.mxu0 %v349
    %470 = vmatpush.bf16.msra.mxu0 %v345
    %471 = vmatpush.bf16.msra.mxu0 %v341
    %472 = vmatpush.bf16.msra.mxu0 %v337
    %473 = vmatpush.bf16.msra.mxu0 %v333
    %474 = vmatpush.bf16.msra.mxu0 %v329
    %475 = vmatpush.bf16.msra.mxu0 %v325
    %476 = vmatpush.bf16.msra.mxu0 %v321
    %477 = vmatmul.bf16.gmra.mxu0 %v176
    %v478 = vpop.f32.mrf.mxu0
    %v479 = vadd.f32 %v217, %v478
    %v480 = vpop.f32.mrf.mxu0
    %v481 = vadd.f32 %v217, %v480
    %482 = vmatmul.bf16.gmra.mxu0 %v177
    %v483 = vpop.f32.mrf.mxu0
    %v484 = vadd.f32 %v217, %v483
    %v485 = vpop.f32.mrf.mxu0
    %v486 = vadd.f32 %v217, %v485
    %487 = vmatmul.bf16.gmra.mxu0 %v178
    %v488 = vpop.f32.mrf.mxu0
    %v489 = vadd.f32 %v217, %v488
    %v490 = vpop.f32.mrf.mxu0
    %v491 = vadd.f32 %v217, %v490
    %492 = vmatmul.bf16.gmra.mxu0 %v179
    %v493 = vpop.f32.mrf.mxu0
    %v494 = vadd.f32 %v217, %v493
    %v495 = vpop.f32.mrf.mxu0
    %v496 = vadd.f32 %v217, %v495
    %497 = vdwg.mxu0
    %498 = vst [vmem:[#allocation2] sm:$0xff] %v392
    %499 = vst [vmem:[#allocation2 + $0x8] sm:$0xff] %v421
    %500 = vst [vmem:[#allocation2 + $0x10] sm:$0xff] %v450
    %501 = vst [vmem:[#allocation2 + $0x18] sm:$0xff] %v479
    %502 = vst [vmem:[#allocation2 + $0x20] sm:$0xff] %v394
    %503 = vst [vmem:[#allocation2 + $0x28] sm:$0xff] %v423
    %504 = vst [vmem:[#allocation2 + $0x30] sm:$0xff] %v452
    %505 = vst [vmem:[#allocation2 + $0x38] sm:$0xff] %v481
    %506 = vst [vmem:[#allocation2 + $0x40] sm:$0xff] %v397
    %507 = vst [vmem:[#allocation2 + $0x48] sm:$0xff] %v426
    %508 = vst [vmem:[#allocation2 + $0x50] sm:$0xff] %v455
    %509 = vst [vmem:[#allocation2 + $0x58] sm:$0xff] %v484
    %510 = vst [vmem:[#allocation2 + $0x60] sm:$0xff] %v399
    %511 = vst [vmem:[#allocation2 + $0x68] sm:$0xff] %v428
    %512 = vst [vmem:[#allocation2 + $0x70] sm:$0xff] %v457
    %513 = vst [vmem:[#allocation2 + $0x78] sm:$0xff] %v486
    %514 = vst [vmem:[#allocation2 + $0x80] sm:$0xff] %v402
    %515 = vst [vmem:[#allocation2 + $0x88] sm:$0xff] %v431
    %516 = vst [vmem:[#allocation2 + $0x90] sm:$0xff] %v460
    %517 = vst [vmem:[#allocation2 + $0x98] sm:$0xff] %v489
    %518 = vst [vmem:[#allocation2 + $0xa0] sm:$0xff] %v404
    %519 = vst [vmem:[#allocation2 + $0xa8] sm:$0xff] %v433
    %520 = vst [vmem:[#allocation2 + $0xb0] sm:$0xff] %v462
    %521 = vst [vmem:[#allocation2 + $0xb8] sm:$0xff] %v491
    %522 = vst [vmem:[#allocation2 + $0xc0] sm:$0xff] %v407
    %523 = vst [vmem:[#allocation2 + $0xc8] sm:$0xff] %v436
    %524 = vst [vmem:[#allocation2 + $0xd0] sm:$0xff] %v465
    %525 = vst [vmem:[#allocation2 + $0xd8] sm:$0xff] %v494
    %526 = vst [vmem:[#allocation2 + $0xe0] sm:$0xff] %v409
    %527 = vst [vmem:[#allocation2 + $0xe8] sm:$0xff] %v438
    %528 = vst [vmem:[#allocation2 + $0xf0] sm:$0xff] %v467
    %529 = vst [vmem:[#allocation2 + $0xf8] sm:$0xff] %v496
    %s530 = scalar_lea.vmem %s6, 4
    %v531 = vld [vmem:[%s530] sm:$0xf]
    %s532 = scalar_lea.vmem %s6, 8
    %v533 = vld [vmem:[%s532] sm:$0xf]
    %v534 = vld [vmem:[%s8] sm:$0x1]
    %v535 = vld [vmem:[%s9] sm:$0xff]
    %s536 = scalar_lea.vmem %s9, 8
    %v537 = vld [vmem:[%s536] sm:$0xff]
    %s538 = scalar_lea.vmem %s9, 16
    %v539 = vld [vmem:[%s538] sm:$0xff]
    %v540 = vld [vmem:[%s10] sm:$0xff]
    %s541 = scalar_lea.vmem %s10, 8
    %v542 = vld [vmem:[%s541] sm:$0xff]
    %s543 = scalar_lea.vmem %s10, 16
    %v544 = vld [vmem:[%s543] sm:$0xff]
    %v545 = vld [vmem:[#allocation2] sm:$0xff]
    %v546 = vld [vmem:[#allocation2 + $0x8] sm:$0xff]
    %v547 = vld [vmem:[#allocation2 + $0x10] sm:$0xff]
    %v548 = vld [vmem:[#allocation2 + $0x18] sm:$0xff]
    %v549 = vpack.c.bf16 %v535, %v535
    %v550 = vld [vmem:[#allocation5] sm:$0xff]
    %v551 = vld [vmem:[#allocation5 + $0x8] sm:$0xff]
    %v552 = vld [vmem:[#allocation5 + $0x10] sm:$0xff]
    %v553 = vld [vmem:[#allocation5 + $0x18] sm:$0xff]
    %v554 = vld [vmem:[#allocation5 + $0x20] sm:$0xff]
    %v555 = vld [vmem:[#allocation5 + $0x28] sm:$0xff]
    %v556 = vld [vmem:[#allocation5 + $0x30] sm:$0xff]
    %v557 = vld [vmem:[#allocation5 + $0x38] sm:$0xff]
    %v558 = vld [vmem:[#allocation5 + $0x40] sm:$0xff]
    %v559 = vld [vmem:[#allocation5 + $0x48] sm:$0xff]
    %v560 = vld [vmem:[#allocation5 + $0x50] sm:$0xff]
    %v561 = vld [vmem:[#allocation5 + $0x58] sm:$0xff]
    %v562 = vld [vmem:[#allocation5 + $0x60] sm:$0xff]
    %v563 = vld [vmem:[#allocation5 + $0x68] sm:$0xff]
    %v564 = vld [vmem:[#allocation5 + $0x70] sm:$0xff]
    %v565 = vld [vmem:[#allocation5 + $0x78] sm:$0xff]
    %v566 = vld [vmem:[#allocation5 + $0x80] sm:$0xff]
    %v567 = vld [vmem:[#allocation5 + $0x88] sm:$0xff]
    %v568 = vld [vmem:[#allocation5 + $0x90] sm:$0xff]
    %v569 = vld [vmem:[#allocation5 + $0x98] sm:$0xff]
    %v570 = vld [vmem:[#allocation5 + $0xa0] sm:$0xff]
    %v571 = vld [vmem:[#allocation5 + $0xa8] sm:$0xff]
    %v572 = vld [vmem:[#allocation5 + $0xb0] sm:$0xff]
    %v573 = vld [vmem:[#allocation5 + $0xb8] sm:$0xff]
    %v574 = vld [vmem:[#allocation5 + $0xc0] sm:$0xff]
    %v575 = vld [vmem:[#allocation5 + $0xc8] sm:$0xff]
    %v576 = vld [vmem:[#allocation5 + $0xd0] sm:$0xff]
    %v577 = vld [vmem:[#allocation5 + $0xd8] sm:$0xff]
    %v578 = vld [vmem:[#allocation5 + $0xe0] sm:$0xff]
    %v579 = vld [vmem:[#allocation5 + $0xe8] sm:$0xff]
    %v580 = vld [vmem:[#allocation5 + $0xf0] sm:$0xff]
    %v581 = vld [vmem:[#allocation5 + $0xf8] sm:$0xff]
    %v614 = vunpack.c.l.b16 %v550
    %v615 = vunpack.c.h.b16 %v550
    %v616 = vunpack.c.l.b16 %v551
    %v617 = vunpack.c.h.b16 %v551
    %v618 = vunpack.c.l.b16 %v552
    %v619 = vunpack.c.h.b16 %v552
    %v620 = vunpack.c.l.b16 %v553
    %v621 = vunpack.c.h.b16 %v553
    %v622 = vunpack.c.l.b16 %v554
    %v623 = vunpack.c.h.b16 %v554
    %v624 = vunpack.c.l.b16 %v555
    %v625 = vunpack.c.h.b16 %v555
    %v626 = vunpack.c.l.b16 %v556
    %v627 = vunpack.c.h.b16 %v556
    %v628 = vunpack.c.l.b16 %v557
    %v629 = vunpack.c.h.b16 %v557
    %v630 = vunpack.c.l.b16 %v558
    %v631 = vunpack.c.h.b16 %v558
    %v632 = vunpack.c.l.b16 %v559
    %v633 = vunpack.c.h.b16 %v559
    %v634 = vunpack.c.l.b16 %v560
    %v635 = vunpack.c.h.b16 %v560
    %v636 = vunpack.c.l.b16 %v561
    %v637 = vunpack.c.h.b16 %v561
    %v638 = vunpack.c.l.b16 %v562
    %v639 = vunpack.c.h.b16 %v562
    %v640 = vunpack.c.l.b16 %v563
    %v641 = vunpack.c.h.b16 %v563
    %v642 = vunpack.c.l.b16 %v564
    %v643 = vunpack.c.h.b16 %v564
    %v644 = vunpack.c.l.b16 %v565
    %v645 = vunpack.c.h.b16 %v565
    %v646 = vunpack.c.l.b16 %v566
    %v647 = vunpack.c.h.b16 %v566
    %v648 = vunpack.c.l.b16 %v567
    %v649 = vunpack.c.h.b16 %v567
    %v650 = vunpack.c.l.b16 %v568
    %v651 = vunpack.c.h.b16 %v568
    %v652 = vunpack.c.l.b16 %v569
    %v653 = vunpack.c.h.b16 %v569
    %v654 = vunpack.c.l.b16 %v570
    %v655 = vunpack.c.h.b16 %v570
    %v656 = vunpack.c.l.b16 %v571
    %v657 = vunpack.c.h.b16 %v571
    %v658 = vunpack.c.l.b16 %v572
    %v659 = vunpack.c.h.b16 %v572
    %v660 = vunpack.c.l.b16 %v573
    %v661 = vunpack.c.h.b16 %v573
    %v662 = vunpack.c.l.b16 %v574
    %v663 = vunpack.c.h.b16 %v574
    %v664 = vunpack.c.l.b16 %v575
    %v665 = vunpack.c.h.b16 %v575
    %v666 = vunpack.c.l.b16 %v576
    %v667 = vunpack.c.h.b16 %v576
    %v668 = vunpack.c.l.b16 %v577
    %v669 = vunpack.c.h.b16 %v577
    %v670 = vunpack.c.l.b16 %v578
    %v671 = vunpack.c.h.b16 %v578
    %v672 = vunpack.c.l.b16 %v579
    %v673 = vunpack.c.h.b16 %v579
    %v674 = vunpack.c.l.b16 %v580
    %v675 = vunpack.c.h.b16 %v580
    %v676 = vunpack.c.l.b16 %v581
    %v677 = vunpack.c.h.b16 %v581
    %v678 = vpack.c.b16 %v618, %v614
    %v679 = vpack.c.b16 %v619, %v615
    %v680 = vpack.c.b16 %v620, %v616
    %v681 = vpack.c.b16 %v621, %v617
    %v682 = vpack.c.b16 %v626, %v622
    %v683 = vpack.c.b16 %v627, %v623
    %v684 = vpack.c.b16 %v628, %v624
    %v685 = vpack.c.b16 %v629, %v625
    %v686 = vpack.c.b16 %v634, %v630
    %v687 = vpack.c.b16 %v635, %v631
    %v688 = vpack.c.b16 %v636, %v632
    %v689 = vpack.c.b16 %v637, %v633
    %v690 = vpack.c.b16 %v642, %v638
    %v691 = vpack.c.b16 %v643, %v639
    %v692 = vpack.c.b16 %v644, %v640
    %v693 = vpack.c.b16 %v645, %v641
    %v694 = vpack.c.b16 %v650, %v646
    %v695 = vpack.c.b16 %v651, %v647
    %v696 = vpack.c.b16 %v652, %v648
    %v697 = vpack.c.b16 %v653, %v649
    %v698 = vpack.c.b16 %v658, %v654
    %v699 = vpack.c.b16 %v659, %v655
    %v700 = vpack.c.b16 %v660, %v656
    %v701 = vpack.c.b16 %v661, %v657
    %v702 = vpack.c.b16 %v666, %v662
    %v703 = vpack.c.b16 %v667, %v663
    %v704 = vpack.c.b16 %v668, %v664
    %v705 = vpack.c.b16 %v669, %v665
    %v706 = vpack.c.b16 %v674, %v670
    %v707 = vpack.c.b16 %v675, %v671
    %v708 = vpack.c.b16 %v676, %v672
    %v709 = vpack.c.b16 %v677, %v673
    %742 = vmatpush.bf16.msra.mxu0 %v706
    %743 = vmatpush.bf16.msra.mxu0 %v702
    %744 = vmatpush.bf16.msra.mxu0 %v698
    %745 = vmatpush.bf16.msra.mxu0 %v694
    %746 = vmatpush.bf16.msra.mxu0 %v690
    %747 = vmatpush.bf16.msra.mxu0 %v686
    %748 = vmatpush.bf16.msra.mxu0 %v682
    %749 = vmatpush.bf16.msra.mxu0 %v678
    %750 = vmatmul.bf16.gmra.mxu0 %v549
    %v751 = vpop.f32.mrf.mxu0
    %v752 = vadd.f32 0.0, %v751
    %v753 = vpop.f32.mrf.mxu0
    %754 = vdwg.mxu0
    %755 = vmatpush.bf16.msra.mxu0 %v707
    %756 = vmatpush.bf16.msra.mxu0 %v703
    %757 = vmatpush.bf16.msra.mxu0 %v699
    %758 = vmatpush.bf16.msra.mxu0 %v695
    %759 = vmatpush.bf16.msra.mxu0 %v691
    %760 = vmatpush.bf16.msra.mxu0 %v687
    %761 = vmatpush.bf16.msra.mxu0 %v683
    %762 = vmatpush.bf16.msra.mxu0 %v679
    %763 = vmatmul.bf16.gmra.mxu0 %v549
    %v764 = vpop.f32.mrf.mxu0
    %v765 = vadd.f32 0.0, %v764
    %v766 = vpop.f32.mrf.mxu0
    %767 = vdwg.mxu0
    %768 = vmatpush.bf16.msra.mxu0 %v708
    %769 = vmatpush.bf16.msra.mxu0 %v704
    %770 = vmatpush.bf16.msra.mxu0 %v700
    %771 = vmatpush.bf16.msra.mxu0 %v696
    %772 = vmatpush.bf16.msra.mxu0 %v692
    %773 = vmatpush.bf16.msra.mxu0 %v688
    %774 = vmatpush.bf16.msra.mxu0 %v684
    %775 = vmatpush.bf16.msra.mxu0 %v680
    %776 = vmatmul.bf16.gmra.mxu0 %v549
    %v777 = vpop.f32.mrf.mxu0
    %v778 = vadd.f32 0.0, %v777
    %v779 = vpop.f32.mrf.mxu0
    %780 = vdwg.mxu0
    %781 = vmatpush.bf16.msra.mxu0 %v709
    %782 = vmatpush.bf16.msra.mxu0 %v705
    %783 = vmatpush.bf16.msra.mxu0 %v701
    %784 = vmatpush.bf16.msra.mxu0 %v697
    %785 = vmatpush.bf16.msra.mxu0 %v693
    %786 = vmatpush.bf16.msra.mxu0 %v689
    %787 = vmatpush.bf16.msra.mxu0 %v685
    %788 = vmatpush.bf16.msra.mxu0 %v681
    %789 = vmatmul.bf16.gmra.mxu0 %v549
    %v790 = vpop.f32.mrf.mxu0
    %v791 = vadd.f32 0.0, %v790
    %v792 = vpop.f32.mrf.mxu0
    %793 = vdwg.mxu0
    %v794 = vadd.f32 %v545, %v752
    %v795 = vadd.f32 %v546, %v765
    %v796 = vadd.f32 %v547, %v778
    %v797 = vadd.f32 %v548, %v791
    %v798 = vxor.u32 %v794, 2147483648
    %v799 = vxor.u32 %v795, 2147483648
    %v800 = vxor.u32 %v796, 2147483648
    %v801 = vmul.f32 %v798, 1.442695
    %v802 = vpow.pop %v801
    %v803 = vmul.f32 %v799, 1.442695
    %v804 = vpow.pop %v803
    %v805 = vmul.f32 %v800, 1.442695
    %v806 = vpow.pop %v805
    %v807 = vadd.f32 %v802, 1.0
    %v808 = vadd.f32 %v804, 1.0
    %v809 = vadd.f32 %v806, 1.0
    %v810 = vrcp.pop %v807
    %v811 = vmul.f32 %v807, %v810
    %v812 = vsub.f32 1.0, %v811
    %v813 = vmul.f32 %v810, %v812
    %v814 = vadd.f32 %v810, %v813
    %vm815 = vweird.f32 %v807
    %vm816 = vweird.f32 %v810
    %vm817 = vmor %vm815, %vm816
    %v818 = vsel %vm817, %v810, %v814
    %v819 = vand.u32 2147483647, %v807
    %vm820 = vcmp.eq.f32.partialorder %v819, 8.507059e+37
    %v821 = vand.u32 %v807, 2147483648
    %v822 = vor.u32 1.1754944e-38, %v821
    %v823 = vsel %vm820, %v822, %v818
    %v824 = vmul.f32 1.0, %v823
    %v825 = vrcp.pop %v808
    %v826 = vmul.f32 %v808, %v825
    %v827 = vsub.f32 1.0, %v826
    %v828 = vmul.f32 %v825, %v827
    %v829 = vadd.f32 %v825, %v828
    %vm830 = vweird.f32 %v808
    %vm831 = vweird.f32 %v825
    %vm832 = vmor %vm830, %vm831
    %v833 = vsel %vm832, %v825, %v829
    %v834 = vand.u32 2147483647, %v808
    %vm835 = vcmp.eq.f32.partialorder %v834, 8.507059e+37
    %v836 = vand.u32 %v808, 2147483648
    %v837 = vor.u32 1.1754944e-38, %v836
    %v838 = vsel %vm835, %v837, %v833
    %v839 = vmul.f32 1.0, %v838
    %v840 = vrcp.pop %v809
    %v841 = vmul.f32 %v809, %v840
    %v842 = vsub.f32 1.0, %v841
    %v843 = vmul.f32 %v840, %v842
    %v844 = vadd.f32 %v840, %v843
    %vm845 = vweird.f32 %v809
    %vm846 = vweird.f32 %v840
    %vm847 = vmor %vm845, %vm846
    %v848 = vsel %vm847, %v840, %v844
    %v849 = vand.u32 2147483647, %v809
    %vm850 = vcmp.eq.f32.partialorder %v849, 8.507059e+37
    %v851 = vand.u32 %v809, 2147483648
    %v852 = vor.u32 1.1754944e-38, %v851
    %v853 = vsel %vm850, %v852, %v848
    %v854 = vmul.f32 1.0, %v853
    %v855 = vtanh.pop %v797
    %v856 = vmul.f32 %v839, %v540
    %v857 = vmul.f32 %v824, %v855
    %v858 = vadd.f32 %v856, %v857
    %v859 = vtanh.pop %v858
    %v860 = vmul.f32 %v854, %v859
    %s861 = scalar_lea.vmem [#allocation2], 32
    %v862 = vld [vmem:[%s861] sm:$0xff]
    %v863 = vld [vmem:[%s861 + $0x8] sm:$0xff]
    %v864 = vld [vmem:[%s861 + $0x10] sm:$0xff]
    %v865 = vld [vmem:[%s861 + $0x18] sm:$0xff]
    %v866 = vpack.c.bf16 %v860, %v860
    %867 = vmatpush.bf16.msra.mxu0 %v706
    %868 = vmatpush.bf16.msra.mxu0 %v702
    %869 = vmatpush.bf16.msra.mxu0 %v698
    %870 = vmatpush.bf16.msra.mxu0 %v694
    %871 = vmatpush.bf16.msra.mxu0 %v690
    %872 = vmatpush.bf16.msra.mxu0 %v686
    %873 = vmatpush.bf16.msra.mxu0 %v682
    %874 = vmatpush.bf16.msra.mxu0 %v678
    %875 = vmatmul.bf16.gmra.mxu0 %v866
    %v876 = vpop.f32.mrf.mxu0
    %v877 = vadd.f32 0.0, %v876
    %v878 = vpop.f32.mrf.mxu0
    %879 = vdwg.mxu0
    %880 = vmatpush.bf16.msra.mxu0 %v707
    %881 = vmatpush.bf16.msra.mxu0 %v703
    %882 = vmatpush.bf16.msra.mxu0 %v699
    %883 = vmatpush.bf16.msra.mxu0 %v695
    %884 = vmatpush.bf16.msra.mxu0 %v691
    %885 = vmatpush.bf16.msra.mxu0 %v687
    %886 = vmatpush.bf16.msra.mxu0 %v683
    %887 = vmatpush.bf16.msra.mxu0 %v679
    %888 = vmatmul.bf16.gmra.mxu0 %v866
    %v889 = vpop.f32.mrf.mxu0
    %v890 = vadd.f32 0.0, %v889
    %v891 = vpop.f32.mrf.mxu0
    %892 = vdwg.mxu0
    %893 = vmatpush.bf16.msra.mxu0 %v708
    %894 = vmatpush.bf16.msra.mxu0 %v704
    %895 = vmatpush.bf16.msra.mxu0 %v700
    %896 = vmatpush.bf16.msra.mxu0 %v696
    %897 = vmatpush.bf16.msra.mxu0 %v692
    %898 = vmatpush.bf16.msra.mxu0 %v688
    %899 = vmatpush.bf16.msra.mxu0 %v684
    %900 = vmatpush.bf16.msra.mxu0 %v680
    %901 = vmatmul.bf16.gmra.mxu0 %v866
    %v902 = vpop.f32.mrf.mxu0
    %v903 = vadd.f32 0.0, %v902
    %v904 = vpop.f32.mrf.mxu0
    %905 = vdwg.mxu0
    %906 = vmatpush.bf16.msra.mxu0 %v709
    %907 = vmatpush.bf16.msra.mxu0 %v705
    %908 = vmatpush.bf16.msra.mxu0 %v701
    %909 = vmatpush.bf16.msra.mxu0 %v697
    %910 = vmatpush.bf16.msra.mxu0 %v693
    %911 = vmatpush.bf16.msra.mxu0 %v689
    %912 = vmatpush.bf16.msra.mxu0 %v685
    %913 = vmatpush.bf16.msra.mxu0 %v681
    %914 = vmatmul.bf16.gmra.mxu0 %v866
    %v915 = vpop.f32.mrf.mxu0
    %v916 = vadd.f32 0.0, %v915
    %v917 = vpop.f32.mrf.mxu0
    %918 = vdwg.mxu0
    %v919 = vadd.f32 %v862, %v877
    %v920 = vadd.f32 %v863, %v890
    %v921 = vadd.f32 %v864, %v903
    %v922 = vadd.f32 %v865, %v916
    %v923 = vxor.u32 %v919, 2147483648
    %v924 = vxor.u32 %v920, 2147483648
    %v925 = vxor.u32 %v921, 2147483648
    %v926 = vmul.f32 %v923, 1.442695
    %v927 = vpow.pop %v926
    %v928 = vmul.f32 %v924, 1.442695
    %v929 = vpow.pop %v928
    %v930 = vmul.f32 %v925, 1.442695
    %v931 = vpow.pop %v930
    %v932 = vadd.f32 %v927, 1.0
    %v933 = vadd.f32 %v929, 1.0
    %v934 = vadd.f32 %v931, 1.0
    %v935 = vrcp.pop %v932
    %v936 = vmul.f32 %v932, %v935
    %v937 = vsub.f32 1.0, %v936
    %v938 = vmul.f32 %v935, %v937
    %v939 = vadd.f32 %v935, %v938
    %vm940 = vweird.f32 %v932
    %vm941 = vweird.f32 %v935
    %vm942 = vmor %vm940, %vm941
    %v943 = vsel %vm942, %v935, %v939
    %v944 = vand.u32 2147483647, %v932
    %vm945 = vcmp.eq.f32.partialorder %v944, 8.507059e+37
    %v946 = vand.u32 %v932, 2147483648
    %v947 = vor.u32 1.1754944e-38, %v946
    %v948 = vsel %vm945, %v947, %v943
    %v949 = vmul.f32 1.0, %v948
    %v950 = vrcp.pop %v933
    %v951 = vmul.f32 %v933, %v950
    %v952 = vsub.f32 1.0, %v951
    %v953 = vmul.f32 %v950, %v952
    %v954 = vadd.f32 %v950, %v953
    %vm955 = vweird.f32 %v933
    %vm956 = vweird.f32 %v950
    %vm957 = vmor %vm955, %vm956
    %v958 = vsel %vm957, %v950, %v954
    %v959 = vand.u32 2147483647, %v933
    %vm960 = vcmp.eq.f32.partialorder %v959, 8.507059e+37
    %v961 = vand.u32 %v933, 2147483648
    %v962 = vor.u32 1.1754944e-38, %v961
    %v963 = vsel %vm960, %v962, %v958
    %v964 = vmul.f32 1.0, %v963
    %v965 = vrcp.pop %v934
    %v966 = vmul.f32 %v934, %v965
    %v967 = vsub.f32 1.0, %v966
    %v968 = vmul.f32 %v965, %v967
    %v969 = vadd.f32 %v965, %v968
    %vm970 = vweird.f32 %v934
    %vm971 = vweird.f32 %v965
    %vm972 = vmor %vm970, %vm971
    %v973 = vsel %vm972, %v965, %v969
    %v974 = vand.u32 2147483647, %v934
    %vm975 = vcmp.eq.f32.partialorder %v974, 8.507059e+37
    %v976 = vand.u32 %v934, 2147483648
    %v977 = vor.u32 1.1754944e-38, %v976
    %v978 = vsel %vm975, %v977, %v973
    %v979 = vmul.f32 1.0, %v978
    %v980 = vtanh.pop %v922
    %v981 = vmul.f32 %v964, %v858
    %v982 = vmul.f32 %v949, %v980
    %v983 = vadd.f32 %v981, %v982
    %v984 = vtanh.pop %v983
    %v985 = vmul.f32 %v979, %v984
    %v986 = vpack.c.bf16 %v537, %v537
    %v987 = vld [vmem:[#allocation7] sm:$0xff]
    %v988 = vld [vmem:[#allocation7 + $0x8] sm:$0xff]
    %v989 = vld [vmem:[#allocation7 + $0x10] sm:$0xff]
    %v990 = vld [vmem:[#allocation7 + $0x18] sm:$0xff]
    %v991 = vld [vmem:[#allocation7 + $0x20] sm:$0xff]
    %v992 = vld [vmem:[#allocation7 + $0x28] sm:$0xff]
    %v993 = vld [vmem:[#allocation7 + $0x30] sm:$0xff]
    %v994 = vld [vmem:[#allocation7 + $0x38] sm:$0xff]
    %v995 = vld [vmem:[#allocation7 + $0x40] sm:$0xff]
    %v996 = vld [vmem:[#allocation7 + $0x48] sm:$0xff]
    %v997 = vld [vmem:[#allocation7 + $0x50] sm:$0xff]
    %v998 = vld [vmem:[#allocation7 + $0x58] sm:$0xff]
    %v999 = vld [vmem:[#allocation7 + $0x60] sm:$0xff]
    %v1000 = vld [vmem:[#allocation7 + $0x68] sm:$0xff]
    %v1001 = vld [vmem:[#allocation7 + $0x70] sm:$0xff]
    %v1002 = vld [vmem:[#allocation7 + $0x78] sm:$0xff]
    %v1003 = vld [vmem:[#allocation7 + $0x80] sm:$0xff]
    %v1004 = vld [vmem:[#allocation7 + $0x88] sm:$0xff]
    %v1005 = vld [vmem:[#allocation7 + $0x90] sm:$0xff]
    %v1006 = vld [vmem:[#allocation7 + $0x98] sm:$0xff]
    %v1007 = vld [vmem:[#allocation7 + $0xa0] sm:$0xff]
    %v1008 = vld [vmem:[#allocation7 + $0xa8] sm:$0xff]
    %v1009 = vld [vmem:[#allocation7 + $0xb0] sm:$0xff]
    %v1010 = vld [vmem:[#allocation7 + $0xb8] sm:$0xff]
    %v1011 = vld [vmem:[#allocation7 + $0xc0] sm:$0xff]
    %v1012 = vld [vmem:[#allocation7 + $0xc8] sm:$0xff]
    %v1013 = vld [vmem:[#allocation7 + $0xd0] sm:$0xff]
    %v1014 = vld [vmem:[#allocation7 + $0xd8] sm:$0xff]
    %v1015 = vld [vmem:[#allocation7 + $0xe0] sm:$0xff]
    %v1016 = vld [vmem:[#allocation7 + $0xe8] sm:$0xff]
    %v1017 = vld [vmem:[#allocation7 + $0xf0] sm:$0xff]
    %v1018 = vld [vmem:[#allocation7 + $0xf8] sm:$0xff]
    %v1019 = vld [vmem:[#allocation7 + $0x100] sm:$0xff]
    %v1020 = vld [vmem:[#allocation7 + $0x108] sm:$0xff]
    %v1021 = vld [vmem:[#allocation7 + $0x110] sm:$0xff]
    %v1022 = vld [vmem:[#allocation7 + $0x118] sm:$0xff]
    %v1023 = vld [vmem:[#allocation7 + $0x120] sm:$0xff]
    %v1024 = vld [vmem:[#allocation7 + $0x128] sm:$0xff]
    %v1025 = vld [vmem:[#allocation7 + $0x130] sm:$0xff]
    %v1026 = vld [vmem:[#allocation7 + $0x138] sm:$0xff]
    %v1027 = vld [vmem:[#allocation7 + $0x140] sm:$0xff]
    %v1028 = vld [vmem:[#allocation7 + $0x148] sm:$0xff]
    %v1029 = vld [vmem:[#allocation7 + $0x150] sm:$0xff]
    %v1030 = vld [vmem:[#allocation7 + $0x158] sm:$0xff]
    %v1031 = vld [vmem:[#allocation7 + $0x160] sm:$0xff]
    %v1032 = vld [vmem:[#allocation7 + $0x168] sm:$0xff]
    %v1033 = vld [vmem:[#allocation7 + $0x170] sm:$0xff]
    %v1034 = vld [vmem:[#allocation7 + $0x178] sm:$0xff]
    %v1035 = vld [vmem:[#allocation7 + $0x180] sm:$0xff]
    %v1036 = vld [vmem:[#allocation7 + $0x188] sm:$0xff]
    %v1037 = vld [vmem:[#allocation7 + $0x190] sm:$0xff]
    %v1038 = vld [vmem:[#allocation7 + $0x198] sm:$0xff]
    %v1039 = vld [vmem:[#allocation7 + $0x1a0] sm:$0xff]
    %v1040 = vld [vmem:[#allocation7 + $0x1a8] sm:$0xff]
    %v1041 = vld [vmem:[#allocation7 + $0x1b0] sm:$0xff]
    %v1042 = vld [vmem:[#allocation7 + $0x1b8] sm:$0xff]
    %v1043 = vld [vmem:[#allocation7 + $0x1c0] sm:$0xff]
    %v1044 = vld [vmem:[#allocation7 + $0x1c8] sm:$0xff]
    %v1045 = vld [vmem:[#allocation7 + $0x1d0] sm:$0xff]
    %v1046 = vld [vmem:[#allocation7 + $0x1d8] sm:$0xff]
    %v1047 = vld [vmem:[#allocation7 + $0x1e0] sm:$0xff]
    %v1048 = vld [vmem:[#allocation7 + $0x1e8] sm:$0xff]
    %v1049 = vld [vmem:[#allocation7 + $0x1f0] sm:$0xff]
    %v1050 = vld [vmem:[#allocation7 + $0x1f8] sm:$0xff]
    %v1052 = vperm.slane %v531, 0
    %v1053 = vperm.slane %v531, 1
    %v1054 = vperm.slane %v531, 2
    %v1055 = vperm.slane %v531, 3
    %v1124 = vunpack.c.l.b16 %v987
    %v1125 = vunpack.c.h.b16 %v987
    %v1126 = vunpack.c.l.b16 %v988
    %v1127 = vunpack.c.h.b16 %v988
    %v1128 = vunpack.c.l.b16 %v989
    %v1129 = vunpack.c.h.b16 %v989
    %v1130 = vunpack.c.l.b16 %v990
    %v1131 = vunpack.c.h.b16 %v990
    %v1132 = vunpack.c.l.b16 %v991
    %v1133 = vunpack.c.h.b16 %v991
    %v1134 = vunpack.c.l.b16 %v992
    %v1135 = vunpack.c.h.b16 %v992
    %v1136 = vunpack.c.l.b16 %v993
    %v1137 = vunpack.c.h.b16 %v993
    %v1138 = vunpack.c.l.b16 %v994
    %v1139 = vunpack.c.h.b16 %v994
    %v1140 = vunpack.c.l.b16 %v995
    %v1141 = vunpack.c.h.b16 %v995
    %v1142 = vunpack.c.l.b16 %v996
    %v1143 = vunpack.c.h.b16 %v996
    %v1144 = vunpack.c.l.b16 %v997
    %v1145 = vunpack.c.h.b16 %v997
    %v1146 = vunpack.c.l.b16 %v998
    %v1147 = vunpack.c.h.b16 %v998
    %v1148 = vunpack.c.l.b16 %v999
    %v1149 = vunpack.c.h.b16 %v999
    %v1150 = vunpack.c.l.b16 %v1000
    %v1151 = vunpack.c.h.b16 %v1000
    %v1152 = vunpack.c.l.b16 %v1001
    %v1153 = vunpack.c.h.b16 %v1001
    %v1154 = vunpack.c.l.b16 %v1002
    %v1155 = vunpack.c.h.b16 %v1002
    %v1156 = vunpack.c.l.b16 %v1003
    %v1157 = vunpack.c.h.b16 %v1003
    %v1158 = vunpack.c.l.b16 %v1004
    %v1159 = vunpack.c.h.b16 %v1004
    %v1160 = vunpack.c.l.b16 %v1005
    %v1161 = vunpack.c.h.b16 %v1005
    %v1162 = vunpack.c.l.b16 %v1006
    %v1163 = vunpack.c.h.b16 %v1006
    %v1164 = vunpack.c.l.b16 %v1007
    %v1165 = vunpack.c.h.b16 %v1007
    %v1166 = vunpack.c.l.b16 %v1008
    %v1167 = vunpack.c.h.b16 %v1008
    %v1168 = vunpack.c.l.b16 %v1009
    %v1169 = vunpack.c.h.b16 %v1009
    %v1170 = vunpack.c.l.b16 %v1010
    %v1171 = vunpack.c.h.b16 %v1010
    %v1172 = vunpack.c.l.b16 %v1011
    %v1173 = vunpack.c.h.b16 %v1011
    %v1174 = vunpack.c.l.b16 %v1012
    %v1175 = vunpack.c.h.b16 %v1012
    %v1176 = vunpack.c.l.b16 %v1013
    %v1177 = vunpack.c.h.b16 %v1013
    %v1178 = vunpack.c.l.b16 %v1014
    %v1179 = vunpack.c.h.b16 %v1014
    %v1180 = vunpack.c.l.b16 %v1015
    %v1181 = vunpack.c.h.b16 %v1015
    %v1182 = vunpack.c.l.b16 %v1016
    %v1183 = vunpack.c.h.b16 %v1016
    %v1184 = vunpack.c.l.b16 %v1017
    %v1185 = vunpack.c.h.b16 %v1017
    %v1186 = vunpack.c.l.b16 %v1018
    %v1187 = vunpack.c.h.b16 %v1018
    %v1188 = vunpack.c.l.b16 %v1019
    %v1189 = vunpack.c.h.b16 %v1019
    %v1190 = vunpack.c.l.b16 %v1020
    %v1191 = vunpack.c.h.b16 %v1020
    %v1192 = vunpack.c.l.b16 %v1021
    %v1193 = vunpack.c.h.b16 %v1021
    %v1194 = vunpack.c.l.b16 %v1022
    %v1195 = vunpack.c.h.b16 %v1022
    %v1196 = vunpack.c.l.b16 %v1023
    %v1197 = vunpack.c.h.b16 %v1023
    %v1198 = vunpack.c.l.b16 %v1024
    %v1199 = vunpack.c.h.b16 %v1024
    %v1200 = vunpack.c.l.b16 %v1025
    %v1201 = vunpack.c.h.b16 %v1025
    %v1202 = vunpack.c.l.b16 %v1026
    %v1203 = vunpack.c.h.b16 %v1026
    %v1204 = vunpack.c.l.b16 %v1027
    %v1205 = vunpack.c.h.b16 %v1027
    %v1206 = vunpack.c.l.b16 %v1028
    %v1207 = vunpack.c.h.b16 %v1028
    %v1208 = vunpack.c.l.b16 %v1029
    %v1209 = vunpack.c.h.b16 %v1029
    %v1210 = vunpack.c.l.b16 %v1030
    %v1211 = vunpack.c.h.b16 %v1030
    %v1212 = vunpack.c.l.b16 %v1031
    %v1213 = vunpack.c.h.b16 %v1031
    %v1214 = vunpack.c.l.b16 %v1032
    %v1215 = vunpack.c.h.b16 %v1032
    %v1216 = vunpack.c.l.b16 %v1033
    %v1217 = vunpack.c.h.b16 %v1033
    %v1218 = vunpack.c.l.b16 %v1034
    %v1219 = vunpack.c.h.b16 %v1034
    %v1220 = vunpack.c.l.b16 %v1035
    %v1221 = vunpack.c.h.b16 %v1035
    %v1222 = vunpack.c.l.b16 %v1036
    %v1223 = vunpack.c.h.b16 %v1036
    %v1224 = vunpack.c.l.b16 %v1037
    %v1225 = vunpack.c.h.b16 %v1037
    %v1226 = vunpack.c.l.b16 %v1038
    %v1227 = vunpack.c.h.b16 %v1038
    %v1228 = vunpack.c.l.b16 %v1039
    %v1229 = vunpack.c.h.b16 %v1039
    %v1230 = vunpack.c.l.b16 %v1040
    %v1231 = vunpack.c.h.b16 %v1040
    %v1232 = vunpack.c.l.b16 %v1041
    %v1233 = vunpack.c.h.b16 %v1041
    %v1234 = vunpack.c.l.b16 %v1042
    %v1235 = vunpack.c.h.b16 %v1042
    %v1236 = vunpack.c.l.b16 %v1043
    %v1237 = vunpack.c.h.b16 %v1043
    %v1238 = vunpack.c.l.b16 %v1044
    %v1239 = vunpack.c.h.b16 %v1044
    %v1240 = vunpack.c.l.b16 %v1045
    %v1241 = vunpack.c.h.b16 %v1045
    %v1242 = vunpack.c.l.b16 %v1046
    %v1243 = vunpack.c.h.b16 %v1046
    %v1244 = vunpack.c.l.b16 %v1047
    %v1245 = vunpack.c.h.b16 %v1047
    %v1246 = vunpack.c.l.b16 %v1048
    %v1247 = vunpack.c.h.b16 %v1048
    %v1248 = vunpack.c.l.b16 %v1049
    %v1249 = vunpack.c.h.b16 %v1049
    %v1250 = vunpack.c.l.b16 %v1050
    %v1251 = vunpack.c.h.b16 %v1050
    %v1252 = vpack.c.b16 %v1128, %v1124
    %v1253 = vpack.c.b16 %v1129, %v1125
    %v1254 = vpack.c.b16 %v1130, %v1126
    %v1255 = vpack.c.b16 %v1131, %v1127
    %v1256 = vpack.c.b16 %v1136, %v1132
    %v1257 = vpack.c.b16 %v1137, %v1133
    %v1258 = vpack.c.b16 %v1138, %v1134
    %v1259 = vpack.c.b16 %v1139, %v1135
    %v1260 = vpack.c.b16 %v1144, %v1140
    %v1261 = vpack.c.b16 %v1145, %v1141
    %v1262 = vpack.c.b16 %v1146, %v1142
    %v1263 = vpack.c.b16 %v1147, %v1143
    %v1264 = vpack.c.b16 %v1152, %v1148
    %v1265 = vpack.c.b16 %v1153, %v1149
    %v1266 = vpack.c.b16 %v1154, %v1150
    %v1267 = vpack.c.b16 %v1155, %v1151
    %v1268 = vpack.c.b16 %v1160, %v1156
    %v1269 = vpack.c.b16 %v1161, %v1157
    %v1270 = vpack.c.b16 %v1162, %v1158
    %v1271 = vpack.c.b16 %v1163, %v1159
    %v1272 = vpack.c.b16 %v1168, %v1164
    %v1273 = vpack.c.b16 %v1169, %v1165
    %v1274 = vpack.c.b16 %v1170, %v1166
    %v1275 = vpack.c.b16 %v1171, %v1167
    %v1276 = vpack.c.b16 %v1176, %v1172
    %v1277 = vpack.c.b16 %v1177, %v1173
    %v1278 = vpack.c.b16 %v1178, %v1174
    %v1279 = vpack.c.b16 %v1179, %v1175
    %v1280 = vpack.c.b16 %v1184, %v1180
    %v1281 = vpack.c.b16 %v1185, %v1181
    %v1282 = vpack.c.b16 %v1186, %v1182
    %v1283 = vpack.c.b16 %v1187, %v1183
    %v1284 = vpack.c.b16 %v1192, %v1188
    %v1285 = vpack.c.b16 %v1193, %v1189
    %v1286 = vpack.c.b16 %v1194, %v1190
    %v1287 = vpack.c.b16 %v1195, %v1191
    %v1288 = vpack.c.b16 %v1200, %v1196
    %v1289 = vpack.c.b16 %v1201, %v1197
    %v1290 = vpack.c.b16 %v1202, %v1198
    %v1291 = vpack.c.b16 %v1203, %v1199
    %v1292 = vpack.c.b16 %v1208, %v1204
    %v1293 = vpack.c.b16 %v1209, %v1205
    %v1294 = vpack.c.b16 %v1210, %v1206
    %v1295 = vpack.c.b16 %v1211, %v1207
    %v1296 = vpack.c.b16 %v1216, %v1212
    %v1297 = vpack.c.b16 %v1217, %v1213
    %v1298 = vpack.c.b16 %v1218, %v1214
    %v1299 = vpack.c.b16 %v1219, %v1215
    %v1300 = vpack.c.b16 %v1224, %v1220
    %v1301 = vpack.c.b16 %v1225, %v1221
    %v1302 = vpack.c.b16 %v1226, %v1222
    %v1303 = vpack.c.b16 %v1227, %v1223
    %v1304 = vpack.c.b16 %v1232, %v1228
    %v1305 = vpack.c.b16 %v1233, %v1229
    %v1306 = vpack.c.b16 %v1234, %v1230
    %v1307 = vpack.c.b16 %v1235, %v1231
    %v1308 = vpack.c.b16 %v1240, %v1236
    %v1309 = vpack.c.b16 %v1241, %v1237
    %v1310 = vpack.c.b16 %v1242, %v1238
    %v1311 = vpack.c.b16 %v1243, %v1239
    %v1312 = vpack.c.b16 %v1248, %v1244
    %v1313 = vpack.c.b16 %v1249, %v1245
    %v1314 = vpack.c.b16 %v1250, %v1246
    %v1315 = vpack.c.b16 %v1251, %v1247
    %1380 = vmatpush.bf16.msra.mxu0 %v1280
    %1381 = vmatpush.bf16.msra.mxu0 %v1276
    %1382 = vmatpush.bf16.msra.mxu0 %v1272
    %1383 = vmatpush.bf16.msra.mxu0 %v1268
    %1384 = vmatpush.bf16.msra.mxu0 %v1264
    %1385 = vmatpush.bf16.msra.mxu0 %v1260
    %1386 = vmatpush.bf16.msra.mxu0 %v1256
    %1387 = vmatpush.bf16.msra.mxu0 %v1252
    %1388 = vmatmul.bf16.gmra.mxu0 %v866
    %v1389 = vpop.f32.mrf.mxu0
    %v1390 = vadd.f32 %v1052, %v1389
    %v1391 = vpop.f32.mrf.mxu0
    %1392 = vdwg.mxu0
    %1393 = vmatpush.bf16.msra.mxu0 %v1312
    %1394 = vmatpush.bf16.msra.mxu0 %v1308
    %1395 = vmatpush.bf16.msra.mxu0 %v1304
    %1396 = vmatpush.bf16.msra.mxu0 %v1300
    %1397 = vmatpush.bf16.msra.mxu0 %v1296
    %1398 = vmatpush.bf16.msra.mxu0 %v1292
    %1399 = vmatpush.bf16.msra.mxu0 %v1288
    %1400 = vmatpush.bf16.msra.mxu0 %v1284
    %1401 = vmatmul.bf16.gmra.mxu0 %v986
    %v1402 = vpop.f32.mrf.mxu0
    %v1403 = vadd.f32 %v1390, %v1402
    %v1404 = vpop.f32.mrf.mxu0
    %1405 = vdwg.mxu0
    %1406 = vmatpush.bf16.msra.mxu0 %v1281
    %1407 = vmatpush.bf16.msra.mxu0 %v1277
    %1408 = vmatpush.bf16.msra.mxu0 %v1273
    %1409 = vmatpush.bf16.msra.mxu0 %v1269
    %1410 = vmatpush.bf16.msra.mxu0 %v1265
    %1411 = vmatpush.bf16.msra.mxu0 %v1261
    %1412 = vmatpush.bf16.msra.mxu0 %v1257
    %1413 = vmatpush.bf16.msra.mxu0 %v1253
    %1414 = vmatmul.bf16.gmra.mxu0 %v866
    %v1415 = vpop.f32.mrf.mxu0
    %v1416 = vadd.f32 %v1053, %v1415
    %v1417 = vpop.f32.mrf.mxu0
    %1418 = vdwg.mxu0
    %1419 = vmatpush.bf16.msra.mxu0 %v1313
    %1420 = vmatpush.bf16.msra.mxu0 %v1309
    %1421 = vmatpush.bf16.msra.mxu0 %v1305
    %1422 = vmatpush.bf16.msra.mxu0 %v1301
    %1423 = vmatpush.bf16.msra.mxu0 %v1297
    %1424 = vmatpush.bf16.msra.mxu0 %v1293
    %1425 = vmatpush.bf16.msra.mxu0 %v1289
    %1426 = vmatpush.bf16.msra.mxu0 %v1285
    %1427 = vmatmul.bf16.gmra.mxu0 %v986
    %v1428 = vpop.f32.mrf.mxu0
    %v1429 = vadd.f32 %v1416, %v1428
    %v1430 = vpop.f32.mrf.mxu0
    %1431 = vdwg.mxu0
    %1432 = vmatpush.bf16.msra.mxu0 %v1282
    %1433 = vmatpush.bf16.msra.mxu0 %v1278
    %1434 = vmatpush.bf16.msra.mxu0 %v1274
    %1435 = vmatpush.bf16.msra.mxu0 %v1270
    %1436 = vmatpush.bf16.msra.mxu0 %v1266
    %1437 = vmatpush.bf16.msra.mxu0 %v1262
    %1438 = vmatpush.bf16.msra.mxu0 %v1258
    %1439 = vmatpush.bf16.msra.mxu0 %v1254
    %1440 = vmatmul.bf16.gmra.mxu0 %v866
    %v1441 = vpop.f32.mrf.mxu0
    %v1442 = vadd.f32 %v1054, %v1441
    %v1443 = vpop.f32.mrf.mxu0
    %1444 = vdwg.mxu0
    %1445 = vmatpush.bf16.msra.mxu0 %v1314
    %1446 = vmatpush.bf16.msra.mxu0 %v1310
    %1447 = vmatpush.bf16.msra.mxu0 %v1306
    %1448 = vmatpush.bf16.msra.mxu0 %v1302
    %1449 = vmatpush.bf16.msra.mxu0 %v1298
    %1450 = vmatpush.bf16.msra.mxu0 %v1294
    %1451 = vmatpush.bf16.msra.mxu0 %v1290
    %1452 = vmatpush.bf16.msra.mxu0 %v1286
    %1453 = vmatmul.bf16.gmra.mxu0 %v986
    %v1454 = vpop.f32.mrf.mxu0
    %v1455 = vadd.f32 %v1442, %v1454
    %v1456 = vpop.f32.mrf.mxu0
    %1457 = vdwg.mxu0
    %1458 = vmatpush.bf16.msra.mxu0 %v1283
    %1459 = vmatpush.bf16.msra.mxu0 %v1279
    %1460 = vmatpush.bf16.msra.mxu0 %v1275
    %1461 = vmatpush.bf16.msra.mxu0 %v1271
    %1462 = vmatpush.bf16.msra.mxu0 %v1267
    %1463 = vmatpush.bf16.msra.mxu0 %v1263
    %1464 = vmatpush.bf16.msra.mxu0 %v1259
    %1465 = vmatpush.bf16.msra.mxu0 %v1255
    %1466 = vmatmul.bf16.gmra.mxu0 %v866
    %v1467 = vpop.f32.mrf.mxu0
    %v1468 = vadd.f32 %v1055, %v1467
    %v1469 = vpop.f32.mrf.mxu0
    %1470 = vdwg.mxu0
    %1471 = vmatpush.bf16.msra.mxu0 %v1315
    %1472 = vmatpush.bf16.msra.mxu0 %v1311
    %1473 = vmatpush.bf16.msra.mxu0 %v1307
    %1474 = vmatpush.bf16.msra.mxu0 %v1303
    %1475 = vmatpush.bf16.msra.mxu0 %v1299
    %1476 = vmatpush.bf16.msra.mxu0 %v1295
    %1477 = vmatpush.bf16.msra.mxu0 %v1291
    %1478 = vmatpush.bf16.msra.mxu0 %v1287
    %1479 = vmatmul.bf16.gmra.mxu0 %v986
    %v1480 = vpop.f32.mrf.mxu0
    %v1481 = vadd.f32 %v1468, %v1480
    %v1482 = vpop.f32.mrf.mxu0
    %1483 = vdwg.mxu0
    %v1484 = vxor.u32 %v1403, 2147483648
    %v1485 = vxor.u32 %v1429, 2147483648
    %v1486 = vxor.u32 %v1455, 2147483648
    %v1487 = vmul.f32 %v1484, 1.442695
    %v1488 = vpow.pop %v1487
    %v1489 = vmul.f32 %v1485, 1.442695
    %v1490 = vpow.pop %v1489
    %v1491 = vmul.f32 %v1486, 1.442695
    %v1492 = vpow.pop %v1491
    %v1493 = vadd.f32 %v1488, 1.0
    %v1494 = vadd.f32 %v1490, 1.0
    %v1495 = vadd.f32 %v1492, 1.0
    %v1496 = vrcp.pop %v1493
    %v1497 = vmul.f32 %v1493, %v1496
    %v1498 = vsub.f32 1.0, %v1497
    %v1499 = vmul.f32 %v1496, %v1498
    %v1500 = vadd.f32 %v1496, %v1499
    %vm1501 = vweird.f32 %v1493
    %vm1502 = vweird.f32 %v1496
    %vm1503 = vmor %vm1501, %vm1502
    %v1504 = vsel %vm1503, %v1496, %v1500
    %v1505 = vand.u32 2147483647, %v1493
    %vm1506 = vcmp.eq.f32.partialorder %v1505, 8.507059e+37
    %v1507 = vand.u32 %v1493, 2147483648
    %v1508 = vor.u32 1.1754944e-38, %v1507
    %v1509 = vsel %vm1506, %v1508, %v1504
    %v1510 = vmul.f32 1.0, %v1509
    %v1511 = vrcp.pop %v1494
    %v1512 = vmul.f32 %v1494, %v1511
    %v1513 = vsub.f32 1.0, %v1512
    %v1514 = vmul.f32 %v1511, %v1513
    %v1515 = vadd.f32 %v1511, %v1514
    %vm1516 = vweird.f32 %v1494
    %vm1517 = vweird.f32 %v1511
    %vm1518 = vmor %vm1516, %vm1517
    %v1519 = vsel %vm1518, %v1511, %v1515
    %v1520 = vand.u32 2147483647, %v1494
    %vm1521 = vcmp.eq.f32.partialorder %v1520, 8.507059e+37
    %v1522 = vand.u32 %v1494, 2147483648
    %v1523 = vor.u32 1.1754944e-38, %v1522
    %v1524 = vsel %vm1521, %v1523, %v1519
    %v1525 = vmul.f32 1.0, %v1524
    %v1526 = vrcp.pop %v1495
    %v1527 = vmul.f32 %v1495, %v1526
    %v1528 = vsub.f32 1.0, %v1527
    %v1529 = vmul.f32 %v1526, %v1528
    %v1530 = vadd.f32 %v1526, %v1529
    %vm1531 = vweird.f32 %v1495
    %vm1532 = vweird.f32 %v1526
    %vm1533 = vmor %vm1531, %vm1532
    %v1534 = vsel %vm1533, %v1526, %v1530
    %v1535 = vand.u32 2147483647, %v1495
    %vm1536 = vcmp.eq.f32.partialorder %v1535, 8.507059e+37
    %v1537 = vand.u32 %v1495, 2147483648
    %v1538 = vor.u32 1.1754944e-38, %v1537
    %v1539 = vsel %vm1536, %v1538, %v1534
    %v1540 = vmul.f32 1.0, %v1539
    %v1541 = vtanh.pop %v1481
    %v1542 = vmul.f32 %v1525, %v542
    %v1543 = vmul.f32 %v1510, %v1541
    %v1544 = vadd.f32 %v1542, %v1543
    %v1545 = vtanh.pop %v1544
    %v1546 = vmul.f32 %v1540, %v1545
    %s1547 = scalar_lea.vmem [#allocation2], 64
    %v1548 = vld [vmem:[%s1547] sm:$0xff]
    %v1549 = vld [vmem:[%s1547 + $0x8] sm:$0xff]
    %v1550 = vld [vmem:[%s1547 + $0x10] sm:$0xff]
    %v1551 = vld [vmem:[%s1547 + $0x18] sm:$0xff]
    %v1552 = vpack.c.bf16 %v985, %v985
    %1553 = vmatpush.bf16.msra.mxu0 %v706
    %1554 = vmatpush.bf16.msra.mxu0 %v702
    %1555 = vmatpush.bf16.msra.mxu0 %v698
    %1556 = vmatpush.bf16.msra.mxu0 %v694
    %1557 = vmatpush.bf16.msra.mxu0 %v690
    %1558 = vmatpush.bf16.msra.mxu0 %v686
    %1559 = vmatpush.bf16.msra.mxu0 %v682
    %1560 = vmatpush.bf16.msra.mxu0 %v678
    %1561 = vmatmul.bf16.gmra.mxu0 %v1552
    %v1562 = vpop.f32.mrf.mxu0
    %v1563 = vadd.f32 0.0, %v1562
    %v1564 = vpop.f32.mrf.mxu0
    %1565 = vdwg.mxu0
    %1566 = vmatpush.bf16.msra.mxu0 %v707
    %1567 = vmatpush.bf16.msra.mxu0 %v703
    %1568 = vmatpush.bf16.msra.mxu0 %v699
    %1569 = vmatpush.bf16.msra.mxu0 %v695
    %1570 = vmatpush.bf16.msra.mxu0 %v691
    %1571 = vmatpush.bf16.msra.mxu0 %v687
    %1572 = vmatpush.bf16.msra.mxu0 %v683
    %1573 = vmatpush.bf16.msra.mxu0 %v679
    %1574 = vmatmul.bf16.gmra.mxu0 %v1552
    %v1575 = vpop.f32.mrf.mxu0
    %v1576 = vadd.f32 0.0, %v1575
    %v1577 = vpop.f32.mrf.mxu0
    %1578 = vdwg.mxu0
    %1579 = vmatpush.bf16.msra.mxu0 %v708
    %1580 = vmatpush.bf16.msra.mxu0 %v704
    %1581 = vmatpush.bf16.msra.mxu0 %v700
    %1582 = vmatpush.bf16.msra.mxu0 %v696
    %1583 = vmatpush.bf16.msra.mxu0 %v692
    %1584 = vmatpush.bf16.msra.mxu0 %v688
    %1585 = vmatpush.bf16.msra.mxu0 %v684
    %1586 = vmatpush.bf16.msra.mxu0 %v680
    %1587 = vmatmul.bf16.gmra.mxu0 %v1552
    %v1588 = vpop.f32.mrf.mxu0
    %v1589 = vadd.f32 0.0, %v1588
    %v1590 = vpop.f32.mrf.mxu0
    %1591 = vdwg.mxu0
    %1592 = vmatpush.bf16.msra.mxu0 %v709
    %1593 = vmatpush.bf16.msra.mxu0 %v705
    %1594 = vmatpush.bf16.msra.mxu0 %v701
    %1595 = vmatpush.bf16.msra.mxu0 %v697
    %1596 = vmatpush.bf16.msra.mxu0 %v693
    %1597 = vmatpush.bf16.msra.mxu0 %v689
    %1598 = vmatpush.bf16.msra.mxu0 %v685
    %1599 = vmatpush.bf16.msra.mxu0 %v681
    %1600 = vmatmul.bf16.gmra.mxu0 %v1552
    %v1601 = vpop.f32.mrf.mxu0
    %v1602 = vadd.f32 0.0, %v1601
    %v1603 = vpop.f32.mrf.mxu0
    %1604 = vdwg.mxu0
    %v1605 = vadd.f32 %v1548, %v1563
    %v1606 = vadd.f32 %v1549, %v1576
    %v1607 = vadd.f32 %v1550, %v1589
    %v1608 = vadd.f32 %v1551, %v1602
    %v1609 = vxor.u32 %v1605, 2147483648
    %v1610 = vxor.u32 %v1606, 2147483648
    %v1611 = vxor.u32 %v1607, 2147483648
    %v1612 = vmul.f32 %v1609, 1.442695
    %v1613 = vpow.pop %v1612
    %v1614 = vmul.f32 %v1610, 1.442695
    %v1615 = vpow.pop %v1614
    %v1616 = vmul.f32 %v1611, 1.442695
    %v1617 = vpow.pop %v1616
    %v1618 = vadd.f32 %v1613, 1.0
    %v1619 = vadd.f32 %v1615, 1.0
    %v1620 = vadd.f32 %v1617, 1.0
    %v1621 = vrcp.pop %v1618
    %v1622 = vmul.f32 %v1618, %v1621
    %v1623 = vsub.f32 1.0, %v1622
    %v1624 = vmul.f32 %v1621, %v1623
    %v1625 = vadd.f32 %v1621, %v1624
    %vm1626 = vweird.f32 %v1618
    %vm1627 = vweird.f32 %v1621
    %vm1628 = vmor %vm1626, %vm1627
    %v1629 = vsel %vm1628, %v1621, %v1625
    %v1630 = vand.u32 2147483647, %v1618
    %vm1631 = vcmp.eq.f32.partialorder %v1630, 8.507059e+37
    %v1632 = vand.u32 %v1618, 2147483648
    %v1633 = vor.u32 1.1754944e-38, %v1632
    %v1634 = vsel %vm1631, %v1633, %v1629
    %v1635 = vmul.f32 1.0, %v1634
    %v1636 = vrcp.pop %v1619
    %v1637 = vmul.f32 %v1619, %v1636
    %v1638 = vsub.f32 1.0, %v1637
    %v1639 = vmul.f32 %v1636, %v1638
    %v1640 = vadd.f32 %v1636, %v1639
    %vm1641 = vweird.f32 %v1619
    %vm1642 = vweird.f32 %v1636
    %vm1643 = vmor %vm1641, %vm1642
    %v1644 = vsel %vm1643, %v1636, %v1640
    %v1645 = vand.u32 2147483647, %v1619
    %vm1646 = vcmp.eq.f32.partialorder %v1645, 8.507059e+37
    %v1647 = vand.u32 %v1619, 2147483648
    %v1648 = vor.u32 1.1754944e-38, %v1647
    %v1649 = vsel %vm1646, %v1648, %v1644
    %v1650 = vmul.f32 1.0, %v1649
    %v1651 = vrcp.pop %v1620
    %v1652 = vmul.f32 %v1620, %v1651
    %v1653 = vsub.f32 1.0, %v1652
    %v1654 = vmul.f32 %v1651, %v1653
    %v1655 = vadd.f32 %v1651, %v1654
    %vm1656 = vweird.f32 %v1620
    %vm1657 = vweird.f32 %v1651
    %vm1658 = vmor %vm1656, %vm1657
    %v1659 = vsel %vm1658, %v1651, %v1655
    %v1660 = vand.u32 2147483647, %v1620
    %vm1661 = vcmp.eq.f32.partialorder %v1660, 8.507059e+37
    %v1662 = vand.u32 %v1620, 2147483648
    %v1663 = vor.u32 1.1754944e-38, %v1662
    %v1664 = vsel %vm1661, %v1663, %v1659
    %v1665 = vmul.f32 1.0, %v1664
    %v1666 = vtanh.pop %v1608
    %v1667 = vmul.f32 %v1650, %v983
    %v1668 = vmul.f32 %v1635, %v1666
    %v1669 = vadd.f32 %v1667, %v1668
    %v1670 = vtanh.pop %v1669
    %v1671 = vmul.f32 %v1665, %v1670
    %v1672 = vpack.c.bf16 %v1546, %v1546
    %1673 = vmatpush.bf16.msra.mxu0 %v1280
    %1674 = vmatpush.bf16.msra.mxu0 %v1276
    %1675 = vmatpush.bf16.msra.mxu0 %v1272
    %1676 = vmatpush.bf16.msra.mxu0 %v1268
    %1677 = vmatpush.bf16.msra.mxu0 %v1264
    %1678 = vmatpush.bf16.msra.mxu0 %v1260
    %1679 = vmatpush.bf16.msra.mxu0 %v1256
    %1680 = vmatpush.bf16.msra.mxu0 %v1252
    %1681 = vmatmul.bf16.gmra.mxu0 %v1552
    %v1682 = vpop.f32.mrf.mxu0
    %v1683 = vadd.f32 %v1052, %v1682
    %v1684 = vpop.f32.mrf.mxu0
    %1685 = vdwg.mxu0
    %1686 = vmatpush.bf16.msra.mxu0 %v1312
    %1687 = vmatpush.bf16.msra.mxu0 %v1308
    %1688 = vmatpush.bf16.msra.mxu0 %v1304
    %1689 = vmatpush.bf16.msra.mxu0 %v1300
    %1690 = vmatpush.bf16.msra.mxu0 %v1296
    %1691 = vmatpush.bf16.msra.mxu0 %v1292
    %1692 = vmatpush.bf16.msra.mxu0 %v1288
    %1693 = vmatpush.bf16.msra.mxu0 %v1284
    %1694 = vmatmul.bf16.gmra.mxu0 %v1672
    %v1695 = vpop.f32.mrf.mxu0
    %v1696 = vadd.f32 %v1683, %v1695
    %v1697 = vpop.f32.mrf.mxu0
    %1698 = vdwg.mxu0
    %1699 = vmatpush.bf16.msra.mxu0 %v1281
    %1700 = vmatpush.bf16.msra.mxu0 %v1277
    %1701 = vmatpush.bf16.msra.mxu0 %v1273
    %1702 = vmatpush.bf16.msra.mxu0 %v1269
    %1703 = vmatpush.bf16.msra.mxu0 %v1265
    %1704 = vmatpush.bf16.msra.mxu0 %v1261
    %1705 = vmatpush.bf16.msra.mxu0 %v1257
    %1706 = vmatpush.bf16.msra.mxu0 %v1253
    %1707 = vmatmul.bf16.gmra.mxu0 %v1552
    %v1708 = vpop.f32.mrf.mxu0
    %v1709 = vadd.f32 %v1053, %v1708
    %v1710 = vpop.f32.mrf.mxu0
    %1711 = vdwg.mxu0
    %1712 = vmatpush.bf16.msra.mxu0 %v1313
    %1713 = vmatpush.bf16.msra.mxu0 %v1309
    %1714 = vmatpush.bf16.msra.mxu0 %v1305
    %1715 = vmatpush.bf16.msra.mxu0 %v1301
    %1716 = vmatpush.bf16.msra.mxu0 %v1297
    %1717 = vmatpush.bf16.msra.mxu0 %v1293
    %1718 = vmatpush.bf16.msra.mxu0 %v1289
    %1719 = vmatpush.bf16.msra.mxu0 %v1285
    %1720 = vmatmul.bf16.gmra.mxu0 %v1672
    %v1721 = vpop.f32.mrf.mxu0
    %v1722 = vadd.f32 %v1709, %v1721
    %v1723 = vpop.f32.mrf.mxu0
    %1724 = vdwg.mxu0
    %1725 = vmatpush.bf16.msra.mxu0 %v1282
    %1726 = vmatpush.bf16.msra.mxu0 %v1278
    %1727 = vmatpush.bf16.msra.mxu0 %v1274
    %1728 = vmatpush.bf16.msra.mxu0 %v1270
    %1729 = vmatpush.bf16.msra.mxu0 %v1266
    %1730 = vmatpush.bf16.msra.mxu0 %v1262
    %1731 = vmatpush.bf16.msra.mxu0 %v1258
    %1732 = vmatpush.bf16.msra.mxu0 %v1254
    %1733 = vmatmul.bf16.gmra.mxu0 %v1552
    %v1734 = vpop.f32.mrf.mxu0
    %v1735 = vadd.f32 %v1054, %v1734
    %v1736 = vpop.f32.mrf.mxu0
    %1737 = vdwg.mxu0
    %1738 = vmatpush.bf16.msra.mxu0 %v1314
    %1739 = vmatpush.bf16.msra.mxu0 %v1310
    %1740 = vmatpush.bf16.msra.mxu0 %v1306
    %1741 = vmatpush.bf16.msra.mxu0 %v1302
    %1742 = vmatpush.bf16.msra.mxu0 %v1298
    %1743 = vmatpush.bf16.msra.mxu0 %v1294
    %1744 = vmatpush.bf16.msra.mxu0 %v1290
    %1745 = vmatpush.bf16.msra.mxu0 %v1286
    %1746 = vmatmul.bf16.gmra.mxu0 %v1672
    %v1747 = vpop.f32.mrf.mxu0
    %v1748 = vadd.f32 %v1735, %v1747
    %v1749 = vpop.f32.mrf.mxu0
    %1750 = vdwg.mxu0
    %1751 = vmatpush.bf16.msra.mxu0 %v1283
    %1752 = vmatpush.bf16.msra.mxu0 %v1279
    %1753 = vmatpush.bf16.msra.mxu0 %v1275
    %1754 = vmatpush.bf16.msra.mxu0 %v1271
    %1755 = vmatpush.bf16.msra.mxu0 %v1267
    %1756 = vmatpush.bf16.msra.mxu0 %v1263
    %1757 = vmatpush.bf16.msra.mxu0 %v1259
    %1758 = vmatpush.bf16.msra.mxu0 %v1255
    %1759 = vmatmul.bf16.gmra.mxu0 %v1552
    %v1760 = vpop.f32.mrf.mxu0
    %v1761 = vadd.f32 %v1055, %v1760
    %v1762 = vpop.f32.mrf.mxu0
    %1763 = vdwg.mxu0
    %1764 = vmatpush.bf16.msra.mxu0 %v1315
    %1765 = vmatpush.bf16.msra.mxu0 %v1311
    %1766 = vmatpush.bf16.msra.mxu0 %v1307
    %1767 = vmatpush.bf16.msra.mxu0 %v1303
    %1768 = vmatpush.bf16.msra.mxu0 %v1299
    %1769 = vmatpush.bf16.msra.mxu0 %v1295
    %1770 = vmatpush.bf16.msra.mxu0 %v1291
    %1771 = vmatpush.bf16.msra.mxu0 %v1287
    %1772 = vmatmul.bf16.gmra.mxu0 %v1672
    %v1773 = vpop.f32.mrf.mxu0
    %v1774 = vadd.f32 %v1761, %v1773
    %v1775 = vpop.f32.mrf.mxu0
    %1776 = vdwg.mxu0
    %v1777 = vxor.u32 %v1696, 2147483648
    %v1778 = vxor.u32 %v1722, 2147483648
    %v1779 = vxor.u32 %v1748, 2147483648
    %v1780 = vmul.f32 %v1777, 1.442695
    %v1781 = vpow.pop %v1780
    %v1782 = vmul.f32 %v1778, 1.442695
    %v1783 = vpow.pop %v1782
    %v1784 = vmul.f32 %v1779, 1.442695
    %v1785 = vpow.pop %v1784
    %v1786 = vadd.f32 %v1781, 1.0
    %v1787 = vadd.f32 %v1783, 1.0
    %v1788 = vadd.f32 %v1785, 1.0
    %v1789 = vrcp.pop %v1786
    %v1790 = vmul.f32 %v1786, %v1789
    %v1791 = vsub.f32 1.0, %v1790
    %v1792 = vmul.f32 %v1789, %v1791
    %v1793 = vadd.f32 %v1789, %v1792
    %vm1794 = vweird.f32 %v1786
    %vm1795 = vweird.f32 %v1789
    %vm1796 = vmor %vm1794, %vm1795
    %v1797 = vsel %vm1796, %v1789, %v1793
    %v1798 = vand.u32 2147483647, %v1786
    %vm1799 = vcmp.eq.f32.partialorder %v1798, 8.507059e+37
    %v1800 = vand.u32 %v1786, 2147483648
    %v1801 = vor.u32 1.1754944e-38, %v1800
    %v1802 = vsel %vm1799, %v1801, %v1797
    %v1803 = vmul.f32 1.0, %v1802
    %v1804 = vrcp.pop %v1787
    %v1805 = vmul.f32 %v1787, %v1804
    %v1806 = vsub.f32 1.0, %v1805
    %v1807 = vmul.f32 %v1804, %v1806
    %v1808 = vadd.f32 %v1804, %v1807
    %vm1809 = vweird.f32 %v1787
    %vm1810 = vweird.f32 %v1804
    %vm1811 = vmor %vm1809, %vm1810
    %v1812 = vsel %vm1811, %v1804, %v1808
    %v1813 = vand.u32 2147483647, %v1787
    %vm1814 = vcmp.eq.f32.partialorder %v1813, 8.507059e+37
    %v1815 = vand.u32 %v1787, 2147483648
    %v1816 = vor.u32 1.1754944e-38, %v1815
    %v1817 = vsel %vm1814, %v1816, %v1812
    %v1818 = vmul.f32 1.0, %v1817
    %v1819 = vrcp.pop %v1788
    %v1820 = vmul.f32 %v1788, %v1819
    %v1821 = vsub.f32 1.0, %v1820
    %v1822 = vmul.f32 %v1819, %v1821
    %v1823 = vadd.f32 %v1819, %v1822
    %vm1824 = vweird.f32 %v1788
    %vm1825 = vweird.f32 %v1819
    %vm1826 = vmor %vm1824, %vm1825
    %v1827 = vsel %vm1826, %v1819, %v1823
    %v1828 = vand.u32 2147483647, %v1788
    %vm1829 = vcmp.eq.f32.partialorder %v1828, 8.507059e+37
    %v1830 = vand.u32 %v1788, 2147483648
    %v1831 = vor.u32 1.1754944e-38, %v1830
    %v1832 = vsel %vm1829, %v1831, %v1827
    %v1833 = vmul.f32 1.0, %v1832
    %v1834 = vtanh.pop %v1774
    %v1835 = vmul.f32 %v1818, %v1544
    %v1836 = vmul.f32 %v1803, %v1834
    %v1837 = vadd.f32 %v1835, %v1836
    %v1838 = vtanh.pop %v1837
    %v1839 = vmul.f32 %v1833, %v1838
    %v1840 = vpack.c.bf16 %v539, %v539
    %s1841 = scalar_lea.vmem [#allocation7], 512
    %v1842 = vld [vmem:[%s1841] sm:$0xff]
    %v1843 = vld [vmem:[%s1841 + $0x8] sm:$0xff]
    %v1844 = vld [vmem:[%s1841 + $0x10] sm:$0xff]
    %v1845 = vld [vmem:[%s1841 + $0x18] sm:$0xff]
    %v1846 = vld [vmem:[%s1841 + $0x20] sm:$0xff]
    %v1847 = vld [vmem:[%s1841 + $0x28] sm:$0xff]
    %v1848 = vld [vmem:[%s1841 + $0x30] sm:$0xff]
    %v1849 = vld [vmem:[%s1841 + $0x38] sm:$0xff]
    %v1850 = vld [vmem:[%s1841 + $0x40] sm:$0xff]
    %v1851 = vld [vmem:[%s1841 + $0x48] sm:$0xff]
    %v1852 = vld [vmem:[%s1841 + $0x50] sm:$0xff]
    %v1853 = vld [vmem:[%s1841 + $0x58] sm:$0xff]
    %v1854 = vld [vmem:[%s1841 + $0x60] sm:$0xff]
    %v1855 = vld [vmem:[%s1841 + $0x68] sm:$0xff]
    %v1856 = vld [vmem:[%s1841 + $0x70] sm:$0xff]
    %v1857 = vld [vmem:[%s1841 + $0x78] sm:$0xff]
    %v1858 = vld [vmem:[%s1841 + $0x80] sm:$0xff]
    %v1859 = vld [vmem:[%s1841 + $0x88] sm:$0xff]
    %v1860 = vld [vmem:[%s1841 + $0x90] sm:$0xff]
    %v1861 = vld [vmem:[%s1841 + $0x98] sm:$0xff]
    %v1862 = vld [vmem:[%s1841 + $0xa0] sm:$0xff]
    %v1863 = vld [vmem:[%s1841 + $0xa8] sm:$0xff]
    %v1864 = vld [vmem:[%s1841 + $0xb0] sm:$0xff]
    %v1865 = vld [vmem:[%s1841 + $0xb8] sm:$0xff]
    %v1866 = vld [vmem:[%s1841 + $0xc0] sm:$0xff]
    %v1867 = vld [vmem:[%s1841 + $0xc8] sm:$0xff]
    %v1868 = vld [vmem:[%s1841 + $0xd0] sm:$0xff]
    %v1869 = vld [vmem:[%s1841 + $0xd8] sm:$0xff]
    %v1870 = vld [vmem:[%s1841 + $0xe0] sm:$0xff]
    %v1871 = vld [vmem:[%s1841 + $0xe8] sm:$0xff]
    %v1872 = vld [vmem:[%s1841 + $0xf0] sm:$0xff]
    %v1873 = vld [vmem:[%s1841 + $0xf8] sm:$0xff]
    %v1874 = vld [vmem:[%s1841 + $0x100] sm:$0xff]
    %v1875 = vld [vmem:[%s1841 + $0x108] sm:$0xff]
    %v1876 = vld [vmem:[%s1841 + $0x110] sm:$0xff]
    %v1877 = vld [vmem:[%s1841 + $0x118] sm:$0xff]
    %v1878 = vld [vmem:[%s1841 + $0x120] sm:$0xff]
    %v1879 = vld [vmem:[%s1841 + $0x128] sm:$0xff]
    %v1880 = vld [vmem:[%s1841 + $0x130] sm:$0xff]
    %v1881 = vld [vmem:[%s1841 + $0x138] sm:$0xff]
    %v1882 = vld [vmem:[%s1841 + $0x140] sm:$0xff]
    %v1883 = vld [vmem:[%s1841 + $0x148] sm:$0xff]
    %v1884 = vld [vmem:[%s1841 + $0x150] sm:$0xff]
    %v1885 = vld [vmem:[%s1841 + $0x158] sm:$0xff]
    %v1886 = vld [vmem:[%s1841 + $0x160] sm:$0xff]
    %v1887 = vld [vmem:[%s1841 + $0x168] sm:$0xff]
    %v1888 = vld [vmem:[%s1841 + $0x170] sm:$0xff]
    %v1889 = vld [vmem:[%s1841 + $0x178] sm:$0xff]
    %v1890 = vld [vmem:[%s1841 + $0x180] sm:$0xff]
    %v1891 = vld [vmem:[%s1841 + $0x188] sm:$0xff]
    %v1892 = vld [vmem:[%s1841 + $0x190] sm:$0xff]
    %v1893 = vld [vmem:[%s1841 + $0x198] sm:$0xff]
    %v1894 = vld [vmem:[%s1841 + $0x1a0] sm:$0xff]
    %v1895 = vld [vmem:[%s1841 + $0x1a8] sm:$0xff]
    %v1896 = vld [vmem:[%s1841 + $0x1b0] sm:$0xff]
    %v1897 = vld [vmem:[%s1841 + $0x1b8] sm:$0xff]
    %v1898 = vld [vmem:[%s1841 + $0x1c0] sm:$0xff]
    %v1899 = vld [vmem:[%s1841 + $0x1c8] sm:$0xff]
    %v1900 = vld [vmem:[%s1841 + $0x1d0] sm:$0xff]
    %v1901 = vld [vmem:[%s1841 + $0x1d8] sm:$0xff]
    %v1902 = vld [vmem:[%s1841 + $0x1e0] sm:$0xff]
    %v1903 = vld [vmem:[%s1841 + $0x1e8] sm:$0xff]
    %v1904 = vld [vmem:[%s1841 + $0x1f0] sm:$0xff]
    %v1905 = vld [vmem:[%s1841 + $0x1f8] sm:$0xff]
    %v1907 = vperm.slane %v533, 0
    %v1908 = vperm.slane %v533, 1
    %v1909 = vperm.slane %v533, 2
    %v1910 = vperm.slane %v533, 3
    %v1979 = vunpack.c.l.b16 %v1842
    %v1980 = vunpack.c.h.b16 %v1842
    %v1981 = vunpack.c.l.b16 %v1843
    %v1982 = vunpack.c.h.b16 %v1843
    %v1983 = vunpack.c.l.b16 %v1844
    %v1984 = vunpack.c.h.b16 %v1844
    %v1985 = vunpack.c.l.b16 %v1845
    %v1986 = vunpack.c.h.b16 %v1845
    %v1987 = vunpack.c.l.b16 %v1846
    %v1988 = vunpack.c.h.b16 %v1846
    %v1989 = vunpack.c.l.b16 %v1847
    %v1990 = vunpack.c.h.b16 %v1847
    %v1991 = vunpack.c.l.b16 %v1848
    %v1992 = vunpack.c.h.b16 %v1848
    %v1993 = vunpack.c.l.b16 %v1849
    %v1994 = vunpack.c.h.b16 %v1849
    %v1995 = vunpack.c.l.b16 %v1850
    %v1996 = vunpack.c.h.b16 %v1850
    %v1997 = vunpack.c.l.b16 %v1851
    %v1998 = vunpack.c.h.b16 %v1851
    %v1999 = vunpack.c.l.b16 %v1852
    %v2000 = vunpack.c.h.b16 %v1852
    %v2001 = vunpack.c.l.b16 %v1853
    %v2002 = vunpack.c.h.b16 %v1853
    %v2003 = vunpack.c.l.b16 %v1854
    %v2004 = vunpack.c.h.b16 %v1854
    %v2005 = vunpack.c.l.b16 %v1855
    %v2006 = vunpack.c.h.b16 %v1855
    %v2007 = vunpack.c.l.b16 %v1856
    %v2008 = vunpack.c.h.b16 %v1856
    %v2009 = vunpack.c.l.b16 %v1857
    %v2010 = vunpack.c.h.b16 %v1857
    %v2011 = vunpack.c.l.b16 %v1858
    %v2012 = vunpack.c.h.b16 %v1858
    %v2013 = vunpack.c.l.b16 %v1859
    %v2014 = vunpack.c.h.b16 %v1859
    %v2015 = vunpack.c.l.b16 %v1860
    %v2016 = vunpack.c.h.b16 %v1860
    %v2017 = vunpack.c.l.b16 %v1861
    %v2018 = vunpack.c.h.b16 %v1861
    %v2019 = vunpack.c.l.b16 %v1862
    %v2020 = vunpack.c.h.b16 %v1862
    %v2021 = vunpack.c.l.b16 %v1863
    %v2022 = vunpack.c.h.b16 %v1863
    %v2023 = vunpack.c.l.b16 %v1864
    %v2024 = vunpack.c.h.b16 %v1864
    %v2025 = vunpack.c.l.b16 %v1865
    %v2026 = vunpack.c.h.b16 %v1865
    %v2027 = vunpack.c.l.b16 %v1866
    %v2028 = vunpack.c.h.b16 %v1866
    %v2029 = vunpack.c.l.b16 %v1867
    %v2030 = vunpack.c.h.b16 %v1867
    %v2031 = vunpack.c.l.b16 %v1868
    %v2032 = vunpack.c.h.b16 %v1868
    %v2033 = vunpack.c.l.b16 %v1869
    %v2034 = vunpack.c.h.b16 %v1869
    %v2035 = vunpack.c.l.b16 %v1870
    %v2036 = vunpack.c.h.b16 %v1870
    %v2037 = vunpack.c.l.b16 %v1871
    %v2038 = vunpack.c.h.b16 %v1871
    %v2039 = vunpack.c.l.b16 %v1872
    %v2040 = vunpack.c.h.b16 %v1872
    %v2041 = vunpack.c.l.b16 %v1873
    %v2042 = vunpack.c.h.b16 %v1873
    %v2043 = vunpack.c.l.b16 %v1874
    %v2044 = vunpack.c.h.b16 %v1874
    %v2045 = vunpack.c.l.b16 %v1875
    %v2046 = vunpack.c.h.b16 %v1875
    %v2047 = vunpack.c.l.b16 %v1876
    %v2048 = vunpack.c.h.b16 %v1876
    %v2049 = vunpack.c.l.b16 %v1877
    %v2050 = vunpack.c.h.b16 %v1877
    %v2051 = vunpack.c.l.b16 %v1878
    %v2052 = vunpack.c.h.b16 %v1878
    %v2053 = vunpack.c.l.b16 %v1879
    %v2054 = vunpack.c.h.b16 %v1879
    %v2055 = vunpack.c.l.b16 %v1880
    %v2056 = vunpack.c.h.b16 %v1880
    %v2057 = vunpack.c.l.b16 %v1881
    %v2058 = vunpack.c.h.b16 %v1881
    %v2059 = vunpack.c.l.b16 %v1882
    %v2060 = vunpack.c.h.b16 %v1882
    %v2061 = vunpack.c.l.b16 %v1883
    %v2062 = vunpack.c.h.b16 %v1883
    %v2063 = vunpack.c.l.b16 %v1884
    %v2064 = vunpack.c.h.b16 %v1884
    %v2065 = vunpack.c.l.b16 %v1885
    %v2066 = vunpack.c.h.b16 %v1885
    %v2067 = vunpack.c.l.b16 %v1886
    %v2068 = vunpack.c.h.b16 %v1886
    %v2069 = vunpack.c.l.b16 %v1887
    %v2070 = vunpack.c.h.b16 %v1887
    %v2071 = vunpack.c.l.b16 %v1888
    %v2072 = vunpack.c.h.b16 %v1888
    %v2073 = vunpack.c.l.b16 %v1889
    %v2074 = vunpack.c.h.b16 %v1889
    %v2075 = vunpack.c.l.b16 %v1890
    %v2076 = vunpack.c.h.b16 %v1890
    %v2077 = vunpack.c.l.b16 %v1891
    %v2078 = vunpack.c.h.b16 %v1891
    %v2079 = vunpack.c.l.b16 %v1892
    %v2080 = vunpack.c.h.b16 %v1892
    %v2081 = vunpack.c.l.b16 %v1893
    %v2082 = vunpack.c.h.b16 %v1893
    %v2083 = vunpack.c.l.b16 %v1894
    %v2084 = vunpack.c.h.b16 %v1894
    %v2085 = vunpack.c.l.b16 %v1895
    %v2086 = vunpack.c.h.b16 %v1895
    %v2087 = vunpack.c.l.b16 %v1896
    %v2088 = vunpack.c.h.b16 %v1896
    %v2089 = vunpack.c.l.b16 %v1897
    %v2090 = vunpack.c.h.b16 %v1897
    %v2091 = vunpack.c.l.b16 %v1898
    %v2092 = vunpack.c.h.b16 %v1898
    %v2093 = vunpack.c.l.b16 %v1899
    %v2094 = vunpack.c.h.b16 %v1899
    %v2095 = vunpack.c.l.b16 %v1900
    %v2096 = vunpack.c.h.b16 %v1900
    %v2097 = vunpack.c.l.b16 %v1901
    %v2098 = vunpack.c.h.b16 %v1901
    %v2099 = vunpack.c.l.b16 %v1902
    %v2100 = vunpack.c.h.b16 %v1902
    %v2101 = vunpack.c.l.b16 %v1903
    %v2102 = vunpack.c.h.b16 %v1903
    %v2103 = vunpack.c.l.b16 %v1904
    %v2104 = vunpack.c.h.b16 %v1904
    %v2105 = vunpack.c.l.b16 %v1905
    %v2106 = vunpack.c.h.b16 %v1905
    %v2107 = vpack.c.b16 %v1983, %v1979
    %v2108 = vpack.c.b16 %v1984, %v1980
    %v2109 = vpack.c.b16 %v1985, %v1981
    %v2110 = vpack.c.b16 %v1986, %v1982
    %v2111 = vpack.c.b16 %v1991, %v1987
    %v2112 = vpack.c.b16 %v1992, %v1988
    %v2113 = vpack.c.b16 %v1993, %v1989
    %v2114 = vpack.c.b16 %v1994, %v1990
    %v2115 = vpack.c.b16 %v1999, %v1995
    %v2116 = vpack.c.b16 %v2000, %v1996
    %v2117 = vpack.c.b16 %v2001, %v1997
    %v2118 = vpack.c.b16 %v2002, %v1998
    %v2119 = vpack.c.b16 %v2007, %v2003
    %v2120 = vpack.c.b16 %v2008, %v2004
    %v2121 = vpack.c.b16 %v2009, %v2005
    %v2122 = vpack.c.b16 %v2010, %v2006
    %v2123 = vpack.c.b16 %v2015, %v2011
    %v2124 = vpack.c.b16 %v2016, %v2012
    %v2125 = vpack.c.b16 %v2017, %v2013
    %v2126 = vpack.c.b16 %v2018, %v2014
    %v2127 = vpack.c.b16 %v2023, %v2019
    %v2128 = vpack.c.b16 %v2024, %v2020
    %v2129 = vpack.c.b16 %v2025, %v2021
    %v2130 = vpack.c.b16 %v2026, %v2022
    %v2131 = vpack.c.b16 %v2031, %v2027
    %v2132 = vpack.c.b16 %v2032, %v2028
    %v2133 = vpack.c.b16 %v2033, %v2029
    %v2134 = vpack.c.b16 %v2034, %v2030
    %v2135 = vpack.c.b16 %v2039, %v2035
    %v2136 = vpack.c.b16 %v2040, %v2036
    %v2137 = vpack.c.b16 %v2041, %v2037
    %v2138 = vpack.c.b16 %v2042, %v2038
    %v2139 = vpack.c.b16 %v2047, %v2043
    %v2140 = vpack.c.b16 %v2048, %v2044
    %v2141 = vpack.c.b16 %v2049, %v2045
    %v2142 = vpack.c.b16 %v2050, %v2046
    %v2143 = vpack.c.b16 %v2055, %v2051
    %v2144 = vpack.c.b16 %v2056, %v2052
    %v2145 = vpack.c.b16 %v2057, %v2053
    %v2146 = vpack.c.b16 %v2058, %v2054
    %v2147 = vpack.c.b16 %v2063, %v2059
    %v2148 = vpack.c.b16 %v2064, %v2060
    %v2149 = vpack.c.b16 %v2065, %v2061
    %v2150 = vpack.c.b16 %v2066, %v2062
    %v2151 = vpack.c.b16 %v2071, %v2067
    %v2152 = vpack.c.b16 %v2072, %v2068
    %v2153 = vpack.c.b16 %v2073, %v2069
    %v2154 = vpack.c.b16 %v2074, %v2070
    %v2155 = vpack.c.b16 %v2079, %v2075
    %v2156 = vpack.c.b16 %v2080, %v2076
    %v2157 = vpack.c.b16 %v2081, %v2077
    %v2158 = vpack.c.b16 %v2082, %v2078
    %v2159 = vpack.c.b16 %v2087, %v2083
    %v2160 = vpack.c.b16 %v2088, %v2084
    %v2161 = vpack.c.b16 %v2089, %v2085
    %v2162 = vpack.c.b16 %v2090, %v2086
    %v2163 = vpack.c.b16 %v2095, %v2091
    %v2164 = vpack.c.b16 %v2096, %v2092
    %v2165 = vpack.c.b16 %v2097, %v2093
    %v2166 = vpack.c.b16 %v2098, %v2094
    %v2167 = vpack.c.b16 %v2103, %v2099
    %v2168 = vpack.c.b16 %v2104, %v2100
    %v2169 = vpack.c.b16 %v2105, %v2101
    %v2170 = vpack.c.b16 %v2106, %v2102
    %2235 = vmatpush.bf16.msra.mxu0 %v2135
    %2236 = vmatpush.bf16.msra.mxu0 %v2131
    %2237 = vmatpush.bf16.msra.mxu0 %v2127
    %2238 = vmatpush.bf16.msra.mxu0 %v2123
    %2239 = vmatpush.bf16.msra.mxu0 %v2119
    %2240 = vmatpush.bf16.msra.mxu0 %v2115
    %2241 = vmatpush.bf16.msra.mxu0 %v2111
    %2242 = vmatpush.bf16.msra.mxu0 %v2107
    %2243 = vmatmul.bf16.gmra.mxu0 %v1672
    %v2244 = vpop.f32.mrf.mxu0
    %v2245 = vadd.f32 %v1907, %v2244
    %v2246 = vpop.f32.mrf.mxu0
    %2247 = vdwg.mxu0
    %2248 = vmatpush.bf16.msra.mxu0 %v2167
    %2249 = vmatpush.bf16.msra.mxu0 %v2163
    %2250 = vmatpush.bf16.msra.mxu0 %v2159
    %2251 = vmatpush.bf16.msra.mxu0 %v2155
    %2252 = vmatpush.bf16.msra.mxu0 %v2151
    %2253 = vmatpush.bf16.msra.mxu0 %v2147
    %2254 = vmatpush.bf16.msra.mxu0 %v2143
    %2255 = vmatpush.bf16.msra.mxu0 %v2139
    %2256 = vmatmul.bf16.gmra.mxu0 %v1840
    %v2257 = vpop.f32.mrf.mxu0
    %v2258 = vadd.f32 %v2245, %v2257
    %v2259 = vpop.f32.mrf.mxu0
    %2260 = vdwg.mxu0
    %2261 = vmatpush.bf16.msra.mxu0 %v2136
    %2262 = vmatpush.bf16.msra.mxu0 %v2132
    %2263 = vmatpush.bf16.msra.mxu0 %v2128
    %2264 = vmatpush.bf16.msra.mxu0 %v2124
    %2265 = vmatpush.bf16.msra.mxu0 %v2120
    %2266 = vmatpush.bf16.msra.mxu0 %v2116
    %2267 = vmatpush.bf16.msra.mxu0 %v2112
    %2268 = vmatpush.bf16.msra.mxu0 %v2108
    %2269 = vmatmul.bf16.gmra.mxu0 %v1672
    %v2270 = vpop.f32.mrf.mxu0
    %v2271 = vadd.f32 %v1908, %v2270
    %v2272 = vpop.f32.mrf.mxu0
    %2273 = vdwg.mxu0
    %2274 = vmatpush.bf16.msra.mxu0 %v2168
    %2275 = vmatpush.bf16.msra.mxu0 %v2164
    %2276 = vmatpush.bf16.msra.mxu0 %v2160
    %2277 = vmatpush.bf16.msra.mxu0 %v2156
    %2278 = vmatpush.bf16.msra.mxu0 %v2152
    %2279 = vmatpush.bf16.msra.mxu0 %v2148
    %2280 = vmatpush.bf16.msra.mxu0 %v2144
    %2281 = vmatpush.bf16.msra.mxu0 %v2140
    %2282 = vmatmul.bf16.gmra.mxu0 %v1840
    %v2283 = vpop.f32.mrf.mxu0
    %v2284 = vadd.f32 %v2271, %v2283
    %v2285 = vpop.f32.mrf.mxu0
    %2286 = vdwg.mxu0
    %2287 = vmatpush.bf16.msra.mxu0 %v2137
    %2288 = vmatpush.bf16.msra.mxu0 %v2133
    %2289 = vmatpush.bf16.msra.mxu0 %v2129
    %2290 = vmatpush.bf16.msra.mxu0 %v2125
    %2291 = vmatpush.bf16.msra.mxu0 %v2121
    %2292 = vmatpush.bf16.msra.mxu0 %v2117
    %2293 = vmatpush.bf16.msra.mxu0 %v2113
    %2294 = vmatpush.bf16.msra.mxu0 %v2109
    %2295 = vmatmul.bf16.gmra.mxu0 %v1672
    %v2296 = vpop.f32.mrf.mxu0
    %v2297 = vadd.f32 %v1909, %v2296
    %v2298 = vpop.f32.mrf.mxu0
    %2299 = vdwg.mxu0
    %2300 = vmatpush.bf16.msra.mxu0 %v2169
    %2301 = vmatpush.bf16.msra.mxu0 %v2165
    %2302 = vmatpush.bf16.msra.mxu0 %v2161
    %2303 = vmatpush.bf16.msra.mxu0 %v2157
    %2304 = vmatpush.bf16.msra.mxu0 %v2153
    %2305 = vmatpush.bf16.msra.mxu0 %v2149
    %2306 = vmatpush.bf16.msra.mxu0 %v2145
    %2307 = vmatpush.bf16.msra.mxu0 %v2141
    %2308 = vmatmul.bf16.gmra.mxu0 %v1840
    %v2309 = vpop.f32.mrf.mxu0
    %v2310 = vadd.f32 %v2297, %v2309
    %v2311 = vpop.f32.mrf.mxu0
    %2312 = vdwg.mxu0
    %2313 = vmatpush.bf16.msra.mxu0 %v2138
    %2314 = vmatpush.bf16.msra.mxu0 %v2134
    %2315 = vmatpush.bf16.msra.mxu0 %v2130
    %2316 = vmatpush.bf16.msra.mxu0 %v2126
    %2317 = vmatpush.bf16.msra.mxu0 %v2122
    %2318 = vmatpush.bf16.msra.mxu0 %v2118
    %2319 = vmatpush.bf16.msra.mxu0 %v2114
    %2320 = vmatpush.bf16.msra.mxu0 %v2110
    %2321 = vmatmul.bf16.gmra.mxu0 %v1672
    %v2322 = vpop.f32.mrf.mxu0
    %v2323 = vadd.f32 %v1910, %v2322
    %v2324 = vpop.f32.mrf.mxu0
    %2325 = vdwg.mxu0
    %2326 = vmatpush.bf16.msra.mxu0 %v2170
    %2327 = vmatpush.bf16.msra.mxu0 %v2166
    %2328 = vmatpush.bf16.msra.mxu0 %v2162
    %2329 = vmatpush.bf16.msra.mxu0 %v2158
    %2330 = vmatpush.bf16.msra.mxu0 %v2154
    %2331 = vmatpush.bf16.msra.mxu0 %v2150
    %2332 = vmatpush.bf16.msra.mxu0 %v2146
    %2333 = vmatpush.bf16.msra.mxu0 %v2142
    %2334 = vmatmul.bf16.gmra.mxu0 %v1840
    %v2335 = vpop.f32.mrf.mxu0
    %v2336 = vadd.f32 %v2323, %v2335
    %v2337 = vpop.f32.mrf.mxu0
    %2338 = vdwg.mxu0
    %v2339 = vxor.u32 %v2258, 2147483648
    %v2340 = vxor.u32 %v2284, 2147483648
    %v2341 = vxor.u32 %v2310, 2147483648
    %v2342 = vmul.f32 %v2339, 1.442695
    %v2343 = vpow.pop %v2342
    %v2344 = vmul.f32 %v2340, 1.442695
    %v2345 = vpow.pop %v2344
    %v2346 = vmul.f32 %v2341, 1.442695
    %v2347 = vpow.pop %v2346
    %v2348 = vadd.f32 %v2343, 1.0
    %v2349 = vadd.f32 %v2345, 1.0
    %v2350 = vadd.f32 %v2347, 1.0
    %v2351 = vrcp.pop %v2348
    %v2352 = vmul.f32 %v2348, %v2351
    %v2353 = vsub.f32 1.0, %v2352
    %v2354 = vmul.f32 %v2351, %v2353
    %v2355 = vadd.f32 %v2351, %v2354
    %vm2356 = vweird.f32 %v2348
    %vm2357 = vweird.f32 %v2351
    %vm2358 = vmor %vm2356, %vm2357
    %v2359 = vsel %vm2358, %v2351, %v2355
    %v2360 = vand.u32 2147483647, %v2348
    %vm2361 = vcmp.eq.f32.partialorder %v2360, 8.507059e+37
    %v2362 = vand.u32 %v2348, 2147483648
    %v2363 = vor.u32 1.1754944e-38, %v2362
    %v2364 = vsel %vm2361, %v2363, %v2359
    %v2365 = vmul.f32 1.0, %v2364
    %v2366 = vrcp.pop %v2349
    %v2367 = vmul.f32 %v2349, %v2366
    %v2368 = vsub.f32 1.0, %v2367
    %v2369 = vmul.f32 %v2366, %v2368
    %v2370 = vadd.f32 %v2366, %v2369
    %vm2371 = vweird.f32 %v2349
    %vm2372 = vweird.f32 %v2366
    %vm2373 = vmor %vm2371, %vm2372
    %v2374 = vsel %vm2373, %v2366, %v2370
    %v2375 = vand.u32 2147483647, %v2349
    %vm2376 = vcmp.eq.f32.partialorder %v2375, 8.507059e+37
    %v2377 = vand.u32 %v2349, 2147483648
    %v2378 = vor.u32 1.1754944e-38, %v2377
    %v2379 = vsel %vm2376, %v2378, %v2374
    %v2380 = vmul.f32 1.0, %v2379
    %v2381 = vrcp.pop %v2350
    %v2382 = vmul.f32 %v2350, %v2381
    %v2383 = vsub.f32 1.0, %v2382
    %v2384 = vmul.f32 %v2381, %v2383
    %v2385 = vadd.f32 %v2381, %v2384
    %vm2386 = vweird.f32 %v2350
    %vm2387 = vweird.f32 %v2381
    %vm2388 = vmor %vm2386, %vm2387
    %v2389 = vsel %vm2388, %v2381, %v2385
    %v2390 = vand.u32 2147483647, %v2350
    %vm2391 = vcmp.eq.f32.partialorder %v2390, 8.507059e+37
    %v2392 = vand.u32 %v2350, 2147483648
    %v2393 = vor.u32 1.1754944e-38, %v2392
    %v2394 = vsel %vm2391, %v2393, %v2389
    %v2395 = vmul.f32 1.0, %v2394
    %v2396 = vtanh.pop %v2336
    %v2397 = vmul.f32 %v2380, %v544
    %v2398 = vmul.f32 %v2365, %v2396
    %v2399 = vadd.f32 %v2397, %v2398
    %v2400 = vtanh.pop %v2399
    %v2401 = vmul.f32 %v2395, %v2400
    %v2402 = vpack.c.bf16 %v2401, %v2401
    %v2403 = vld [vmem:[%s7] sm:$0xf]
    %v2404 = vld [vmem:[%s7 + $0x4] sm:$0xf]
    %v2405 = vld [vmem:[%s7 + $0x8] sm:$0xf]
    %v2406 = vld [vmem:[%s7 + $0xc] sm:$0xf]
    %v2407 = vld [vmem:[%s7 + $0x10] sm:$0xf]
    %v2408 = vld [vmem:[%s7 + $0x14] sm:$0xf]
    %v2409 = vld [vmem:[%s7 + $0x18] sm:$0xf]
    %v2410 = vld [vmem:[%s7 + $0x1c] sm:$0xf]
    %v2411 = vld [vmem:[%s7 + $0x20] sm:$0xf]
    %v2412 = vld [vmem:[%s7 + $0x24] sm:$0xf]
    %v2413 = vld [vmem:[%s7 + $0x28] sm:$0xf]
    %v2414 = vld [vmem:[%s7 + $0x2c] sm:$0xf]
    %v2415 = vld [vmem:[%s7 + $0x30] sm:$0xf]
    %v2416 = vld [vmem:[%s7 + $0x34] sm:$0xf]
    %v2417 = vld [vmem:[%s7 + $0x38] sm:$0xf]
    %v2418 = vld [vmem:[%s7 + $0x3c] sm:$0xf]
    %v2420 = vperm.slane %v534, 0
    %v2438 = vunpack.c.l.b16 %v2403
    %v2439 = vunpack.c.l.b16 %v2404
    %v2440 = vunpack.c.l.b16 %v2405
    %v2441 = vunpack.c.l.b16 %v2406
    %v2442 = vunpack.c.l.b16 %v2407
    %v2443 = vunpack.c.l.b16 %v2408
    %v2444 = vunpack.c.l.b16 %v2409
    %v2445 = vunpack.c.l.b16 %v2410
    %v2446 = vunpack.c.l.b16 %v2411
    %v2447 = vunpack.c.l.b16 %v2412
    %v2448 = vunpack.c.l.b16 %v2413
    %v2449 = vunpack.c.l.b16 %v2414
    %v2450 = vunpack.c.l.b16 %v2415
    %v2451 = vunpack.c.l.b16 %v2416
    %v2452 = vunpack.c.l.b16 %v2417
    %v2453 = vunpack.c.l.b16 %v2418
    %v2454 = vpack.c.b16 %v2439, %v2438
    %v2455 = vpack.c.b16 %v2441, %v2440
    %v2456 = vpack.c.b16 %v2443, %v2442
    %v2457 = vpack.c.b16 %v2445, %v2444
    %v2458 = vpack.c.b16 %v2447, %v2446
    %v2459 = vpack.c.b16 %v2449, %v2448
    %v2460 = vpack.c.b16 %v2451, %v2450
    %v2461 = vpack.c.b16 %v2453, %v2452
    %2470 = vmatpush.bf16.msra.mxu0 %v2461
    %2471 = vmatpush.bf16.msra.mxu0 %v2460
    %2472 = vmatpush.bf16.msra.mxu0 %v2459
    %2473 = vmatpush.bf16.msra.mxu0 %v2458
    %2474 = vmatpush.bf16.msra.mxu0 %v2457
    %2475 = vmatpush.bf16.msra.mxu0 %v2456
    %2476 = vmatpush.bf16.msra.mxu0 %v2455
    %2477 = vmatpush.bf16.msra.mxu0 %v2454
    %2478 = vmatmul.bf16.gmra.mxu0 %v2402
    %v2479 = vpop.f32.mrf.mxu0
    %v2480 = vadd.f32 %v2420, %v2479
    %v2481 = vpop.f32.mrf.mxu0
    %2482 = vdwg.mxu0
    %2483 = vst [vmem:[%s11] sm:$0xff] %v2480
    %s2484 = scalar_lea.vmem [#allocation2], 96
    %v2485 = vld [vmem:[%s2484] sm:$0xff]
    %v2486 = vld [vmem:[%s2484 + $0x8] sm:$0xff]
    %v2487 = vld [vmem:[%s2484 + $0x10] sm:$0xff]
    %v2488 = vld [vmem:[%s2484 + $0x18] sm:$0xff]
    %v2489 = vpack.c.bf16 %v1671, %v1671
    %v2490 = vld [vmem:[#allocation5] sm:$0xff]
    %v2491 = vld [vmem:[#allocation5 + $0x8] sm:$0xff]
    %v2492 = vld [vmem:[#allocation5 + $0x10] sm:$0xff]
    %v2493 = vld [vmem:[#allocation5 + $0x18] sm:$0xff]
    %v2494 = vld [vmem:[#allocation5 + $0x20] sm:$0xff]
    %v2495 = vld [vmem:[#allocation5 + $0x28] sm:$0xff]
    %v2496 = vld [vmem:[#allocation5 + $0x30] sm:$0xff]
    %v2497 = vld [vmem:[#allocation5 + $0x38] sm:$0xff]
    %v2498 = vld [vmem:[#allocation5 + $0x40] sm:$0xff]
    %v2499 = vld [vmem:[#allocation5 + $0x48] sm:$0xff]
    %v2500 = vld [vmem:[#allocation5 + $0x50] sm:$0xff]
    %v2501 = vld [vmem:[#allocation5 + $0x58] sm:$0xff]
    %v2502 = vld [vmem:[#allocation5 + $0x60] sm:$0xff]
    %v2503 = vld [vmem:[#allocation5 + $0x68] sm:$0xff]
    %v2504 = vld [vmem:[#allocation5 + $0x70] sm:$0xff]
    %v2505 = vld [vmem:[#allocation5 + $0x78] sm:$0xff]
    %v2506 = vld [vmem:[#allocation5 + $0x80] sm:$0xff]
    %v2507 = vld [vmem:[#allocation5 + $0x88] sm:$0xff]
    %v2508 = vld [vmem:[#allocation5 + $0x90] sm:$0xff]
    %v2509 = vld [vmem:[#allocation5 + $0x98] sm:$0xff]
    %v2510 = vld [vmem:[#allocation5 + $0xa0] sm:$0xff]
    %v2511 = vld [vmem:[#allocation5 + $0xa8] sm:$0xff]
    %v2512 = vld [vmem:[#allocation5 + $0xb0] sm:$0xff]
    %v2513 = vld [vmem:[#allocation5 + $0xb8] sm:$0xff]
    %v2514 = vld [vmem:[#allocation5 + $0xc0] sm:$0xff]
    %v2515 = vld [vmem:[#allocation5 + $0xc8] sm:$0xff]
    %v2516 = vld [vmem:[#allocation5 + $0xd0] sm:$0xff]
    %v2517 = vld [vmem:[#allocation5 + $0xd8] sm:$0xff]
    %v2518 = vld [vmem:[#allocation5 + $0xe0] sm:$0xff]
    %v2519 = vld [vmem:[#allocation5 + $0xe8] sm:$0xff]
    %v2520 = vld [vmem:[#allocation5 + $0xf0] sm:$0xff]
    %v2521 = vld [vmem:[#allocation5 + $0xf8] sm:$0xff]
    %v2554 = vunpack.c.l.b16 %v2490
    %v2555 = vunpack.c.h.b16 %v2490
    %v2556 = vunpack.c.l.b16 %v2491
    %v2557 = vunpack.c.h.b16 %v2491
    %v2558 = vunpack.c.l.b16 %v2492
    %v2559 = vunpack.c.h.b16 %v2492
    %v2560 = vunpack.c.l.b16 %v2493
    %v2561 = vunpack.c.h.b16 %v2493
    %v2562 = vunpack.c.l.b16 %v2494
    %v2563 = vunpack.c.h.b16 %v2494
    %v2564 = vunpack.c.l.b16 %v2495
    %v2565 = vunpack.c.h.b16 %v2495
    %v2566 = vunpack.c.l.b16 %v2496
    %v2567 = vunpack.c.h.b16 %v2496
    %v2568 = vunpack.c.l.b16 %v2497
    %v2569 = vunpack.c.h.b16 %v2497
    %v2570 = vunpack.c.l.b16 %v2498
    %v2571 = vunpack.c.h.b16 %v2498
    %v2572 = vunpack.c.l.b16 %v2499
    %v2573 = vunpack.c.h.b16 %v2499
    %v2574 = vunpack.c.l.b16 %v2500
    %v2575 = vunpack.c.h.b16 %v2500
    %v2576 = vunpack.c.l.b16 %v2501
    %v2577 = vunpack.c.h.b16 %v2501
    %v2578 = vunpack.c.l.b16 %v2502
    %v2579 = vunpack.c.h.b16 %v2502
    %v2580 = vunpack.c.l.b16 %v2503
    %v2581 = vunpack.c.h.b16 %v2503
    %v2582 = vunpack.c.l.b16 %v2504
    %v2583 = vunpack.c.h.b16 %v2504
    %v2584 = vunpack.c.l.b16 %v2505
    %v2585 = vunpack.c.h.b16 %v2505
    %v2586 = vunpack.c.l.b16 %v2506
    %v2587 = vunpack.c.h.b16 %v2506
    %v2588 = vunpack.c.l.b16 %v2507
    %v2589 = vunpack.c.h.b16 %v2507
    %v2590 = vunpack.c.l.b16 %v2508
    %v2591 = vunpack.c.h.b16 %v2508
    %v2592 = vunpack.c.l.b16 %v2509
    %v2593 = vunpack.c.h.b16 %v2509
    %v2594 = vunpack.c.l.b16 %v2510
    %v2595 = vunpack.c.h.b16 %v2510
    %v2596 = vunpack.c.l.b16 %v2511
    %v2597 = vunpack.c.h.b16 %v2511
    %v2598 = vunpack.c.l.b16 %v2512
    %v2599 = vunpack.c.h.b16 %v2512
    %v2600 = vunpack.c.l.b16 %v2513
    %v2601 = vunpack.c.h.b16 %v2513
    %v2602 = vunpack.c.l.b16 %v2514
    %v2603 = vunpack.c.h.b16 %v2514
    %v2604 = vunpack.c.l.b16 %v2515
    %v2605 = vunpack.c.h.b16 %v2515
    %v2606 = vunpack.c.l.b16 %v2516
    %v2607 = vunpack.c.h.b16 %v2516
    %v2608 = vunpack.c.l.b16 %v2517
    %v2609 = vunpack.c.h.b16 %v2517
    %v2610 = vunpack.c.l.b16 %v2518
    %v2611 = vunpack.c.h.b16 %v2518
    %v2612 = vunpack.c.l.b16 %v2519
    %v2613 = vunpack.c.h.b16 %v2519
    %v2614 = vunpack.c.l.b16 %v2520
    %v2615 = vunpack.c.h.b16 %v2520
    %v2616 = vunpack.c.l.b16 %v2521
    %v2617 = vunpack.c.h.b16 %v2521
    %v2618 = vpack.c.b16 %v2558, %v2554
    %v2619 = vpack.c.b16 %v2559, %v2555
    %v2620 = vpack.c.b16 %v2560, %v2556
    %v2621 = vpack.c.b16 %v2561, %v2557
    %v2622 = vpack.c.b16 %v2566, %v2562
    %v2623 = vpack.c.b16 %v2567, %v2563
    %v2624 = vpack.c.b16 %v2568, %v2564
    %v2625 = vpack.c.b16 %v2569, %v2565
    %v2626 = vpack.c.b16 %v2574, %v2570
    %v2627 = vpack.c.b16 %v2575, %v2571
    %v2628 = vpack.c.b16 %v2576, %v2572
    %v2629 = vpack.c.b16 %v2577, %v2573
    %v2630 = vpack.c.b16 %v2582, %v2578
    %v2631 = vpack.c.b16 %v2583, %v2579
    %v2632 = vpack.c.b16 %v2584, %v2580
    %v2633 = vpack.c.b16 %v2585, %v2581
    %v2634 = vpack.c.b16 %v2590, %v2586
    %v2635 = vpack.c.b16 %v2591, %v2587
    %v2636 = vpack.c.b16 %v2592, %v2588
    %v2637 = vpack.c.b16 %v2593, %v2589
    %v2638 = vpack.c.b16 %v2598, %v2594
    %v2639 = vpack.c.b16 %v2599, %v2595
    %v2640 = vpack.c.b16 %v2600, %v2596
    %v2641 = vpack.c.b16 %v2601, %v2597
    %v2642 = vpack.c.b16 %v2606, %v2602
    %v2643 = vpack.c.b16 %v2607, %v2603
    %v2644 = vpack.c.b16 %v2608, %v2604
    %v2645 = vpack.c.b16 %v2609, %v2605
    %v2646 = vpack.c.b16 %v2614, %v2610
    %v2647 = vpack.c.b16 %v2615, %v2611
    %v2648 = vpack.c.b16 %v2616, %v2612
    %v2649 = vpack.c.b16 %v2617, %v2613
    %2682 = vmatpush.bf16.msra.mxu0 %v2646
    %2683 = vmatpush.bf16.msra.mxu0 %v2642
    %2684 = vmatpush.bf16.msra.mxu0 %v2638
    %2685 = vmatpush.bf16.msra.mxu0 %v2634
    %2686 = vmatpush.bf16.msra.mxu0 %v2630
    %2687 = vmatpush.bf16.msra.mxu0 %v2626
    %2688 = vmatpush.bf16.msra.mxu0 %v2622
    %2689 = vmatpush.bf16.msra.mxu0 %v2618
    %2690 = vmatmul.bf16.gmra.mxu0 %v2489
    %v2691 = vpop.f32.mrf.mxu0
    %v2692 = vadd.f32 0.0, %v2691
    %v2693 = vpop.f32.mrf.mxu0
    %2694 = vdwg.mxu0
    %2695 = vmatpush.bf16.msra.mxu0 %v2647
    %2696 = vmatpush.bf16.msra.mxu0 %v2643
    %2697 = vmatpush.bf16.msra.mxu0 %v2639
    %2698 = vmatpush.bf16.msra.mxu0 %v2635
    %2699 = vmatpush.bf16.msra.mxu0 %v2631
    %2700 = vmatpush.bf16.msra.mxu0 %v2627
    %2701 = vmatpush.bf16.msra.mxu0 %v2623
    %2702 = vmatpush.bf16.msra.mxu0 %v2619
    %2703 = vmatmul.bf16.gmra.mxu0 %v2489
    %v2704 = vpop.f32.mrf.mxu0
    %v2705 = vadd.f32 0.0, %v2704
    %v2706 = vpop.f32.mrf.mxu0
    %2707 = vdwg.mxu0
    %2708 = vmatpush.bf16.msra.mxu0 %v2648
    %2709 = vmatpush.bf16.msra.mxu0 %v2644
    %2710 = vmatpush.bf16.msra.mxu0 %v2640
    %2711 = vmatpush.bf16.msra.mxu0 %v2636
    %2712 = vmatpush.bf16.msra.mxu0 %v2632
    %2713 = vmatpush.bf16.msra.mxu0 %v2628
    %2714 = vmatpush.bf16.msra.mxu0 %v2624
    %2715 = vmatpush.bf16.msra.mxu0 %v2620
    %2716 = vmatmul.bf16.gmra.mxu0 %v2489
    %v2717 = vpop.f32.mrf.mxu0
    %v2718 = vadd.f32 0.0, %v2717
    %v2719 = vpop.f32.mrf.mxu0
    %2720 = vdwg.mxu0
    %2721 = vmatpush.bf16.msra.mxu0 %v2649
    %2722 = vmatpush.bf16.msra.mxu0 %v2645
    %2723 = vmatpush.bf16.msra.mxu0 %v2641
    %2724 = vmatpush.bf16.msra.mxu0 %v2637
    %2725 = vmatpush.bf16.msra.mxu0 %v2633
    %2726 = vmatpush.bf16.msra.mxu0 %v2629
    %2727 = vmatpush.bf16.msra.mxu0 %v2625
    %2728 = vmatpush.bf16.msra.mxu0 %v2621
    %2729 = vmatmul.bf16.gmra.mxu0 %v2489
    %v2730 = vpop.f32.mrf.mxu0
    %v2731 = vadd.f32 0.0, %v2730
    %v2732 = vpop.f32.mrf.mxu0
    %2733 = vdwg.mxu0
    %v2734 = vadd.f32 %v2485, %v2692
    %v2735 = vadd.f32 %v2486, %v2705
    %v2736 = vadd.f32 %v2487, %v2718
    %v2737 = vadd.f32 %v2488, %v2731
    %v2738 = vxor.u32 %v2734, 2147483648
    %v2739 = vxor.u32 %v2735, 2147483648
    %v2740 = vxor.u32 %v2736, 2147483648
    %v2741 = vmul.f32 %v2738, 1.442695
    %v2742 = vpow.pop %v2741
    %v2743 = vmul.f32 %v2739, 1.442695
    %v2744 = vpow.pop %v2743
    %v2745 = vmul.f32 %v2740, 1.442695
    %v2746 = vpow.pop %v2745
    %v2747 = vadd.f32 %v2742, 1.0
    %v2748 = vadd.f32 %v2744, 1.0
    %v2749 = vadd.f32 %v2746, 1.0
    %v2750 = vrcp.pop %v2747
    %v2751 = vmul.f32 %v2747, %v2750
    %v2752 = vsub.f32 1.0, %v2751
    %v2753 = vmul.f32 %v2750, %v2752
    %v2754 = vadd.f32 %v2750, %v2753
    %vm2755 = vweird.f32 %v2747
    %vm2756 = vweird.f32 %v2750
    %vm2757 = vmor %vm2755, %vm2756
    %v2758 = vsel %vm2757, %v2750, %v2754
    %v2759 = vand.u32 2147483647, %v2747
    %vm2760 = vcmp.eq.f32.partialorder %v2759, 8.507059e+37
    %v2761 = vand.u32 %v2747, 2147483648
    %v2762 = vor.u32 1.1754944e-38, %v2761
    %v2763 = vsel %vm2760, %v2762, %v2758
    %v2764 = vmul.f32 1.0, %v2763
    %v2765 = vrcp.pop %v2748
    %v2766 = vmul.f32 %v2748, %v2765
    %v2767 = vsub.f32 1.0, %v2766
    %v2768 = vmul.f32 %v2765, %v2767
    %v2769 = vadd.f32 %v2765, %v2768
    %vm2770 = vweird.f32 %v2748
    %vm2771 = vweird.f32 %v2765
    %vm2772 = vmor %vm2770, %vm2771
    %v2773 = vsel %vm2772, %v2765, %v2769
    %v2774 = vand.u32 2147483647, %v2748
    %vm2775 = vcmp.eq.f32.partialorder %v2774, 8.507059e+37
    %v2776 = vand.u32 %v2748, 2147483648
    %v2777 = vor.u32 1.1754944e-38, %v2776
    %v2778 = vsel %vm2775, %v2777, %v2773
    %v2779 = vmul.f32 1.0, %v2778
    %v2780 = vrcp.pop %v2749
    %v2781 = vmul.f32 %v2749, %v2780
    %v2782 = vsub.f32 1.0, %v2781
    %v2783 = vmul.f32 %v2780, %v2782
    %v2784 = vadd.f32 %v2780, %v2783
    %vm2785 = vweird.f32 %v2749
    %vm2786 = vweird.f32 %v2780
    %vm2787 = vmor %vm2785, %vm2786
    %v2788 = vsel %vm2787, %v2780, %v2784
    %v2789 = vand.u32 2147483647, %v2749
    %vm2790 = vcmp.eq.f32.partialorder %v2789, 8.507059e+37
    %v2791 = vand.u32 %v2749, 2147483648
    %v2792 = vor.u32 1.1754944e-38, %v2791
    %v2793 = vsel %vm2790, %v2792, %v2788
    %v2794 = vmul.f32 1.0, %v2793
    %v2795 = vtanh.pop %v2737
    %v2796 = vmul.f32 %v2779, %v1669
    %v2797 = vmul.f32 %v2764, %v2795
    %v2798 = vadd.f32 %v2796, %v2797
    %v2799 = vtanh.pop %v2798
    %v2800 = vmul.f32 %v2794, %v2799
    %v2801 = vpack.c.bf16 %v1839, %v1839
    %v2802 = vld [vmem:[#allocation7] sm:$0xff]
    %v2803 = vld [vmem:[#allocation7 + $0x8] sm:$0xff]
    %v2804 = vld [vmem:[#allocation7 + $0x10] sm:$0xff]
    %v2805 = vld [vmem:[#allocation7 + $0x18] sm:$0xff]
    %v2806 = vld [vmem:[#allocation7 + $0x20] sm:$0xff]
    %v2807 = vld [vmem:[#allocation7 + $0x28] sm:$0xff]
    %v2808 = vld [vmem:[#allocation7 + $0x30] sm:$0xff]
    %v2809 = vld [vmem:[#allocation7 + $0x38] sm:$0xff]
    %v2810 = vld [vmem:[#allocation7 + $0x40] sm:$0xff]
    %v2811 = vld [vmem:[#allocation7 + $0x48] sm:$0xff]
    %v2812 = vld [vmem:[#allocation7 + $0x50] sm:$0xff]
    %v2813 = vld [vmem:[#allocation7 + $0x58] sm:$0xff]
    %v2814 = vld [vmem:[#allocation7 + $0x60] sm:$0xff]
    %v2815 = vld [vmem:[#allocation7 + $0x68] sm:$0xff]
    %v2816 = vld [vmem:[#allocation7 + $0x70] sm:$0xff]
    %v2817 = vld [vmem:[#allocation7 + $0x78] sm:$0xff]
    %v2818 = vld [vmem:[#allocation7 + $0x80] sm:$0xff]
    %v2819 = vld [vmem:[#allocation7 + $0x88] sm:$0xff]
    %v2820 = vld [vmem:[#allocation7 + $0x90] sm:$0xff]
    %v2821 = vld [vmem:[#allocation7 + $0x98] sm:$0xff]
    %v2822 = vld [vmem:[#allocation7 + $0xa0] sm:$0xff]
    %v2823 = vld [vmem:[#allocation7 + $0xa8] sm:$0xff]
    %v2824 = vld [vmem:[#allocation7 + $0xb0] sm:$0xff]
    %v2825 = vld [vmem:[#allocation7 + $0xb8] sm:$0xff]
    %v2826 = vld [vmem:[#allocation7 + $0xc0] sm:$0xff]
    %v2827 = vld [vmem:[#allocation7 + $0xc8] sm:$0xff]
    %v2828 = vld [vmem:[#allocation7 + $0xd0] sm:$0xff]
    %v2829 = vld [vmem:[#allocation7 + $0xd8] sm:$0xff]
    %v2830 = vld [vmem:[#allocation7 + $0xe0] sm:$0xff]
    %v2831 = vld [vmem:[#allocation7 + $0xe8] sm:$0xff]
    %v2832 = vld [vmem:[#allocation7 + $0xf0] sm:$0xff]
    %v2833 = vld [vmem:[#allocation7 + $0xf8] sm:$0xff]
    %v2834 = vld [vmem:[#allocation7 + $0x100] sm:$0xff]
    %v2835 = vld [vmem:[#allocation7 + $0x108] sm:$0xff]
    %v2836 = vld [vmem:[#allocation7 + $0x110] sm:$0xff]
    %v2837 = vld [vmem:[#allocation7 + $0x118] sm:$0xff]
    %v2838 = vld [vmem:[#allocation7 + $0x120] sm:$0xff]
    %v2839 = vld [vmem:[#allocation7 + $0x128] sm:$0xff]
    %v2840 = vld [vmem:[#allocation7 + $0x130] sm:$0xff]
    %v2841 = vld [vmem:[#allocation7 + $0x138] sm:$0xff]
    %v2842 = vld [vmem:[#allocation7 + $0x140] sm:$0xff]
    %v2843 = vld [vmem:[#allocation7 + $0x148] sm:$0xff]
    %v2844 = vld [vmem:[#allocation7 + $0x150] sm:$0xff]
    %v2845 = vld [vmem:[#allocation7 + $0x158] sm:$0xff]
    %v2846 = vld [vmem:[#allocation7 + $0x160] sm:$0xff]
    %v2847 = vld [vmem:[#allocation7 + $0x168] sm:$0xff]
    %v2848 = vld [vmem:[#allocation7 + $0x170] sm:$0xff]
    %v2849 = vld [vmem:[#allocation7 + $0x178] sm:$0xff]
    %v2850 = vld [vmem:[#allocation7 + $0x180] sm:$0xff]
    %v2851 = vld [vmem:[#allocation7 + $0x188] sm:$0xff]
    %v2852 = vld [vmem:[#allocation7 + $0x190] sm:$0xff]
    %v2853 = vld [vmem:[#allocation7 + $0x198] sm:$0xff]
    %v2854 = vld [vmem:[#allocation7 + $0x1a0] sm:$0xff]
    %v2855 = vld [vmem:[#allocation7 + $0x1a8] sm:$0xff]
    %v2856 = vld [vmem:[#allocation7 + $0x1b0] sm:$0xff]
    %v2857 = vld [vmem:[#allocation7 + $0x1b8] sm:$0xff]
    %v2858 = vld [vmem:[#allocation7 + $0x1c0] sm:$0xff]
    %v2859 = vld [vmem:[#allocation7 + $0x1c8] sm:$0xff]
    %v2860 = vld [vmem:[#allocation7 + $0x1d0] sm:$0xff]
    %v2861 = vld [vmem:[#allocation7 + $0x1d8] sm:$0xff]
    %v2862 = vld [vmem:[#allocation7 + $0x1e0] sm:$0xff]
    %v2863 = vld [vmem:[#allocation7 + $0x1e8] sm:$0xff]
    %v2864 = vld [vmem:[#allocation7 + $0x1f0] sm:$0xff]
    %v2865 = vld [vmem:[#allocation7 + $0x1f8] sm:$0xff]
    %v2930 = vunpack.c.l.b16 %v2802
    %v2931 = vunpack.c.h.b16 %v2802
    %v2932 = vunpack.c.l.b16 %v2803
    %v2933 = vunpack.c.h.b16 %v2803
    %v2934 = vunpack.c.l.b16 %v2804
    %v2935 = vunpack.c.h.b16 %v2804
    %v2936 = vunpack.c.l.b16 %v2805
    %v2937 = vunpack.c.h.b16 %v2805
    %v2938 = vunpack.c.l.b16 %v2806
    %v2939 = vunpack.c.h.b16 %v2806
    %v2940 = vunpack.c.l.b16 %v2807
    %v2941 = vunpack.c.h.b16 %v2807
    %v2942 = vunpack.c.l.b16 %v2808
    %v2943 = vunpack.c.h.b16 %v2808
    %v2944 = vunpack.c.l.b16 %v2809
    %v2945 = vunpack.c.h.b16 %v2809
    %v2946 = vunpack.c.l.b16 %v2810
    %v2947 = vunpack.c.h.b16 %v2810
    %v2948 = vunpack.c.l.b16 %v2811
    %v2949 = vunpack.c.h.b16 %v2811
    %v2950 = vunpack.c.l.b16 %v2812
    %v2951 = vunpack.c.h.b16 %v2812
    %v2952 = vunpack.c.l.b16 %v2813
    %v2953 = vunpack.c.h.b16 %v2813
    %v2954 = vunpack.c.l.b16 %v2814
    %v2955 = vunpack.c.h.b16 %v2814
    %v2956 = vunpack.c.l.b16 %v2815
    %v2957 = vunpack.c.h.b16 %v2815
    %v2958 = vunpack.c.l.b16 %v2816
    %v2959 = vunpack.c.h.b16 %v2816
    %v2960 = vunpack.c.l.b16 %v2817
    %v2961 = vunpack.c.h.b16 %v2817
    %v2962 = vunpack.c.l.b16 %v2818
    %v2963 = vunpack.c.h.b16 %v2818
    %v2964 = vunpack.c.l.b16 %v2819
    %v2965 = vunpack.c.h.b16 %v2819
    %v2966 = vunpack.c.l.b16 %v2820
    %v2967 = vunpack.c.h.b16 %v2820
    %v2968 = vunpack.c.l.b16 %v2821
    %v2969 = vunpack.c.h.b16 %v2821
    %v2970 = vunpack.c.l.b16 %v2822
    %v2971 = vunpack.c.h.b16 %v2822
    %v2972 = vunpack.c.l.b16 %v2823
    %v2973 = vunpack.c.h.b16 %v2823
    %v2974 = vunpack.c.l.b16 %v2824
    %v2975 = vunpack.c.h.b16 %v2824
    %v2976 = vunpack.c.l.b16 %v2825
    %v2977 = vunpack.c.h.b16 %v2825
    %v2978 = vunpack.c.l.b16 %v2826
    %v2979 = vunpack.c.h.b16 %v2826
    %v2980 = vunpack.c.l.b16 %v2827
    %v2981 = vunpack.c.h.b16 %v2827
    %v2982 = vunpack.c.l.b16 %v2828
    %v2983 = vunpack.c.h.b16 %v2828
    %v2984 = vunpack.c.l.b16 %v2829
    %v2985 = vunpack.c.h.b16 %v2829
    %v2986 = vunpack.c.l.b16 %v2830
    %v2987 = vunpack.c.h.b16 %v2830
    %v2988 = vunpack.c.l.b16 %v2831
    %v2989 = vunpack.c.h.b16 %v2831
    %v2990 = vunpack.c.l.b16 %v2832
    %v2991 = vunpack.c.h.b16 %v2832
    %v2992 = vunpack.c.l.b16 %v2833
    %v2993 = vunpack.c.h.b16 %v2833
    %v2994 = vunpack.c.l.b16 %v2834
    %v2995 = vunpack.c.h.b16 %v2834
    %v2996 = vunpack.c.l.b16 %v2835
    %v2997 = vunpack.c.h.b16 %v2835
    %v2998 = vunpack.c.l.b16 %v2836
    %v2999 = vunpack.c.h.b16 %v2836
    %v3000 = vunpack.c.l.b16 %v2837
    %v3001 = vunpack.c.h.b16 %v2837
    %v3002 = vunpack.c.l.b16 %v2838
    %v3003 = vunpack.c.h.b16 %v2838
    %v3004 = vunpack.c.l.b16 %v2839
    %v3005 = vunpack.c.h.b16 %v2839
    %v3006 = vunpack.c.l.b16 %v2840
    %v3007 = vunpack.c.h.b16 %v2840
    %v3008 = vunpack.c.l.b16 %v2841
    %v3009 = vunpack.c.h.b16 %v2841
    %v3010 = vunpack.c.l.b16 %v2842
    %v3011 = vunpack.c.h.b16 %v2842
    %v3012 = vunpack.c.l.b16 %v2843
    %v3013 = vunpack.c.h.b16 %v2843
    %v3014 = vunpack.c.l.b16 %v2844
    %v3015 = vunpack.c.h.b16 %v2844
    %v3016 = vunpack.c.l.b16 %v2845
    %v3017 = vunpack.c.h.b16 %v2845
    %v3018 = vunpack.c.l.b16 %v2846
    %v3019 = vunpack.c.h.b16 %v2846
    %v3020 = vunpack.c.l.b16 %v2847
    %v3021 = vunpack.c.h.b16 %v2847
    %v3022 = vunpack.c.l.b16 %v2848
    %v3023 = vunpack.c.h.b16 %v2848
    %v3024 = vunpack.c.l.b16 %v2849
    %v3025 = vunpack.c.h.b16 %v2849
    %v3026 = vunpack.c.l.b16 %v2850
    %v3027 = vunpack.c.h.b16 %v2850
    %v3028 = vunpack.c.l.b16 %v2851
    %v3029 = vunpack.c.h.b16 %v2851
    %v3030 = vunpack.c.l.b16 %v2852
    %v3031 = vunpack.c.h.b16 %v2852
    %v3032 = vunpack.c.l.b16 %v2853
    %v3033 = vunpack.c.h.b16 %v2853
    %v3034 = vunpack.c.l.b16 %v2854
    %v3035 = vunpack.c.h.b16 %v2854
    %v3036 = vunpack.c.l.b16 %v2855
    %v3037 = vunpack.c.h.b16 %v2855
    %v3038 = vunpack.c.l.b16 %v2856
    %v3039 = vunpack.c.h.b16 %v2856
    %v3040 = vunpack.c.l.b16 %v2857
    %v3041 = vunpack.c.h.b16 %v2857
    %v3042 = vunpack.c.l.b16 %v2858
    %v3043 = vunpack.c.h.b16 %v2858
    %v3044 = vunpack.c.l.b16 %v2859
    %v3045 = vunpack.c.h.b16 %v2859
    %v3046 = vunpack.c.l.b16 %v2860
    %v3047 = vunpack.c.h.b16 %v2860
    %v3048 = vunpack.c.l.b16 %v2861
    %v3049 = vunpack.c.h.b16 %v2861
    %v3050 = vunpack.c.l.b16 %v2862
    %v3051 = vunpack.c.h.b16 %v2862
    %v3052 = vunpack.c.l.b16 %v2863
    %v3053 = vunpack.c.h.b16 %v2863
    %v3054 = vunpack.c.l.b16 %v2864
    %v3055 = vunpack.c.h.b16 %v2864
    %v3056 = vunpack.c.l.b16 %v2865
    %v3057 = vunpack.c.h.b16 %v2865
    %v3058 = vpack.c.b16 %v2934, %v2930
    %v3059 = vpack.c.b16 %v2935, %v2931
    %v3060 = vpack.c.b16 %v2936, %v2932
    %v3061 = vpack.c.b16 %v2937, %v2933
    %v3062 = vpack.c.b16 %v2942, %v2938
    %v3063 = vpack.c.b16 %v2943, %v2939
    %v3064 = vpack.c.b16 %v2944, %v2940
    %v3065 = vpack.c.b16 %v2945, %v2941
    %v3066 = vpack.c.b16 %v2950, %v2946
    %v3067 = vpack.c.b16 %v2951, %v2947
    %v3068 = vpack.c.b16 %v2952, %v2948
    %v3069 = vpack.c.b16 %v2953, %v2949
    %v3070 = vpack.c.b16 %v2958, %v2954
    %v3071 = vpack.c.b16 %v2959, %v2955
    %v3072 = vpack.c.b16 %v2960, %v2956
    %v3073 = vpack.c.b16 %v2961, %v2957
    %v3074 = vpack.c.b16 %v2966, %v2962
    %v3075 = vpack.c.b16 %v2967, %v2963
    %v3076 = vpack.c.b16 %v2968, %v2964
    %v3077 = vpack.c.b16 %v2969, %v2965
    %v3078 = vpack.c.b16 %v2974, %v2970
    %v3079 = vpack.c.b16 %v2975, %v2971
    %v3080 = vpack.c.b16 %v2976, %v2972
    %v3081 = vpack.c.b16 %v2977, %v2973
    %v3082 = vpack.c.b16 %v2982, %v2978
    %v3083 = vpack.c.b16 %v2983, %v2979
    %v3084 = vpack.c.b16 %v2984, %v2980
    %v3085 = vpack.c.b16 %v2985, %v2981
    %v3086 = vpack.c.b16 %v2990, %v2986
    %v3087 = vpack.c.b16 %v2991, %v2987
    %v3088 = vpack.c.b16 %v2992, %v2988
    %v3089 = vpack.c.b16 %v2993, %v2989
    %v3090 = vpack.c.b16 %v2998, %v2994
    %v3091 = vpack.c.b16 %v2999, %v2995
    %v3092 = vpack.c.b16 %v3000, %v2996
    %v3093 = vpack.c.b16 %v3001, %v2997
    %v3094 = vpack.c.b16 %v3006, %v3002
    %v3095 = vpack.c.b16 %v3007, %v3003
    %v3096 = vpack.c.b16 %v3008, %v3004
    %v3097 = vpack.c.b16 %v3009, %v3005
    %v3098 = vpack.c.b16 %v3014, %v3010
    %v3099 = vpack.c.b16 %v3015, %v3011
    %v3100 = vpack.c.b16 %v3016, %v3012
    %v3101 = vpack.c.b16 %v3017, %v3013
    %v3102 = vpack.c.b16 %v3022, %v3018
    %v3103 = vpack.c.b16 %v3023, %v3019
    %v3104 = vpack.c.b16 %v3024, %v3020
    %v3105 = vpack.c.b16 %v3025, %v3021
    %v3106 = vpack.c.b16 %v3030, %v3026
    %v3107 = vpack.c.b16 %v3031, %v3027
    %v3108 = vpack.c.b16 %v3032, %v3028
    %v3109 = vpack.c.b16 %v3033, %v3029
    %v3110 = vpack.c.b16 %v3038, %v3034
    %v3111 = vpack.c.b16 %v3039, %v3035
    %v3112 = vpack.c.b16 %v3040, %v3036
    %v3113 = vpack.c.b16 %v3041, %v3037
    %v3114 = vpack.c.b16 %v3046, %v3042
    %v3115 = vpack.c.b16 %v3047, %v3043
    %v3116 = vpack.c.b16 %v3048, %v3044
    %v3117 = vpack.c.b16 %v3049, %v3045
    %v3118 = vpack.c.b16 %v3054, %v3050
    %v3119 = vpack.c.b16 %v3055, %v3051
    %v3120 = vpack.c.b16 %v3056, %v3052
    %v3121 = vpack.c.b16 %v3057, %v3053
    %3186 = vmatpush.bf16.msra.mxu0 %v3086
    %3187 = vmatpush.bf16.msra.mxu0 %v3082
    %3188 = vmatpush.bf16.msra.mxu0 %v3078
    %3189 = vmatpush.bf16.msra.mxu0 %v3074
    %3190 = vmatpush.bf16.msra.mxu0 %v3070
    %3191 = vmatpush.bf16.msra.mxu0 %v3066
    %3192 = vmatpush.bf16.msra.mxu0 %v3062
    %3193 = vmatpush.bf16.msra.mxu0 %v3058
    %3194 = vmatmul.bf16.gmra.mxu0 %v2489
    %v3195 = vpop.f32.mrf.mxu0
    %v3196 = vadd.f32 %v1052, %v3195
    %v3197 = vpop.f32.mrf.mxu0
    %3198 = vdwg.mxu0
    %3199 = vmatpush.bf16.msra.mxu0 %v3118
    %3200 = vmatpush.bf16.msra.mxu0 %v3114
    %3201 = vmatpush.bf16.msra.mxu0 %v3110
    %3202 = vmatpush.bf16.msra.mxu0 %v3106
    %3203 = vmatpush.bf16.msra.mxu0 %v3102
    %3204 = vmatpush.bf16.msra.mxu0 %v3098
    %3205 = vmatpush.bf16.msra.mxu0 %v3094
    %3206 = vmatpush.bf16.msra.mxu0 %v3090
    %3207 = vmatmul.bf16.gmra.mxu0 %v2801
    %v3208 = vpop.f32.mrf.mxu0
    %v3209 = vadd.f32 %v3196, %v3208
    %v3210 = vpop.f32.mrf.mxu0
    %3211 = vdwg.mxu0
    %3212 = vmatpush.bf16.msra.mxu0 %v3087
    %3213 = vmatpush.bf16.msra.mxu0 %v3083
    %3214 = vmatpush.bf16.msra.mxu0 %v3079
    %3215 = vmatpush.bf16.msra.mxu0 %v3075
    %3216 = vmatpush.bf16.msra.mxu0 %v3071
    %3217 = vmatpush.bf16.msra.mxu0 %v3067
    %3218 = vmatpush.bf16.msra.mxu0 %v3063
    %3219 = vmatpush.bf16.msra.mxu0 %v3059
    %3220 = vmatmul.bf16.gmra.mxu0 %v2489
    %v3221 = vpop.f32.mrf.mxu0
    %v3222 = vadd.f32 %v1053, %v3221
    %v3223 = vpop.f32.mrf.mxu0
    %3224 = vdwg.mxu0
    %3225 = vmatpush.bf16.msra.mxu0 %v3119
    %3226 = vmatpush.bf16.msra.mxu0 %v3115
    %3227 = vmatpush.bf16.msra.mxu0 %v3111
    %3228 = vmatpush.bf16.msra.mxu0 %v3107
    %3229 = vmatpush.bf16.msra.mxu0 %v3103
    %3230 = vmatpush.bf16.msra.mxu0 %v3099
    %3231 = vmatpush.bf16.msra.mxu0 %v3095
    %3232 = vmatpush.bf16.msra.mxu0 %v3091
    %3233 = vmatmul.bf16.gmra.mxu0 %v2801
    %v3234 = vpop.f32.mrf.mxu0
    %v3235 = vadd.f32 %v3222, %v3234
    %v3236 = vpop.f32.mrf.mxu0
    %3237 = vdwg.mxu0
    %3238 = vmatpush.bf16.msra.mxu0 %v3088
    %3239 = vmatpush.bf16.msra.mxu0 %v3084
    %3240 = vmatpush.bf16.msra.mxu0 %v3080
    %3241 = vmatpush.bf16.msra.mxu0 %v3076
    %3242 = vmatpush.bf16.msra.mxu0 %v3072
    %3243 = vmatpush.bf16.msra.mxu0 %v3068
    %3244 = vmatpush.bf16.msra.mxu0 %v3064
    %3245 = vmatpush.bf16.msra.mxu0 %v3060
    %3246 = vmatmul.bf16.gmra.mxu0 %v2489
    %v3247 = vpop.f32.mrf.mxu0
    %v3248 = vadd.f32 %v1054, %v3247
    %v3249 = vpop.f32.mrf.mxu0
    %3250 = vdwg.mxu0
    %3251 = vmatpush.bf16.msra.mxu0 %v3120
    %3252 = vmatpush.bf16.msra.mxu0 %v3116
    %3253 = vmatpush.bf16.msra.mxu0 %v3112
    %3254 = vmatpush.bf16.msra.mxu0 %v3108
    %3255 = vmatpush.bf16.msra.mxu0 %v3104
    %3256 = vmatpush.bf16.msra.mxu0 %v3100
    %3257 = vmatpush.bf16.msra.mxu0 %v3096
    %3258 = vmatpush.bf16.msra.mxu0 %v3092
    %3259 = vmatmul.bf16.gmra.mxu0 %v2801
    %v3260 = vpop.f32.mrf.mxu0
    %v3261 = vadd.f32 %v3248, %v3260
    %v3262 = vpop.f32.mrf.mxu0
    %3263 = vdwg.mxu0
    %3264 = vmatpush.bf16.msra.mxu0 %v3089
    %3265 = vmatpush.bf16.msra.mxu0 %v3085
    %3266 = vmatpush.bf16.msra.mxu0 %v3081
    %3267 = vmatpush.bf16.msra.mxu0 %v3077
    %3268 = vmatpush.bf16.msra.mxu0 %v3073
    %3269 = vmatpush.bf16.msra.mxu0 %v3069
    %3270 = vmatpush.bf16.msra.mxu0 %v3065
    %3271 = vmatpush.bf16.msra.mxu0 %v3061
    %3272 = vmatmul.bf16.gmra.mxu0 %v2489
    %v3273 = vpop.f32.mrf.mxu0
    %v3274 = vadd.f32 %v1055, %v3273
    %v3275 = vpop.f32.mrf.mxu0
    %3276 = vdwg.mxu0
    %3277 = vmatpush.bf16.msra.mxu0 %v3121
    %3278 = vmatpush.bf16.msra.mxu0 %v3117
    %3279 = vmatpush.bf16.msra.mxu0 %v3113
    %3280 = vmatpush.bf16.msra.mxu0 %v3109
    %3281 = vmatpush.bf16.msra.mxu0 %v3105
    %3282 = vmatpush.bf16.msra.mxu0 %v3101
    %3283 = vmatpush.bf16.msra.mxu0 %v3097
    %3284 = vmatpush.bf16.msra.mxu0 %v3093
    %3285 = vmatmul.bf16.gmra.mxu0 %v2801
    %v3286 = vpop.f32.mrf.mxu0
    %v3287 = vadd.f32 %v3274, %v3286
    %v3288 = vpop.f32.mrf.mxu0
    %3289 = vdwg.mxu0
    %v3290 = vxor.u32 %v3209, 2147483648
    %v3291 = vxor.u32 %v3235, 2147483648
    %v3292 = vxor.u32 %v3261, 2147483648
    %v3293 = vmul.f32 %v3290, 1.442695
    %v3294 = vpow.pop %v3293
    %v3295 = vmul.f32 %v3291, 1.442695
    %v3296 = vpow.pop %v3295
    %v3297 = vmul.f32 %v3292, 1.442695
    %v3298 = vpow.pop %v3297
    %v3299 = vadd.f32 %v3294, 1.0
    %v3300 = vadd.f32 %v3296, 1.0
    %v3301 = vadd.f32 %v3298, 1.0
    %v3302 = vrcp.pop %v3299
    %v3303 = vmul.f32 %v3299, %v3302
    %v3304 = vsub.f32 1.0, %v3303
    %v3305 = vmul.f32 %v3302, %v3304
    %v3306 = vadd.f32 %v3302, %v3305
    %vm3307 = vweird.f32 %v3299
    %vm3308 = vweird.f32 %v3302
    %vm3309 = vmor %vm3307, %vm3308
    %v3310 = vsel %vm3309, %v3302, %v3306
    %v3311 = vand.u32 2147483647, %v3299
    %vm3312 = vcmp.eq.f32.partialorder %v3311, 8.507059e+37
    %v3313 = vand.u32 %v3299, 2147483648
    %v3314 = vor.u32 1.1754944e-38, %v3313
    %v3315 = vsel %vm3312, %v3314, %v3310
    %v3316 = vmul.f32 1.0, %v3315
    %v3317 = vrcp.pop %v3300
    %v3318 = vmul.f32 %v3300, %v3317
    %v3319 = vsub.f32 1.0, %v3318
    %v3320 = vmul.f32 %v3317, %v3319
    %v3321 = vadd.f32 %v3317, %v3320
    %vm3322 = vweird.f32 %v3300
    %vm3323 = vweird.f32 %v3317
    %vm3324 = vmor %vm3322, %vm3323
    %v3325 = vsel %vm3324, %v3317, %v3321
    %v3326 = vand.u32 2147483647, %v3300
    %vm3327 = vcmp.eq.f32.partialorder %v3326, 8.507059e+37
    %v3328 = vand.u32 %v3300, 2147483648
    %v3329 = vor.u32 1.1754944e-38, %v3328
    %v3330 = vsel %vm3327, %v3329, %v3325
    %v3331 = vmul.f32 1.0, %v3330
    %v3332 = vrcp.pop %v3301
    %v3333 = vmul.f32 %v3301, %v3332
    %v3334 = vsub.f32 1.0, %v3333
    %v3335 = vmul.f32 %v3332, %v3334
    %v3336 = vadd.f32 %v3332, %v3335
    %vm3337 = vweird.f32 %v3301
    %vm3338 = vweird.f32 %v3332
    %vm3339 = vmor %vm3337, %vm3338
    %v3340 = vsel %vm3339, %v3332, %v3336
    %v3341 = vand.u32 2147483647, %v3301
    %vm3342 = vcmp.eq.f32.partialorder %v3341, 8.507059e+37
    %v3343 = vand.u32 %v3301, 2147483648
    %v3344 = vor.u32 1.1754944e-38, %v3343
    %v3345 = vsel %vm3342, %v3344, %v3340
    %v3346 = vmul.f32 1.0, %v3345
    %v3347 = vtanh.pop %v3287
    %v3348 = vmul.f32 %v3331, %v1837
    %v3349 = vmul.f32 %v3316, %v3347
    %v3350 = vadd.f32 %v3348, %v3349
    %v3351 = vtanh.pop %v3350
    %v3352 = vmul.f32 %v3346, %v3351
    %v3353 = vld [vmem:[%s1841] sm:$0xff]
    %v3354 = vld [vmem:[%s1841 + $0x8] sm:$0xff]
    %v3355 = vld [vmem:[%s1841 + $0x10] sm:$0xff]
    %v3356 = vld [vmem:[%s1841 + $0x18] sm:$0xff]
    %v3357 = vld [vmem:[%s1841 + $0x20] sm:$0xff]
    %v3358 = vld [vmem:[%s1841 + $0x28] sm:$0xff]
    %v3359 = vld [vmem:[%s1841 + $0x30] sm:$0xff]
    %v3360 = vld [vmem:[%s1841 + $0x38] sm:$0xff]
    %v3361 = vld [vmem:[%s1841 + $0x40] sm:$0xff]
    %v3362 = vld [vmem:[%s1841 + $0x48] sm:$0xff]
    %v3363 = vld [vmem:[%s1841 + $0x50] sm:$0xff]
    %v3364 = vld [vmem:[%s1841 + $0x58] sm:$0xff]
    %v3365 = vld [vmem:[%s1841 + $0x60] sm:$0xff]
    %v3366 = vld [vmem:[%s1841 + $0x68] sm:$0xff]
    %v3367 = vld [vmem:[%s1841 + $0x70] sm:$0xff]
    %v3368 = vld [vmem:[%s1841 + $0x78] sm:$0xff]
    %v3369 = vld [vmem:[%s1841 + $0x80] sm:$0xff]
    %v3370 = vld [vmem:[%s1841 + $0x88] sm:$0xff]
    %v3371 = vld [vmem:[%s1841 + $0x90] sm:$0xff]
    %v3372 = vld [vmem:[%s1841 + $0x98] sm:$0xff]
    %v3373 = vld [vmem:[%s1841 + $0xa0] sm:$0xff]
    %v3374 = vld [vmem:[%s1841 + $0xa8] sm:$0xff]
    %v3375 = vld [vmem:[%s1841 + $0xb0] sm:$0xff]
    %v3376 = vld [vmem:[%s1841 + $0xb8] sm:$0xff]
    %v3377 = vld [vmem:[%s1841 + $0xc0] sm:$0xff]
    %v3378 = vld [vmem:[%s1841 + $0xc8] sm:$0xff]
    %v3379 = vld [vmem:[%s1841 + $0xd0] sm:$0xff]
    %v3380 = vld [vmem:[%s1841 + $0xd8] sm:$0xff]
    %v3381 = vld [vmem:[%s1841 + $0xe0] sm:$0xff]
    %v3382 = vld [vmem:[%s1841 + $0xe8] sm:$0xff]
    %v3383 = vld [vmem:[%s1841 + $0xf0] sm:$0xff]
    %v3384 = vld [vmem:[%s1841 + $0xf8] sm:$0xff]
    %v3385 = vld [vmem:[%s1841 + $0x100] sm:$0xff]
    %v3386 = vld [vmem:[%s1841 + $0x108] sm:$0xff]
    %v3387 = vld [vmem:[%s1841 + $0x110] sm:$0xff]
    %v3388 = vld [vmem:[%s1841 + $0x118] sm:$0xff]
    %v3389 = vld [vmem:[%s1841 + $0x120] sm:$0xff]
    %v3390 = vld [vmem:[%s1841 + $0x128] sm:$0xff]
    %v3391 = vld [vmem:[%s1841 + $0x130] sm:$0xff]
    %v3392 = vld [vmem:[%s1841 + $0x138] sm:$0xff]
    %v3393 = vld [vmem:[%s1841 + $0x140] sm:$0xff]
    %v3394 = vld [vmem:[%s1841 + $0x148] sm:$0xff]
    %v3395 = vld [vmem:[%s1841 + $0x150] sm:$0xff]
    %v3396 = vld [vmem:[%s1841 + $0x158] sm:$0xff]
    %v3397 = vld [vmem:[%s1841 + $0x160] sm:$0xff]
    %v3398 = vld [vmem:[%s1841 + $0x168] sm:$0xff]
    %v3399 = vld [vmem:[%s1841 + $0x170] sm:$0xff]
    %v3400 = vld [vmem:[%s1841 + $0x178] sm:$0xff]
    %v3401 = vld [vmem:[%s1841 + $0x180] sm:$0xff]
    %v3402 = vld [vmem:[%s1841 + $0x188] sm:$0xff]
    %v3403 = vld [vmem:[%s1841 + $0x190] sm:$0xff]
    %v3404 = vld [vmem:[%s1841 + $0x198] sm:$0xff]
    %v3405 = vld [vmem:[%s1841 + $0x1a0] sm:$0xff]
    %v3406 = vld [vmem:[%s1841 + $0x1a8] sm:$0xff]
    %v3407 = vld [vmem:[%s1841 + $0x1b0] sm:$0xff]
    %v3408 = vld [vmem:[%s1841 + $0x1b8] sm:$0xff]
    %v3409 = vld [vmem:[%s1841 + $0x1c0] sm:$0xff]
    %v3410 = vld [vmem:[%s1841 + $0x1c8] sm:$0xff]
    %v3411 = vld [vmem:[%s1841 + $0x1d0] sm:$0xff]
    %v3412 = vld [vmem:[%s1841 + $0x1d8] sm:$0xff]
    %v3413 = vld [vmem:[%s1841 + $0x1e0] sm:$0xff]
    %v3414 = vld [vmem:[%s1841 + $0x1e8] sm:$0xff]
    %v3415 = vld [vmem:[%s1841 + $0x1f0] sm:$0xff]
    %v3416 = vld [vmem:[%s1841 + $0x1f8] sm:$0xff]
    %v3481 = vunpack.c.l.b16 %v3353
    %v3482 = vunpack.c.h.b16 %v3353
    %v3483 = vunpack.c.l.b16 %v3354
    %v3484 = vunpack.c.h.b16 %v3354
    %v3485 = vunpack.c.l.b16 %v3355
    %v3486 = vunpack.c.h.b16 %v3355
    %v3487 = vunpack.c.l.b16 %v3356
    %v3488 = vunpack.c.h.b16 %v3356
    %v3489 = vunpack.c.l.b16 %v3357
    %v3490 = vunpack.c.h.b16 %v3357
    %v3491 = vunpack.c.l.b16 %v3358
    %v3492 = vunpack.c.h.b16 %v3358
    %v3493 = vunpack.c.l.b16 %v3359
    %v3494 = vunpack.c.h.b16 %v3359
    %v3495 = vunpack.c.l.b16 %v3360
    %v3496 = vunpack.c.h.b16 %v3360
    %v3497 = vunpack.c.l.b16 %v3361
    %v3498 = vunpack.c.h.b16 %v3361
    %v3499 = vunpack.c.l.b16 %v3362
    %v3500 = vunpack.c.h.b16 %v3362
    %v3501 = vunpack.c.l.b16 %v3363
    %v3502 = vunpack.c.h.b16 %v3363
    %v3503 = vunpack.c.l.b16 %v3364
    %v3504 = vunpack.c.h.b16 %v3364
    %v3505 = vunpack.c.l.b16 %v3365
    %v3506 = vunpack.c.h.b16 %v3365
    %v3507 = vunpack.c.l.b16 %v3366
    %v3508 = vunpack.c.h.b16 %v3366
    %v3509 = vunpack.c.l.b16 %v3367
    %v3510 = vunpack.c.h.b16 %v3367
    %v3511 = vunpack.c.l.b16 %v3368
    %v3512 = vunpack.c.h.b16 %v3368
    %v3513 = vunpack.c.l.b16 %v3369
    %v3514 = vunpack.c.h.b16 %v3369
    %v3515 = vunpack.c.l.b16 %v3370
    %v3516 = vunpack.c.h.b16 %v3370
    %v3517 = vunpack.c.l.b16 %v3371
    %v3518 = vunpack.c.h.b16 %v3371
    %v3519 = vunpack.c.l.b16 %v3372
    %v3520 = vunpack.c.h.b16 %v3372
    %v3521 = vunpack.c.l.b16 %v3373
    %v3522 = vunpack.c.h.b16 %v3373
    %v3523 = vunpack.c.l.b16 %v3374
    %v3524 = vunpack.c.h.b16 %v3374
    %v3525 = vunpack.c.l.b16 %v3375
    %v3526 = vunpack.c.h.b16 %v3375
    %v3527 = vunpack.c.l.b16 %v3376
    %v3528 = vunpack.c.h.b16 %v3376
    %v3529 = vunpack.c.l.b16 %v3377
    %v3530 = vunpack.c.h.b16 %v3377
    %v3531 = vunpack.c.l.b16 %v3378
    %v3532 = vunpack.c.h.b16 %v3378
    %v3533 = vunpack.c.l.b16 %v3379
    %v3534 = vunpack.c.h.b16 %v3379
    %v3535 = vunpack.c.l.b16 %v3380
    %v3536 = vunpack.c.h.b16 %v3380
    %v3537 = vunpack.c.l.b16 %v3381
    %v3538 = vunpack.c.h.b16 %v3381
    %v3539 = vunpack.c.l.b16 %v3382
    %v3540 = vunpack.c.h.b16 %v3382
    %v3541 = vunpack.c.l.b16 %v3383
    %v3542 = vunpack.c.h.b16 %v3383
    %v3543 = vunpack.c.l.b16 %v3384
    %v3544 = vunpack.c.h.b16 %v3384
    %v3545 = vunpack.c.l.b16 %v3385
    %v3546 = vunpack.c.h.b16 %v3385
    %v3547 = vunpack.c.l.b16 %v3386
    %v3548 = vunpack.c.h.b16 %v3386
    %v3549 = vunpack.c.l.b16 %v3387
    %v3550 = vunpack.c.h.b16 %v3387
    %v3551 = vunpack.c.l.b16 %v3388
    %v3552 = vunpack.c.h.b16 %v3388
    %v3553 = vunpack.c.l.b16 %v3389
    %v3554 = vunpack.c.h.b16 %v3389
    %v3555 = vunpack.c.l.b16 %v3390
    %v3556 = vunpack.c.h.b16 %v3390
    %v3557 = vunpack.c.l.b16 %v3391
    %v3558 = vunpack.c.h.b16 %v3391
    %v3559 = vunpack.c.l.b16 %v3392
    %v3560 = vunpack.c.h.b16 %v3392
    %v3561 = vunpack.c.l.b16 %v3393
    %v3562 = vunpack.c.h.b16 %v3393
    %v3563 = vunpack.c.l.b16 %v3394
    %v3564 = vunpack.c.h.b16 %v3394
    %v3565 = vunpack.c.l.b16 %v3395
    %v3566 = vunpack.c.h.b16 %v3395
    %v3567 = vunpack.c.l.b16 %v3396
    %v3568 = vunpack.c.h.b16 %v3396
    %v3569 = vunpack.c.l.b16 %v3397
    %v3570 = vunpack.c.h.b16 %v3397
    %v3571 = vunpack.c.l.b16 %v3398
    %v3572 = vunpack.c.h.b16 %v3398
    %v3573 = vunpack.c.l.b16 %v3399
    %v3574 = vunpack.c.h.b16 %v3399
    %v3575 = vunpack.c.l.b16 %v3400
    %v3576 = vunpack.c.h.b16 %v3400
    %v3577 = vunpack.c.l.b16 %v3401
    %v3578 = vunpack.c.h.b16 %v3401
    %v3579 = vunpack.c.l.b16 %v3402
    %v3580 = vunpack.c.h.b16 %v3402
    %v3581 = vunpack.c.l.b16 %v3403
    %v3582 = vunpack.c.h.b16 %v3403
    %v3583 = vunpack.c.l.b16 %v3404
    %v3584 = vunpack.c.h.b16 %v3404
    %v3585 = vunpack.c.l.b16 %v3405
    %v3586 = vunpack.c.h.b16 %v3405
    %v3587 = vunpack.c.l.b16 %v3406
    %v3588 = vunpack.c.h.b16 %v3406
    %v3589 = vunpack.c.l.b16 %v3407
    %v3590 = vunpack.c.h.b16 %v3407
    %v3591 = vunpack.c.l.b16 %v3408
    %v3592 = vunpack.c.h.b16 %v3408
    %v3593 = vunpack.c.l.b16 %v3409
    %v3594 = vunpack.c.h.b16 %v3409
    %v3595 = vunpack.c.l.b16 %v3410
    %v3596 = vunpack.c.h.b16 %v3410
    %v3597 = vunpack.c.l.b16 %v3411
    %v3598 = vunpack.c.h.b16 %v3411
    %v3599 = vunpack.c.l.b16 %v3412
    %v3600 = vunpack.c.h.b16 %v3412
    %v3601 = vunpack.c.l.b16 %v3413
    %v3602 = vunpack.c.h.b16 %v3413
    %v3603 = vunpack.c.l.b16 %v3414
    %v3604 = vunpack.c.h.b16 %v3414
    %v3605 = vunpack.c.l.b16 %v3415
    %v3606 = vunpack.c.h.b16 %v3415
    %v3607 = vunpack.c.l.b16 %v3416
    %v3608 = vunpack.c.h.b16 %v3416
    %v3609 = vpack.c.b16 %v3485, %v3481
    %v3610 = vpack.c.b16 %v3486, %v3482
    %v3611 = vpack.c.b16 %v3487, %v3483
    %v3612 = vpack.c.b16 %v3488, %v3484
    %v3613 = vpack.c.b16 %v3493, %v3489
    %v3614 = vpack.c.b16 %v3494, %v3490
    %v3615 = vpack.c.b16 %v3495, %v3491
    %v3616 = vpack.c.b16 %v3496, %v3492
    %v3617 = vpack.c.b16 %v3501, %v3497
    %v3618 = vpack.c.b16 %v3502, %v3498
    %v3619 = vpack.c.b16 %v3503, %v3499
    %v3620 = vpack.c.b16 %v3504, %v3500
    %v3621 = vpack.c.b16 %v3509, %v3505
    %v3622 = vpack.c.b16 %v3510, %v3506
    %v3623 = vpack.c.b16 %v3511, %v3507
    %v3624 = vpack.c.b16 %v3512, %v3508
    %v3625 = vpack.c.b16 %v3517, %v3513
    %v3626 = vpack.c.b16 %v3518, %v3514
    %v3627 = vpack.c.b16 %v3519, %v3515
    %v3628 = vpack.c.b16 %v3520, %v3516
    %v3629 = vpack.c.b16 %v3525, %v3521
    %v3630 = vpack.c.b16 %v3526, %v3522
    %v3631 = vpack.c.b16 %v3527, %v3523
    %v3632 = vpack.c.b16 %v3528, %v3524
    %v3633 = vpack.c.b16 %v3533, %v3529
    %v3634 = vpack.c.b16 %v3534, %v3530
    %v3635 = vpack.c.b16 %v3535, %v3531
    %v3636 = vpack.c.b16 %v3536, %v3532
    %v3637 = vpack.c.b16 %v3541, %v3537
    %v3638 = vpack.c.b16 %v3542, %v3538
    %v3639 = vpack.c.b16 %v3543, %v3539
    %v3640 = vpack.c.b16 %v3544, %v3540
    %v3641 = vpack.c.b16 %v3549, %v3545
    %v3642 = vpack.c.b16 %v3550, %v3546
    %v3643 = vpack.c.b16 %v3551, %v3547
    %v3644 = vpack.c.b16 %v3552, %v3548
    %v3645 = vpack.c.b16 %v3557, %v3553
    %v3646 = vpack.c.b16 %v3558, %v3554
    %v3647 = vpack.c.b16 %v3559, %v3555
    %v3648 = vpack.c.b16 %v3560, %v3556
    %v3649 = vpack.c.b16 %v3565, %v3561
    %v3650 = vpack.c.b16 %v3566, %v3562
    %v3651 = vpack.c.b16 %v3567, %v3563
    %v3652 = vpack.c.b16 %v3568, %v3564
    %v3653 = vpack.c.b16 %v3573, %v3569
    %v3654 = vpack.c.b16 %v3574, %v3570
    %v3655 = vpack.c.b16 %v3575, %v3571
    %v3656 = vpack.c.b16 %v3576, %v3572
    %v3657 = vpack.c.b16 %v3581, %v3577
    %v3658 = vpack.c.b16 %v3582, %v3578
    %v3659 = vpack.c.b16 %v3583, %v3579
    %v3660 = vpack.c.b16 %v3584, %v3580
    %v3661 = vpack.c.b16 %v3589, %v3585
    %v3662 = vpack.c.b16 %v3590, %v3586
    %v3663 = vpack.c.b16 %v3591, %v3587
    %v3664 = vpack.c.b16 %v3592, %v3588
    %v3665 = vpack.c.b16 %v3597, %v3593
    %v3666 = vpack.c.b16 %v3598, %v3594
    %v3667 = vpack.c.b16 %v3599, %v3595
    %v3668 = vpack.c.b16 %v3600, %v3596
    %v3669 = vpack.c.b16 %v3605, %v3601
    %v3670 = vpack.c.b16 %v3606, %v3602
    %v3671 = vpack.c.b16 %v3607, %v3603
    %v3672 = vpack.c.b16 %v3608, %v3604
    %3737 = vmatpush.bf16.msra.mxu0 %v3637
    %3738 = vmatpush.bf16.msra.mxu0 %v3633
    %3739 = vmatpush.bf16.msra.mxu0 %v3629
    %3740 = vmatpush.bf16.msra.mxu0 %v3625
    %3741 = vmatpush.bf16.msra.mxu0 %v3621
    %3742 = vmatpush.bf16.msra.mxu0 %v3617
    %3743 = vmatpush.bf16.msra.mxu0 %v3613
    %3744 = vmatpush.bf16.msra.mxu0 %v3609
    %3745 = vmatmul.bf16.gmra.mxu0 %v2801
    %v3746 = vpop.f32.mrf.mxu0
    %v3747 = vadd.f32 %v1907, %v3746
    %v3748 = vpop.f32.mrf.mxu0
    %3749 = vdwg.mxu0
    %3750 = vmatpush.bf16.msra.mxu0 %v3669
    %3751 = vmatpush.bf16.msra.mxu0 %v3665
    %3752 = vmatpush.bf16.msra.mxu0 %v3661
    %3753 = vmatpush.bf16.msra.mxu0 %v3657
    %3754 = vmatpush.bf16.msra.mxu0 %v3653
    %3755 = vmatpush.bf16.msra.mxu0 %v3649
    %3756 = vmatpush.bf16.msra.mxu0 %v3645
    %3757 = vmatpush.bf16.msra.mxu0 %v3641
    %3758 = vmatmul.bf16.gmra.mxu0 %v2402
    %v3759 = vpop.f32.mrf.mxu0
    %v3760 = vadd.f32 %v3747, %v3759
    %v3761 = vpop.f32.mrf.mxu0
    %3762 = vdwg.mxu0
    %3763 = vmatpush.bf16.msra.mxu0 %v3638
    %3764 = vmatpush.bf16.msra.mxu0 %v3634
    %3765 = vmatpush.bf16.msra.mxu0 %v3630
    %3766 = vmatpush.bf16.msra.mxu0 %v3626
    %3767 = vmatpush.bf16.msra.mxu0 %v3622
    %3768 = vmatpush.bf16.msra.mxu0 %v3618
    %3769 = vmatpush.bf16.msra.mxu0 %v3614
    %3770 = vmatpush.bf16.msra.mxu0 %v3610
    %3771 = vmatmul.bf16.gmra.mxu0 %v2801
    %v3772 = vpop.f32.mrf.mxu0
    %v3773 = vadd.f32 %v1908, %v3772
    %v3774 = vpop.f32.mrf.mxu0
    %3775 = vdwg.mxu0
    %3776 = vmatpush.bf16.msra.mxu0 %v3670
    %3777 = vmatpush.bf16.msra.mxu0 %v3666
    %3778 = vmatpush.bf16.msra.mxu0 %v3662
    %3779 = vmatpush.bf16.msra.mxu0 %v3658
    %3780 = vmatpush.bf16.msra.mxu0 %v3654
    %3781 = vmatpush.bf16.msra.mxu0 %v3650
    %3782 = vmatpush.bf16.msra.mxu0 %v3646
    %3783 = vmatpush.bf16.msra.mxu0 %v3642
    %3784 = vmatmul.bf16.gmra.mxu0 %v2402
    %v3785 = vpop.f32.mrf.mxu0
    %v3786 = vadd.f32 %v3773, %v3785
    %v3787 = vpop.f32.mrf.mxu0
    %3788 = vdwg.mxu0
    %3789 = vmatpush.bf16.msra.mxu0 %v3639
    %3790 = vmatpush.bf16.msra.mxu0 %v3635
    %3791 = vmatpush.bf16.msra.mxu0 %v3631
    %3792 = vmatpush.bf16.msra.mxu0 %v3627
    %3793 = vmatpush.bf16.msra.mxu0 %v3623
    %3794 = vmatpush.bf16.msra.mxu0 %v3619
    %3795 = vmatpush.bf16.msra.mxu0 %v3615
    %3796 = vmatpush.bf16.msra.mxu0 %v3611
    %3797 = vmatmul.bf16.gmra.mxu0 %v2801
    %v3798 = vpop.f32.mrf.mxu0
    %v3799 = vadd.f32 %v1909, %v3798
    %v3800 = vpop.f32.mrf.mxu0
    %3801 = vdwg.mxu0
    %3802 = vmatpush.bf16.msra.mxu0 %v3671
    %3803 = vmatpush.bf16.msra.mxu0 %v3667
    %3804 = vmatpush.bf16.msra.mxu0 %v3663
    %3805 = vmatpush.bf16.msra.mxu0 %v3659
    %3806 = vmatpush.bf16.msra.mxu0 %v3655
    %3807 = vmatpush.bf16.msra.mxu0 %v3651
    %3808 = vmatpush.bf16.msra.mxu0 %v3647
    %3809 = vmatpush.bf16.msra.mxu0 %v3643
    %3810 = vmatmul.bf16.gmra.mxu0 %v2402
    %v3811 = vpop.f32.mrf.mxu0
    %v3812 = vadd.f32 %v3799, %v3811
    %v3813 = vpop.f32.mrf.mxu0
    %3814 = vdwg.mxu0
    %3815 = vmatpush.bf16.msra.mxu0 %v3640
    %3816 = vmatpush.bf16.msra.mxu0 %v3636
    %3817 = vmatpush.bf16.msra.mxu0 %v3632
    %3818 = vmatpush.bf16.msra.mxu0 %v3628
    %3819 = vmatpush.bf16.msra.mxu0 %v3624
    %3820 = vmatpush.bf16.msra.mxu0 %v3620
    %3821 = vmatpush.bf16.msra.mxu0 %v3616
    %3822 = vmatpush.bf16.msra.mxu0 %v3612
    %3823 = vmatmul.bf16.gmra.mxu0 %v2801
    %v3824 = vpop.f32.mrf.mxu0
    %v3825 = vadd.f32 %v1910, %v3824
    %v3826 = vpop.f32.mrf.mxu0
    %3827 = vdwg.mxu0
    %3828 = vmatpush.bf16.msra.mxu0 %v3672
    %3829 = vmatpush.bf16.msra.mxu0 %v3668
    %3830 = vmatpush.bf16.msra.mxu0 %v3664
    %3831 = vmatpush.bf16.msra.mxu0 %v3660
    %3832 = vmatpush.bf16.msra.mxu0 %v3656
    %3833 = vmatpush.bf16.msra.mxu0 %v3652
    %3834 = vmatpush.bf16.msra.mxu0 %v3648
    %3835 = vmatpush.bf16.msra.mxu0 %v3644
    %3836 = vmatmul.bf16.gmra.mxu0 %v2402
    %v3837 = vpop.f32.mrf.mxu0
    %v3838 = vadd.f32 %v3825, %v3837
    %v3839 = vpop.f32.mrf.mxu0
    %3840 = vdwg.mxu0
    %v3841 = vxor.u32 %v3760, 2147483648
    %v3842 = vxor.u32 %v3786, 2147483648
    %v3843 = vxor.u32 %v3812, 2147483648
    %v3844 = vmul.f32 %v3841, 1.442695
    %v3845 = vpow.pop %v3844
    %v3846 = vmul.f32 %v3842, 1.442695
    %v3847 = vpow.pop %v3846
    %v3848 = vmul.f32 %v3843, 1.442695
    %v3849 = vpow.pop %v3848
    %v3850 = vadd.f32 %v3845, 1.0
    %v3851 = vadd.f32 %v3847, 1.0
    %v3852 = vadd.f32 %v3849, 1.0
    %v3853 = vrcp.pop %v3850
    %v3854 = vmul.f32 %v3850, %v3853
    %v3855 = vsub.f32 1.0, %v3854
    %v3856 = vmul.f32 %v3853, %v3855
    %v3857 = vadd.f32 %v3853, %v3856
    %vm3858 = vweird.f32 %v3850
    %vm3859 = vweird.f32 %v3853
    %vm3860 = vmor %vm3858, %vm3859
    %v3861 = vsel %vm3860, %v3853, %v3857
    %v3862 = vand.u32 2147483647, %v3850
    %vm3863 = vcmp.eq.f32.partialorder %v3862, 8.507059e+37
    %v3864 = vand.u32 %v3850, 2147483648
    %v3865 = vor.u32 1.1754944e-38, %v3864
    %v3866 = vsel %vm3863, %v3865, %v3861
    %v3867 = vmul.f32 1.0, %v3866
    %v3868 = vrcp.pop %v3851
    %v3869 = vmul.f32 %v3851, %v3868
    %v3870 = vsub.f32 1.0, %v3869
    %v3871 = vmul.f32 %v3868, %v3870
    %v3872 = vadd.f32 %v3868, %v3871
    %vm3873 = vweird.f32 %v3851
    %vm3874 = vweird.f32 %v3868
    %vm3875 = vmor %vm3873, %vm3874
    %v3876 = vsel %vm3875, %v3868, %v3872
    %v3877 = vand.u32 2147483647, %v3851
    %vm3878 = vcmp.eq.f32.partialorder %v3877, 8.507059e+37
    %v3879 = vand.u32 %v3851, 2147483648
    %v3880 = vor.u32 1.1754944e-38, %v3879
    %v3881 = vsel %vm3878, %v3880, %v3876
    %v3882 = vmul.f32 1.0, %v3881
    %v3883 = vrcp.pop %v3852
    %v3884 = vmul.f32 %v3852, %v3883
    %v3885 = vsub.f32 1.0, %v3884
    %v3886 = vmul.f32 %v3883, %v3885
    %v3887 = vadd.f32 %v3883, %v3886
    %vm3888 = vweird.f32 %v3852
    %vm3889 = vweird.f32 %v3883
    %vm3890 = vmor %vm3888, %vm3889
    %v3891 = vsel %vm3890, %v3883, %v3887
    %v3892 = vand.u32 2147483647, %v3852
    %vm3893 = vcmp.eq.f32.partialorder %v3892, 8.507059e+37
    %v3894 = vand.u32 %v3852, 2147483648
    %v3895 = vor.u32 1.1754944e-38, %v3894
    %v3896 = vsel %vm3893, %v3895, %v3891
    %v3897 = vmul.f32 1.0, %v3896
    %v3898 = vtanh.pop %v3838
    %v3899 = vmul.f32 %v3882, %v2399
    %v3900 = vmul.f32 %v3867, %v3898
    %v3901 = vadd.f32 %v3899, %v3900
    %v3902 = vtanh.pop %v3901
    %v3903 = vmul.f32 %v3897, %v3902
    %v3904 = vpack.c.bf16 %v3903, %v3903
    %v3905 = vld [vmem:[%s7] sm:$0xf]
    %v3906 = vld [vmem:[%s7 + $0x4] sm:$0xf]
    %v3907 = vld [vmem:[%s7 + $0x8] sm:$0xf]
    %v3908 = vld [vmem:[%s7 + $0xc] sm:$0xf]
    %v3909 = vld [vmem:[%s7 + $0x10] sm:$0xf]
    %v3910 = vld [vmem:[%s7 + $0x14] sm:$0xf]
    %v3911 = vld [vmem:[%s7 + $0x18] sm:$0xf]
    %v3912 = vld [vmem:[%s7 + $0x1c] sm:$0xf]
    %v3913 = vld [vmem:[%s7 + $0x20] sm:$0xf]
    %v3914 = vld [vmem:[%s7 + $0x24] sm:$0xf]
    %v3915 = vld [vmem:[%s7 + $0x28] sm:$0xf]
    %v3916 = vld [vmem:[%s7 + $0x2c] sm:$0xf]
    %v3917 = vld [vmem:[%s7 + $0x30] sm:$0xf]
    %v3918 = vld [vmem:[%s7 + $0x34] sm:$0xf]
    %v3919 = vld [vmem:[%s7 + $0x38] sm:$0xf]
    %v3920 = vld [vmem:[%s7 + $0x3c] sm:$0xf]
    %v3937 = vunpack.c.l.b16 %v3905
    %v3938 = vunpack.c.l.b16 %v3906
    %v3939 = vunpack.c.l.b16 %v3907
    %v3940 = vunpack.c.l.b16 %v3908
    %v3941 = vunpack.c.l.b16 %v3909
    %v3942 = vunpack.c.l.b16 %v3910
    %v3943 = vunpack.c.l.b16 %v3911
    %v3944 = vunpack.c.l.b16 %v3912
    %v3945 = vunpack.c.l.b16 %v3913
    %v3946 = vunpack.c.l.b16 %v3914
    %v3947 = vunpack.c.l.b16 %v3915
    %v3948 = vunpack.c.l.b16 %v3916
    %v3949 = vunpack.c.l.b16 %v3917
    %v3950 = vunpack.c.l.b16 %v3918
    %v3951 = vunpack.c.l.b16 %v3919
    %v3952 = vunpack.c.l.b16 %v3920
    %v3953 = vpack.c.b16 %v3938, %v3937
    %v3954 = vpack.c.b16 %v3940, %v3939
    %v3955 = vpack.c.b16 %v3942, %v3941
    %v3956 = vpack.c.b16 %v3944, %v3943
    %v3957 = vpack.c.b16 %v3946, %v3945
    %v3958 = vpack.c.b16 %v3948, %v3947
    %v3959 = vpack.c.b16 %v3950, %v3949
    %v3960 = vpack.c.b16 %v3952, %v3951
    %3969 = vmatpush.bf16.msra.mxu0 %v3960
    %3970 = vmatpush.bf16.msra.mxu0 %v3959
    %3971 = vmatpush.bf16.msra.mxu0 %v3958
    %3972 = vmatpush.bf16.msra.mxu0 %v3957
    %3973 = vmatpush.bf16.msra.mxu0 %v3956
    %3974 = vmatpush.bf16.msra.mxu0 %v3955
    %3975 = vmatpush.bf16.msra.mxu0 %v3954
    %3976 = vmatpush.bf16.msra.mxu0 %v3953
    %3977 = vmatmul.bf16.gmra.mxu0 %v3904
    %v3978 = vpop.f32.mrf.mxu0
    %v3979 = vadd.f32 %v2420, %v3978
    %v3980 = vpop.f32.mrf.mxu0
    %3981 = vdwg.mxu0
    %s3982 = scalar_lea.vmem %s11, 8
    %3983 = vst [vmem:[%s3982] sm:$0xff] %v3979
    %s3984 = scalar_lea.vmem [#allocation2], 128
    %v3985 = vld [vmem:[%s3984] sm:$0xff]
    %v3986 = vld [vmem:[%s3984 + $0x8] sm:$0xff]
    %v3987 = vld [vmem:[%s3984 + $0x10] sm:$0xff]
    %v3988 = vld [vmem:[%s3984 + $0x18] sm:$0xff]
    %v3989 = vpack.c.bf16 %v2800, %v2800
    %v3990 = vld [vmem:[#allocation5] sm:$0xff]
    %v3991 = vld [vmem:[#allocation5 + $0x8] sm:$0xff]
    %v3992 = vld [vmem:[#allocation5 + $0x10] sm:$0xff]
    %v3993 = vld [vmem:[#allocation5 + $0x18] sm:$0xff]
    %v3994 = vld [vmem:[#allocation5 + $0x20] sm:$0xff]
    %v3995 = vld [vmem:[#allocation5 + $0x28] sm:$0xff]
    %v3996 = vld [vmem:[#allocation5 + $0x30] sm:$0xff]
    %v3997 = vld [vmem:[#allocation5 + $0x38] sm:$0xff]
    %v3998 = vld [vmem:[#allocation5 + $0x40] sm:$0xff]
    %v3999 = vld [vmem:[#allocation5 + $0x48] sm:$0xff]
    %v4000 = vld [vmem:[#allocation5 + $0x50] sm:$0xff]
    %v4001 = vld [vmem:[#allocation5 + $0x58] sm:$0xff]
    %v4002 = vld [vmem:[#allocation5 + $0x60] sm:$0xff]
    %v4003 = vld [vmem:[#allocation5 + $0x68] sm:$0xff]
    %v4004 = vld [vmem:[#allocation5 + $0x70] sm:$0xff]
    %v4005 = vld [vmem:[#allocation5 + $0x78] sm:$0xff]
    %v4006 = vld [vmem:[#allocation5 + $0x80] sm:$0xff]
    %v4007 = vld [vmem:[#allocation5 + $0x88] sm:$0xff]
    %v4008 = vld [vmem:[#allocation5 + $0x90] sm:$0xff]
    %v4009 = vld [vmem:[#allocation5 + $0x98] sm:$0xff]
    %v4010 = vld [vmem:[#allocation5 + $0xa0] sm:$0xff]
    %v4011 = vld [vmem:[#allocation5 + $0xa8] sm:$0xff]
    %v4012 = vld [vmem:[#allocation5 + $0xb0] sm:$0xff]
    %v4013 = vld [vmem:[#allocation5 + $0xb8] sm:$0xff]
    %v4014 = vld [vmem:[#allocation5 + $0xc0] sm:$0xff]
    %v4015 = vld [vmem:[#allocation5 + $0xc8] sm:$0xff]
    %v4016 = vld [vmem:[#allocation5 + $0xd0] sm:$0xff]
    %v4017 = vld [vmem:[#allocation5 + $0xd8] sm:$0xff]
    %v4018 = vld [vmem:[#allocation5 + $0xe0] sm:$0xff]
    %v4019 = vld [vmem:[#allocation5 + $0xe8] sm:$0xff]
    %v4020 = vld [vmem:[#allocation5 + $0xf0] sm:$0xff]
    %v4021 = vld [vmem:[#allocation5 + $0xf8] sm:$0xff]
    %v4054 = vunpack.c.l.b16 %v3990
    %v4055 = vunpack.c.h.b16 %v3990
    %v4056 = vunpack.c.l.b16 %v3991
    %v4057 = vunpack.c.h.b16 %v3991
    %v4058 = vunpack.c.l.b16 %v3992
    %v4059 = vunpack.c.h.b16 %v3992
    %v4060 = vunpack.c.l.b16 %v3993
    %v4061 = vunpack.c.h.b16 %v3993
    %v4062 = vunpack.c.l.b16 %v3994
    %v4063 = vunpack.c.h.b16 %v3994
    %v4064 = vunpack.c.l.b16 %v3995
    %v4065 = vunpack.c.h.b16 %v3995
    %v4066 = vunpack.c.l.b16 %v3996
    %v4067 = vunpack.c.h.b16 %v3996
    %v4068 = vunpack.c.l.b16 %v3997
    %v4069 = vunpack.c.h.b16 %v3997
    %v4070 = vunpack.c.l.b16 %v3998
    %v4071 = vunpack.c.h.b16 %v3998
    %v4072 = vunpack.c.l.b16 %v3999
    %v4073 = vunpack.c.h.b16 %v3999
    %v4074 = vunpack.c.l.b16 %v4000
    %v4075 = vunpack.c.h.b16 %v4000
    %v4076 = vunpack.c.l.b16 %v4001
    %v4077 = vunpack.c.h.b16 %v4001
    %v4078 = vunpack.c.l.b16 %v4002
    %v4079 = vunpack.c.h.b16 %v4002
    %v4080 = vunpack.c.l.b16 %v4003
    %v4081 = vunpack.c.h.b16 %v4003
    %v4082 = vunpack.c.l.b16 %v4004
    %v4083 = vunpack.c.h.b16 %v4004
    %v4084 = vunpack.c.l.b16 %v4005
    %v4085 = vunpack.c.h.b16 %v4005
    %v4086 = vunpack.c.l.b16 %v4006
    %v4087 = vunpack.c.h.b16 %v4006
    %v4088 = vunpack.c.l.b16 %v4007
    %v4089 = vunpack.c.h.b16 %v4007
    %v4090 = vunpack.c.l.b16 %v4008
    %v4091 = vunpack.c.h.b16 %v4008
    %v4092 = vunpack.c.l.b16 %v4009
    %v4093 = vunpack.c.h.b16 %v4009
    %v4094 = vunpack.c.l.b16 %v4010
    %v4095 = vunpack.c.h.b16 %v4010
    %v4096 = vunpack.c.l.b16 %v4011
    %v4097 = vunpack.c.h.b16 %v4011
    %v4098 = vunpack.c.l.b16 %v4012
    %v4099 = vunpack.c.h.b16 %v4012
    %v4100 = vunpack.c.l.b16 %v4013
    %v4101 = vunpack.c.h.b16 %v4013
    %v4102 = vunpack.c.l.b16 %v4014
    %v4103 = vunpack.c.h.b16 %v4014
    %v4104 = vunpack.c.l.b16 %v4015
    %v4105 = vunpack.c.h.b16 %v4015
    %v4106 = vunpack.c.l.b16 %v4016
    %v4107 = vunpack.c.h.b16 %v4016
    %v4108 = vunpack.c.l.b16 %v4017
    %v4109 = vunpack.c.h.b16 %v4017
    %v4110 = vunpack.c.l.b16 %v4018
    %v4111 = vunpack.c.h.b16 %v4018
    %v4112 = vunpack.c.l.b16 %v4019
    %v4113 = vunpack.c.h.b16 %v4019
    %v4114 = vunpack.c.l.b16 %v4020
    %v4115 = vunpack.c.h.b16 %v4020
    %v4116 = vunpack.c.l.b16 %v4021
    %v4117 = vunpack.c.h.b16 %v4021
    %v4118 = vpack.c.b16 %v4058, %v4054
    %v4119 = vpack.c.b16 %v4059, %v4055
    %v4120 = vpack.c.b16 %v4060, %v4056
    %v4121 = vpack.c.b16 %v4061, %v4057
    %v4122 = vpack.c.b16 %v4066, %v4062
    %v4123 = vpack.c.b16 %v4067, %v4063
    %v4124 = vpack.c.b16 %v4068, %v4064
    %v4125 = vpack.c.b16 %v4069, %v4065
    %v4126 = vpack.c.b16 %v4074, %v4070
    %v4127 = vpack.c.b16 %v4075, %v4071
    %v4128 = vpack.c.b16 %v4076, %v4072
    %v4129 = vpack.c.b16 %v4077, %v4073
    %v4130 = vpack.c.b16 %v4082, %v4078
    %v4131 = vpack.c.b16 %v4083, %v4079
    %v4132 = vpack.c.b16 %v4084, %v4080
    %v4133 = vpack.c.b16 %v4085, %v4081
    %v4134 = vpack.c.b16 %v4090, %v4086
    %v4135 = vpack.c.b16 %v4091, %v4087
    %v4136 = vpack.c.b16 %v4092, %v4088
    %v4137 = vpack.c.b16 %v4093, %v4089
    %v4138 = vpack.c.b16 %v4098, %v4094
    %v4139 = vpack.c.b16 %v4099, %v4095
    %v4140 = vpack.c.b16 %v4100, %v4096
    %v4141 = vpack.c.b16 %v4101, %v4097
    %v4142 = vpack.c.b16 %v4106, %v4102
    %v4143 = vpack.c.b16 %v4107, %v4103
    %v4144 = vpack.c.b16 %v4108, %v4104
    %v4145 = vpack.c.b16 %v4109, %v4105
    %v4146 = vpack.c.b16 %v4114, %v4110
    %v4147 = vpack.c.b16 %v4115, %v4111
    %v4148 = vpack.c.b16 %v4116, %v4112
    %v4149 = vpack.c.b16 %v4117, %v4113
    %4182 = vmatpush.bf16.msra.mxu0 %v4146
    %4183 = vmatpush.bf16.msra.mxu0 %v4142
    %4184 = vmatpush.bf16.msra.mxu0 %v4138
    %4185 = vmatpush.bf16.msra.mxu0 %v4134
    %4186 = vmatpush.bf16.msra.mxu0 %v4130
    %4187 = vmatpush.bf16.msra.mxu0 %v4126
    %4188 = vmatpush.bf16.msra.mxu0 %v4122
    %4189 = vmatpush.bf16.msra.mxu0 %v4118
    %4190 = vmatmul.bf16.gmra.mxu0 %v3989
    %v4191 = vpop.f32.mrf.mxu0
    %v4192 = vadd.f32 0.0, %v4191
    %v4193 = vpop.f32.mrf.mxu0
    %4194 = vdwg.mxu0
    %4195 = vmatpush.bf16.msra.mxu0 %v4147
    %4196 = vmatpush.bf16.msra.mxu0 %v4143
    %4197 = vmatpush.bf16.msra.mxu0 %v4139
    %4198 = vmatpush.bf16.msra.mxu0 %v4135
    %4199 = vmatpush.bf16.msra.mxu0 %v4131
    %4200 = vmatpush.bf16.msra.mxu0 %v4127
    %4201 = vmatpush.bf16.msra.mxu0 %v4123
    %4202 = vmatpush.bf16.msra.mxu0 %v4119
    %4203 = vmatmul.bf16.gmra.mxu0 %v3989
    %v4204 = vpop.f32.mrf.mxu0
    %v4205 = vadd.f32 0.0, %v4204
    %v4206 = vpop.f32.mrf.mxu0
    %4207 = vdwg.mxu0
    %4208 = vmatpush.bf16.msra.mxu0 %v4148
    %4209 = vmatpush.bf16.msra.mxu0 %v4144
    %4210 = vmatpush.bf16.msra.mxu0 %v4140
    %4211 = vmatpush.bf16.msra.mxu0 %v4136
    %4212 = vmatpush.bf16.msra.mxu0 %v4132
    %4213 = vmatpush.bf16.msra.mxu0 %v4128
    %4214 = vmatpush.bf16.msra.mxu0 %v4124
    %4215 = vmatpush.bf16.msra.mxu0 %v4120
    %4216 = vmatmul.bf16.gmra.mxu0 %v3989
    %v4217 = vpop.f32.mrf.mxu0
    %v4218 = vadd.f32 0.0, %v4217
    %v4219 = vpop.f32.mrf.mxu0
    %4220 = vdwg.mxu0
    %4221 = vmatpush.bf16.msra.mxu0 %v4149
    %4222 = vmatpush.bf16.msra.mxu0 %v4145
    %4223 = vmatpush.bf16.msra.mxu0 %v4141
    %4224 = vmatpush.bf16.msra.mxu0 %v4137
    %4225 = vmatpush.bf16.msra.mxu0 %v4133
    %4226 = vmatpush.bf16.msra.mxu0 %v4129
    %4227 = vmatpush.bf16.msra.mxu0 %v4125
    %4228 = vmatpush.bf16.msra.mxu0 %v4121
    %4229 = vmatmul.bf16.gmra.mxu0 %v3989
    %v4230 = vpop.f32.mrf.mxu0
    %v4231 = vadd.f32 0.0, %v4230
    %v4232 = vpop.f32.mrf.mxu0
    %4233 = vdwg.mxu0
    %v4234 = vadd.f32 %v3985, %v4192
    %v4235 = vadd.f32 %v3986, %v4205
    %v4236 = vadd.f32 %v3987, %v4218
    %v4237 = vadd.f32 %v3988, %v4231
    %v4238 = vxor.u32 %v4234, 2147483648
    %v4239 = vxor.u32 %v4235, 2147483648
    %v4240 = vxor.u32 %v4236, 2147483648
    %v4241 = vmul.f32 %v4238, 1.442695
    %v4242 = vpow.pop %v4241
    %v4243 = vmul.f32 %v4239, 1.442695
    %v4244 = vpow.pop %v4243
    %v4245 = vmul.f32 %v4240, 1.442695
    %v4246 = vpow.pop %v4245
    %v4247 = vadd.f32 %v4242, 1.0
    %v4248 = vadd.f32 %v4244, 1.0
    %v4249 = vadd.f32 %v4246, 1.0
    %v4250 = vrcp.pop %v4247
    %v4251 = vmul.f32 %v4247, %v4250
    %v4252 = vsub.f32 1.0, %v4251
    %v4253 = vmul.f32 %v4250, %v4252
    %v4254 = vadd.f32 %v4250, %v4253
    %vm4255 = vweird.f32 %v4247
    %vm4256 = vweird.f32 %v4250
    %vm4257 = vmor %vm4255, %vm4256
    %v4258 = vsel %vm4257, %v4250, %v4254
    %v4259 = vand.u32 2147483647, %v4247
    %vm4260 = vcmp.eq.f32.partialorder %v4259, 8.507059e+37
    %v4261 = vand.u32 %v4247, 2147483648
    %v4262 = vor.u32 1.1754944e-38, %v4261
    %v4263 = vsel %vm4260, %v4262, %v4258
    %v4264 = vmul.f32 1.0, %v4263
    %v4265 = vrcp.pop %v4248
    %v4266 = vmul.f32 %v4248, %v4265
    %v4267 = vsub.f32 1.0, %v4266
    %v4268 = vmul.f32 %v4265, %v4267
    %v4269 = vadd.f32 %v4265, %v4268
    %vm4270 = vweird.f32 %v4248
    %vm4271 = vweird.f32 %v4265
    %vm4272 = vmor %vm4270, %vm4271
    %v4273 = vsel %vm4272, %v4265, %v4269
    %v4274 = vand.u32 2147483647, %v4248
    %vm4275 = vcmp.eq.f32.partialorder %v4274, 8.507059e+37
    %v4276 = vand.u32 %v4248, 2147483648
    %v4277 = vor.u32 1.1754944e-38, %v4276
    %v4278 = vsel %vm4275, %v4277, %v4273
    %v4279 = vmul.f32 1.0, %v4278
    %v4280 = vrcp.pop %v4249
    %v4281 = vmul.f32 %v4249, %v4280
    %v4282 = vsub.f32 1.0, %v4281
    %v4283 = vmul.f32 %v4280, %v4282
    %v4284 = vadd.f32 %v4280, %v4283
    %vm4285 = vweird.f32 %v4249
    %vm4286 = vweird.f32 %v4280
    %vm4287 = vmor %vm4285, %vm4286
    %v4288 = vsel %vm4287, %v4280, %v4284
    %v4289 = vand.u32 2147483647, %v4249
    %vm4290 = vcmp.eq.f32.partialorder %v4289, 8.507059e+37
    %v4291 = vand.u32 %v4249, 2147483648
    %v4292 = vor.u32 1.1754944e-38, %v4291
    %v4293 = vsel %vm4290, %v4292, %v4288
    %v4294 = vmul.f32 1.0, %v4293
    %v4295 = vtanh.pop %v4237
    %v4296 = vmul.f32 %v4279, %v2798
    %v4297 = vmul.f32 %v4264, %v4295
    %v4298 = vadd.f32 %v4296, %v4297
    %v4299 = vtanh.pop %v4298
    %v4300 = vmul.f32 %v4294, %v4299
    %v4301 = vpack.c.bf16 %v3352, %v3352
    %v4302 = vld [vmem:[#allocation7] sm:$0xff]
    %v4303 = vld [vmem:[#allocation7 + $0x8] sm:$0xff]
    %v4304 = vld [vmem:[#allocation7 + $0x10] sm:$0xff]
    %v4305 = vld [vmem:[#allocation7 + $0x18] sm:$0xff]
    %v4306 = vld [vmem:[#allocation7 + $0x20] sm:$0xff]
    %v4307 = vld [vmem:[#allocation7 + $0x28] sm:$0xff]
    %v4308 = vld [vmem:[#allocation7 + $0x30] sm:$0xff]
    %v4309 = vld [vmem:[#allocation7 + $0x38] sm:$0xff]
    %v4310 = vld [vmem:[#allocation7 + $0x40] sm:$0xff]
    %v4311 = vld [vmem:[#allocation7 + $0x48] sm:$0xff]
    %v4312 = vld [vmem:[#allocation7 + $0x50] sm:$0xff]
    %v4313 = vld [vmem:[#allocation7 + $0x58] sm:$0xff]
    %v4314 = vld [vmem:[#allocation7 + $0x60] sm:$0xff]
    %v4315 = vld [vmem:[#allocation7 + $0x68] sm:$0xff]
    %v4316 = vld [vmem:[#allocation7 + $0x70] sm:$0xff]
    %v4317 = vld [vmem:[#allocation7 + $0x78] sm:$0xff]
    %v4318 = vld [vmem:[#allocation7 + $0x80] sm:$0xff]
    %v4319 = vld [vmem:[#allocation7 + $0x88] sm:$0xff]
    %v4320 = vld [vmem:[#allocation7 + $0x90] sm:$0xff]
    %v4321 = vld [vmem:[#allocation7 + $0x98] sm:$0xff]
    %v4322 = vld [vmem:[#allocation7 + $0xa0] sm:$0xff]
    %v4323 = vld [vmem:[#allocation7 + $0xa8] sm:$0xff]
    %v4324 = vld [vmem:[#allocation7 + $0xb0] sm:$0xff]
    %v4325 = vld [vmem:[#allocation7 + $0xb8] sm:$0xff]
    %v4326 = vld [vmem:[#allocation7 + $0xc0] sm:$0xff]
    %v4327 = vld [vmem:[#allocation7 + $0xc8] sm:$0xff]
    %v4328 = vld [vmem:[#allocation7 + $0xd0] sm:$0xff]
    %v4329 = vld [vmem:[#allocation7 + $0xd8] sm:$0xff]
    %v4330 = vld [vmem:[#allocation7 + $0xe0] sm:$0xff]
    %v4331 = vld [vmem:[#allocation7 + $0xe8] sm:$0xff]
    %v4332 = vld [vmem:[#allocation7 + $0xf0] sm:$0xff]
    %v4333 = vld [vmem:[#allocation7 + $0xf8] sm:$0xff]
    %v4334 = vld [vmem:[#allocation7 + $0x100] sm:$0xff]
    %v4335 = vld [vmem:[#allocation7 + $0x108] sm:$0xff]
    %v4336 = vld [vmem:[#allocation7 + $0x110] sm:$0xff]
    %v4337 = vld [vmem:[#allocation7 + $0x118] sm:$0xff]
    %v4338 = vld [vmem:[#allocation7 + $0x120] sm:$0xff]
    %v4339 = vld [vmem:[#allocation7 + $0x128] sm:$0xff]
    %v4340 = vld [vmem:[#allocation7 + $0x130] sm:$0xff]
    %v4341 = vld [vmem:[#allocation7 + $0x138] sm:$0xff]
    %v4342 = vld [vmem:[#allocation7 + $0x140] sm:$0xff]
    %v4343 = vld [vmem:[#allocation7 + $0x148] sm:$0xff]
    %v4344 = vld [vmem:[#allocation7 + $0x150] sm:$0xff]
    %v4345 = vld [vmem:[#allocation7 + $0x158] sm:$0xff]
    %v4346 = vld [vmem:[#allocation7 + $0x160] sm:$0xff]
    %v4347 = vld [vmem:[#allocation7 + $0x168] sm:$0xff]
    %v4348 = vld [vmem:[#allocation7 + $0x170] sm:$0xff]
    %v4349 = vld [vmem:[#allocation7 + $0x178] sm:$0xff]
    %v4350 = vld [vmem:[#allocation7 + $0x180] sm:$0xff]
    %v4351 = vld [vmem:[#allocation7 + $0x188] sm:$0xff]
    %v4352 = vld [vmem:[#allocation7 + $0x190] sm:$0xff]
    %v4353 = vld [vmem:[#allocation7 + $0x198] sm:$0xff]
    %v4354 = vld [vmem:[#allocation7 + $0x1a0] sm:$0xff]
    %v4355 = vld [vmem:[#allocation7 + $0x1a8] sm:$0xff]
    %v4356 = vld [vmem:[#allocation7 + $0x1b0] sm:$0xff]
    %v4357 = vld [vmem:[#allocation7 + $0x1b8] sm:$0xff]
    %v4358 = vld [vmem:[#allocation7 + $0x1c0] sm:$0xff]
    %v4359 = vld [vmem:[#allocation7 + $0x1c8] sm:$0xff]
    %v4360 = vld [vmem:[#allocation7 + $0x1d0] sm:$0xff]
    %v4361 = vld [vmem:[#allocation7 + $0x1d8] sm:$0xff]
    %v4362 = vld [vmem:[#allocation7 + $0x1e0] sm:$0xff]
    %v4363 = vld [vmem:[#allocation7 + $0x1e8] sm:$0xff]
    %v4364 = vld [vmem:[#allocation7 + $0x1f0] sm:$0xff]
    %v4365 = vld [vmem:[#allocation7 + $0x1f8] sm:$0xff]
    %v4430 = vunpack.c.l.b16 %v4302
    %v4431 = vunpack.c.h.b16 %v4302
    %v4432 = vunpack.c.l.b16 %v4303
    %v4433 = vunpack.c.h.b16 %v4303
    %v4434 = vunpack.c.l.b16 %v4304
    %v4435 = vunpack.c.h.b16 %v4304
    %v4436 = vunpack.c.l.b16 %v4305
    %v4437 = vunpack.c.h.b16 %v4305
    %v4438 = vunpack.c.l.b16 %v4306
    %v4439 = vunpack.c.h.b16 %v4306
    %v4440 = vunpack.c.l.b16 %v4307
    %v4441 = vunpack.c.h.b16 %v4307
    %v4442 = vunpack.c.l.b16 %v4308
    %v4443 = vunpack.c.h.b16 %v4308
    %v4444 = vunpack.c.l.b16 %v4309
    %v4445 = vunpack.c.h.b16 %v4309
    %v4446 = vunpack.c.l.b16 %v4310
    %v4447 = vunpack.c.h.b16 %v4310
    %v4448 = vunpack.c.l.b16 %v4311
    %v4449 = vunpack.c.h.b16 %v4311
    %v4450 = vunpack.c.l.b16 %v4312
    %v4451 = vunpack.c.h.b16 %v4312
    %v4452 = vunpack.c.l.b16 %v4313
    %v4453 = vunpack.c.h.b16 %v4313
    %v4454 = vunpack.c.l.b16 %v4314
    %v4455 = vunpack.c.h.b16 %v4314
    %v4456 = vunpack.c.l.b16 %v4315
    %v4457 = vunpack.c.h.b16 %v4315
    %v4458 = vunpack.c.l.b16 %v4316
    %v4459 = vunpack.c.h.b16 %v4316
    %v4460 = vunpack.c.l.b16 %v4317
    %v4461 = vunpack.c.h.b16 %v4317
    %v4462 = vunpack.c.l.b16 %v4318
    %v4463 = vunpack.c.h.b16 %v4318
    %v4464 = vunpack.c.l.b16 %v4319
    %v4465 = vunpack.c.h.b16 %v4319
    %v4466 = vunpack.c.l.b16 %v4320
    %v4467 = vunpack.c.h.b16 %v4320
    %v4468 = vunpack.c.l.b16 %v4321
    %v4469 = vunpack.c.h.b16 %v4321
    %v4470 = vunpack.c.l.b16 %v4322
    %v4471 = vunpack.c.h.b16 %v4322
    %v4472 = vunpack.c.l.b16 %v4323
    %v4473 = vunpack.c.h.b16 %v4323
    %v4474 = vunpack.c.l.b16 %v4324
    %v4475 = vunpack.c.h.b16 %v4324
    %v4476 = vunpack.c.l.b16 %v4325
    %v4477 = vunpack.c.h.b16 %v4325
    %v4478 = vunpack.c.l.b16 %v4326
    %v4479 = vunpack.c.h.b16 %v4326
    %v4480 = vunpack.c.l.b16 %v4327
    %v4481 = vunpack.c.h.b16 %v4327
    %v4482 = vunpack.c.l.b16 %v4328
    %v4483 = vunpack.c.h.b16 %v4328
    %v4484 = vunpack.c.l.b16 %v4329
    %v4485 = vunpack.c.h.b16 %v4329
    %v4486 = vunpack.c.l.b16 %v4330
    %v4487 = vunpack.c.h.b16 %v4330
    %v4488 = vunpack.c.l.b16 %v4331
    %v4489 = vunpack.c.h.b16 %v4331
    %v4490 = vunpack.c.l.b16 %v4332
    %v4491 = vunpack.c.h.b16 %v4332
    %v4492 = vunpack.c.l.b16 %v4333
    %v4493 = vunpack.c.h.b16 %v4333
    %v4494 = vunpack.c.l.b16 %v4334
    %v4495 = vunpack.c.h.b16 %v4334
    %v4496 = vunpack.c.l.b16 %v4335
    %v4497 = vunpack.c.h.b16 %v4335
    %v4498 = vunpack.c.l.b16 %v4336
    %v4499 = vunpack.c.h.b16 %v4336
    %v4500 = vunpack.c.l.b16 %v4337
    %v4501 = vunpack.c.h.b16 %v4337
    %v4502 = vunpack.c.l.b16 %v4338
    %v4503 = vunpack.c.h.b16 %v4338
    %v4504 = vunpack.c.l.b16 %v4339
    %v4505 = vunpack.c.h.b16 %v4339
    %v4506 = vunpack.c.l.b16 %v4340
    %v4507 = vunpack.c.h.b16 %v4340
    %v4508 = vunpack.c.l.b16 %v4341
    %v4509 = vunpack.c.h.b16 %v4341
    %v4510 = vunpack.c.l.b16 %v4342
    %v4511 = vunpack.c.h.b16 %v4342
    %v4512 = vunpack.c.l.b16 %v4343
    %v4513 = vunpack.c.h.b16 %v4343
    %v4514 = vunpack.c.l.b16 %v4344
    %v4515 = vunpack.c.h.b16 %v4344
    %v4516 = vunpack.c.l.b16 %v4345
    %v4517 = vunpack.c.h.b16 %v4345
    %v4518 = vunpack.c.l.b16 %v4346
    %v4519 = vunpack.c.h.b16 %v4346
    %v4520 = vunpack.c.l.b16 %v4347
    %v4521 = vunpack.c.h.b16 %v4347
    %v4522 = vunpack.c.l.b16 %v4348
    %v4523 = vunpack.c.h.b16 %v4348
    %v4524 = vunpack.c.l.b16 %v4349
    %v4525 = vunpack.c.h.b16 %v4349
    %v4526 = vunpack.c.l.b16 %v4350
    %v4527 = vunpack.c.h.b16 %v4350
    %v4528 = vunpack.c.l.b16 %v4351
    %v4529 = vunpack.c.h.b16 %v4351
    %v4530 = vunpack.c.l.b16 %v4352
    %v4531 = vunpack.c.h.b16 %v4352
    %v4532 = vunpack.c.l.b16 %v4353
    %v4533 = vunpack.c.h.b16 %v4353
    %v4534 = vunpack.c.l.b16 %v4354
    %v4535 = vunpack.c.h.b16 %v4354
    %v4536 = vunpack.c.l.b16 %v4355
    %v4537 = vunpack.c.h.b16 %v4355
    %v4538 = vunpack.c.l.b16 %v4356
    %v4539 = vunpack.c.h.b16 %v4356
    %v4540 = vunpack.c.l.b16 %v4357
    %v4541 = vunpack.c.h.b16 %v4357
    %v4542 = vunpack.c.l.b16 %v4358
    %v4543 = vunpack.c.h.b16 %v4358
    %v4544 = vunpack.c.l.b16 %v4359
    %v4545 = vunpack.c.h.b16 %v4359
    %v4546 = vunpack.c.l.b16 %v4360
    %v4547 = vunpack.c.h.b16 %v4360
    %v4548 = vunpack.c.l.b16 %v4361
    %v4549 = vunpack.c.h.b16 %v4361
    %v4550 = vunpack.c.l.b16 %v4362
    %v4551 = vunpack.c.h.b16 %v4362
    %v4552 = vunpack.c.l.b16 %v4363
    %v4553 = vunpack.c.h.b16 %v4363
    %v4554 = vunpack.c.l.b16 %v4364
    %v4555 = vunpack.c.h.b16 %v4364
    %v4556 = vunpack.c.l.b16 %v4365
    %v4557 = vunpack.c.h.b16 %v4365
    %v4558 = vpack.c.b16 %v4434, %v4430
    %v4559 = vpack.c.b16 %v4435, %v4431
    %v4560 = vpack.c.b16 %v4436, %v4432
    %v4561 = vpack.c.b16 %v4437, %v4433
    %v4562 = vpack.c.b16 %v4442, %v4438
    %v4563 = vpack.c.b16 %v4443, %v4439
    %v4564 = vpack.c.b16 %v4444, %v4440
    %v4565 = vpack.c.b16 %v4445, %v4441
    %v4566 = vpack.c.b16 %v4450, %v4446
    %v4567 = vpack.c.b16 %v4451, %v4447
    %v4568 = vpack.c.b16 %v4452, %v4448
    %v4569 = vpack.c.b16 %v4453, %v4449
    %v4570 = vpack.c.b16 %v4458, %v4454
    %v4571 = vpack.c.b16 %v4459, %v4455
    %v4572 = vpack.c.b16 %v4460, %v4456
    %v4573 = vpack.c.b16 %v4461, %v4457
    %v4574 = vpack.c.b16 %v4466, %v4462
    %v4575 = vpack.c.b16 %v4467, %v4463
    %v4576 = vpack.c.b16 %v4468, %v4464
    %v4577 = vpack.c.b16 %v4469, %v4465
    %v4578 = vpack.c.b16 %v4474, %v4470
    %v4579 = vpack.c.b16 %v4475, %v4471
    %v4580 = vpack.c.b16 %v4476, %v4472
    %v4581 = vpack.c.b16 %v4477, %v4473
    %v4582 = vpack.c.b16 %v4482, %v4478
    %v4583 = vpack.c.b16 %v4483, %v4479
    %v4584 = vpack.c.b16 %v4484, %v4480
    %v4585 = vpack.c.b16 %v4485, %v4481
    %v4586 = vpack.c.b16 %v4490, %v4486
    %v4587 = vpack.c.b16 %v4491, %v4487
    %v4588 = vpack.c.b16 %v4492, %v4488
    %v4589 = vpack.c.b16 %v4493, %v4489
    %v4590 = vpack.c.b16 %v4498, %v4494
    %v4591 = vpack.c.b16 %v4499, %v4495
    %v4592 = vpack.c.b16 %v4500, %v4496
    %v4593 = vpack.c.b16 %v4501, %v4497
    %v4594 = vpack.c.b16 %v4506, %v4502
    %v4595 = vpack.c.b16 %v4507, %v4503
    %v4596 = vpack.c.b16 %v4508, %v4504
    %v4597 = vpack.c.b16 %v4509, %v4505
    %v4598 = vpack.c.b16 %v4514, %v4510
    %v4599 = vpack.c.b16 %v4515, %v4511
    %v4600 = vpack.c.b16 %v4516, %v4512
    %v4601 = vpack.c.b16 %v4517, %v4513
    %v4602 = vpack.c.b16 %v4522, %v4518
    %v4603 = vpack.c.b16 %v4523, %v4519
    %v4604 = vpack.c.b16 %v4524, %v4520
    %v4605 = vpack.c.b16 %v4525, %v4521
    %v4606 = vpack.c.b16 %v4530, %v4526
    %v4607 = vpack.c.b16 %v4531, %v4527
    %v4608 = vpack.c.b16 %v4532, %v4528
    %v4609 = vpack.c.b16 %v4533, %v4529
    %v4610 = vpack.c.b16 %v4538, %v4534
    %v4611 = vpack.c.b16 %v4539, %v4535
    %v4612 = vpack.c.b16 %v4540, %v4536
    %v4613 = vpack.c.b16 %v4541, %v4537
    %v4614 = vpack.c.b16 %v4546, %v4542
    %v4615 = vpack.c.b16 %v4547, %v4543
    %v4616 = vpack.c.b16 %v4548, %v4544
    %v4617 = vpack.c.b16 %v4549, %v4545
    %v4618 = vpack.c.b16 %v4554, %v4550
    %v4619 = vpack.c.b16 %v4555, %v4551
    %v4620 = vpack.c.b16 %v4556, %v4552
    %v4621 = vpack.c.b16 %v4557, %v4553
    %4686 = vmatpush.bf16.msra.mxu0 %v4586
    %4687 = vmatpush.bf16.msra.mxu0 %v4582
    %4688 = vmatpush.bf16.msra.mxu0 %v4578
    %4689 = vmatpush.bf16.msra.mxu0 %v4574
    %4690 = vmatpush.bf16.msra.mxu0 %v4570
    %4691 = vmatpush.bf16.msra.mxu0 %v4566
    %4692 = vmatpush.bf16.msra.mxu0 %v4562
    %4693 = vmatpush.bf16.msra.mxu0 %v4558
    %4694 = vmatmul.bf16.gmra.mxu0 %v3989
    %v4695 = vpop.f32.mrf.mxu0
    %v4696 = vadd.f32 %v1052, %v4695
    %v4697 = vpop.f32.mrf.mxu0
    %4698 = vdwg.mxu0
    %4699 = vmatpush.bf16.msra.mxu0 %v4618
    %4700 = vmatpush.bf16.msra.mxu0 %v4614
    %4701 = vmatpush.bf16.msra.mxu0 %v4610
    %4702 = vmatpush.bf16.msra.mxu0 %v4606
    %4703 = vmatpush.bf16.msra.mxu0 %v4602
    %4704 = vmatpush.bf16.msra.mxu0 %v4598
    %4705 = vmatpush.bf16.msra.mxu0 %v4594
    %4706 = vmatpush.bf16.msra.mxu0 %v4590
    %4707 = vmatmul.bf16.gmra.mxu0 %v4301
    %v4708 = vpop.f32.mrf.mxu0
    %v4709 = vadd.f32 %v4696, %v4708
    %v4710 = vpop.f32.mrf.mxu0
    %4711 = vdwg.mxu0
    %4712 = vmatpush.bf16.msra.mxu0 %v4587
    %4713 = vmatpush.bf16.msra.mxu0 %v4583
    %4714 = vmatpush.bf16.msra.mxu0 %v4579
    %4715 = vmatpush.bf16.msra.mxu0 %v4575
    %4716 = vmatpush.bf16.msra.mxu0 %v4571
    %4717 = vmatpush.bf16.msra.mxu0 %v4567
    %4718 = vmatpush.bf16.msra.mxu0 %v4563
    %4719 = vmatpush.bf16.msra.mxu0 %v4559
    %4720 = vmatmul.bf16.gmra.mxu0 %v3989
    %v4721 = vpop.f32.mrf.mxu0
    %v4722 = vadd.f32 %v1053, %v4721
    %v4723 = vpop.f32.mrf.mxu0
    %4724 = vdwg.mxu0
    %4725 = vmatpush.bf16.msra.mxu0 %v4619
    %4726 = vmatpush.bf16.msra.mxu0 %v4615
    %4727 = vmatpush.bf16.msra.mxu0 %v4611
    %4728 = vmatpush.bf16.msra.mxu0 %v4607
    %4729 = vmatpush.bf16.msra.mxu0 %v4603
    %4730 = vmatpush.bf16.msra.mxu0 %v4599
    %4731 = vmatpush.bf16.msra.mxu0 %v4595
    %4732 = vmatpush.bf16.msra.mxu0 %v4591
    %4733 = vmatmul.bf16.gmra.mxu0 %v4301
    %v4734 = vpop.f32.mrf.mxu0
    %v4735 = vadd.f32 %v4722, %v4734
    %v4736 = vpop.f32.mrf.mxu0
    %4737 = vdwg.mxu0
    %4738 = vmatpush.bf16.msra.mxu0 %v4588
    %4739 = vmatpush.bf16.msra.mxu0 %v4584
    %4740 = vmatpush.bf16.msra.mxu0 %v4580
    %4741 = vmatpush.bf16.msra.mxu0 %v4576
    %4742 = vmatpush.bf16.msra.mxu0 %v4572
    %4743 = vmatpush.bf16.msra.mxu0 %v4568
    %4744 = vmatpush.bf16.msra.mxu0 %v4564
    %4745 = vmatpush.bf16.msra.mxu0 %v4560
    %4746 = vmatmul.bf16.gmra.mxu0 %v3989
    %v4747 = vpop.f32.mrf.mxu0
    %v4748 = vadd.f32 %v1054, %v4747
    %v4749 = vpop.f32.mrf.mxu0
    %4750 = vdwg.mxu0
    %4751 = vmatpush.bf16.msra.mxu0 %v4620
    %4752 = vmatpush.bf16.msra.mxu0 %v4616
    %4753 = vmatpush.bf16.msra.mxu0 %v4612
    %4754 = vmatpush.bf16.msra.mxu0 %v4608
    %4755 = vmatpush.bf16.msra.mxu0 %v4604
    %4756 = vmatpush.bf16.msra.mxu0 %v4600
    %4757 = vmatpush.bf16.msra.mxu0 %v4596
    %4758 = vmatpush.bf16.msra.mxu0 %v4592
    %4759 = vmatmul.bf16.gmra.mxu0 %v4301
    %v4760 = vpop.f32.mrf.mxu0
    %v4761 = vadd.f32 %v4748, %v4760
    %v4762 = vpop.f32.mrf.mxu0
    %4763 = vdwg.mxu0
    %4764 = vmatpush.bf16.msra.mxu0 %v4589
    %4765 = vmatpush.bf16.msra.mxu0 %v4585
    %4766 = vmatpush.bf16.msra.mxu0 %v4581
    %4767 = vmatpush.bf16.msra.mxu0 %v4577
    %4768 = vmatpush.bf16.msra.mxu0 %v4573
    %4769 = vmatpush.bf16.msra.mxu0 %v4569
    %4770 = vmatpush.bf16.msra.mxu0 %v4565
    %4771 = vmatpush.bf16.msra.mxu0 %v4561
    %4772 = vmatmul.bf16.gmra.mxu0 %v3989
    %v4773 = vpop.f32.mrf.mxu0
    %v4774 = vadd.f32 %v1055, %v4773
    %v4775 = vpop.f32.mrf.mxu0
    %4776 = vdwg.mxu0
    %4777 = vmatpush.bf16.msra.mxu0 %v4621
    %4778 = vmatpush.bf16.msra.mxu0 %v4617
    %4779 = vmatpush.bf16.msra.mxu0 %v4613
    %4780 = vmatpush.bf16.msra.mxu0 %v4609
    %4781 = vmatpush.bf16.msra.mxu0 %v4605
    %4782 = vmatpush.bf16.msra.mxu0 %v4601
    %4783 = vmatpush.bf16.msra.mxu0 %v4597
    %4784 = vmatpush.bf16.msra.mxu0 %v4593
    %4785 = vmatmul.bf16.gmra.mxu0 %v4301
    %v4786 = vpop.f32.mrf.mxu0
    %v4787 = vadd.f32 %v4774, %v4786
    %v4788 = vpop.f32.mrf.mxu0
    %4789 = vdwg.mxu0
    %v4790 = vxor.u32 %v4709, 2147483648
    %v4791 = vxor.u32 %v4735, 2147483648
    %v4792 = vxor.u32 %v4761, 2147483648
    %v4793 = vmul.f32 %v4790, 1.442695
    %v4794 = vpow.pop %v4793
    %v4795 = vmul.f32 %v4791, 1.442695
    %v4796 = vpow.pop %v4795
    %v4797 = vmul.f32 %v4792, 1.442695
    %v4798 = vpow.pop %v4797
    %v4799 = vadd.f32 %v4794, 1.0
    %v4800 = vadd.f32 %v4796, 1.0
    %v4801 = vadd.f32 %v4798, 1.0
    %v4802 = vrcp.pop %v4799
    %v4803 = vmul.f32 %v4799, %v4802
    %v4804 = vsub.f32 1.0, %v4803
    %v4805 = vmul.f32 %v4802, %v4804
    %v4806 = vadd.f32 %v4802, %v4805
    %vm4807 = vweird.f32 %v4799
    %vm4808 = vweird.f32 %v4802
    %vm4809 = vmor %vm4807, %vm4808
    %v4810 = vsel %vm4809, %v4802, %v4806
    %v4811 = vand.u32 2147483647, %v4799
    %vm4812 = vcmp.eq.f32.partialorder %v4811, 8.507059e+37
    %v4813 = vand.u32 %v4799, 2147483648
    %v4814 = vor.u32 1.1754944e-38, %v4813
    %v4815 = vsel %vm4812, %v4814, %v4810
    %v4816 = vmul.f32 1.0, %v4815
    %v4817 = vrcp.pop %v4800
    %v4818 = vmul.f32 %v4800, %v4817
    %v4819 = vsub.f32 1.0, %v4818
    %v4820 = vmul.f32 %v4817, %v4819
    %v4821 = vadd.f32 %v4817, %v4820
    %vm4822 = vweird.f32 %v4800
    %vm4823 = vweird.f32 %v4817
    %vm4824 = vmor %vm4822, %vm4823
    %v4825 = vsel %vm4824, %v4817, %v4821
    %v4826 = vand.u32 2147483647, %v4800
    %vm4827 = vcmp.eq.f32.partialorder %v4826, 8.507059e+37
    %v4828 = vand.u32 %v4800, 2147483648
    %v4829 = vor.u32 1.1754944e-38, %v4828
    %v4830 = vsel %vm4827, %v4829, %v4825
    %v4831 = vmul.f32 1.0, %v4830
    %v4832 = vrcp.pop %v4801
    %v4833 = vmul.f32 %v4801, %v4832
    %v4834 = vsub.f32 1.0, %v4833
    %v4835 = vmul.f32 %v4832, %v4834
    %v4836 = vadd.f32 %v4832, %v4835
    %vm4837 = vweird.f32 %v4801
    %vm4838 = vweird.f32 %v4832
    %vm4839 = vmor %vm4837, %vm4838
    %v4840 = vsel %vm4839, %v4832, %v4836
    %v4841 = vand.u32 2147483647, %v4801
    %vm4842 = vcmp.eq.f32.partialorder %v4841, 8.507059e+37
    %v4843 = vand.u32 %v4801, 2147483648
    %v4844 = vor.u32 1.1754944e-38, %v4843
    %v4845 = vsel %vm4842, %v4844, %v4840
    %v4846 = vmul.f32 1.0, %v4845
    %v4847 = vtanh.pop %v4787
    %v4848 = vmul.f32 %v4831, %v3350
    %v4849 = vmul.f32 %v4816, %v4847
    %v4850 = vadd.f32 %v4848, %v4849
    %v4851 = vtanh.pop %v4850
    %v4852 = vmul.f32 %v4846, %v4851
    %v4853 = vld [vmem:[%s1841] sm:$0xff]
    %v4854 = vld [vmem:[%s1841 + $0x8] sm:$0xff]
    %v4855 = vld [vmem:[%s1841 + $0x10] sm:$0xff]
    %v4856 = vld [vmem:[%s1841 + $0x18] sm:$0xff]
    %v4857 = vld [vmem:[%s1841 + $0x20] sm:$0xff]
    %v4858 = vld [vmem:[%s1841 + $0x28] sm:$0xff]
    %v4859 = vld [vmem:[%s1841 + $0x30] sm:$0xff]
    %v4860 = vld [vmem:[%s1841 + $0x38] sm:$0xff]
    %v4861 = vld [vmem:[%s1841 + $0x40] sm:$0xff]
    %v4862 = vld [vmem:[%s1841 + $0x48] sm:$0xff]
    %v4863 = vld [vmem:[%s1841 + $0x50] sm:$0xff]
    %v4864 = vld [vmem:[%s1841 + $0x58] sm:$0xff]
    %v4865 = vld [vmem:[%s1841 + $0x60] sm:$0xff]
    %v4866 = vld [vmem:[%s1841 + $0x68] sm:$0xff]
    %v4867 = vld [vmem:[%s1841 + $0x70] sm:$0xff]
    %v4868 = vld [vmem:[%s1841 + $0x78] sm:$0xff]
    %v4869 = vld [vmem:[%s1841 + $0x80] sm:$0xff]
    %v4870 = vld [vmem:[%s1841 + $0x88] sm:$0xff]
    %v4871 = vld [vmem:[%s1841 + $0x90] sm:$0xff]
    %v4872 = vld [vmem:[%s1841 + $0x98] sm:$0xff]
    %v4873 = vld [vmem:[%s1841 + $0xa0] sm:$0xff]
    %v4874 = vld [vmem:[%s1841 + $0xa8] sm:$0xff]
    %v4875 = vld [vmem:[%s1841 + $0xb0] sm:$0xff]
    %v4876 = vld [vmem:[%s1841 + $0xb8] sm:$0xff]
    %v4877 = vld [vmem:[%s1841 + $0xc0] sm:$0xff]
    %v4878 = vld [vmem:[%s1841 + $0xc8] sm:$0xff]
    %v4879 = vld [vmem:[%s1841 + $0xd0] sm:$0xff]
    %v4880 = vld [vmem:[%s1841 + $0xd8] sm:$0xff]
    %v4881 = vld [vmem:[%s1841 + $0xe0] sm:$0xff]
    %v4882 = vld [vmem:[%s1841 + $0xe8] sm:$0xff]
    %v4883 = vld [vmem:[%s1841 + $0xf0] sm:$0xff]
    %v4884 = vld [vmem:[%s1841 + $0xf8] sm:$0xff]
    %v4885 = vld [vmem:[%s1841 + $0x100] sm:$0xff]
    %v4886 = vld [vmem:[%s1841 + $0x108] sm:$0xff]
    %v4887 = vld [vmem:[%s1841 + $0x110] sm:$0xff]
    %v4888 = vld [vmem:[%s1841 + $0x118] sm:$0xff]
    %v4889 = vld [vmem:[%s1841 + $0x120] sm:$0xff]
    %v4890 = vld [vmem:[%s1841 + $0x128] sm:$0xff]
    %v4891 = vld [vmem:[%s1841 + $0x130] sm:$0xff]
    %v4892 = vld [vmem:[%s1841 + $0x138] sm:$0xff]
    %v4893 = vld [vmem:[%s1841 + $0x140] sm:$0xff]
    %v4894 = vld [vmem:[%s1841 + $0x148] sm:$0xff]
    %v4895 = vld [vmem:[%s1841 + $0x150] sm:$0xff]
    %v4896 = vld [vmem:[%s1841 + $0x158] sm:$0xff]
    %v4897 = vld [vmem:[%s1841 + $0x160] sm:$0xff]
    %v4898 = vld [vmem:[%s1841 + $0x168] sm:$0xff]
    %v4899 = vld [vmem:[%s1841 + $0x170] sm:$0xff]
    %v4900 = vld [vmem:[%s1841 + $0x178] sm:$0xff]
    %v4901 = vld [vmem:[%s1841 + $0x180] sm:$0xff]
    %v4902 = vld [vmem:[%s1841 + $0x188] sm:$0xff]
    %v4903 = vld [vmem:[%s1841 + $0x190] sm:$0xff]
    %v4904 = vld [vmem:[%s1841 + $0x198] sm:$0xff]
    %v4905 = vld [vmem:[%s1841 + $0x1a0] sm:$0xff]
    %v4906 = vld [vmem:[%s1841 + $0x1a8] sm:$0xff]
    %v4907 = vld [vmem:[%s1841 + $0x1b0] sm:$0xff]
    %v4908 = vld [vmem:[%s1841 + $0x1b8] sm:$0xff]
    %v4909 = vld [vmem:[%s1841 + $0x1c0] sm:$0xff]
    %v4910 = vld [vmem:[%s1841 + $0x1c8] sm:$0xff]
    %v4911 = vld [vmem:[%s1841 + $0x1d0] sm:$0xff]
    %v4912 = vld [vmem:[%s1841 + $0x1d8] sm:$0xff]
    %v4913 = vld [vmem:[%s1841 + $0x1e0] sm:$0xff]
    %v4914 = vld [vmem:[%s1841 + $0x1e8] sm:$0xff]
    %v4915 = vld [vmem:[%s1841 + $0x1f0] sm:$0xff]
    %v4916 = vld [vmem:[%s1841 + $0x1f8] sm:$0xff]
    %v4981 = vunpack.c.l.b16 %v4853
    %v4982 = vunpack.c.h.b16 %v4853
    %v4983 = vunpack.c.l.b16 %v4854
    %v4984 = vunpack.c.h.b16 %v4854
    %v4985 = vunpack.c.l.b16 %v4855
    %v4986 = vunpack.c.h.b16 %v4855
    %v4987 = vunpack.c.l.b16 %v4856
    %v4988 = vunpack.c.h.b16 %v4856
    %v4989 = vunpack.c.l.b16 %v4857
    %v4990 = vunpack.c.h.b16 %v4857
    %v4991 = vunpack.c.l.b16 %v4858
    %v4992 = vunpack.c.h.b16 %v4858
    %v4993 = vunpack.c.l.b16 %v4859
    %v4994 = vunpack.c.h.b16 %v4859
    %v4995 = vunpack.c.l.b16 %v4860
    %v4996 = vunpack.c.h.b16 %v4860
    %v4997 = vunpack.c.l.b16 %v4861
    %v4998 = vunpack.c.h.b16 %v4861
    %v4999 = vunpack.c.l.b16 %v4862
    %v5000 = vunpack.c.h.b16 %v4862
    %v5001 = vunpack.c.l.b16 %v4863
    %v5002 = vunpack.c.h.b16 %v4863
    %v5003 = vunpack.c.l.b16 %v4864
    %v5004 = vunpack.c.h.b16 %v4864
    %v5005 = vunpack.c.l.b16 %v4865
    %v5006 = vunpack.c.h.b16 %v4865
    %v5007 = vunpack.c.l.b16 %v4866
    %v5008 = vunpack.c.h.b16 %v4866
    %v5009 = vunpack.c.l.b16 %v4867
    %v5010 = vunpack.c.h.b16 %v4867
    %v5011 = vunpack.c.l.b16 %v4868
    %v5012 = vunpack.c.h.b16 %v4868
    %v5013 = vunpack.c.l.b16 %v4869
    %v5014 = vunpack.c.h.b16 %v4869
    %v5015 = vunpack.c.l.b16 %v4870
    %v5016 = vunpack.c.h.b16 %v4870
    %v5017 = vunpack.c.l.b16 %v4871
    %v5018 = vunpack.c.h.b16 %v4871
    %v5019 = vunpack.c.l.b16 %v4872
    %v5020 = vunpack.c.h.b16 %v4872
    %v5021 = vunpack.c.l.b16 %v4873
    %v5022 = vunpack.c.h.b16 %v4873
    %v5023 = vunpack.c.l.b16 %v4874
    %v5024 = vunpack.c.h.b16 %v4874
    %v5025 = vunpack.c.l.b16 %v4875
    %v5026 = vunpack.c.h.b16 %v4875
    %v5027 = vunpack.c.l.b16 %v4876
    %v5028 = vunpack.c.h.b16 %v4876
    %v5029 = vunpack.c.l.b16 %v4877
    %v5030 = vunpack.c.h.b16 %v4877
    %v5031 = vunpack.c.l.b16 %v4878
    %v5032 = vunpack.c.h.b16 %v4878
    %v5033 = vunpack.c.l.b16 %v4879
    %v5034 = vunpack.c.h.b16 %v4879
    %v5035 = vunpack.c.l.b16 %v4880
    %v5036 = vunpack.c.h.b16 %v4880
    %v5037 = vunpack.c.l.b16 %v4881
    %v5038 = vunpack.c.h.b16 %v4881
    %v5039 = vunpack.c.l.b16 %v4882
    %v5040 = vunpack.c.h.b16 %v4882
    %v5041 = vunpack.c.l.b16 %v4883
    %v5042 = vunpack.c.h.b16 %v4883
    %v5043 = vunpack.c.l.b16 %v4884
    %v5044 = vunpack.c.h.b16 %v4884
    %v5045 = vunpack.c.l.b16 %v4885
    %v5046 = vunpack.c.h.b16 %v4885
    %v5047 = vunpack.c.l.b16 %v4886
    %v5048 = vunpack.c.h.b16 %v4886
    %v5049 = vunpack.c.l.b16 %v4887
    %v5050 = vunpack.c.h.b16 %v4887
    %v5051 = vunpack.c.l.b16 %v4888
    %v5052 = vunpack.c.h.b16 %v4888
    %v5053 = vunpack.c.l.b16 %v4889
    %v5054 = vunpack.c.h.b16 %v4889
    %v5055 = vunpack.c.l.b16 %v4890
    %v5056 = vunpack.c.h.b16 %v4890
    %v5057 = vunpack.c.l.b16 %v4891
    %v5058 = vunpack.c.h.b16 %v4891
    %v5059 = vunpack.c.l.b16 %v4892
    %v5060 = vunpack.c.h.b16 %v4892
    %v5061 = vunpack.c.l.b16 %v4893
    %v5062 = vunpack.c.h.b16 %v4893
    %v5063 = vunpack.c.l.b16 %v4894
    %v5064 = vunpack.c.h.b16 %v4894
    %v5065 = vunpack.c.l.b16 %v4895
    %v5066 = vunpack.c.h.b16 %v4895
    %v5067 = vunpack.c.l.b16 %v4896
    %v5068 = vunpack.c.h.b16 %v4896
    %v5069 = vunpack.c.l.b16 %v4897
    %v5070 = vunpack.c.h.b16 %v4897
    %v5071 = vunpack.c.l.b16 %v4898
    %v5072 = vunpack.c.h.b16 %v4898
    %v5073 = vunpack.c.l.b16 %v4899
    %v5074 = vunpack.c.h.b16 %v4899
    %v5075 = vunpack.c.l.b16 %v4900
    %v5076 = vunpack.c.h.b16 %v4900
    %v5077 = vunpack.c.l.b16 %v4901
    %v5078 = vunpack.c.h.b16 %v4901
    %v5079 = vunpack.c.l.b16 %v4902
    %v5080 = vunpack.c.h.b16 %v4902
    %v5081 = vunpack.c.l.b16 %v4903
    %v5082 = vunpack.c.h.b16 %v4903
    %v5083 = vunpack.c.l.b16 %v4904
    %v5084 = vunpack.c.h.b16 %v4904
    %v5085 = vunpack.c.l.b16 %v4905
    %v5086 = vunpack.c.h.b16 %v4905
    %v5087 = vunpack.c.l.b16 %v4906
    %v5088 = vunpack.c.h.b16 %v4906
    %v5089 = vunpack.c.l.b16 %v4907
    %v5090 = vunpack.c.h.b16 %v4907
    %v5091 = vunpack.c.l.b16 %v4908
    %v5092 = vunpack.c.h.b16 %v4908
    %v5093 = vunpack.c.l.b16 %v4909
    %v5094 = vunpack.c.h.b16 %v4909
    %v5095 = vunpack.c.l.b16 %v4910
    %v5096 = vunpack.c.h.b16 %v4910
    %v5097 = vunpack.c.l.b16 %v4911
    %v5098 = vunpack.c.h.b16 %v4911
    %v5099 = vunpack.c.l.b16 %v4912
    %v5100 = vunpack.c.h.b16 %v4912
    %v5101 = vunpack.c.l.b16 %v4913
    %v5102 = vunpack.c.h.b16 %v4913
    %v5103 = vunpack.c.l.b16 %v4914
    %v5104 = vunpack.c.h.b16 %v4914
    %v5105 = vunpack.c.l.b16 %v4915
    %v5106 = vunpack.c.h.b16 %v4915
    %v5107 = vunpack.c.l.b16 %v4916
    %v5108 = vunpack.c.h.b16 %v4916
    %v5109 = vpack.c.b16 %v4985, %v4981
    %v5110 = vpack.c.b16 %v4986, %v4982
    %v5111 = vpack.c.b16 %v4987, %v4983
    %v5112 = vpack.c.b16 %v4988, %v4984
    %v5113 = vpack.c.b16 %v4993, %v4989
    %v5114 = vpack.c.b16 %v4994, %v4990
    %v5115 = vpack.c.b16 %v4995, %v4991
    %v5116 = vpack.c.b16 %v4996, %v4992
    %v5117 = vpack.c.b16 %v5001, %v4997
    %v5118 = vpack.c.b16 %v5002, %v4998
    %v5119 = vpack.c.b16 %v5003, %v4999
    %v5120 = vpack.c.b16 %v5004, %v5000
    %v5121 = vpack.c.b16 %v5009, %v5005
    %v5122 = vpack.c.b16 %v5010, %v5006
    %v5123 = vpack.c.b16 %v5011, %v5007
    %v5124 = vpack.c.b16 %v5012, %v5008
    %v5125 = vpack.c.b16 %v5017, %v5013
    %v5126 = vpack.c.b16 %v5018, %v5014
    %v5127 = vpack.c.b16 %v5019, %v5015
    %v5128 = vpack.c.b16 %v5020, %v5016
    %v5129 = vpack.c.b16 %v5025, %v5021
    %v5130 = vpack.c.b16 %v5026, %v5022
    %v5131 = vpack.c.b16 %v5027, %v5023
    %v5132 = vpack.c.b16 %v5028, %v5024
    %v5133 = vpack.c.b16 %v5033, %v5029
    %v5134 = vpack.c.b16 %v5034, %v5030
    %v5135 = vpack.c.b16 %v5035, %v5031
    %v5136 = vpack.c.b16 %v5036, %v5032
    %v5137 = vpack.c.b16 %v5041, %v5037
    %v5138 = vpack.c.b16 %v5042, %v5038
    %v5139 = vpack.c.b16 %v5043, %v5039
    %v5140 = vpack.c.b16 %v5044, %v5040
    %v5141 = vpack.c.b16 %v5049, %v5045
    %v5142 = vpack.c.b16 %v5050, %v5046
    %v5143 = vpack.c.b16 %v5051, %v5047
    %v5144 = vpack.c.b16 %v5052, %v5048
    %v5145 = vpack.c.b16 %v5057, %v5053
    %v5146 = vpack.c.b16 %v5058, %v5054
    %v5147 = vpack.c.b16 %v5059, %v5055
    %v5148 = vpack.c.b16 %v5060, %v5056
    %v5149 = vpack.c.b16 %v5065, %v5061
    %v5150 = vpack.c.b16 %v5066, %v5062
    %v5151 = vpack.c.b16 %v5067, %v5063
    %v5152 = vpack.c.b16 %v5068, %v5064
    %v5153 = vpack.c.b16 %v5073, %v5069
    %v5154 = vpack.c.b16 %v5074, %v5070
    %v5155 = vpack.c.b16 %v5075, %v5071
    %v5156 = vpack.c.b16 %v5076, %v5072
    %v5157 = vpack.c.b16 %v5081, %v5077
    %v5158 = vpack.c.b16 %v5082, %v5078
    %v5159 = vpack.c.b16 %v5083, %v5079
    %v5160 = vpack.c.b16 %v5084, %v5080
    %v5161 = vpack.c.b16 %v5089, %v5085
    %v5162 = vpack.c.b16 %v5090, %v5086
    %v5163 = vpack.c.b16 %v5091, %v5087
    %v5164 = vpack.c.b16 %v5092, %v5088
    %v5165 = vpack.c.b16 %v5097, %v5093
    %v5166 = vpack.c.b16 %v5098, %v5094
    %v5167 = vpack.c.b16 %v5099, %v5095
    %v5168 = vpack.c.b16 %v5100, %v5096
    %v5169 = vpack.c.b16 %v5105, %v5101
    %v5170 = vpack.c.b16 %v5106, %v5102
    %v5171 = vpack.c.b16 %v5107, %v5103
    %v5172 = vpack.c.b16 %v5108, %v5104
    %5237 = vmatpush.bf16.msra.mxu0 %v5137
    %5238 = vmatpush.bf16.msra.mxu0 %v5133
    %5239 = vmatpush.bf16.msra.mxu0 %v5129
    %5240 = vmatpush.bf16.msra.mxu0 %v5125
    %5241 = vmatpush.bf16.msra.mxu0 %v5121
    %5242 = vmatpush.bf16.msra.mxu0 %v5117
    %5243 = vmatpush.bf16.msra.mxu0 %v5113
    %5244 = vmatpush.bf16.msra.mxu0 %v5109
    %5245 = vmatmul.bf16.gmra.mxu0 %v4301
    %v5246 = vpop.f32.mrf.mxu0
    %v5247 = vadd.f32 %v1907, %v5246
    %v5248 = vpop.f32.mrf.mxu0
    %5249 = vdwg.mxu0
    %5250 = vmatpush.bf16.msra.mxu0 %v5169
    %5251 = vmatpush.bf16.msra.mxu0 %v5165
    %5252 = vmatpush.bf16.msra.mxu0 %v5161
    %5253 = vmatpush.bf16.msra.mxu0 %v5157
    %5254 = vmatpush.bf16.msra.mxu0 %v5153
    %5255 = vmatpush.bf16.msra.mxu0 %v5149
    %5256 = vmatpush.bf16.msra.mxu0 %v5145
    %5257 = vmatpush.bf16.msra.mxu0 %v5141
    %5258 = vmatmul.bf16.gmra.mxu0 %v3904
    %v5259 = vpop.f32.mrf.mxu0
    %v5260 = vadd.f32 %v5247, %v5259
    %v5261 = vpop.f32.mrf.mxu0
    %5262 = vdwg.mxu0
    %5263 = vmatpush.bf16.msra.mxu0 %v5138
    %5264 = vmatpush.bf16.msra.mxu0 %v5134
    %5265 = vmatpush.bf16.msra.mxu0 %v5130
    %5266 = vmatpush.bf16.msra.mxu0 %v5126
    %5267 = vmatpush.bf16.msra.mxu0 %v5122
    %5268 = vmatpush.bf16.msra.mxu0 %v5118
    %5269 = vmatpush.bf16.msra.mxu0 %v5114
    %5270 = vmatpush.bf16.msra.mxu0 %v5110
    %5271 = vmatmul.bf16.gmra.mxu0 %v4301
    %v5272 = vpop.f32.mrf.mxu0
    %v5273 = vadd.f32 %v1908, %v5272
    %v5274 = vpop.f32.mrf.mxu0
    %5275 = vdwg.mxu0
    %5276 = vmatpush.bf16.msra.mxu0 %v5170
    %5277 = vmatpush.bf16.msra.mxu0 %v5166
    %5278 = vmatpush.bf16.msra.mxu0 %v5162
    %5279 = vmatpush.bf16.msra.mxu0 %v5158
    %5280 = vmatpush.bf16.msra.mxu0 %v5154
    %5281 = vmatpush.bf16.msra.mxu0 %v5150
    %5282 = vmatpush.bf16.msra.mxu0 %v5146
    %5283 = vmatpush.bf16.msra.mxu0 %v5142
    %5284 = vmatmul.bf16.gmra.mxu0 %v3904
    %v5285 = vpop.f32.mrf.mxu0
    %v5286 = vadd.f32 %v5273, %v5285
    %v5287 = vpop.f32.mrf.mxu0
    %5288 = vdwg.mxu0
    %5289 = vmatpush.bf16.msra.mxu0 %v5139
    %5290 = vmatpush.bf16.msra.mxu0 %v5135
    %5291 = vmatpush.bf16.msra.mxu0 %v5131
    %5292 = vmatpush.bf16.msra.mxu0 %v5127
    %5293 = vmatpush.bf16.msra.mxu0 %v5123
    %5294 = vmatpush.bf16.msra.mxu0 %v5119
    %5295 = vmatpush.bf16.msra.mxu0 %v5115
    %5296 = vmatpush.bf16.msra.mxu0 %v5111
    %5297 = vmatmul.bf16.gmra.mxu0 %v4301
    %v5298 = vpop.f32.mrf.mxu0
    %v5299 = vadd.f32 %v1909, %v5298
    %v5300 = vpop.f32.mrf.mxu0
    %5301 = vdwg.mxu0
    %5302 = vmatpush.bf16.msra.mxu0 %v5171
    %5303 = vmatpush.bf16.msra.mxu0 %v5167
    %5304 = vmatpush.bf16.msra.mxu0 %v5163
    %5305 = vmatpush.bf16.msra.mxu0 %v5159
    %5306 = vmatpush.bf16.msra.mxu0 %v5155
    %5307 = vmatpush.bf16.msra.mxu0 %v5151
    %5308 = vmatpush.bf16.msra.mxu0 %v5147
    %5309 = vmatpush.bf16.msra.mxu0 %v5143
    %5310 = vmatmul.bf16.gmra.mxu0 %v3904
    %v5311 = vpop.f32.mrf.mxu0
    %v5312 = vadd.f32 %v5299, %v5311
    %v5313 = vpop.f32.mrf.mxu0
    %5314 = vdwg.mxu0
    %5315 = vmatpush.bf16.msra.mxu0 %v5140
    %5316 = vmatpush.bf16.msra.mxu0 %v5136
    %5317 = vmatpush.bf16.msra.mxu0 %v5132
    %5318 = vmatpush.bf16.msra.mxu0 %v5128
    %5319 = vmatpush.bf16.msra.mxu0 %v5124
    %5320 = vmatpush.bf16.msra.mxu0 %v5120
    %5321 = vmatpush.bf16.msra.mxu0 %v5116
    %5322 = vmatpush.bf16.msra.mxu0 %v5112
    %5323 = vmatmul.bf16.gmra.mxu0 %v4301
    %v5324 = vpop.f32.mrf.mxu0
    %v5325 = vadd.f32 %v1910, %v5324
    %v5326 = vpop.f32.mrf.mxu0
    %5327 = vdwg.mxu0
    %5328 = vmatpush.bf16.msra.mxu0 %v5172
    %5329 = vmatpush.bf16.msra.mxu0 %v5168
    %5330 = vmatpush.bf16.msra.mxu0 %v5164
    %5331 = vmatpush.bf16.msra.mxu0 %v5160
    %5332 = vmatpush.bf16.msra.mxu0 %v5156
    %5333 = vmatpush.bf16.msra.mxu0 %v5152
    %5334 = vmatpush.bf16.msra.mxu0 %v5148
    %5335 = vmatpush.bf16.msra.mxu0 %v5144
    %5336 = vmatmul.bf16.gmra.mxu0 %v3904
    %v5337 = vpop.f32.mrf.mxu0
    %v5338 = vadd.f32 %v5325, %v5337
    %v5339 = vpop.f32.mrf.mxu0
    %5340 = vdwg.mxu0
    %v5341 = vxor.u32 %v5260, 2147483648
    %v5342 = vxor.u32 %v5286, 2147483648
    %v5343 = vxor.u32 %v5312, 2147483648
    %v5344 = vmul.f32 %v5341, 1.442695
    %v5345 = vpow.pop %v5344
    %v5346 = vmul.f32 %v5342, 1.442695
    %v5347 = vpow.pop %v5346
    %v5348 = vmul.f32 %v5343, 1.442695
    %v5349 = vpow.pop %v5348
    %v5350 = vadd.f32 %v5345, 1.0
    %v5351 = vadd.f32 %v5347, 1.0
    %v5352 = vadd.f32 %v5349, 1.0
    %v5353 = vrcp.pop %v5350
    %v5354 = vmul.f32 %v5350, %v5353
    %v5355 = vsub.f32 1.0, %v5354
    %v5356 = vmul.f32 %v5353, %v5355
    %v5357 = vadd.f32 %v5353, %v5356
    %vm5358 = vweird.f32 %v5350
    %vm5359 = vweird.f32 %v5353
    %vm5360 = vmor %vm5358, %vm5359
    %v5361 = vsel %vm5360, %v5353, %v5357
    %v5362 = vand.u32 2147483647, %v5350
    %vm5363 = vcmp.eq.f32.partialorder %v5362, 8.507059e+37
    %v5364 = vand.u32 %v5350, 2147483648
    %v5365 = vor.u32 1.1754944e-38, %v5364
    %v5366 = vsel %vm5363, %v5365, %v5361
    %v5367 = vmul.f32 1.0, %v5366
    %v5368 = vrcp.pop %v5351
    %v5369 = vmul.f32 %v5351, %v5368
    %v5370 = vsub.f32 1.0, %v5369
    %v5371 = vmul.f32 %v5368, %v5370
    %v5372 = vadd.f32 %v5368, %v5371
    %vm5373 = vweird.f32 %v5351
    %vm5374 = vweird.f32 %v5368
    %vm5375 = vmor %vm5373, %vm5374
    %v5376 = vsel %vm5375, %v5368, %v5372
    %v5377 = vand.u32 2147483647, %v5351
    %vm5378 = vcmp.eq.f32.partialorder %v5377, 8.507059e+37
    %v5379 = vand.u32 %v5351, 2147483648
    %v5380 = vor.u32 1.1754944e-38, %v5379
    %v5381 = vsel %vm5378, %v5380, %v5376
    %v5382 = vmul.f32 1.0, %v5381
    %v5383 = vrcp.pop %v5352
    %v5384 = vmul.f32 %v5352, %v5383
    %v5385 = vsub.f32 1.0, %v5384
    %v5386 = vmul.f32 %v5383, %v5385
    %v5387 = vadd.f32 %v5383, %v5386
    %vm5388 = vweird.f32 %v5352
    %vm5389 = vweird.f32 %v5383
    %vm5390 = vmor %vm5388, %vm5389
    %v5391 = vsel %vm5390, %v5383, %v5387
    %v5392 = vand.u32 2147483647, %v5352
    %vm5393 = vcmp.eq.f32.partialorder %v5392, 8.507059e+37
    %v5394 = vand.u32 %v5352, 2147483648
    %v5395 = vor.u32 1.1754944e-38, %v5394
    %v5396 = vsel %vm5393, %v5395, %v5391
    %v5397 = vmul.f32 1.0, %v5396
    %v5398 = vtanh.pop %v5338
    %v5399 = vmul.f32 %v5382, %v3901
    %v5400 = vmul.f32 %v5367, %v5398
    %v5401 = vadd.f32 %v5399, %v5400
    %v5402 = vtanh.pop %v5401
    %v5403 = vmul.f32 %v5397, %v5402
    %v5404 = vpack.c.bf16 %v5403, %v5403
    %v5405 = vld [vmem:[%s7] sm:$0xf]
    %v5406 = vld [vmem:[%s7 + $0x4] sm:$0xf]
    %v5407 = vld [vmem:[%s7 + $0x8] sm:$0xf]
    %v5408 = vld [vmem:[%s7 + $0xc] sm:$0xf]
    %v5409 = vld [vmem:[%s7 + $0x10] sm:$0xf]
    %v5410 = vld [vmem:[%s7 + $0x14] sm:$0xf]
    %v5411 = vld [vmem:[%s7 + $0x18] sm:$0xf]
    %v5412 = vld [vmem:[%s7 + $0x1c] sm:$0xf]
    %v5413 = vld [vmem:[%s7 + $0x20] sm:$0xf]
    %v5414 = vld [vmem:[%s7 + $0x24] sm:$0xf]
    %v5415 = vld [vmem:[%s7 + $0x28] sm:$0xf]
    %v5416 = vld [vmem:[%s7 + $0x2c] sm:$0xf]
    %v5417 = vld [vmem:[%s7 + $0x30] sm:$0xf]
    %v5418 = vld [vmem:[%s7 + $0x34] sm:$0xf]
    %v5419 = vld [vmem:[%s7 + $0x38] sm:$0xf]
    %v5420 = vld [vmem:[%s7 + $0x3c] sm:$0xf]
    %v5437 = vunpack.c.l.b16 %v5405
    %v5438 = vunpack.c.l.b16 %v5406
    %v5439 = vunpack.c.l.b16 %v5407
    %v5440 = vunpack.c.l.b16 %v5408
    %v5441 = vunpack.c.l.b16 %v5409
    %v5442 = vunpack.c.l.b16 %v5410
    %v5443 = vunpack.c.l.b16 %v5411
    %v5444 = vunpack.c.l.b16 %v5412
    %v5445 = vunpack.c.l.b16 %v5413
    %v5446 = vunpack.c.l.b16 %v5414
    %v5447 = vunpack.c.l.b16 %v5415
    %v5448 = vunpack.c.l.b16 %v5416
    %v5449 = vunpack.c.l.b16 %v5417
    %v5450 = vunpack.c.l.b16 %v5418
    %v5451 = vunpack.c.l.b16 %v5419
    %v5452 = vunpack.c.l.b16 %v5420
    %v5453 = vpack.c.b16 %v5438, %v5437
    %v5454 = vpack.c.b16 %v5440, %v5439
    %v5455 = vpack.c.b16 %v5442, %v5441
    %v5456 = vpack.c.b16 %v5444, %v5443
    %v5457 = vpack.c.b16 %v5446, %v5445
    %v5458 = vpack.c.b16 %v5448, %v5447
    %v5459 = vpack.c.b16 %v5450, %v5449
    %v5460 = vpack.c.b16 %v5452, %v5451
    %5469 = vmatpush.bf16.msra.mxu0 %v5460
    %5470 = vmatpush.bf16.msra.mxu0 %v5459
    %5471 = vmatpush.bf16.msra.mxu0 %v5458
    %5472 = vmatpush.bf16.msra.mxu0 %v5457
    %5473 = vmatpush.bf16.msra.mxu0 %v5456
    %5474 = vmatpush.bf16.msra.mxu0 %v5455
    %5475 = vmatpush.bf16.msra.mxu0 %v5454
    %5476 = vmatpush.bf16.msra.mxu0 %v5453
    %5477 = vmatmul.bf16.gmra.mxu0 %v5404
    %v5478 = vpop.f32.mrf.mxu0
    %v5479 = vadd.f32 %v2420, %v5478
    %v5480 = vpop.f32.mrf.mxu0
    %5481 = vdwg.mxu0
    %s5482 = scalar_lea.vmem %s11, 16
    %5483 = vst [vmem:[%s5482] sm:$0xff] %v5479
    %s5484 = scalar_lea.vmem [#allocation2], 160
    %v5485 = vld [vmem:[%s5484] sm:$0xff]
    %v5486 = vld [vmem:[%s5484 + $0x8] sm:$0xff]
    %v5487 = vld [vmem:[%s5484 + $0x10] sm:$0xff]
    %v5488 = vld [vmem:[%s5484 + $0x18] sm:$0xff]
    %v5489 = vpack.c.bf16 %v4300, %v4300
    %v5490 = vld [vmem:[#allocation5] sm:$0xff]
    %v5491 = vld [vmem:[#allocation5 + $0x8] sm:$0xff]
    %v5492 = vld [vmem:[#allocation5 + $0x10] sm:$0xff]
    %v5493 = vld [vmem:[#allocation5 + $0x18] sm:$0xff]
    %v5494 = vld [vmem:[#allocation5 + $0x20] sm:$0xff]
    %v5495 = vld [vmem:[#allocation5 + $0x28] sm:$0xff]
    %v5496 = vld [vmem:[#allocation5 + $0x30] sm:$0xff]
    %v5497 = vld [vmem:[#allocation5 + $0x38] sm:$0xff]
    %v5498 = vld [vmem:[#allocation5 + $0x40] sm:$0xff]
    %v5499 = vld [vmem:[#allocation5 + $0x48] sm:$0xff]
    %v5500 = vld [vmem:[#allocation5 + $0x50] sm:$0xff]
    %v5501 = vld [vmem:[#allocation5 + $0x58] sm:$0xff]
    %v5502 = vld [vmem:[#allocation5 + $0x60] sm:$0xff]
    %v5503 = vld [vmem:[#allocation5 + $0x68] sm:$0xff]
    %v5504 = vld [vmem:[#allocation5 + $0x70] sm:$0xff]
    %v5505 = vld [vmem:[#allocation5 + $0x78] sm:$0xff]
    %v5506 = vld [vmem:[#allocation5 + $0x80] sm:$0xff]
    %v5507 = vld [vmem:[#allocation5 + $0x88] sm:$0xff]
    %v5508 = vld [vmem:[#allocation5 + $0x90] sm:$0xff]
    %v5509 = vld [vmem:[#allocation5 + $0x98] sm:$0xff]
    %v5510 = vld [vmem:[#allocation5 + $0xa0] sm:$0xff]
    %v5511 = vld [vmem:[#allocation5 + $0xa8] sm:$0xff]
    %v5512 = vld [vmem:[#allocation5 + $0xb0] sm:$0xff]
    %v5513 = vld [vmem:[#allocation5 + $0xb8] sm:$0xff]
    %v5514 = vld [vmem:[#allocation5 + $0xc0] sm:$0xff]
    %v5515 = vld [vmem:[#allocation5 + $0xc8] sm:$0xff]
    %v5516 = vld [vmem:[#allocation5 + $0xd0] sm:$0xff]
    %v5517 = vld [vmem:[#allocation5 + $0xd8] sm:$0xff]
    %v5518 = vld [vmem:[#allocation5 + $0xe0] sm:$0xff]
    %v5519 = vld [vmem:[#allocation5 + $0xe8] sm:$0xff]
    %v5520 = vld [vmem:[#allocation5 + $0xf0] sm:$0xff]
    %v5521 = vld [vmem:[#allocation5 + $0xf8] sm:$0xff]
    %v5554 = vunpack.c.l.b16 %v5490
    %v5555 = vunpack.c.h.b16 %v5490
    %v5556 = vunpack.c.l.b16 %v5491
    %v5557 = vunpack.c.h.b16 %v5491
    %v5558 = vunpack.c.l.b16 %v5492
    %v5559 = vunpack.c.h.b16 %v5492
    %v5560 = vunpack.c.l.b16 %v5493
    %v5561 = vunpack.c.h.b16 %v5493
    %v5562 = vunpack.c.l.b16 %v5494
    %v5563 = vunpack.c.h.b16 %v5494
    %v5564 = vunpack.c.l.b16 %v5495
    %v5565 = vunpack.c.h.b16 %v5495
    %v5566 = vunpack.c.l.b16 %v5496
    %v5567 = vunpack.c.h.b16 %v5496
    %v5568 = vunpack.c.l.b16 %v5497
    %v5569 = vunpack.c.h.b16 %v5497
    %v5570 = vunpack.c.l.b16 %v5498
    %v5571 = vunpack.c.h.b16 %v5498
    %v5572 = vunpack.c.l.b16 %v5499
    %v5573 = vunpack.c.h.b16 %v5499
    %v5574 = vunpack.c.l.b16 %v5500
    %v5575 = vunpack.c.h.b16 %v5500
    %v5576 = vunpack.c.l.b16 %v5501
    %v5577 = vunpack.c.h.b16 %v5501
    %v5578 = vunpack.c.l.b16 %v5502
    %v5579 = vunpack.c.h.b16 %v5502
    %v5580 = vunpack.c.l.b16 %v5503
    %v5581 = vunpack.c.h.b16 %v5503
    %v5582 = vunpack.c.l.b16 %v5504
    %v5583 = vunpack.c.h.b16 %v5504
    %v5584 = vunpack.c.l.b16 %v5505
    %v5585 = vunpack.c.h.b16 %v5505
    %v5586 = vunpack.c.l.b16 %v5506
    %v5587 = vunpack.c.h.b16 %v5506
    %v5588 = vunpack.c.l.b16 %v5507
    %v5589 = vunpack.c.h.b16 %v5507
    %v5590 = vunpack.c.l.b16 %v5508
    %v5591 = vunpack.c.h.b16 %v5508
    %v5592 = vunpack.c.l.b16 %v5509
    %v5593 = vunpack.c.h.b16 %v5509
    %v5594 = vunpack.c.l.b16 %v5510
    %v5595 = vunpack.c.h.b16 %v5510
    %v5596 = vunpack.c.l.b16 %v5511
    %v5597 = vunpack.c.h.b16 %v5511
    %v5598 = vunpack.c.l.b16 %v5512
    %v5599 = vunpack.c.h.b16 %v5512
    %v5600 = vunpack.c.l.b16 %v5513
    %v5601 = vunpack.c.h.b16 %v5513
    %v5602 = vunpack.c.l.b16 %v5514
    %v5603 = vunpack.c.h.b16 %v5514
    %v5604 = vunpack.c.l.b16 %v5515
    %v5605 = vunpack.c.h.b16 %v5515
    %v5606 = vunpack.c.l.b16 %v5516
    %v5607 = vunpack.c.h.b16 %v5516
    %v5608 = vunpack.c.l.b16 %v5517
    %v5609 = vunpack.c.h.b16 %v5517
    %v5610 = vunpack.c.l.b16 %v5518
    %v5611 = vunpack.c.h.b16 %v5518
    %v5612 = vunpack.c.l.b16 %v5519
    %v5613 = vunpack.c.h.b16 %v5519
    %v5614 = vunpack.c.l.b16 %v5520
    %v5615 = vunpack.c.h.b16 %v5520
    %v5616 = vunpack.c.l.b16 %v5521
    %v5617 = vunpack.c.h.b16 %v5521
    %v5618 = vpack.c.b16 %v5558, %v5554
    %v5619 = vpack.c.b16 %v5559, %v5555
    %v5620 = vpack.c.b16 %v5560, %v5556
    %v5621 = vpack.c.b16 %v5561, %v5557
    %v5622 = vpack.c.b16 %v5566, %v5562
    %v5623 = vpack.c.b16 %v5567, %v5563
    %v5624 = vpack.c.b16 %v5568, %v5564
    %v5625 = vpack.c.b16 %v5569, %v5565
    %v5626 = vpack.c.b16 %v5574, %v5570
    %v5627 = vpack.c.b16 %v5575, %v5571
    %v5628 = vpack.c.b16 %v5576, %v5572
    %v5629 = vpack.c.b16 %v5577, %v5573
    %v5630 = vpack.c.b16 %v5582, %v5578
    %v5631 = vpack.c.b16 %v5583, %v5579
    %v5632 = vpack.c.b16 %v5584, %v5580
    %v5633 = vpack.c.b16 %v5585, %v5581
    %v5634 = vpack.c.b16 %v5590, %v5586
    %v5635 = vpack.c.b16 %v5591, %v5587
    %v5636 = vpack.c.b16 %v5592, %v5588
    %v5637 = vpack.c.b16 %v5593, %v5589
    %v5638 = vpack.c.b16 %v5598, %v5594
    %v5639 = vpack.c.b16 %v5599, %v5595
    %v5640 = vpack.c.b16 %v5600, %v5596
    %v5641 = vpack.c.b16 %v5601, %v5597
    %v5642 = vpack.c.b16 %v5606, %v5602
    %v5643 = vpack.c.b16 %v5607, %v5603
    %v5644 = vpack.c.b16 %v5608, %v5604
    %v5645 = vpack.c.b16 %v5609, %v5605
    %v5646 = vpack.c.b16 %v5614, %v5610
    %v5647 = vpack.c.b16 %v5615, %v5611
    %v5648 = vpack.c.b16 %v5616, %v5612
    %v5649 = vpack.c.b16 %v5617, %v5613
    %5682 = vmatpush.bf16.msra.mxu0 %v5646
    %5683 = vmatpush.bf16.msra.mxu0 %v5642
    %5684 = vmatpush.bf16.msra.mxu0 %v5638
    %5685 = vmatpush.bf16.msra.mxu0 %v5634
    %5686 = vmatpush.bf16.msra.mxu0 %v5630
    %5687 = vmatpush.bf16.msra.mxu0 %v5626
    %5688 = vmatpush.bf16.msra.mxu0 %v5622
    %5689 = vmatpush.bf16.msra.mxu0 %v5618
    %5690 = vmatmul.bf16.gmra.mxu0 %v5489
    %v5691 = vpop.f32.mrf.mxu0
    %v5692 = vadd.f32 0.0, %v5691
    %v5693 = vpop.f32.mrf.mxu0
    %5694 = vdwg.mxu0
    %5695 = vmatpush.bf16.msra.mxu0 %v5647
    %5696 = vmatpush.bf16.msra.mxu0 %v5643
    %5697 = vmatpush.bf16.msra.mxu0 %v5639
    %5698 = vmatpush.bf16.msra.mxu0 %v5635
    %5699 = vmatpush.bf16.msra.mxu0 %v5631
    %5700 = vmatpush.bf16.msra.mxu0 %v5627
    %5701 = vmatpush.bf16.msra.mxu0 %v5623
    %5702 = vmatpush.bf16.msra.mxu0 %v5619
    %5703 = vmatmul.bf16.gmra.mxu0 %v5489
    %v5704 = vpop.f32.mrf.mxu0
    %v5705 = vadd.f32 0.0, %v5704
    %v5706 = vpop.f32.mrf.mxu0
    %5707 = vdwg.mxu0
    %5708 = vmatpush.bf16.msra.mxu0 %v5648
    %5709 = vmatpush.bf16.msra.mxu0 %v5644
    %5710 = vmatpush.bf16.msra.mxu0 %v5640
    %5711 = vmatpush.bf16.msra.mxu0 %v5636
    %5712 = vmatpush.bf16.msra.mxu0 %v5632
    %5713 = vmatpush.bf16.msra.mxu0 %v5628
    %5714 = vmatpush.bf16.msra.mxu0 %v5624
    %5715 = vmatpush.bf16.msra.mxu0 %v5620
    %5716 = vmatmul.bf16.gmra.mxu0 %v5489
    %v5717 = vpop.f32.mrf.mxu0
    %v5718 = vadd.f32 0.0, %v5717
    %v5719 = vpop.f32.mrf.mxu0
    %5720 = vdwg.mxu0
    %5721 = vmatpush.bf16.msra.mxu0 %v5649
    %5722 = vmatpush.bf16.msra.mxu0 %v5645
    %5723 = vmatpush.bf16.msra.mxu0 %v5641
    %5724 = vmatpush.bf16.msra.mxu0 %v5637
    %5725 = vmatpush.bf16.msra.mxu0 %v5633
    %5726 = vmatpush.bf16.msra.mxu0 %v5629
    %5727 = vmatpush.bf16.msra.mxu0 %v5625
    %5728 = vmatpush.bf16.msra.mxu0 %v5621
    %5729 = vmatmul.bf16.gmra.mxu0 %v5489
    %v5730 = vpop.f32.mrf.mxu0
    %v5731 = vadd.f32 0.0, %v5730
    %v5732 = vpop.f32.mrf.mxu0
    %5733 = vdwg.mxu0
    %v5734 = vadd.f32 %v5485, %v5692
    %v5735 = vadd.f32 %v5486, %v5705
    %v5736 = vadd.f32 %v5487, %v5718
    %v5737 = vadd.f32 %v5488, %v5731
    %v5738 = vxor.u32 %v5734, 2147483648
    %v5739 = vxor.u32 %v5735, 2147483648
    %v5740 = vxor.u32 %v5736, 2147483648
    %v5741 = vmul.f32 %v5738, 1.442695
    %v5742 = vpow.pop %v5741
    %v5743 = vmul.f32 %v5739, 1.442695
    %v5744 = vpow.pop %v5743
    %v5745 = vmul.f32 %v5740, 1.442695
    %v5746 = vpow.pop %v5745
    %v5747 = vadd.f32 %v5742, 1.0
    %v5748 = vadd.f32 %v5744, 1.0
    %v5749 = vadd.f32 %v5746, 1.0
    %v5750 = vrcp.pop %v5747
    %v5751 = vmul.f32 %v5747, %v5750
    %v5752 = vsub.f32 1.0, %v5751
    %v5753 = vmul.f32 %v5750, %v5752
    %v5754 = vadd.f32 %v5750, %v5753
    %vm5755 = vweird.f32 %v5747
    %vm5756 = vweird.f32 %v5750
    %vm5757 = vmor %vm5755, %vm5756
    %v5758 = vsel %vm5757, %v5750, %v5754
    %v5759 = vand.u32 2147483647, %v5747
    %vm5760 = vcmp.eq.f32.partialorder %v5759, 8.507059e+37
    %v5761 = vand.u32 %v5747, 2147483648
    %v5762 = vor.u32 1.1754944e-38, %v5761
    %v5763 = vsel %vm5760, %v5762, %v5758
    %v5764 = vmul.f32 1.0, %v5763
    %v5765 = vrcp.pop %v5748
    %v5766 = vmul.f32 %v5748, %v5765
    %v5767 = vsub.f32 1.0, %v5766
    %v5768 = vmul.f32 %v5765, %v5767
    %v5769 = vadd.f32 %v5765, %v5768
    %vm5770 = vweird.f32 %v5748
    %vm5771 = vweird.f32 %v5765
    %vm5772 = vmor %vm5770, %vm5771
    %v5773 = vsel %vm5772, %v5765, %v5769
    %v5774 = vand.u32 2147483647, %v5748
    %vm5775 = vcmp.eq.f32.partialorder %v5774, 8.507059e+37
    %v5776 = vand.u32 %v5748, 2147483648
    %v5777 = vor.u32 1.1754944e-38, %v5776
    %v5778 = vsel %vm5775, %v5777, %v5773
    %v5779 = vmul.f32 1.0, %v5778
    %v5780 = vrcp.pop %v5749
    %v5781 = vmul.f32 %v5749, %v5780
    %v5782 = vsub.f32 1.0, %v5781
    %v5783 = vmul.f32 %v5780, %v5782
    %v5784 = vadd.f32 %v5780, %v5783
    %vm5785 = vweird.f32 %v5749
    %vm5786 = vweird.f32 %v5780
    %vm5787 = vmor %vm5785, %vm5786
    %v5788 = vsel %vm5787, %v5780, %v5784
    %v5789 = vand.u32 2147483647, %v5749
    %vm5790 = vcmp.eq.f32.partialorder %v5789, 8.507059e+37
    %v5791 = vand.u32 %v5749, 2147483648
    %v5792 = vor.u32 1.1754944e-38, %v5791
    %v5793 = vsel %vm5790, %v5792, %v5788
    %v5794 = vmul.f32 1.0, %v5793
    %v5795 = vtanh.pop %v5737
    %v5796 = vmul.f32 %v5779, %v4298
    %v5797 = vmul.f32 %v5764, %v5795
    %v5798 = vadd.f32 %v5796, %v5797
    %v5799 = vtanh.pop %v5798
    %v5800 = vmul.f32 %v5794, %v5799
    %v5801 = vpack.c.bf16 %v4852, %v4852
    %v5802 = vld [vmem:[#allocation7] sm:$0xff]
    %v5803 = vld [vmem:[#allocation7 + $0x8] sm:$0xff]
    %v5804 = vld [vmem:[#allocation7 + $0x10] sm:$0xff]
    %v5805 = vld [vmem:[#allocation7 + $0x18] sm:$0xff]
    %v5806 = vld [vmem:[#allocation7 + $0x20] sm:$0xff]
    %v5807 = vld [vmem:[#allocation7 + $0x28] sm:$0xff]
    %v5808 = vld [vmem:[#allocation7 + $0x30] sm:$0xff]
    %v5809 = vld [vmem:[#allocation7 + $0x38] sm:$0xff]
    %v5810 = vld [vmem:[#allocation7 + $0x40] sm:$0xff]
    %v5811 = vld [vmem:[#allocation7 + $0x48] sm:$0xff]
    %v5812 = vld [vmem:[#allocation7 + $0x50] sm:$0xff]
    %v5813 = vld [vmem:[#allocation7 + $0x58] sm:$0xff]
    %v5814 = vld [vmem:[#allocation7 + $0x60] sm:$0xff]
    %v5815 = vld [vmem:[#allocation7 + $0x68] sm:$0xff]
    %v5816 = vld [vmem:[#allocation7 + $0x70] sm:$0xff]
    %v5817 = vld [vmem:[#allocation7 + $0x78] sm:$0xff]
    %v5818 = vld [vmem:[#allocation7 + $0x80] sm:$0xff]
    %v5819 = vld [vmem:[#allocation7 + $0x88] sm:$0xff]
    %v5820 = vld [vmem:[#allocation7 + $0x90] sm:$0xff]
    %v5821 = vld [vmem:[#allocation7 + $0x98] sm:$0xff]
    %v5822 = vld [vmem:[#allocation7 + $0xa0] sm:$0xff]
    %v5823 = vld [vmem:[#allocation7 + $0xa8] sm:$0xff]
    %v5824 = vld [vmem:[#allocation7 + $0xb0] sm:$0xff]
    %v5825 = vld [vmem:[#allocation7 + $0xb8] sm:$0xff]
    %v5826 = vld [vmem:[#allocation7 + $0xc0] sm:$0xff]
    %v5827 = vld [vmem:[#allocation7 + $0xc8] sm:$0xff]
    %v5828 = vld [vmem:[#allocation7 + $0xd0] sm:$0xff]
    %v5829 = vld [vmem:[#allocation7 + $0xd8] sm:$0xff]
    %v5830 = vld [vmem:[#allocation7 + $0xe0] sm:$0xff]
    %v5831 = vld [vmem:[#allocation7 + $0xe8] sm:$0xff]
    %v5832 = vld [vmem:[#allocation7 + $0xf0] sm:$0xff]
    %v5833 = vld [vmem:[#allocation7 + $0xf8] sm:$0xff]
    %v5834 = vld [vmem:[#allocation7 + $0x100] sm:$0xff]
    %v5835 = vld [vmem:[#allocation7 + $0x108] sm:$0xff]
    %v5836 = vld [vmem:[#allocation7 + $0x110] sm:$0xff]
    %v5837 = vld [vmem:[#allocation7 + $0x118] sm:$0xff]
    %v5838 = vld [vmem:[#allocation7 + $0x120] sm:$0xff]
    %v5839 = vld [vmem:[#allocation7 + $0x128] sm:$0xff]
    %v5840 = vld [vmem:[#allocation7 + $0x130] sm:$0xff]
    %v5841 = vld [vmem:[#allocation7 + $0x138] sm:$0xff]
    %v5842 = vld [vmem:[#allocation7 + $0x140] sm:$0xff]
    %v5843 = vld [vmem:[#allocation7 + $0x148] sm:$0xff]
    %v5844 = vld [vmem:[#allocation7 + $0x150] sm:$0xff]
    %v5845 = vld [vmem:[#allocation7 + $0x158] sm:$0xff]
    %v5846 = vld [vmem:[#allocation7 + $0x160] sm:$0xff]
    %v5847 = vld [vmem:[#allocation7 + $0x168] sm:$0xff]
    %v5848 = vld [vmem:[#allocation7 + $0x170] sm:$0xff]
    %v5849 = vld [vmem:[#allocation7 + $0x178] sm:$0xff]
    %v5850 = vld [vmem:[#allocation7 + $0x180] sm:$0xff]
    %v5851 = vld [vmem:[#allocation7 + $0x188] sm:$0xff]
    %v5852 = vld [vmem:[#allocation7 + $0x190] sm:$0xff]
    %v5853 = vld [vmem:[#allocation7 + $0x198] sm:$0xff]
    %v5854 = vld [vmem:[#allocation7 + $0x1a0] sm:$0xff]
    %v5855 = vld [vmem:[#allocation7 + $0x1a8] sm:$0xff]
    %v5856 = vld [vmem:[#allocation7 + $0x1b0] sm:$0xff]
    %v5857 = vld [vmem:[#allocation7 + $0x1b8] sm:$0xff]
    %v5858 = vld [vmem:[#allocation7 + $0x1c0] sm:$0xff]
    %v5859 = vld [vmem:[#allocation7 + $0x1c8] sm:$0xff]
    %v5860 = vld [vmem:[#allocation7 + $0x1d0] sm:$0xff]
    %v5861 = vld [vmem:[#allocation7 + $0x1d8] sm:$0xff]
    %v5862 = vld [vmem:[#allocation7 + $0x1e0] sm:$0xff]
    %v5863 = vld [vmem:[#allocation7 + $0x1e8] sm:$0xff]
    %v5864 = vld [vmem:[#allocation7 + $0x1f0] sm:$0xff]
    %v5865 = vld [vmem:[#allocation7 + $0x1f8] sm:$0xff]
    %v5930 = vunpack.c.l.b16 %v5802
    %v5931 = vunpack.c.h.b16 %v5802
    %v5932 = vunpack.c.l.b16 %v5803
    %v5933 = vunpack.c.h.b16 %v5803
    %v5934 = vunpack.c.l.b16 %v5804
    %v5935 = vunpack.c.h.b16 %v5804
    %v5936 = vunpack.c.l.b16 %v5805
    %v5937 = vunpack.c.h.b16 %v5805
    %v5938 = vunpack.c.l.b16 %v5806
    %v5939 = vunpack.c.h.b16 %v5806
    %v5940 = vunpack.c.l.b16 %v5807
    %v5941 = vunpack.c.h.b16 %v5807
    %v5942 = vunpack.c.l.b16 %v5808
    %v5943 = vunpack.c.h.b16 %v5808
    %v5944 = vunpack.c.l.b16 %v5809
    %v5945 = vunpack.c.h.b16 %v5809
    %v5946 = vunpack.c.l.b16 %v5810
    %v5947 = vunpack.c.h.b16 %v5810
    %v5948 = vunpack.c.l.b16 %v5811
    %v5949 = vunpack.c.h.b16 %v5811
    %v5950 = vunpack.c.l.b16 %v5812
    %v5951 = vunpack.c.h.b16 %v5812
    %v5952 = vunpack.c.l.b16 %v5813
    %v5953 = vunpack.c.h.b16 %v5813
    %v5954 = vunpack.c.l.b16 %v5814
    %v5955 = vunpack.c.h.b16 %v5814
    %v5956 = vunpack.c.l.b16 %v5815
    %v5957 = vunpack.c.h.b16 %v5815
    %v5958 = vunpack.c.l.b16 %v5816
    %v5959 = vunpack.c.h.b16 %v5816
    %v5960 = vunpack.c.l.b16 %v5817
    %v5961 = vunpack.c.h.b16 %v5817
    %v5962 = vunpack.c.l.b16 %v5818
    %v5963 = vunpack.c.h.b16 %v5818
    %v5964 = vunpack.c.l.b16 %v5819
    %v5965 = vunpack.c.h.b16 %v5819
    %v5966 = vunpack.c.l.b16 %v5820
    %v5967 = vunpack.c.h.b16 %v5820
    %v5968 = vunpack.c.l.b16 %v5821
    %v5969 = vunpack.c.h.b16 %v5821
    %v5970 = vunpack.c.l.b16 %v5822
    %v5971 = vunpack.c.h.b16 %v5822
    %v5972 = vunpack.c.l.b16 %v5823
    %v5973 = vunpack.c.h.b16 %v5823
    %v5974 = vunpack.c.l.b16 %v5824
    %v5975 = vunpack.c.h.b16 %v5824
    %v5976 = vunpack.c.l.b16 %v5825
    %v5977 = vunpack.c.h.b16 %v5825
    %v5978 = vunpack.c.l.b16 %v5826
    %v5979 = vunpack.c.h.b16 %v5826
    %v5980 = vunpack.c.l.b16 %v5827
    %v5981 = vunpack.c.h.b16 %v5827
    %v5982 = vunpack.c.l.b16 %v5828
    %v5983 = vunpack.c.h.b16 %v5828
    %v5984 = vunpack.c.l.b16 %v5829
    %v5985 = vunpack.c.h.b16 %v5829
    %v5986 = vunpack.c.l.b16 %v5830
    %v5987 = vunpack.c.h.b16 %v5830
    %v5988 = vunpack.c.l.b16 %v5831
    %v5989 = vunpack.c.h.b16 %v5831
    %v5990 = vunpack.c.l.b16 %v5832
    %v5991 = vunpack.c.h.b16 %v5832
    %v5992 = vunpack.c.l.b16 %v5833
    %v5993 = vunpack.c.h.b16 %v5833
    %v5994 = vunpack.c.l.b16 %v5834
    %v5995 = vunpack.c.h.b16 %v5834
    %v5996 = vunpack.c.l.b16 %v5835
    %v5997 = vunpack.c.h.b16 %v5835
    %v5998 = vunpack.c.l.b16 %v5836
    %v5999 = vunpack.c.h.b16 %v5836
    %v6000 = vunpack.c.l.b16 %v5837
    %v6001 = vunpack.c.h.b16 %v5837
    %v6002 = vunpack.c.l.b16 %v5838
    %v6003 = vunpack.c.h.b16 %v5838
    %v6004 = vunpack.c.l.b16 %v5839
    %v6005 = vunpack.c.h.b16 %v5839
    %v6006 = vunpack.c.l.b16 %v5840
    %v6007 = vunpack.c.h.b16 %v5840
    %v6008 = vunpack.c.l.b16 %v5841
    %v6009 = vunpack.c.h.b16 %v5841
    %v6010 = vunpack.c.l.b16 %v5842
    %v6011 = vunpack.c.h.b16 %v5842
    %v6012 = vunpack.c.l.b16 %v5843
    %v6013 = vunpack.c.h.b16 %v5843
    %v6014 = vunpack.c.l.b16 %v5844
    %v6015 = vunpack.c.h.b16 %v5844
    %v6016 = vunpack.c.l.b16 %v5845
    %v6017 = vunpack.c.h.b16 %v5845
    %v6018 = vunpack.c.l.b16 %v5846
    %v6019 = vunpack.c.h.b16 %v5846
    %v6020 = vunpack.c.l.b16 %v5847
    %v6021 = vunpack.c.h.b16 %v5847
    %v6022 = vunpack.c.l.b16 %v5848
    %v6023 = vunpack.c.h.b16 %v5848
    %v6024 = vunpack.c.l.b16 %v5849
    %v6025 = vunpack.c.h.b16 %v5849
    %v6026 = vunpack.c.l.b16 %v5850
    %v6027 = vunpack.c.h.b16 %v5850
    %v6028 = vunpack.c.l.b16 %v5851
    %v6029 = vunpack.c.h.b16 %v5851
    %v6030 = vunpack.c.l.b16 %v5852
    %v6031 = vunpack.c.h.b16 %v5852
    %v6032 = vunpack.c.l.b16 %v5853
    %v6033 = vunpack.c.h.b16 %v5853
    %v6034 = vunpack.c.l.b16 %v5854
    %v6035 = vunpack.c.h.b16 %v5854
    %v6036 = vunpack.c.l.b16 %v5855
    %v6037 = vunpack.c.h.b16 %v5855
    %v6038 = vunpack.c.l.b16 %v5856
    %v6039 = vunpack.c.h.b16 %v5856
    %v6040 = vunpack.c.l.b16 %v5857
    %v6041 = vunpack.c.h.b16 %v5857
    %v6042 = vunpack.c.l.b16 %v5858
    %v6043 = vunpack.c.h.b16 %v5858
    %v6044 = vunpack.c.l.b16 %v5859
    %v6045 = vunpack.c.h.b16 %v5859
    %v6046 = vunpack.c.l.b16 %v5860
    %v6047 = vunpack.c.h.b16 %v5860
    %v6048 = vunpack.c.l.b16 %v5861
    %v6049 = vunpack.c.h.b16 %v5861
    %v6050 = vunpack.c.l.b16 %v5862
    %v6051 = vunpack.c.h.b16 %v5862
    %v6052 = vunpack.c.l.b16 %v5863
    %v6053 = vunpack.c.h.b16 %v5863
    %v6054 = vunpack.c.l.b16 %v5864
    %v6055 = vunpack.c.h.b16 %v5864
    %v6056 = vunpack.c.l.b16 %v5865
    %v6057 = vunpack.c.h.b16 %v5865
    %v6058 = vpack.c.b16 %v5934, %v5930
    %v6059 = vpack.c.b16 %v5935, %v5931
    %v6060 = vpack.c.b16 %v5936, %v5932
    %v6061 = vpack.c.b16 %v5937, %v5933
    %v6062 = vpack.c.b16 %v5942, %v5938
    %v6063 = vpack.c.b16 %v5943, %v5939
    %v6064 = vpack.c.b16 %v5944, %v5940
    %v6065 = vpack.c.b16 %v5945, %v5941
    %v6066 = vpack.c.b16 %v5950, %v5946
    %v6067 = vpack.c.b16 %v5951, %v5947
    %v6068 = vpack.c.b16 %v5952, %v5948
    %v6069 = vpack.c.b16 %v5953, %v5949
    %v6070 = vpack.c.b16 %v5958, %v5954
    %v6071 = vpack.c.b16 %v5959, %v5955
    %v6072 = vpack.c.b16 %v5960, %v5956
    %v6073 = vpack.c.b16 %v5961, %v5957
    %v6074 = vpack.c.b16 %v5966, %v5962
    %v6075 = vpack.c.b16 %v5967, %v5963
    %v6076 = vpack.c.b16 %v5968, %v5964
    %v6077 = vpack.c.b16 %v5969, %v5965
    %v6078 = vpack.c.b16 %v5974, %v5970
    %v6079 = vpack.c.b16 %v5975, %v5971
    %v6080 = vpack.c.b16 %v5976, %v5972
    %v6081 = vpack.c.b16 %v5977, %v5973
    %v6082 = vpack.c.b16 %v5982, %v5978
    %v6083 = vpack.c.b16 %v5983, %v5979
    %v6084 = vpack.c.b16 %v5984, %v5980
    %v6085 = vpack.c.b16 %v5985, %v5981
    %v6086 = vpack.c.b16 %v5990, %v5986
    %v6087 = vpack.c.b16 %v5991, %v5987
    %v6088 = vpack.c.b16 %v5992, %v5988
    %v6089 = vpack.c.b16 %v5993, %v5989
    %v6090 = vpack.c.b16 %v5998, %v5994
    %v6091 = vpack.c.b16 %v5999, %v5995
    %v6092 = vpack.c.b16 %v6000, %v5996
    %v6093 = vpack.c.b16 %v6001, %v5997
    %v6094 = vpack.c.b16 %v6006, %v6002
    %v6095 = vpack.c.b16 %v6007, %v6003
    %v6096 = vpack.c.b16 %v6008, %v6004
    %v6097 = vpack.c.b16 %v6009, %v6005
    %v6098 = vpack.c.b16 %v6014, %v6010
    %v6099 = vpack.c.b16 %v6015, %v6011
    %v6100 = vpack.c.b16 %v6016, %v6012
    %v6101 = vpack.c.b16 %v6017, %v6013
    %v6102 = vpack.c.b16 %v6022, %v6018
    %v6103 = vpack.c.b16 %v6023, %v6019
    %v6104 = vpack.c.b16 %v6024, %v6020
    %v6105 = vpack.c.b16 %v6025, %v6021
    %v6106 = vpack.c.b16 %v6030, %v6026
    %v6107 = vpack.c.b16 %v6031, %v6027
    %v6108 = vpack.c.b16 %v6032, %v6028
    %v6109 = vpack.c.b16 %v6033, %v6029
    %v6110 = vpack.c.b16 %v6038, %v6034
    %v6111 = vpack.c.b16 %v6039, %v6035
    %v6112 = vpack.c.b16 %v6040, %v6036
    %v6113 = vpack.c.b16 %v6041, %v6037
    %v6114 = vpack.c.b16 %v6046, %v6042
    %v6115 = vpack.c.b16 %v6047, %v6043
    %v6116 = vpack.c.b16 %v6048, %v6044
    %v6117 = vpack.c.b16 %v6049, %v6045
    %v6118 = vpack.c.b16 %v6054, %v6050
    %v6119 = vpack.c.b16 %v6055, %v6051
    %v6120 = vpack.c.b16 %v6056, %v6052
    %v6121 = vpack.c.b16 %v6057, %v6053
    %6186 = vmatpush.bf16.msra.mxu0 %v6086
    %6187 = vmatpush.bf16.msra.mxu0 %v6082
    %6188 = vmatpush.bf16.msra.mxu0 %v6078
    %6189 = vmatpush.bf16.msra.mxu0 %v6074
    %6190 = vmatpush.bf16.msra.mxu0 %v6070
    %6191 = vmatpush.bf16.msra.mxu0 %v6066
    %6192 = vmatpush.bf16.msra.mxu0 %v6062
    %6193 = vmatpush.bf16.msra.mxu0 %v6058
    %6194 = vmatmul.bf16.gmra.mxu0 %v5489
    %v6195 = vpop.f32.mrf.mxu0
    %v6196 = vadd.f32 %v1052, %v6195
    %v6197 = vpop.f32.mrf.mxu0
    %6198 = vdwg.mxu0
    %6199 = vmatpush.bf16.msra.mxu0 %v6118
    %6200 = vmatpush.bf16.msra.mxu0 %v6114
    %6201 = vmatpush.bf16.msra.mxu0 %v6110
    %6202 = vmatpush.bf16.msra.mxu0 %v6106
    %6203 = vmatpush.bf16.msra.mxu0 %v6102
    %6204 = vmatpush.bf16.msra.mxu0 %v6098
    %6205 = vmatpush.bf16.msra.mxu0 %v6094
    %6206 = vmatpush.bf16.msra.mxu0 %v6090
    %6207 = vmatmul.bf16.gmra.mxu0 %v5801
    %v6208 = vpop.f32.mrf.mxu0
    %v6209 = vadd.f32 %v6196, %v6208
    %v6210 = vpop.f32.mrf.mxu0
    %6211 = vdwg.mxu0
    %6212 = vmatpush.bf16.msra.mxu0 %v6087
    %6213 = vmatpush.bf16.msra.mxu0 %v6083
    %6214 = vmatpush.bf16.msra.mxu0 %v6079
    %6215 = vmatpush.bf16.msra.mxu0 %v6075
    %6216 = vmatpush.bf16.msra.mxu0 %v6071
    %6217 = vmatpush.bf16.msra.mxu0 %v6067
    %6218 = vmatpush.bf16.msra.mxu0 %v6063
    %6219 = vmatpush.bf16.msra.mxu0 %v6059
    %6220 = vmatmul.bf16.gmra.mxu0 %v5489
    %v6221 = vpop.f32.mrf.mxu0
    %v6222 = vadd.f32 %v1053, %v6221
    %v6223 = vpop.f32.mrf.mxu0
    %6224 = vdwg.mxu0
    %6225 = vmatpush.bf16.msra.mxu0 %v6119
    %6226 = vmatpush.bf16.msra.mxu0 %v6115
    %6227 = vmatpush.bf16.msra.mxu0 %v6111
    %6228 = vmatpush.bf16.msra.mxu0 %v6107
    %6229 = vmatpush.bf16.msra.mxu0 %v6103
    %6230 = vmatpush.bf16.msra.mxu0 %v6099
    %6231 = vmatpush.bf16.msra.mxu0 %v6095
    %6232 = vmatpush.bf16.msra.mxu0 %v6091
    %6233 = vmatmul.bf16.gmra.mxu0 %v5801
    %v6234 = vpop.f32.mrf.mxu0
    %v6235 = vadd.f32 %v6222, %v6234
    %v6236 = vpop.f32.mrf.mxu0
    %6237 = vdwg.mxu0
    %6238 = vmatpush.bf16.msra.mxu0 %v6088
    %6239 = vmatpush.bf16.msra.mxu0 %v6084
    %6240 = vmatpush.bf16.msra.mxu0 %v6080
    %6241 = vmatpush.bf16.msra.mxu0 %v6076
    %6242 = vmatpush.bf16.msra.mxu0 %v6072
    %6243 = vmatpush.bf16.msra.mxu0 %v6068
    %6244 = vmatpush.bf16.msra.mxu0 %v6064
    %6245 = vmatpush.bf16.msra.mxu0 %v6060
    %6246 = vmatmul.bf16.gmra.mxu0 %v5489
    %v6247 = vpop.f32.mrf.mxu0
    %v6248 = vadd.f32 %v1054, %v6247
    %v6249 = vpop.f32.mrf.mxu0
    %6250 = vdwg.mxu0
    %6251 = vmatpush.bf16.msra.mxu0 %v6120
    %6252 = vmatpush.bf16.msra.mxu0 %v6116
    %6253 = vmatpush.bf16.msra.mxu0 %v6112
    %6254 = vmatpush.bf16.msra.mxu0 %v6108
    %6255 = vmatpush.bf16.msra.mxu0 %v6104
    %6256 = vmatpush.bf16.msra.mxu0 %v6100
    %6257 = vmatpush.bf16.msra.mxu0 %v6096
    %6258 = vmatpush.bf16.msra.mxu0 %v6092
    %6259 = vmatmul.bf16.gmra.mxu0 %v5801
    %v6260 = vpop.f32.mrf.mxu0
    %v6261 = vadd.f32 %v6248, %v6260
    %v6262 = vpop.f32.mrf.mxu0
    %6263 = vdwg.mxu0
    %6264 = vmatpush.bf16.msra.mxu0 %v6089
    %6265 = vmatpush.bf16.msra.mxu0 %v6085
    %6266 = vmatpush.bf16.msra.mxu0 %v6081
    %6267 = vmatpush.bf16.msra.mxu0 %v6077
    %6268 = vmatpush.bf16.msra.mxu0 %v6073
    %6269 = vmatpush.bf16.msra.mxu0 %v6069
    %6270 = vmatpush.bf16.msra.mxu0 %v6065
    %6271 = vmatpush.bf16.msra.mxu0 %v6061
    %6272 = vmatmul.bf16.gmra.mxu0 %v5489
    %v6273 = vpop.f32.mrf.mxu0
    %v6274 = vadd.f32 %v1055, %v6273
    %v6275 = vpop.f32.mrf.mxu0
    %6276 = vdwg.mxu0
    %6277 = vmatpush.bf16.msra.mxu0 %v6121
    %6278 = vmatpush.bf16.msra.mxu0 %v6117
    %6279 = vmatpush.bf16.msra.mxu0 %v6113
    %6280 = vmatpush.bf16.msra.mxu0 %v6109
    %6281 = vmatpush.bf16.msra.mxu0 %v6105
    %6282 = vmatpush.bf16.msra.mxu0 %v6101
    %6283 = vmatpush.bf16.msra.mxu0 %v6097
    %6284 = vmatpush.bf16.msra.mxu0 %v6093
    %6285 = vmatmul.bf16.gmra.mxu0 %v5801
    %v6286 = vpop.f32.mrf.mxu0
    %v6287 = vadd.f32 %v6274, %v6286
    %v6288 = vpop.f32.mrf.mxu0
    %6289 = vdwg.mxu0
    %v6290 = vxor.u32 %v6209, 2147483648
    %v6291 = vxor.u32 %v6235, 2147483648
    %v6292 = vxor.u32 %v6261, 2147483648
    %v6293 = vmul.f32 %v6290, 1.442695
    %v6294 = vpow.pop %v6293
    %v6295 = vmul.f32 %v6291, 1.442695
    %v6296 = vpow.pop %v6295
    %v6297 = vmul.f32 %v6292, 1.442695
    %v6298 = vpow.pop %v6297
    %v6299 = vadd.f32 %v6294, 1.0
    %v6300 = vadd.f32 %v6296, 1.0
    %v6301 = vadd.f32 %v6298, 1.0
    %v6302 = vrcp.pop %v6299
    %v6303 = vmul.f32 %v6299, %v6302
    %v6304 = vsub.f32 1.0, %v6303
    %v6305 = vmul.f32 %v6302, %v6304
    %v6306 = vadd.f32 %v6302, %v6305
    %vm6307 = vweird.f32 %v6299
    %vm6308 = vweird.f32 %v6302
    %vm6309 = vmor %vm6307, %vm6308
    %v6310 = vsel %vm6309, %v6302, %v6306
    %v6311 = vand.u32 2147483647, %v6299
    %vm6312 = vcmp.eq.f32.partialorder %v6311, 8.507059e+37
    %v6313 = vand.u32 %v6299, 2147483648
    %v6314 = vor.u32 1.1754944e-38, %v6313
    %v6315 = vsel %vm6312, %v6314, %v6310
    %v6316 = vmul.f32 1.0, %v6315
    %v6317 = vrcp.pop %v6300
    %v6318 = vmul.f32 %v6300, %v6317
    %v6319 = vsub.f32 1.0, %v6318
    %v6320 = vmul.f32 %v6317, %v6319
    %v6321 = vadd.f32 %v6317, %v6320
    %vm6322 = vweird.f32 %v6300
    %vm6323 = vweird.f32 %v6317
    %vm6324 = vmor %vm6322, %vm6323
    %v6325 = vsel %vm6324, %v6317, %v6321
    %v6326 = vand.u32 2147483647, %v6300
    %vm6327 = vcmp.eq.f32.partialorder %v6326, 8.507059e+37
    %v6328 = vand.u32 %v6300, 2147483648
    %v6329 = vor.u32 1.1754944e-38, %v6328
    %v6330 = vsel %vm6327, %v6329, %v6325
    %v6331 = vmul.f32 1.0, %v6330
    %v6332 = vrcp.pop %v6301
    %v6333 = vmul.f32 %v6301, %v6332
    %v6334 = vsub.f32 1.0, %v6333
    %v6335 = vmul.f32 %v6332, %v6334
    %v6336 = vadd.f32 %v6332, %v6335
    %vm6337 = vweird.f32 %v6301
    %vm6338 = vweird.f32 %v6332
    %vm6339 = vmor %vm6337, %vm6338
    %v6340 = vsel %vm6339, %v6332, %v6336
    %v6341 = vand.u32 2147483647, %v6301
    %vm6342 = vcmp.eq.f32.partialorder %v6341, 8.507059e+37
    %v6343 = vand.u32 %v6301, 2147483648
    %v6344 = vor.u32 1.1754944e-38, %v6343
    %v6345 = vsel %vm6342, %v6344, %v6340
    %v6346 = vmul.f32 1.0, %v6345
    %v6347 = vtanh.pop %v6287
    %v6348 = vmul.f32 %v6331, %v4850
    %v6349 = vmul.f32 %v6316, %v6347
    %v6350 = vadd.f32 %v6348, %v6349
    %v6351 = vtanh.pop %v6350
    %v6352 = vmul.f32 %v6346, %v6351
    %v6353 = vld [vmem:[%s1841] sm:$0xff]
    %v6354 = vld [vmem:[%s1841 + $0x8] sm:$0xff]
    %v6355 = vld [vmem:[%s1841 + $0x10] sm:$0xff]
    %v6356 = vld [vmem:[%s1841 + $0x18] sm:$0xff]
    %v6357 = vld [vmem:[%s1841 + $0x20] sm:$0xff]
    %v6358 = vld [vmem:[%s1841 + $0x28] sm:$0xff]
    %v6359 = vld [vmem:[%s1841 + $0x30] sm:$0xff]
    %v6360 = vld [vmem:[%s1841 + $0x38] sm:$0xff]
    %v6361 = vld [vmem:[%s1841 + $0x40] sm:$0xff]
    %v6362 = vld [vmem:[%s1841 + $0x48] sm:$0xff]
    %v6363 = vld [vmem:[%s1841 + $0x50] sm:$0xff]
    %v6364 = vld [vmem:[%s1841 + $0x58] sm:$0xff]
    %v6365 = vld [vmem:[%s1841 + $0x60] sm:$0xff]
    %v6366 = vld [vmem:[%s1841 + $0x68] sm:$0xff]
    %v6367 = vld [vmem:[%s1841 + $0x70] sm:$0xff]
    %v6368 = vld [vmem:[%s1841 + $0x78] sm:$0xff]
    %v6369 = vld [vmem:[%s1841 + $0x80] sm:$0xff]
    %v6370 = vld [vmem:[%s1841 + $0x88] sm:$0xff]
    %v6371 = vld [vmem:[%s1841 + $0x90] sm:$0xff]
    %v6372 = vld [vmem:[%s1841 + $0x98] sm:$0xff]
    %v6373 = vld [vmem:[%s1841 + $0xa0] sm:$0xff]
    %v6374 = vld [vmem:[%s1841 + $0xa8] sm:$0xff]
    %v6375 = vld [vmem:[%s1841 + $0xb0] sm:$0xff]
    %v6376 = vld [vmem:[%s1841 + $0xb8] sm:$0xff]
    %v6377 = vld [vmem:[%s1841 + $0xc0] sm:$0xff]
    %v6378 = vld [vmem:[%s1841 + $0xc8] sm:$0xff]
    %v6379 = vld [vmem:[%s1841 + $0xd0] sm:$0xff]
    %v6380 = vld [vmem:[%s1841 + $0xd8] sm:$0xff]
    %v6381 = vld [vmem:[%s1841 + $0xe0] sm:$0xff]
    %v6382 = vld [vmem:[%s1841 + $0xe8] sm:$0xff]
    %v6383 = vld [vmem:[%s1841 + $0xf0] sm:$0xff]
    %v6384 = vld [vmem:[%s1841 + $0xf8] sm:$0xff]
    %v6385 = vld [vmem:[%s1841 + $0x100] sm:$0xff]
    %v6386 = vld [vmem:[%s1841 + $0x108] sm:$0xff]
    %v6387 = vld [vmem:[%s1841 + $0x110] sm:$0xff]
    %v6388 = vld [vmem:[%s1841 + $0x118] sm:$0xff]
    %v6389 = vld [vmem:[%s1841 + $0x120] sm:$0xff]
    %v6390 = vld [vmem:[%s1841 + $0x128] sm:$0xff]
    %v6391 = vld [vmem:[%s1841 + $0x130] sm:$0xff]
    %v6392 = vld [vmem:[%s1841 + $0x138] sm:$0xff]
    %v6393 = vld [vmem:[%s1841 + $0x140] sm:$0xff]
    %v6394 = vld [vmem:[%s1841 + $0x148] sm:$0xff]
    %v6395 = vld [vmem:[%s1841 + $0x150] sm:$0xff]
    %v6396 = vld [vmem:[%s1841 + $0x158] sm:$0xff]
    %v6397 = vld [vmem:[%s1841 + $0x160] sm:$0xff]
    %v6398 = vld [vmem:[%s1841 + $0x168] sm:$0xff]
    %v6399 = vld [vmem:[%s1841 + $0x170] sm:$0xff]
    %v6400 = vld [vmem:[%s1841 + $0x178] sm:$0xff]
    %v6401 = vld [vmem:[%s1841 + $0x180] sm:$0xff]
    %v6402 = vld [vmem:[%s1841 + $0x188] sm:$0xff]
    %v6403 = vld [vmem:[%s1841 + $0x190] sm:$0xff]
    %v6404 = vld [vmem:[%s1841 + $0x198] sm:$0xff]
    %v6405 = vld [vmem:[%s1841 + $0x1a0] sm:$0xff]
    %v6406 = vld [vmem:[%s1841 + $0x1a8] sm:$0xff]
    %v6407 = vld [vmem:[%s1841 + $0x1b0] sm:$0xff]
    %v6408 = vld [vmem:[%s1841 + $0x1b8] sm:$0xff]
    %v6409 = vld [vmem:[%s1841 + $0x1c0] sm:$0xff]
    %v6410 = vld [vmem:[%s1841 + $0x1c8] sm:$0xff]
    %v6411 = vld [vmem:[%s1841 + $0x1d0] sm:$0xff]
    %v6412 = vld [vmem:[%s1841 + $0x1d8] sm:$0xff]
    %v6413 = vld [vmem:[%s1841 + $0x1e0] sm:$0xff]
    %v6414 = vld [vmem:[%s1841 + $0x1e8] sm:$0xff]
    %v6415 = vld [vmem:[%s1841 + $0x1f0] sm:$0xff]
    %v6416 = vld [vmem:[%s1841 + $0x1f8] sm:$0xff]
    %v6481 = vunpack.c.l.b16 %v6353
    %v6482 = vunpack.c.h.b16 %v6353
    %v6483 = vunpack.c.l.b16 %v6354
    %v6484 = vunpack.c.h.b16 %v6354
    %v6485 = vunpack.c.l.b16 %v6355
    %v6486 = vunpack.c.h.b16 %v6355
    %v6487 = vunpack.c.l.b16 %v6356
    %v6488 = vunpack.c.h.b16 %v6356
    %v6489 = vunpack.c.l.b16 %v6357
    %v6490 = vunpack.c.h.b16 %v6357
    %v6491 = vunpack.c.l.b16 %v6358
    %v6492 = vunpack.c.h.b16 %v6358
    %v6493 = vunpack.c.l.b16 %v6359
    %v6494 = vunpack.c.h.b16 %v6359
    %v6495 = vunpack.c.l.b16 %v6360
    %v6496 = vunpack.c.h.b16 %v6360
    %v6497 = vunpack.c.l.b16 %v6361
    %v6498 = vunpack.c.h.b16 %v6361
    %v6499 = vunpack.c.l.b16 %v6362
    %v6500 = vunpack.c.h.b16 %v6362
    %v6501 = vunpack.c.l.b16 %v6363
    %v6502 = vunpack.c.h.b16 %v6363
    %v6503 = vunpack.c.l.b16 %v6364
    %v6504 = vunpack.c.h.b16 %v6364
    %v6505 = vunpack.c.l.b16 %v6365
    %v6506 = vunpack.c.h.b16 %v6365
    %v6507 = vunpack.c.l.b16 %v6366
    %v6508 = vunpack.c.h.b16 %v6366
    %v6509 = vunpack.c.l.b16 %v6367
    %v6510 = vunpack.c.h.b16 %v6367
    %v6511 = vunpack.c.l.b16 %v6368
    %v6512 = vunpack.c.h.b16 %v6368
    %v6513 = vunpack.c.l.b16 %v6369
    %v6514 = vunpack.c.h.b16 %v6369
    %v6515 = vunpack.c.l.b16 %v6370
    %v6516 = vunpack.c.h.b16 %v6370
    %v6517 = vunpack.c.l.b16 %v6371
    %v6518 = vunpack.c.h.b16 %v6371
    %v6519 = vunpack.c.l.b16 %v6372
    %v6520 = vunpack.c.h.b16 %v6372
    %v6521 = vunpack.c.l.b16 %v6373
    %v6522 = vunpack.c.h.b16 %v6373
    %v6523 = vunpack.c.l.b16 %v6374
    %v6524 = vunpack.c.h.b16 %v6374
    %v6525 = vunpack.c.l.b16 %v6375
    %v6526 = vunpack.c.h.b16 %v6375
    %v6527 = vunpack.c.l.b16 %v6376
    %v6528 = vunpack.c.h.b16 %v6376
    %v6529 = vunpack.c.l.b16 %v6377
    %v6530 = vunpack.c.h.b16 %v6377
    %v6531 = vunpack.c.l.b16 %v6378
    %v6532 = vunpack.c.h.b16 %v6378
    %v6533 = vunpack.c.l.b16 %v6379
    %v6534 = vunpack.c.h.b16 %v6379
    %v6535 = vunpack.c.l.b16 %v6380
    %v6536 = vunpack.c.h.b16 %v6380
    %v6537 = vunpack.c.l.b16 %v6381
    %v6538 = vunpack.c.h.b16 %v6381
    %v6539 = vunpack.c.l.b16 %v6382
    %v6540 = vunpack.c.h.b16 %v6382
    %v6541 = vunpack.c.l.b16 %v6383
    %v6542 = vunpack.c.h.b16 %v6383
    %v6543 = vunpack.c.l.b16 %v6384
    %v6544 = vunpack.c.h.b16 %v6384
    %v6545 = vunpack.c.l.b16 %v6385
    %v6546 = vunpack.c.h.b16 %v6385
    %v6547 = vunpack.c.l.b16 %v6386
    %v6548 = vunpack.c.h.b16 %v6386
    %v6549 = vunpack.c.l.b16 %v6387
    %v6550 = vunpack.c.h.b16 %v6387
    %v6551 = vunpack.c.l.b16 %v6388
    %v6552 = vunpack.c.h.b16 %v6388
    %v6553 = vunpack.c.l.b16 %v6389
    %v6554 = vunpack.c.h.b16 %v6389
    %v6555 = vunpack.c.l.b16 %v6390
    %v6556 = vunpack.c.h.b16 %v6390
    %v6557 = vunpack.c.l.b16 %v6391
    %v6558 = vunpack.c.h.b16 %v6391
    %v6559 = vunpack.c.l.b16 %v6392
    %v6560 = vunpack.c.h.b16 %v6392
    %v6561 = vunpack.c.l.b16 %v6393
    %v6562 = vunpack.c.h.b16 %v6393
    %v6563 = vunpack.c.l.b16 %v6394
    %v6564 = vunpack.c.h.b16 %v6394
    %v6565 = vunpack.c.l.b16 %v6395
    %v6566 = vunpack.c.h.b16 %v6395
    %v6567 = vunpack.c.l.b16 %v6396
    %v6568 = vunpack.c.h.b16 %v6396
    %v6569 = vunpack.c.l.b16 %v6397
    %v6570 = vunpack.c.h.b16 %v6397
    %v6571 = vunpack.c.l.b16 %v6398
    %v6572 = vunpack.c.h.b16 %v6398
    %v6573 = vunpack.c.l.b16 %v6399
    %v6574 = vunpack.c.h.b16 %v6399
    %v6575 = vunpack.c.l.b16 %v6400
    %v6576 = vunpack.c.h.b16 %v6400
    %v6577 = vunpack.c.l.b16 %v6401
    %v6578 = vunpack.c.h.b16 %v6401
    %v6579 = vunpack.c.l.b16 %v6402
    %v6580 = vunpack.c.h.b16 %v6402
    %v6581 = vunpack.c.l.b16 %v6403
    %v6582 = vunpack.c.h.b16 %v6403
    %v6583 = vunpack.c.l.b16 %v6404
    %v6584 = vunpack.c.h.b16 %v6404
    %v6585 = vunpack.c.l.b16 %v6405
    %v6586 = vunpack.c.h.b16 %v6405
    %v6587 = vunpack.c.l.b16 %v6406
    %v6588 = vunpack.c.h.b16 %v6406
    %v6589 = vunpack.c.l.b16 %v6407
    %v6590 = vunpack.c.h.b16 %v6407
    %v6591 = vunpack.c.l.b16 %v6408
    %v6592 = vunpack.c.h.b16 %v6408
    %v6593 = vunpack.c.l.b16 %v6409
    %v6594 = vunpack.c.h.b16 %v6409
    %v6595 = vunpack.c.l.b16 %v6410
    %v6596 = vunpack.c.h.b16 %v6410
    %v6597 = vunpack.c.l.b16 %v6411
    %v6598 = vunpack.c.h.b16 %v6411
    %v6599 = vunpack.c.l.b16 %v6412
    %v6600 = vunpack.c.h.b16 %v6412
    %v6601 = vunpack.c.l.b16 %v6413
    %v6602 = vunpack.c.h.b16 %v6413
    %v6603 = vunpack.c.l.b16 %v6414
    %v6604 = vunpack.c.h.b16 %v6414
    %v6605 = vunpack.c.l.b16 %v6415
    %v6606 = vunpack.c.h.b16 %v6415
    %v6607 = vunpack.c.l.b16 %v6416
    %v6608 = vunpack.c.h.b16 %v6416
    %v6609 = vpack.c.b16 %v6485, %v6481
    %v6610 = vpack.c.b16 %v6486, %v6482
    %v6611 = vpack.c.b16 %v6487, %v6483
    %v6612 = vpack.c.b16 %v6488, %v6484
    %v6613 = vpack.c.b16 %v6493, %v6489
    %v6614 = vpack.c.b16 %v6494, %v6490
    %v6615 = vpack.c.b16 %v6495, %v6491
    %v6616 = vpack.c.b16 %v6496, %v6492
    %v6617 = vpack.c.b16 %v6501, %v6497
    %v6618 = vpack.c.b16 %v6502, %v6498
    %v6619 = vpack.c.b16 %v6503, %v6499
    %v6620 = vpack.c.b16 %v6504, %v6500
    %v6621 = vpack.c.b16 %v6509, %v6505
    %v6622 = vpack.c.b16 %v6510, %v6506
    %v6623 = vpack.c.b16 %v6511, %v6507
    %v6624 = vpack.c.b16 %v6512, %v6508
    %v6625 = vpack.c.b16 %v6517, %v6513
    %v6626 = vpack.c.b16 %v6518, %v6514
    %v6627 = vpack.c.b16 %v6519, %v6515
    %v6628 = vpack.c.b16 %v6520, %v6516
    %v6629 = vpack.c.b16 %v6525, %v6521
    %v6630 = vpack.c.b16 %v6526, %v6522
    %v6631 = vpack.c.b16 %v6527, %v6523
    %v6632 = vpack.c.b16 %v6528, %v6524
    %v6633 = vpack.c.b16 %v6533, %v6529
    %v6634 = vpack.c.b16 %v6534, %v6530
    %v6635 = vpack.c.b16 %v6535, %v6531
    %v6636 = vpack.c.b16 %v6536, %v6532
    %v6637 = vpack.c.b16 %v6541, %v6537
    %v6638 = vpack.c.b16 %v6542, %v6538
    %v6639 = vpack.c.b16 %v6543, %v6539
    %v6640 = vpack.c.b16 %v6544, %v6540
    %v6641 = vpack.c.b16 %v6549, %v6545
    %v6642 = vpack.c.b16 %v6550, %v6546
    %v6643 = vpack.c.b16 %v6551, %v6547
    %v6644 = vpack.c.b16 %v6552, %v6548
    %v6645 = vpack.c.b16 %v6557, %v6553
    %v6646 = vpack.c.b16 %v6558, %v6554
    %v6647 = vpack.c.b16 %v6559, %v6555
    %v6648 = vpack.c.b16 %v6560, %v6556
    %v6649 = vpack.c.b16 %v6565, %v6561
    %v6650 = vpack.c.b16 %v6566, %v6562
    %v6651 = vpack.c.b16 %v6567, %v6563
    %v6652 = vpack.c.b16 %v6568, %v6564
    %v6653 = vpack.c.b16 %v6573, %v6569
    %v6654 = vpack.c.b16 %v6574, %v6570
    %v6655 = vpack.c.b16 %v6575, %v6571
    %v6656 = vpack.c.b16 %v6576, %v6572
    %v6657 = vpack.c.b16 %v6581, %v6577
    %v6658 = vpack.c.b16 %v6582, %v6578
    %v6659 = vpack.c.b16 %v6583, %v6579
    %v6660 = vpack.c.b16 %v6584, %v6580
    %v6661 = vpack.c.b16 %v6589, %v6585
    %v6662 = vpack.c.b16 %v6590, %v6586
    %v6663 = vpack.c.b16 %v6591, %v6587
    %v6664 = vpack.c.b16 %v6592, %v6588
    %v6665 = vpack.c.b16 %v6597, %v6593
    %v6666 = vpack.c.b16 %v6598, %v6594
    %v6667 = vpack.c.b16 %v6599, %v6595
    %v6668 = vpack.c.b16 %v6600, %v6596
    %v6669 = vpack.c.b16 %v6605, %v6601
    %v6670 = vpack.c.b16 %v6606, %v6602
    %v6671 = vpack.c.b16 %v6607, %v6603
    %v6672 = vpack.c.b16 %v6608, %v6604
    %6737 = vmatpush.bf16.msra.mxu0 %v6637
    %6738 = vmatpush.bf16.msra.mxu0 %v6633
    %6739 = vmatpush.bf16.msra.mxu0 %v6629
    %6740 = vmatpush.bf16.msra.mxu0 %v6625
    %6741 = vmatpush.bf16.msra.mxu0 %v6621
    %6742 = vmatpush.bf16.msra.mxu0 %v6617
    %6743 = vmatpush.bf16.msra.mxu0 %v6613
    %6744 = vmatpush.bf16.msra.mxu0 %v6609
    %6745 = vmatmul.bf16.gmra.mxu0 %v5801
    %v6746 = vpop.f32.mrf.mxu0
    %v6747 = vadd.f32 %v1907, %v6746
    %v6748 = vpop.f32.mrf.mxu0
    %6749 = vdwg.mxu0
    %6750 = vmatpush.bf16.msra.mxu0 %v6669
    %6751 = vmatpush.bf16.msra.mxu0 %v6665
    %6752 = vmatpush.bf16.msra.mxu0 %v6661
    %6753 = vmatpush.bf16.msra.mxu0 %v6657
    %6754 = vmatpush.bf16.msra.mxu0 %v6653
    %6755 = vmatpush.bf16.msra.mxu0 %v6649
    %6756 = vmatpush.bf16.msra.mxu0 %v6645
    %6757 = vmatpush.bf16.msra.mxu0 %v6641
    %6758 = vmatmul.bf16.gmra.mxu0 %v5404
    %v6759 = vpop.f32.mrf.mxu0
    %v6760 = vadd.f32 %v6747, %v6759
    %v6761 = vpop.f32.mrf.mxu0
    %6762 = vdwg.mxu0
    %6763 = vmatpush.bf16.msra.mxu0 %v6638
    %6764 = vmatpush.bf16.msra.mxu0 %v6634
    %6765 = vmatpush.bf16.msra.mxu0 %v6630
    %6766 = vmatpush.bf16.msra.mxu0 %v6626
    %6767 = vmatpush.bf16.msra.mxu0 %v6622
    %6768 = vmatpush.bf16.msra.mxu0 %v6618
    %6769 = vmatpush.bf16.msra.mxu0 %v6614
    %6770 = vmatpush.bf16.msra.mxu0 %v6610
    %6771 = vmatmul.bf16.gmra.mxu0 %v5801
    %v6772 = vpop.f32.mrf.mxu0
    %v6773 = vadd.f32 %v1908, %v6772
    %v6774 = vpop.f32.mrf.mxu0
    %6775 = vdwg.mxu0
    %6776 = vmatpush.bf16.msra.mxu0 %v6670
    %6777 = vmatpush.bf16.msra.mxu0 %v6666
    %6778 = vmatpush.bf16.msra.mxu0 %v6662
    %6779 = vmatpush.bf16.msra.mxu0 %v6658
    %6780 = vmatpush.bf16.msra.mxu0 %v6654
    %6781 = vmatpush.bf16.msra.mxu0 %v6650
    %6782 = vmatpush.bf16.msra.mxu0 %v6646
    %6783 = vmatpush.bf16.msra.mxu0 %v6642
    %6784 = vmatmul.bf16.gmra.mxu0 %v5404
    %v6785 = vpop.f32.mrf.mxu0
    %v6786 = vadd.f32 %v6773, %v6785
    %v6787 = vpop.f32.mrf.mxu0
    %6788 = vdwg.mxu0
    %6789 = vmatpush.bf16.msra.mxu0 %v6639
    %6790 = vmatpush.bf16.msra.mxu0 %v6635
    %6791 = vmatpush.bf16.msra.mxu0 %v6631
    %6792 = vmatpush.bf16.msra.mxu0 %v6627
    %6793 = vmatpush.bf16.msra.mxu0 %v6623
    %6794 = vmatpush.bf16.msra.mxu0 %v6619
    %6795 = vmatpush.bf16.msra.mxu0 %v6615
    %6796 = vmatpush.bf16.msra.mxu0 %v6611
    %6797 = vmatmul.bf16.gmra.mxu0 %v5801
    %v6798 = vpop.f32.mrf.mxu0
    %v6799 = vadd.f32 %v1909, %v6798
    %v6800 = vpop.f32.mrf.mxu0
    %6801 = vdwg.mxu0
    %6802 = vmatpush.bf16.msra.mxu0 %v6671
    %6803 = vmatpush.bf16.msra.mxu0 %v6667
    %6804 = vmatpush.bf16.msra.mxu0 %v6663
    %6805 = vmatpush.bf16.msra.mxu0 %v6659
    %6806 = vmatpush.bf16.msra.mxu0 %v6655
    %6807 = vmatpush.bf16.msra.mxu0 %v6651
    %6808 = vmatpush.bf16.msra.mxu0 %v6647
    %6809 = vmatpush.bf16.msra.mxu0 %v6643
    %6810 = vmatmul.bf16.gmra.mxu0 %v5404
    %v6811 = vpop.f32.mrf.mxu0
    %v6812 = vadd.f32 %v6799, %v6811
    %v6813 = vpop.f32.mrf.mxu0
    %6814 = vdwg.mxu0
    %6815 = vmatpush.bf16.msra.mxu0 %v6640
    %6816 = vmatpush.bf16.msra.mxu0 %v6636
    %6817 = vmatpush.bf16.msra.mxu0 %v6632
    %6818 = vmatpush.bf16.msra.mxu0 %v6628
    %6819 = vmatpush.bf16.msra.mxu0 %v6624
    %6820 = vmatpush.bf16.msra.mxu0 %v6620
    %6821 = vmatpush.bf16.msra.mxu0 %v6616
    %6822 = vmatpush.bf16.msra.mxu0 %v6612
    %6823 = vmatmul.bf16.gmra.mxu0 %v5801
    %v6824 = vpop.f32.mrf.mxu0
    %v6825 = vadd.f32 %v1910, %v6824
    %v6826 = vpop.f32.mrf.mxu0
    %6827 = vdwg.mxu0
    %6828 = vmatpush.bf16.msra.mxu0 %v6672
    %6829 = vmatpush.bf16.msra.mxu0 %v6668
    %6830 = vmatpush.bf16.msra.mxu0 %v6664
    %6831 = vmatpush.bf16.msra.mxu0 %v6660
    %6832 = vmatpush.bf16.msra.mxu0 %v6656
    %6833 = vmatpush.bf16.msra.mxu0 %v6652
    %6834 = vmatpush.bf16.msra.mxu0 %v6648
    %6835 = vmatpush.bf16.msra.mxu0 %v6644
    %6836 = vmatmul.bf16.gmra.mxu0 %v5404
    %v6837 = vpop.f32.mrf.mxu0
    %v6838 = vadd.f32 %v6825, %v6837
    %v6839 = vpop.f32.mrf.mxu0
    %6840 = vdwg.mxu0
    %v6841 = vxor.u32 %v6760, 2147483648
    %v6842 = vxor.u32 %v6786, 2147483648
    %v6843 = vxor.u32 %v6812, 2147483648
    %v6844 = vmul.f32 %v6841, 1.442695
    %v6845 = vpow.pop %v6844
    %v6846 = vmul.f32 %v6842, 1.442695
    %v6847 = vpow.pop %v6846
    %v6848 = vmul.f32 %v6843, 1.442695
    %v6849 = vpow.pop %v6848
    %v6850 = vadd.f32 %v6845, 1.0
    %v6851 = vadd.f32 %v6847, 1.0
    %v6852 = vadd.f32 %v6849, 1.0
    %v6853 = vrcp.pop %v6850
    %v6854 = vmul.f32 %v6850, %v6853
    %v6855 = vsub.f32 1.0, %v6854
    %v6856 = vmul.f32 %v6853, %v6855
    %v6857 = vadd.f32 %v6853, %v6856
    %vm6858 = vweird.f32 %v6850
    %vm6859 = vweird.f32 %v6853
    %vm6860 = vmor %vm6858, %vm6859
    %v6861 = vsel %vm6860, %v6853, %v6857
    %v6862 = vand.u32 2147483647, %v6850
    %vm6863 = vcmp.eq.f32.partialorder %v6862, 8.507059e+37
    %v6864 = vand.u32 %v6850, 2147483648
    %v6865 = vor.u32 1.1754944e-38, %v6864
    %v6866 = vsel %vm6863, %v6865, %v6861
    %v6867 = vmul.f32 1.0, %v6866
    %v6868 = vrcp.pop %v6851
    %v6869 = vmul.f32 %v6851, %v6868
    %v6870 = vsub.f32 1.0, %v6869
    %v6871 = vmul.f32 %v6868, %v6870
    %v6872 = vadd.f32 %v6868, %v6871
    %vm6873 = vweird.f32 %v6851
    %vm6874 = vweird.f32 %v6868
    %vm6875 = vmor %vm6873, %vm6874
    %v6876 = vsel %vm6875, %v6868, %v6872
    %v6877 = vand.u32 2147483647, %v6851
    %vm6878 = vcmp.eq.f32.partialorder %v6877, 8.507059e+37
    %v6879 = vand.u32 %v6851, 2147483648
    %v6880 = vor.u32 1.1754944e-38, %v6879
    %v6881 = vsel %vm6878, %v6880, %v6876
    %v6882 = vmul.f32 1.0, %v6881
    %v6883 = vrcp.pop %v6852
    %v6884 = vmul.f32 %v6852, %v6883
    %v6885 = vsub.f32 1.0, %v6884
    %v6886 = vmul.f32 %v6883, %v6885
    %v6887 = vadd.f32 %v6883, %v6886
    %vm6888 = vweird.f32 %v6852
    %vm6889 = vweird.f32 %v6883
    %vm6890 = vmor %vm6888, %vm6889
    %v6891 = vsel %vm6890, %v6883, %v6887
    %v6892 = vand.u32 2147483647, %v6852
    %vm6893 = vcmp.eq.f32.partialorder %v6892, 8.507059e+37
    %v6894 = vand.u32 %v6852, 2147483648
    %v6895 = vor.u32 1.1754944e-38, %v6894
    %v6896 = vsel %vm6893, %v6895, %v6891
    %v6897 = vmul.f32 1.0, %v6896
    %v6898 = vtanh.pop %v6838
    %v6899 = vmul.f32 %v6882, %v5401
    %v6900 = vmul.f32 %v6867, %v6898
    %v6901 = vadd.f32 %v6899, %v6900
    %v6902 = vtanh.pop %v6901
    %v6903 = vmul.f32 %v6897, %v6902
    %v6904 = vpack.c.bf16 %v6903, %v6903
    %v6905 = vld [vmem:[%s7] sm:$0xf]
    %v6906 = vld [vmem:[%s7 + $0x4] sm:$0xf]
    %v6907 = vld [vmem:[%s7 + $0x8] sm:$0xf]
    %v6908 = vld [vmem:[%s7 + $0xc] sm:$0xf]
    %v6909 = vld [vmem:[%s7 + $0x10] sm:$0xf]
    %v6910 = vld [vmem:[%s7 + $0x14] sm:$0xf]
    %v6911 = vld [vmem:[%s7 + $0x18] sm:$0xf]
    %v6912 = vld [vmem:[%s7 + $0x1c] sm:$0xf]
    %v6913 = vld [vmem:[%s7 + $0x20] sm:$0xf]
    %v6914 = vld [vmem:[%s7 + $0x24] sm:$0xf]
    %v6915 = vld [vmem:[%s7 + $0x28] sm:$0xf]
    %v6916 = vld [vmem:[%s7 + $0x2c] sm:$0xf]
    %v6917 = vld [vmem:[%s7 + $0x30] sm:$0xf]
    %v6918 = vld [vmem:[%s7 + $0x34] sm:$0xf]
    %v6919 = vld [vmem:[%s7 + $0x38] sm:$0xf]
    %v6920 = vld [vmem:[%s7 + $0x3c] sm:$0xf]
    %v6937 = vunpack.c.l.b16 %v6905
    %v6938 = vunpack.c.l.b16 %v6906
    %v6939 = vunpack.c.l.b16 %v6907
    %v6940 = vunpack.c.l.b16 %v6908
    %v6941 = vunpack.c.l.b16 %v6909
    %v6942 = vunpack.c.l.b16 %v6910
    %v6943 = vunpack.c.l.b16 %v6911
    %v6944 = vunpack.c.l.b16 %v6912
    %v6945 = vunpack.c.l.b16 %v6913
    %v6946 = vunpack.c.l.b16 %v6914
    %v6947 = vunpack.c.l.b16 %v6915
    %v6948 = vunpack.c.l.b16 %v6916
    %v6949 = vunpack.c.l.b16 %v6917
    %v6950 = vunpack.c.l.b16 %v6918
    %v6951 = vunpack.c.l.b16 %v6919
    %v6952 = vunpack.c.l.b16 %v6920
    %v6953 = vpack.c.b16 %v6938, %v6937
    %v6954 = vpack.c.b16 %v6940, %v6939
    %v6955 = vpack.c.b16 %v6942, %v6941
    %v6956 = vpack.c.b16 %v6944, %v6943
    %v6957 = vpack.c.b16 %v6946, %v6945
    %v6958 = vpack.c.b16 %v6948, %v6947
    %v6959 = vpack.c.b16 %v6950, %v6949
    %v6960 = vpack.c.b16 %v6952, %v6951
    %6969 = vmatpush.bf16.msra.mxu0 %v6960
    %6970 = vmatpush.bf16.msra.mxu0 %v6959
    %6971 = vmatpush.bf16.msra.mxu0 %v6958
    %6972 = vmatpush.bf16.msra.mxu0 %v6957
    %6973 = vmatpush.bf16.msra.mxu0 %v6956
    %6974 = vmatpush.bf16.msra.mxu0 %v6955
    %6975 = vmatpush.bf16.msra.mxu0 %v6954
    %6976 = vmatpush.bf16.msra.mxu0 %v6953
    %6977 = vmatmul.bf16.gmra.mxu0 %v6904
    %v6978 = vpop.f32.mrf.mxu0
    %v6979 = vadd.f32 %v2420, %v6978
    %v6980 = vpop.f32.mrf.mxu0
    %6981 = vdwg.mxu0
    %s6982 = scalar_lea.vmem %s11, 24
    %6983 = vst [vmem:[%s6982] sm:$0xff] %v6979
    %s6984 = scalar_lea.vmem [#allocation2], 192
    %v6985 = vld [vmem:[%s6984] sm:$0xff]
    %v6986 = vld [vmem:[%s6984 + $0x8] sm:$0xff]
    %v6987 = vld [vmem:[%s6984 + $0x10] sm:$0xff]
    %v6988 = vld [vmem:[%s6984 + $0x18] sm:$0xff]
    %v6989 = vpack.c.bf16 %v5800, %v5800
    %v6990 = vld [vmem:[#allocation5] sm:$0xff]
    %v6991 = vld [vmem:[#allocation5 + $0x8] sm:$0xff]
    %v6992 = vld [vmem:[#allocation5 + $0x10] sm:$0xff]
    %v6993 = vld [vmem:[#allocation5 + $0x18] sm:$0xff]
    %v6994 = vld [vmem:[#allocation5 + $0x20] sm:$0xff]
    %v6995 = vld [vmem:[#allocation5 + $0x28] sm:$0xff]
    %v6996 = vld [vmem:[#allocation5 + $0x30] sm:$0xff]
    %v6997 = vld [vmem:[#allocation5 + $0x38] sm:$0xff]
    %v6998 = vld [vmem:[#allocation5 + $0x40] sm:$0xff]
    %v6999 = vld [vmem:[#allocation5 + $0x48] sm:$0xff]
    %v7000 = vld [vmem:[#allocation5 + $0x50] sm:$0xff]
    %v7001 = vld [vmem:[#allocation5 + $0x58] sm:$0xff]
    %v7002 = vld [vmem:[#allocation5 + $0x60] sm:$0xff]
    %v7003 = vld [vmem:[#allocation5 + $0x68] sm:$0xff]
    %v7004 = vld [vmem:[#allocation5 + $0x70] sm:$0xff]
    %v7005 = vld [vmem:[#allocation5 + $0x78] sm:$0xff]
    %v7006 = vld [vmem:[#allocation5 + $0x80] sm:$0xff]
    %v7007 = vld [vmem:[#allocation5 + $0x88] sm:$0xff]
    %v7008 = vld [vmem:[#allocation5 + $0x90] sm:$0xff]
    %v7009 = vld [vmem:[#allocation5 + $0x98] sm:$0xff]
    %v7010 = vld [vmem:[#allocation5 + $0xa0] sm:$0xff]
    %v7011 = vld [vmem:[#allocation5 + $0xa8] sm:$0xff]
    %v7012 = vld [vmem:[#allocation5 + $0xb0] sm:$0xff]
    %v7013 = vld [vmem:[#allocation5 + $0xb8] sm:$0xff]
    %v7014 = vld [vmem:[#allocation5 + $0xc0] sm:$0xff]
    %v7015 = vld [vmem:[#allocation5 + $0xc8] sm:$0xff]
    %v7016 = vld [vmem:[#allocation5 + $0xd0] sm:$0xff]
    %v7017 = vld [vmem:[#allocation5 + $0xd8] sm:$0xff]
    %v7018 = vld [vmem:[#allocation5 + $0xe0] sm:$0xff]
    %v7019 = vld [vmem:[#allocation5 + $0xe8] sm:$0xff]
    %v7020 = vld [vmem:[#allocation5 + $0xf0] sm:$0xff]
    %v7021 = vld [vmem:[#allocation5 + $0xf8] sm:$0xff]
    %v7054 = vunpack.c.l.b16 %v6990
    %v7055 = vunpack.c.h.b16 %v6990
    %v7056 = vunpack.c.l.b16 %v6991
    %v7057 = vunpack.c.h.b16 %v6991
    %v7058 = vunpack.c.l.b16 %v6992
    %v7059 = vunpack.c.h.b16 %v6992
    %v7060 = vunpack.c.l.b16 %v6993
    %v7061 = vunpack.c.h.b16 %v6993
    %v7062 = vunpack.c.l.b16 %v6994
    %v7063 = vunpack.c.h.b16 %v6994
    %v7064 = vunpack.c.l.b16 %v6995
    %v7065 = vunpack.c.h.b16 %v6995
    %v7066 = vunpack.c.l.b16 %v6996
    %v7067 = vunpack.c.h.b16 %v6996
    %v7068 = vunpack.c.l.b16 %v6997
    %v7069 = vunpack.c.h.b16 %v6997
    %v7070 = vunpack.c.l.b16 %v6998
    %v7071 = vunpack.c.h.b16 %v6998
    %v7072 = vunpack.c.l.b16 %v6999
    %v7073 = vunpack.c.h.b16 %v6999
    %v7074 = vunpack.c.l.b16 %v7000
    %v7075 = vunpack.c.h.b16 %v7000
    %v7076 = vunpack.c.l.b16 %v7001
    %v7077 = vunpack.c.h.b16 %v7001
    %v7078 = vunpack.c.l.b16 %v7002
    %v7079 = vunpack.c.h.b16 %v7002
    %v7080 = vunpack.c.l.b16 %v7003
    %v7081 = vunpack.c.h.b16 %v7003
    %v7082 = vunpack.c.l.b16 %v7004
    %v7083 = vunpack.c.h.b16 %v7004
    %v7084 = vunpack.c.l.b16 %v7005
    %v7085 = vunpack.c.h.b16 %v7005
    %v7086 = vunpack.c.l.b16 %v7006
    %v7087 = vunpack.c.h.b16 %v7006
    %v7088 = vunpack.c.l.b16 %v7007
    %v7089 = vunpack.c.h.b16 %v7007
    %v7090 = vunpack.c.l.b16 %v7008
    %v7091 = vunpack.c.h.b16 %v7008
    %v7092 = vunpack.c.l.b16 %v7009
    %v7093 = vunpack.c.h.b16 %v7009
    %v7094 = vunpack.c.l.b16 %v7010
    %v7095 = vunpack.c.h.b16 %v7010
    %v7096 = vunpack.c.l.b16 %v7011
    %v7097 = vunpack.c.h.b16 %v7011
    %v7098 = vunpack.c.l.b16 %v7012
    %v7099 = vunpack.c.h.b16 %v7012
    %v7100 = vunpack.c.l.b16 %v7013
    %v7101 = vunpack.c.h.b16 %v7013
    %v7102 = vunpack.c.l.b16 %v7014
    %v7103 = vunpack.c.h.b16 %v7014
    %v7104 = vunpack.c.l.b16 %v7015
    %v7105 = vunpack.c.h.b16 %v7015
    %v7106 = vunpack.c.l.b16 %v7016
    %v7107 = vunpack.c.h.b16 %v7016
    %v7108 = vunpack.c.l.b16 %v7017
    %v7109 = vunpack.c.h.b16 %v7017
    %v7110 = vunpack.c.l.b16 %v7018
    %v7111 = vunpack.c.h.b16 %v7018
    %v7112 = vunpack.c.l.b16 %v7019
    %v7113 = vunpack.c.h.b16 %v7019
    %v7114 = vunpack.c.l.b16 %v7020
    %v7115 = vunpack.c.h.b16 %v7020
    %v7116 = vunpack.c.l.b16 %v7021
    %v7117 = vunpack.c.h.b16 %v7021
    %v7118 = vpack.c.b16 %v7058, %v7054
    %v7119 = vpack.c.b16 %v7059, %v7055
    %v7120 = vpack.c.b16 %v7060, %v7056
    %v7121 = vpack.c.b16 %v7061, %v7057
    %v7122 = vpack.c.b16 %v7066, %v7062
    %v7123 = vpack.c.b16 %v7067, %v7063
    %v7124 = vpack.c.b16 %v7068, %v7064
    %v7125 = vpack.c.b16 %v7069, %v7065
    %v7126 = vpack.c.b16 %v7074, %v7070
    %v7127 = vpack.c.b16 %v7075, %v7071
    %v7128 = vpack.c.b16 %v7076, %v7072
    %v7129 = vpack.c.b16 %v7077, %v7073
    %v7130 = vpack.c.b16 %v7082, %v7078
    %v7131 = vpack.c.b16 %v7083, %v7079
    %v7132 = vpack.c.b16 %v7084, %v7080
    %v7133 = vpack.c.b16 %v7085, %v7081
    %v7134 = vpack.c.b16 %v7090, %v7086
    %v7135 = vpack.c.b16 %v7091, %v7087
    %v7136 = vpack.c.b16 %v7092, %v7088
    %v7137 = vpack.c.b16 %v7093, %v7089
    %v7138 = vpack.c.b16 %v7098, %v7094
    %v7139 = vpack.c.b16 %v7099, %v7095
    %v7140 = vpack.c.b16 %v7100, %v7096
    %v7141 = vpack.c.b16 %v7101, %v7097
    %v7142 = vpack.c.b16 %v7106, %v7102
    %v7143 = vpack.c.b16 %v7107, %v7103
    %v7144 = vpack.c.b16 %v7108, %v7104
    %v7145 = vpack.c.b16 %v7109, %v7105
    %v7146 = vpack.c.b16 %v7114, %v7110
    %v7147 = vpack.c.b16 %v7115, %v7111
    %v7148 = vpack.c.b16 %v7116, %v7112
    %v7149 = vpack.c.b16 %v7117, %v7113
    %7182 = vmatpush.bf16.msra.mxu0 %v7146
    %7183 = vmatpush.bf16.msra.mxu0 %v7142
    %7184 = vmatpush.bf16.msra.mxu0 %v7138
    %7185 = vmatpush.bf16.msra.mxu0 %v7134
    %7186 = vmatpush.bf16.msra.mxu0 %v7130
    %7187 = vmatpush.bf16.msra.mxu0 %v7126
    %7188 = vmatpush.bf16.msra.mxu0 %v7122
    %7189 = vmatpush.bf16.msra.mxu0 %v7118
    %7190 = vmatmul.bf16.gmra.mxu0 %v6989
    %v7191 = vpop.f32.mrf.mxu0
    %v7192 = vadd.f32 0.0, %v7191
    %v7193 = vpop.f32.mrf.mxu0
    %7194 = vdwg.mxu0
    %7195 = vmatpush.bf16.msra.mxu0 %v7147
    %7196 = vmatpush.bf16.msra.mxu0 %v7143
    %7197 = vmatpush.bf16.msra.mxu0 %v7139
    %7198 = vmatpush.bf16.msra.mxu0 %v7135
    %7199 = vmatpush.bf16.msra.mxu0 %v7131
    %7200 = vmatpush.bf16.msra.mxu0 %v7127
    %7201 = vmatpush.bf16.msra.mxu0 %v7123
    %7202 = vmatpush.bf16.msra.mxu0 %v7119
    %7203 = vmatmul.bf16.gmra.mxu0 %v6989
    %v7204 = vpop.f32.mrf.mxu0
    %v7205 = vadd.f32 0.0, %v7204
    %v7206 = vpop.f32.mrf.mxu0
    %7207 = vdwg.mxu0
    %7208 = vmatpush.bf16.msra.mxu0 %v7148
    %7209 = vmatpush.bf16.msra.mxu0 %v7144
    %7210 = vmatpush.bf16.msra.mxu0 %v7140
    %7211 = vmatpush.bf16.msra.mxu0 %v7136
    %7212 = vmatpush.bf16.msra.mxu0 %v7132
    %7213 = vmatpush.bf16.msra.mxu0 %v7128
    %7214 = vmatpush.bf16.msra.mxu0 %v7124
    %7215 = vmatpush.bf16.msra.mxu0 %v7120
    %7216 = vmatmul.bf16.gmra.mxu0 %v6989
    %v7217 = vpop.f32.mrf.mxu0
    %v7218 = vadd.f32 0.0, %v7217
    %v7219 = vpop.f32.mrf.mxu0
    %7220 = vdwg.mxu0
    %7221 = vmatpush.bf16.msra.mxu0 %v7149
    %7222 = vmatpush.bf16.msra.mxu0 %v7145
    %7223 = vmatpush.bf16.msra.mxu0 %v7141
    %7224 = vmatpush.bf16.msra.mxu0 %v7137
    %7225 = vmatpush.bf16.msra.mxu0 %v7133
    %7226 = vmatpush.bf16.msra.mxu0 %v7129
    %7227 = vmatpush.bf16.msra.mxu0 %v7125
    %7228 = vmatpush.bf16.msra.mxu0 %v7121
    %7229 = vmatmul.bf16.gmra.mxu0 %v6989
    %v7230 = vpop.f32.mrf.mxu0
    %v7231 = vadd.f32 0.0, %v7230
    %v7232 = vpop.f32.mrf.mxu0
    %7233 = vdwg.mxu0
    %v7234 = vadd.f32 %v6985, %v7192
    %v7235 = vadd.f32 %v6986, %v7205
    %v7236 = vadd.f32 %v6987, %v7218
    %v7237 = vadd.f32 %v6988, %v7231
    %v7238 = vxor.u32 %v7234, 2147483648
    %v7239 = vxor.u32 %v7235, 2147483648
    %v7240 = vxor.u32 %v7236, 2147483648
    %v7241 = vmul.f32 %v7238, 1.442695
    %v7242 = vpow.pop %v7241
    %v7243 = vmul.f32 %v7239, 1.442695
    %v7244 = vpow.pop %v7243
    %v7245 = vmul.f32 %v7240, 1.442695
    %v7246 = vpow.pop %v7245
    %v7247 = vadd.f32 %v7242, 1.0
    %v7248 = vadd.f32 %v7244, 1.0
    %v7249 = vadd.f32 %v7246, 1.0
    %v7250 = vrcp.pop %v7247
    %v7251 = vmul.f32 %v7247, %v7250
    %v7252 = vsub.f32 1.0, %v7251
    %v7253 = vmul.f32 %v7250, %v7252
    %v7254 = vadd.f32 %v7250, %v7253
    %vm7255 = vweird.f32 %v7247
    %vm7256 = vweird.f32 %v7250
    %vm7257 = vmor %vm7255, %vm7256
    %v7258 = vsel %vm7257, %v7250, %v7254
    %v7259 = vand.u32 2147483647, %v7247
    %vm7260 = vcmp.eq.f32.partialorder %v7259, 8.507059e+37
    %v7261 = vand.u32 %v7247, 2147483648
    %v7262 = vor.u32 1.1754944e-38, %v7261
    %v7263 = vsel %vm7260, %v7262, %v7258
    %v7264 = vmul.f32 1.0, %v7263
    %v7265 = vrcp.pop %v7248
    %v7266 = vmul.f32 %v7248, %v7265
    %v7267 = vsub.f32 1.0, %v7266
    %v7268 = vmul.f32 %v7265, %v7267
    %v7269 = vadd.f32 %v7265, %v7268
    %vm7270 = vweird.f32 %v7248
    %vm7271 = vweird.f32 %v7265
    %vm7272 = vmor %vm7270, %vm7271
    %v7273 = vsel %vm7272, %v7265, %v7269
    %v7274 = vand.u32 2147483647, %v7248
    %vm7275 = vcmp.eq.f32.partialorder %v7274, 8.507059e+37
    %v7276 = vand.u32 %v7248, 2147483648
    %v7277 = vor.u32 1.1754944e-38, %v7276
    %v7278 = vsel %vm7275, %v7277, %v7273
    %v7279 = vmul.f32 1.0, %v7278
    %v7280 = vrcp.pop %v7249
    %v7281 = vmul.f32 %v7249, %v7280
    %v7282 = vsub.f32 1.0, %v7281
    %v7283 = vmul.f32 %v7280, %v7282
    %v7284 = vadd.f32 %v7280, %v7283
    %vm7285 = vweird.f32 %v7249
    %vm7286 = vweird.f32 %v7280
    %vm7287 = vmor %vm7285, %vm7286
    %v7288 = vsel %vm7287, %v7280, %v7284
    %v7289 = vand.u32 2147483647, %v7249
    %vm7290 = vcmp.eq.f32.partialorder %v7289, 8.507059e+37
    %v7291 = vand.u32 %v7249, 2147483648
    %v7292 = vor.u32 1.1754944e-38, %v7291
    %v7293 = vsel %vm7290, %v7292, %v7288
    %v7294 = vmul.f32 1.0, %v7293
    %v7295 = vtanh.pop %v7237
    %v7296 = vmul.f32 %v7279, %v5798
    %v7297 = vmul.f32 %v7264, %v7295
    %v7298 = vadd.f32 %v7296, %v7297
    %v7299 = vtanh.pop %v7298
    %v7300 = vmul.f32 %v7294, %v7299
    %v7301 = vpack.c.bf16 %v6352, %v6352
    %v7302 = vld [vmem:[#allocation7] sm:$0xff]
    %v7303 = vld [vmem:[#allocation7 + $0x8] sm:$0xff]
    %v7304 = vld [vmem:[#allocation7 + $0x10] sm:$0xff]
    %v7305 = vld [vmem:[#allocation7 + $0x18] sm:$0xff]
    %v7306 = vld [vmem:[#allocation7 + $0x20] sm:$0xff]
    %v7307 = vld [vmem:[#allocation7 + $0x28] sm:$0xff]
    %v7308 = vld [vmem:[#allocation7 + $0x30] sm:$0xff]
    %v7309 = vld [vmem:[#allocation7 + $0x38] sm:$0xff]
    %v7310 = vld [vmem:[#allocation7 + $0x40] sm:$0xff]
    %v7311 = vld [vmem:[#allocation7 + $0x48] sm:$0xff]
    %v7312 = vld [vmem:[#allocation7 + $0x50] sm:$0xff]
    %v7313 = vld [vmem:[#allocation7 + $0x58] sm:$0xff]
    %v7314 = vld [vmem:[#allocation7 + $0x60] sm:$0xff]
    %v7315 = vld [vmem:[#allocation7 + $0x68] sm:$0xff]
    %v7316 = vld [vmem:[#allocation7 + $0x70] sm:$0xff]
    %v7317 = vld [vmem:[#allocation7 + $0x78] sm:$0xff]
    %v7318 = vld [vmem:[#allocation7 + $0x80] sm:$0xff]
    %v7319 = vld [vmem:[#allocation7 + $0x88] sm:$0xff]
    %v7320 = vld [vmem:[#allocation7 + $0x90] sm:$0xff]
    %v7321 = vld [vmem:[#allocation7 + $0x98] sm:$0xff]
    %v7322 = vld [vmem:[#allocation7 + $0xa0] sm:$0xff]
    %v7323 = vld [vmem:[#allocation7 + $0xa8] sm:$0xff]
    %v7324 = vld [vmem:[#allocation7 + $0xb0] sm:$0xff]
    %v7325 = vld [vmem:[#allocation7 + $0xb8] sm:$0xff]
    %v7326 = vld [vmem:[#allocation7 + $0xc0] sm:$0xff]
    %v7327 = vld [vmem:[#allocation7 + $0xc8] sm:$0xff]
    %v7328 = vld [vmem:[#allocation7 + $0xd0] sm:$0xff]
    %v7329 = vld [vmem:[#allocation7 + $0xd8] sm:$0xff]
    %v7330 = vld [vmem:[#allocation7 + $0xe0] sm:$0xff]
    %v7331 = vld [vmem:[#allocation7 + $0xe8] sm:$0xff]
    %v7332 = vld [vmem:[#allocation7 + $0xf0] sm:$0xff]
    %v7333 = vld [vmem:[#allocation7 + $0xf8] sm:$0xff]
    %v7334 = vld [vmem:[#allocation7 + $0x100] sm:$0xff]
    %v7335 = vld [vmem:[#allocation7 + $0x108] sm:$0xff]
    %v7336 = vld [vmem:[#allocation7 + $0x110] sm:$0xff]
    %v7337 = vld [vmem:[#allocation7 + $0x118] sm:$0xff]
    %v7338 = vld [vmem:[#allocation7 + $0x120] sm:$0xff]
    %v7339 = vld [vmem:[#allocation7 + $0x128] sm:$0xff]
    %v7340 = vld [vmem:[#allocation7 + $0x130] sm:$0xff]
    %v7341 = vld [vmem:[#allocation7 + $0x138] sm:$0xff]
    %v7342 = vld [vmem:[#allocation7 + $0x140] sm:$0xff]
    %v7343 = vld [vmem:[#allocation7 + $0x148] sm:$0xff]
    %v7344 = vld [vmem:[#allocation7 + $0x150] sm:$0xff]
    %v7345 = vld [vmem:[#allocation7 + $0x158] sm:$0xff]
    %v7346 = vld [vmem:[#allocation7 + $0x160] sm:$0xff]
    %v7347 = vld [vmem:[#allocation7 + $0x168] sm:$0xff]
    %v7348 = vld [vmem:[#allocation7 + $0x170] sm:$0xff]
    %v7349 = vld [vmem:[#allocation7 + $0x178] sm:$0xff]
    %v7350 = vld [vmem:[#allocation7 + $0x180] sm:$0xff]
    %v7351 = vld [vmem:[#allocation7 + $0x188] sm:$0xff]
    %v7352 = vld [vmem:[#allocation7 + $0x190] sm:$0xff]
    %v7353 = vld [vmem:[#allocation7 + $0x198] sm:$0xff]
    %v7354 = vld [vmem:[#allocation7 + $0x1a0] sm:$0xff]
    %v7355 = vld [vmem:[#allocation7 + $0x1a8] sm:$0xff]
    %v7356 = vld [vmem:[#allocation7 + $0x1b0] sm:$0xff]
    %v7357 = vld [vmem:[#allocation7 + $0x1b8] sm:$0xff]
    %v7358 = vld [vmem:[#allocation7 + $0x1c0] sm:$0xff]
    %v7359 = vld [vmem:[#allocation7 + $0x1c8] sm:$0xff]
    %v7360 = vld [vmem:[#allocation7 + $0x1d0] sm:$0xff]
    %v7361 = vld [vmem:[#allocation7 + $0x1d8] sm:$0xff]
    %v7362 = vld [vmem:[#allocation7 + $0x1e0] sm:$0xff]
    %v7363 = vld [vmem:[#allocation7 + $0x1e8] sm:$0xff]
    %v7364 = vld [vmem:[#allocation7 + $0x1f0] sm:$0xff]
    %v7365 = vld [vmem:[#allocation7 + $0x1f8] sm:$0xff]
    %v7430 = vunpack.c.l.b16 %v7302
    %v7431 = vunpack.c.h.b16 %v7302
    %v7432 = vunpack.c.l.b16 %v7303
    %v7433 = vunpack.c.h.b16 %v7303
    %v7434 = vunpack.c.l.b16 %v7304
    %v7435 = vunpack.c.h.b16 %v7304
    %v7436 = vunpack.c.l.b16 %v7305
    %v7437 = vunpack.c.h.b16 %v7305
    %v7438 = vunpack.c.l.b16 %v7306
    %v7439 = vunpack.c.h.b16 %v7306
    %v7440 = vunpack.c.l.b16 %v7307
    %v7441 = vunpack.c.h.b16 %v7307
    %v7442 = vunpack.c.l.b16 %v7308
    %v7443 = vunpack.c.h.b16 %v7308
    %v7444 = vunpack.c.l.b16 %v7309
    %v7445 = vunpack.c.h.b16 %v7309
    %v7446 = vunpack.c.l.b16 %v7310
    %v7447 = vunpack.c.h.b16 %v7310
    %v7448 = vunpack.c.l.b16 %v7311
    %v7449 = vunpack.c.h.b16 %v7311
    %v7450 = vunpack.c.l.b16 %v7312
    %v7451 = vunpack.c.h.b16 %v7312
    %v7452 = vunpack.c.l.b16 %v7313
    %v7453 = vunpack.c.h.b16 %v7313
    %v7454 = vunpack.c.l.b16 %v7314
    %v7455 = vunpack.c.h.b16 %v7314
    %v7456 = vunpack.c.l.b16 %v7315
    %v7457 = vunpack.c.h.b16 %v7315
    %v7458 = vunpack.c.l.b16 %v7316
    %v7459 = vunpack.c.h.b16 %v7316
    %v7460 = vunpack.c.l.b16 %v7317
    %v7461 = vunpack.c.h.b16 %v7317
    %v7462 = vunpack.c.l.b16 %v7318
    %v7463 = vunpack.c.h.b16 %v7318
    %v7464 = vunpack.c.l.b16 %v7319
    %v7465 = vunpack.c.h.b16 %v7319
    %v7466 = vunpack.c.l.b16 %v7320
    %v7467 = vunpack.c.h.b16 %v7320
    %v7468 = vunpack.c.l.b16 %v7321
    %v7469 = vunpack.c.h.b16 %v7321
    %v7470 = vunpack.c.l.b16 %v7322
    %v7471 = vunpack.c.h.b16 %v7322
    %v7472 = vunpack.c.l.b16 %v7323
    %v7473 = vunpack.c.h.b16 %v7323
    %v7474 = vunpack.c.l.b16 %v7324
    %v7475 = vunpack.c.h.b16 %v7324
    %v7476 = vunpack.c.l.b16 %v7325
    %v7477 = vunpack.c.h.b16 %v7325
    %v7478 = vunpack.c.l.b16 %v7326
    %v7479 = vunpack.c.h.b16 %v7326
    %v7480 = vunpack.c.l.b16 %v7327
    %v7481 = vunpack.c.h.b16 %v7327
    %v7482 = vunpack.c.l.b16 %v7328
    %v7483 = vunpack.c.h.b16 %v7328
    %v7484 = vunpack.c.l.b16 %v7329
    %v7485 = vunpack.c.h.b16 %v7329
    %v7486 = vunpack.c.l.b16 %v7330
    %v7487 = vunpack.c.h.b16 %v7330
    %v7488 = vunpack.c.l.b16 %v7331
    %v7489 = vunpack.c.h.b16 %v7331
    %v7490 = vunpack.c.l.b16 %v7332
    %v7491 = vunpack.c.h.b16 %v7332
    %v7492 = vunpack.c.l.b16 %v7333
    %v7493 = vunpack.c.h.b16 %v7333
    %v7494 = vunpack.c.l.b16 %v7334
    %v7495 = vunpack.c.h.b16 %v7334
    %v7496 = vunpack.c.l.b16 %v7335
    %v7497 = vunpack.c.h.b16 %v7335
    %v7498 = vunpack.c.l.b16 %v7336
    %v7499 = vunpack.c.h.b16 %v7336
    %v7500 = vunpack.c.l.b16 %v7337
    %v7501 = vunpack.c.h.b16 %v7337
    %v7502 = vunpack.c.l.b16 %v7338
    %v7503 = vunpack.c.h.b16 %v7338
    %v7504 = vunpack.c.l.b16 %v7339
    %v7505 = vunpack.c.h.b16 %v7339
    %v7506 = vunpack.c.l.b16 %v7340
    %v7507 = vunpack.c.h.b16 %v7340
    %v7508 = vunpack.c.l.b16 %v7341
    %v7509 = vunpack.c.h.b16 %v7341
    %v7510 = vunpack.c.l.b16 %v7342
    %v7511 = vunpack.c.h.b16 %v7342
    %v7512 = vunpack.c.l.b16 %v7343
    %v7513 = vunpack.c.h.b16 %v7343
    %v7514 = vunpack.c.l.b16 %v7344
    %v7515 = vunpack.c.h.b16 %v7344
    %v7516 = vunpack.c.l.b16 %v7345
    %v7517 = vunpack.c.h.b16 %v7345
    %v7518 = vunpack.c.l.b16 %v7346
    %v7519 = vunpack.c.h.b16 %v7346
    %v7520 = vunpack.c.l.b16 %v7347
    %v7521 = vunpack.c.h.b16 %v7347
    %v7522 = vunpack.c.l.b16 %v7348
    %v7523 = vunpack.c.h.b16 %v7348
    %v7524 = vunpack.c.l.b16 %v7349
    %v7525 = vunpack.c.h.b16 %v7349
    %v7526 = vunpack.c.l.b16 %v7350
    %v7527 = vunpack.c.h.b16 %v7350
    %v7528 = vunpack.c.l.b16 %v7351
    %v7529 = vunpack.c.h.b16 %v7351
    %v7530 = vunpack.c.l.b16 %v7352
    %v7531 = vunpack.c.h.b16 %v7352
    %v7532 = vunpack.c.l.b16 %v7353
    %v7533 = vunpack.c.h.b16 %v7353
    %v7534 = vunpack.c.l.b16 %v7354
    %v7535 = vunpack.c.h.b16 %v7354
    %v7536 = vunpack.c.l.b16 %v7355
    %v7537 = vunpack.c.h.b16 %v7355
    %v7538 = vunpack.c.l.b16 %v7356
    %v7539 = vunpack.c.h.b16 %v7356
    %v7540 = vunpack.c.l.b16 %v7357
    %v7541 = vunpack.c.h.b16 %v7357
    %v7542 = vunpack.c.l.b16 %v7358
    %v7543 = vunpack.c.h.b16 %v7358
    %v7544 = vunpack.c.l.b16 %v7359
    %v7545 = vunpack.c.h.b16 %v7359
    %v7546 = vunpack.c.l.b16 %v7360
    %v7547 = vunpack.c.h.b16 %v7360
    %v7548 = vunpack.c.l.b16 %v7361
    %v7549 = vunpack.c.h.b16 %v7361
    %v7550 = vunpack.c.l.b16 %v7362
    %v7551 = vunpack.c.h.b16 %v7362
    %v7552 = vunpack.c.l.b16 %v7363
    %v7553 = vunpack.c.h.b16 %v7363
    %v7554 = vunpack.c.l.b16 %v7364
    %v7555 = vunpack.c.h.b16 %v7364
    %v7556 = vunpack.c.l.b16 %v7365
    %v7557 = vunpack.c.h.b16 %v7365
    %v7558 = vpack.c.b16 %v7434, %v7430
    %v7559 = vpack.c.b16 %v7435, %v7431
    %v7560 = vpack.c.b16 %v7436, %v7432
    %v7561 = vpack.c.b16 %v7437, %v7433
    %v7562 = vpack.c.b16 %v7442, %v7438
    %v7563 = vpack.c.b16 %v7443, %v7439
    %v7564 = vpack.c.b16 %v7444, %v7440
    %v7565 = vpack.c.b16 %v7445, %v7441
    %v7566 = vpack.c.b16 %v7450, %v7446
    %v7567 = vpack.c.b16 %v7451, %v7447
    %v7568 = vpack.c.b16 %v7452, %v7448
    %v7569 = vpack.c.b16 %v7453, %v7449
    %v7570 = vpack.c.b16 %v7458, %v7454
    %v7571 = vpack.c.b16 %v7459, %v7455
    %v7572 = vpack.c.b16 %v7460, %v7456
    %v7573 = vpack.c.b16 %v7461, %v7457
    %v7574 = vpack.c.b16 %v7466, %v7462
    %v7575 = vpack.c.b16 %v7467, %v7463
    %v7576 = vpack.c.b16 %v7468, %v7464
    %v7577 = vpack.c.b16 %v7469, %v7465
    %v7578 = vpack.c.b16 %v7474, %v7470
    %v7579 = vpack.c.b16 %v7475, %v7471
    %v7580 = vpack.c.b16 %v7476, %v7472
    %v7581 = vpack.c.b16 %v7477, %v7473
    %v7582 = vpack.c.b16 %v7482, %v7478
    %v7583 = vpack.c.b16 %v7483, %v7479
    %v7584 = vpack.c.b16 %v7484, %v7480
    %v7585 = vpack.c.b16 %v7485, %v7481
    %v7586 = vpack.c.b16 %v7490, %v7486
    %v7587 = vpack.c.b16 %v7491, %v7487
    %v7588 = vpack.c.b16 %v7492, %v7488
    %v7589 = vpack.c.b16 %v7493, %v7489
    %v7590 = vpack.c.b16 %v7498, %v7494
    %v7591 = vpack.c.b16 %v7499, %v7495
    %v7592 = vpack.c.b16 %v7500, %v7496
    %v7593 = vpack.c.b16 %v7501, %v7497
    %v7594 = vpack.c.b16 %v7506, %v7502
    %v7595 = vpack.c.b16 %v7507, %v7503
    %v7596 = vpack.c.b16 %v7508, %v7504
    %v7597 = vpack.c.b16 %v7509, %v7505
    %v7598 = vpack.c.b16 %v7514, %v7510
    %v7599 = vpack.c.b16 %v7515, %v7511
    %v7600 = vpack.c.b16 %v7516, %v7512
    %v7601 = vpack.c.b16 %v7517, %v7513
    %v7602 = vpack.c.b16 %v7522, %v7518
    %v7603 = vpack.c.b16 %v7523, %v7519
    %v7604 = vpack.c.b16 %v7524, %v7520
    %v7605 = vpack.c.b16 %v7525, %v7521
    %v7606 = vpack.c.b16 %v7530, %v7526
    %v7607 = vpack.c.b16 %v7531, %v7527
    %v7608 = vpack.c.b16 %v7532, %v7528
    %v7609 = vpack.c.b16 %v7533, %v7529
    %v7610 = vpack.c.b16 %v7538, %v7534
    %v7611 = vpack.c.b16 %v7539, %v7535
    %v7612 = vpack.c.b16 %v7540, %v7536
    %v7613 = vpack.c.b16 %v7541, %v7537
    %v7614 = vpack.c.b16 %v7546, %v7542
    %v7615 = vpack.c.b16 %v7547, %v7543
    %v7616 = vpack.c.b16 %v7548, %v7544
    %v7617 = vpack.c.b16 %v7549, %v7545
    %v7618 = vpack.c.b16 %v7554, %v7550
    %v7619 = vpack.c.b16 %v7555, %v7551
    %v7620 = vpack.c.b16 %v7556, %v7552
    %v7621 = vpack.c.b16 %v7557, %v7553
    %7686 = vmatpush.bf16.msra.mxu0 %v7586
    %7687 = vmatpush.bf16.msra.mxu0 %v7582
    %7688 = vmatpush.bf16.msra.mxu0 %v7578
    %7689 = vmatpush.bf16.msra.mxu0 %v7574
    %7690 = vmatpush.bf16.msra.mxu0 %v7570
    %7691 = vmatpush.bf16.msra.mxu0 %v7566
    %7692 = vmatpush.bf16.msra.mxu0 %v7562
    %7693 = vmatpush.bf16.msra.mxu0 %v7558
    %7694 = vmatmul.bf16.gmra.mxu0 %v6989
    %v7695 = vpop.f32.mrf.mxu0
    %v7696 = vadd.f32 %v1052, %v7695
    %v7697 = vpop.f32.mrf.mxu0
    %7698 = vdwg.mxu0
    %7699 = vmatpush.bf16.msra.mxu0 %v7618
    %7700 = vmatpush.bf16.msra.mxu0 %v7614
    %7701 = vmatpush.bf16.msra.mxu0 %v7610
    %7702 = vmatpush.bf16.msra.mxu0 %v7606
    %7703 = vmatpush.bf16.msra.mxu0 %v7602
    %7704 = vmatpush.bf16.msra.mxu0 %v7598
    %7705 = vmatpush.bf16.msra.mxu0 %v7594
    %7706 = vmatpush.bf16.msra.mxu0 %v7590
    %7707 = vmatmul.bf16.gmra.mxu0 %v7301
    %v7708 = vpop.f32.mrf.mxu0
    %v7709 = vadd.f32 %v7696, %v7708
    %v7710 = vpop.f32.mrf.mxu0
    %7711 = vdwg.mxu0
    %7712 = vmatpush.bf16.msra.mxu0 %v7587
    %7713 = vmatpush.bf16.msra.mxu0 %v7583
    %7714 = vmatpush.bf16.msra.mxu0 %v7579
    %7715 = vmatpush.bf16.msra.mxu0 %v7575
    %7716 = vmatpush.bf16.msra.mxu0 %v7571
    %7717 = vmatpush.bf16.msra.mxu0 %v7567
    %7718 = vmatpush.bf16.msra.mxu0 %v7563
    %7719 = vmatpush.bf16.msra.mxu0 %v7559
    %7720 = vmatmul.bf16.gmra.mxu0 %v6989
    %v7721 = vpop.f32.mrf.mxu0
    %v7722 = vadd.f32 %v1053, %v7721
    %v7723 = vpop.f32.mrf.mxu0
    %7724 = vdwg.mxu0
    %7725 = vmatpush.bf16.msra.mxu0 %v7619
    %7726 = vmatpush.bf16.msra.mxu0 %v7615
    %7727 = vmatpush.bf16.msra.mxu0 %v7611
    %7728 = vmatpush.bf16.msra.mxu0 %v7607
    %7729 = vmatpush.bf16.msra.mxu0 %v7603
    %7730 = vmatpush.bf16.msra.mxu0 %v7599
    %7731 = vmatpush.bf16.msra.mxu0 %v7595
    %7732 = vmatpush.bf16.msra.mxu0 %v7591
    %7733 = vmatmul.bf16.gmra.mxu0 %v7301
    %v7734 = vpop.f32.mrf.mxu0
    %v7735 = vadd.f32 %v7722, %v7734
    %v7736 = vpop.f32.mrf.mxu0
    %7737 = vdwg.mxu0
    %7738 = vmatpush.bf16.msra.mxu0 %v7588
    %7739 = vmatpush.bf16.msra.mxu0 %v7584
    %7740 = vmatpush.bf16.msra.mxu0 %v7580
    %7741 = vmatpush.bf16.msra.mxu0 %v7576
    %7742 = vmatpush.bf16.msra.mxu0 %v7572
    %7743 = vmatpush.bf16.msra.mxu0 %v7568
    %7744 = vmatpush.bf16.msra.mxu0 %v7564
    %7745 = vmatpush.bf16.msra.mxu0 %v7560
    %7746 = vmatmul.bf16.gmra.mxu0 %v6989
    %v7747 = vpop.f32.mrf.mxu0
    %v7748 = vadd.f32 %v1054, %v7747
    %v7749 = vpop.f32.mrf.mxu0
    %7750 = vdwg.mxu0
    %7751 = vmatpush.bf16.msra.mxu0 %v7620
    %7752 = vmatpush.bf16.msra.mxu0 %v7616
    %7753 = vmatpush.bf16.msra.mxu0 %v7612
    %7754 = vmatpush.bf16.msra.mxu0 %v7608
    %7755 = vmatpush.bf16.msra.mxu0 %v7604
    %7756 = vmatpush.bf16.msra.mxu0 %v7600
    %7757 = vmatpush.bf16.msra.mxu0 %v7596
    %7758 = vmatpush.bf16.msra.mxu0 %v7592
    %7759 = vmatmul.bf16.gmra.mxu0 %v7301
    %v7760 = vpop.f32.mrf.mxu0
    %v7761 = vadd.f32 %v7748, %v7760
    %v7762 = vpop.f32.mrf.mxu0
    %7763 = vdwg.mxu0
    %7764 = vmatpush.bf16.msra.mxu0 %v7589
    %7765 = vmatpush.bf16.msra.mxu0 %v7585
    %7766 = vmatpush.bf16.msra.mxu0 %v7581
    %7767 = vmatpush.bf16.msra.mxu0 %v7577
    %7768 = vmatpush.bf16.msra.mxu0 %v7573
    %7769 = vmatpush.bf16.msra.mxu0 %v7569
    %7770 = vmatpush.bf16.msra.mxu0 %v7565
    %7771 = vmatpush.bf16.msra.mxu0 %v7561
    %7772 = vmatmul.bf16.gmra.mxu0 %v6989
    %v7773 = vpop.f32.mrf.mxu0
    %v7774 = vadd.f32 %v1055, %v7773
    %v7775 = vpop.f32.mrf.mxu0
    %7776 = vdwg.mxu0
    %7777 = vmatpush.bf16.msra.mxu0 %v7621
    %7778 = vmatpush.bf16.msra.mxu0 %v7617
    %7779 = vmatpush.bf16.msra.mxu0 %v7613
    %7780 = vmatpush.bf16.msra.mxu0 %v7609
    %7781 = vmatpush.bf16.msra.mxu0 %v7605
    %7782 = vmatpush.bf16.msra.mxu0 %v7601
    %7783 = vmatpush.bf16.msra.mxu0 %v7597
    %7784 = vmatpush.bf16.msra.mxu0 %v7593
    %7785 = vmatmul.bf16.gmra.mxu0 %v7301
    %v7786 = vpop.f32.mrf.mxu0
    %v7787 = vadd.f32 %v7774, %v7786
    %v7788 = vpop.f32.mrf.mxu0
    %7789 = vdwg.mxu0
    %v7790 = vxor.u32 %v7709, 2147483648
    %v7791 = vxor.u32 %v7735, 2147483648
    %v7792 = vxor.u32 %v7761, 2147483648
    %v7793 = vmul.f32 %v7790, 1.442695
    %v7794 = vpow.pop %v7793
    %v7795 = vmul.f32 %v7791, 1.442695
    %v7796 = vpow.pop %v7795
    %v7797 = vmul.f32 %v7792, 1.442695
    %v7798 = vpow.pop %v7797
    %v7799 = vadd.f32 %v7794, 1.0
    %v7800 = vadd.f32 %v7796, 1.0
    %v7801 = vadd.f32 %v7798, 1.0
    %v7802 = vrcp.pop %v7799
    %v7803 = vmul.f32 %v7799, %v7802
    %v7804 = vsub.f32 1.0, %v7803
    %v7805 = vmul.f32 %v7802, %v7804
    %v7806 = vadd.f32 %v7802, %v7805
    %vm7807 = vweird.f32 %v7799
    %vm7808 = vweird.f32 %v7802
    %vm7809 = vmor %vm7807, %vm7808
    %v7810 = vsel %vm7809, %v7802, %v7806
    %v7811 = vand.u32 2147483647, %v7799
    %vm7812 = vcmp.eq.f32.partialorder %v7811, 8.507059e+37
    %v7813 = vand.u32 %v7799, 2147483648
    %v7814 = vor.u32 1.1754944e-38, %v7813
    %v7815 = vsel %vm7812, %v7814, %v7810
    %v7816 = vmul.f32 1.0, %v7815
    %v7817 = vrcp.pop %v7800
    %v7818 = vmul.f32 %v7800, %v7817
    %v7819 = vsub.f32 1.0, %v7818
    %v7820 = vmul.f32 %v7817, %v7819
    %v7821 = vadd.f32 %v7817, %v7820
    %vm7822 = vweird.f32 %v7800
    %vm7823 = vweird.f32 %v7817
    %vm7824 = vmor %vm7822, %vm7823
    %v7825 = vsel %vm7824, %v7817, %v7821
    %v7826 = vand.u32 2147483647, %v7800
    %vm7827 = vcmp.eq.f32.partialorder %v7826, 8.507059e+37
    %v7828 = vand.u32 %v7800, 2147483648
    %v7829 = vor.u32 1.1754944e-38, %v7828
    %v7830 = vsel %vm7827, %v7829, %v7825
    %v7831 = vmul.f32 1.0, %v7830
    %v7832 = vrcp.pop %v7801
    %v7833 = vmul.f32 %v7801, %v7832
    %v7834 = vsub.f32 1.0, %v7833
    %v7835 = vmul.f32 %v7832, %v7834
    %v7836 = vadd.f32 %v7832, %v7835
    %vm7837 = vweird.f32 %v7801
    %vm7838 = vweird.f32 %v7832
    %vm7839 = vmor %vm7837, %vm7838
    %v7840 = vsel %vm7839, %v7832, %v7836
    %v7841 = vand.u32 2147483647, %v7801
    %vm7842 = vcmp.eq.f32.partialorder %v7841, 8.507059e+37
    %v7843 = vand.u32 %v7801, 2147483648
    %v7844 = vor.u32 1.1754944e-38, %v7843
    %v7845 = vsel %vm7842, %v7844, %v7840
    %v7846 = vmul.f32 1.0, %v7845
    %v7847 = vtanh.pop %v7787
    %v7848 = vmul.f32 %v7831, %v6350
    %v7849 = vmul.f32 %v7816, %v7847
    %v7850 = vadd.f32 %v7848, %v7849
    %v7851 = vtanh.pop %v7850
    %v7852 = vmul.f32 %v7846, %v7851
    %v7853 = vld [vmem:[%s1841] sm:$0xff]
    %v7854 = vld [vmem:[%s1841 + $0x8] sm:$0xff]
    %v7855 = vld [vmem:[%s1841 + $0x10] sm:$0xff]
    %v7856 = vld [vmem:[%s1841 + $0x18] sm:$0xff]
    %v7857 = vld [vmem:[%s1841 + $0x20] sm:$0xff]
    %v7858 = vld [vmem:[%s1841 + $0x28] sm:$0xff]
    %v7859 = vld [vmem:[%s1841 + $0x30] sm:$0xff]
    %v7860 = vld [vmem:[%s1841 + $0x38] sm:$0xff]
    %v7861 = vld [vmem:[%s1841 + $0x40] sm:$0xff]
    %v7862 = vld [vmem:[%s1841 + $0x48] sm:$0xff]
    %v7863 = vld [vmem:[%s1841 + $0x50] sm:$0xff]
    %v7864 = vld [vmem:[%s1841 + $0x58] sm:$0xff]
    %v7865 = vld [vmem:[%s1841 + $0x60] sm:$0xff]
    %v7866 = vld [vmem:[%s1841 + $0x68] sm:$0xff]
    %v7867 = vld [vmem:[%s1841 + $0x70] sm:$0xff]
    %v7868 = vld [vmem:[%s1841 + $0x78] sm:$0xff]
    %v7869 = vld [vmem:[%s1841 + $0x80] sm:$0xff]
    %v7870 = vld [vmem:[%s1841 + $0x88] sm:$0xff]
    %v7871 = vld [vmem:[%s1841 + $0x90] sm:$0xff]
    %v7872 = vld [vmem:[%s1841 + $0x98] sm:$0xff]
    %v7873 = vld [vmem:[%s1841 + $0xa0] sm:$0xff]
    %v7874 = vld [vmem:[%s1841 + $0xa8] sm:$0xff]
    %v7875 = vld [vmem:[%s1841 + $0xb0] sm:$0xff]
    %v7876 = vld [vmem:[%s1841 + $0xb8] sm:$0xff]
    %v7877 = vld [vmem:[%s1841 + $0xc0] sm:$0xff]
    %v7878 = vld [vmem:[%s1841 + $0xc8] sm:$0xff]
    %v7879 = vld [vmem:[%s1841 + $0xd0] sm:$0xff]
    %v7880 = vld [vmem:[%s1841 + $0xd8] sm:$0xff]
    %v7881 = vld [vmem:[%s1841 + $0xe0] sm:$0xff]
    %v7882 = vld [vmem:[%s1841 + $0xe8] sm:$0xff]
    %v7883 = vld [vmem:[%s1841 + $0xf0] sm:$0xff]
    %v7884 = vld [vmem:[%s1841 + $0xf8] sm:$0xff]
    %v7885 = vld [vmem:[%s1841 + $0x100] sm:$0xff]
    %v7886 = vld [vmem:[%s1841 + $0x108] sm:$0xff]
    %v7887 = vld [vmem:[%s1841 + $0x110] sm:$0xff]
    %v7888 = vld [vmem:[%s1841 + $0x118] sm:$0xff]
    %v7889 = vld [vmem:[%s1841 + $0x120] sm:$0xff]
    %v7890 = vld [vmem:[%s1841 + $0x128] sm:$0xff]
    %v7891 = vld [vmem:[%s1841 + $0x130] sm:$0xff]
    %v7892 = vld [vmem:[%s1841 + $0x138] sm:$0xff]
    %v7893 = vld [vmem:[%s1841 + $0x140] sm:$0xff]
    %v7894 = vld [vmem:[%s1841 + $0x148] sm:$0xff]
    %v7895 = vld [vmem:[%s1841 + $0x150] sm:$0xff]
    %v7896 = vld [vmem:[%s1841 + $0x158] sm:$0xff]
    %v7897 = vld [vmem:[%s1841 + $0x160] sm:$0xff]
    %v7898 = vld [vmem:[%s1841 + $0x168] sm:$0xff]
    %v7899 = vld [vmem:[%s1841 + $0x170] sm:$0xff]
    %v7900 = vld [vmem:[%s1841 + $0x178] sm:$0xff]
    %v7901 = vld [vmem:[%s1841 + $0x180] sm:$0xff]
    %v7902 = vld [vmem:[%s1841 + $0x188] sm:$0xff]
    %v7903 = vld [vmem:[%s1841 + $0x190] sm:$0xff]
    %v7904 = vld [vmem:[%s1841 + $0x198] sm:$0xff]
    %v7905 = vld [vmem:[%s1841 + $0x1a0] sm:$0xff]
    %v7906 = vld [vmem:[%s1841 + $0x1a8] sm:$0xff]
    %v7907 = vld [vmem:[%s1841 + $0x1b0] sm:$0xff]
    %v7908 = vld [vmem:[%s1841 + $0x1b8] sm:$0xff]
    %v7909 = vld [vmem:[%s1841 + $0x1c0] sm:$0xff]
    %v7910 = vld [vmem:[%s1841 + $0x1c8] sm:$0xff]
    %v7911 = vld [vmem:[%s1841 + $0x1d0] sm:$0xff]
    %v7912 = vld [vmem:[%s1841 + $0x1d8] sm:$0xff]
    %v7913 = vld [vmem:[%s1841 + $0x1e0] sm:$0xff]
    %v7914 = vld [vmem:[%s1841 + $0x1e8] sm:$0xff]
    %v7915 = vld [vmem:[%s1841 + $0x1f0] sm:$0xff]
    %v7916 = vld [vmem:[%s1841 + $0x1f8] sm:$0xff]
    %v7981 = vunpack.c.l.b16 %v7853
    %v7982 = vunpack.c.h.b16 %v7853
    %v7983 = vunpack.c.l.b16 %v7854
    %v7984 = vunpack.c.h.b16 %v7854
    %v7985 = vunpack.c.l.b16 %v7855
    %v7986 = vunpack.c.h.b16 %v7855
    %v7987 = vunpack.c.l.b16 %v7856
    %v7988 = vunpack.c.h.b16 %v7856
    %v7989 = vunpack.c.l.b16 %v7857
    %v7990 = vunpack.c.h.b16 %v7857
    %v7991 = vunpack.c.l.b16 %v7858
    %v7992 = vunpack.c.h.b16 %v7858
    %v7993 = vunpack.c.l.b16 %v7859
    %v7994 = vunpack.c.h.b16 %v7859
    %v7995 = vunpack.c.l.b16 %v7860
    %v7996 = vunpack.c.h.b16 %v7860
    %v7997 = vunpack.c.l.b16 %v7861
    %v7998 = vunpack.c.h.b16 %v7861
    %v7999 = vunpack.c.l.b16 %v7862
    %v8000 = vunpack.c.h.b16 %v7862
    %v8001 = vunpack.c.l.b16 %v7863
    %v8002 = vunpack.c.h.b16 %v7863
    %v8003 = vunpack.c.l.b16 %v7864
    %v8004 = vunpack.c.h.b16 %v7864
    %v8005 = vunpack.c.l.b16 %v7865
    %v8006 = vunpack.c.h.b16 %v7865
    %v8007 = vunpack.c.l.b16 %v7866
    %v8008 = vunpack.c.h.b16 %v7866
    %v8009 = vunpack.c.l.b16 %v7867
    %v8010 = vunpack.c.h.b16 %v7867
    %v8011 = vunpack.c.l.b16 %v7868
    %v8012 = vunpack.c.h.b16 %v7868
    %v8013 = vunpack.c.l.b16 %v7869
    %v8014 = vunpack.c.h.b16 %v7869
    %v8015 = vunpack.c.l.b16 %v7870
    %v8016 = vunpack.c.h.b16 %v7870
    %v8017 = vunpack.c.l.b16 %v7871
    %v8018 = vunpack.c.h.b16 %v7871
    %v8019 = vunpack.c.l.b16 %v7872
    %v8020 = vunpack.c.h.b16 %v7872
    %v8021 = vunpack.c.l.b16 %v7873
    %v8022 = vunpack.c.h.b16 %v7873
    %v8023 = vunpack.c.l.b16 %v7874
    %v8024 = vunpack.c.h.b16 %v7874
    %v8025 = vunpack.c.l.b16 %v7875
    %v8026 = vunpack.c.h.b16 %v7875
    %v8027 = vunpack.c.l.b16 %v7876
    %v8028 = vunpack.c.h.b16 %v7876
    %v8029 = vunpack.c.l.b16 %v7877
    %v8030 = vunpack.c.h.b16 %v7877
    %v8031 = vunpack.c.l.b16 %v7878
    %v8032 = vunpack.c.h.b16 %v7878
    %v8033 = vunpack.c.l.b16 %v7879
    %v8034 = vunpack.c.h.b16 %v7879
    %v8035 = vunpack.c.l.b16 %v7880
    %v8036 = vunpack.c.h.b16 %v7880
    %v8037 = vunpack.c.l.b16 %v7881
    %v8038 = vunpack.c.h.b16 %v7881
    %v8039 = vunpack.c.l.b16 %v7882
    %v8040 = vunpack.c.h.b16 %v7882
    %v8041 = vunpack.c.l.b16 %v7883
    %v8042 = vunpack.c.h.b16 %v7883
    %v8043 = vunpack.c.l.b16 %v7884
    %v8044 = vunpack.c.h.b16 %v7884
    %v8045 = vunpack.c.l.b16 %v7885
    %v8046 = vunpack.c.h.b16 %v7885
    %v8047 = vunpack.c.l.b16 %v7886
    %v8048 = vunpack.c.h.b16 %v7886
    %v8049 = vunpack.c.l.b16 %v7887
    %v8050 = vunpack.c.h.b16 %v7887
    %v8051 = vunpack.c.l.b16 %v7888
    %v8052 = vunpack.c.h.b16 %v7888
    %v8053 = vunpack.c.l.b16 %v7889
    %v8054 = vunpack.c.h.b16 %v7889
    %v8055 = vunpack.c.l.b16 %v7890
    %v8056 = vunpack.c.h.b16 %v7890
    %v8057 = vunpack.c.l.b16 %v7891
    %v8058 = vunpack.c.h.b16 %v7891
    %v8059 = vunpack.c.l.b16 %v7892
    %v8060 = vunpack.c.h.b16 %v7892
    %v8061 = vunpack.c.l.b16 %v7893
    %v8062 = vunpack.c.h.b16 %v7893
    %v8063 = vunpack.c.l.b16 %v7894
    %v8064 = vunpack.c.h.b16 %v7894
    %v8065 = vunpack.c.l.b16 %v7895
    %v8066 = vunpack.c.h.b16 %v7895
    %v8067 = vunpack.c.l.b16 %v7896
    %v8068 = vunpack.c.h.b16 %v7896
    %v8069 = vunpack.c.l.b16 %v7897
    %v8070 = vunpack.c.h.b16 %v7897
    %v8071 = vunpack.c.l.b16 %v7898
    %v8072 = vunpack.c.h.b16 %v7898
    %v8073 = vunpack.c.l.b16 %v7899
    %v8074 = vunpack.c.h.b16 %v7899
    %v8075 = vunpack.c.l.b16 %v7900
    %v8076 = vunpack.c.h.b16 %v7900
    %v8077 = vunpack.c.l.b16 %v7901
    %v8078 = vunpack.c.h.b16 %v7901
    %v8079 = vunpack.c.l.b16 %v7902
    %v8080 = vunpack.c.h.b16 %v7902
    %v8081 = vunpack.c.l.b16 %v7903
    %v8082 = vunpack.c.h.b16 %v7903
    %v8083 = vunpack.c.l.b16 %v7904
    %v8084 = vunpack.c.h.b16 %v7904
    %v8085 = vunpack.c.l.b16 %v7905
    %v8086 = vunpack.c.h.b16 %v7905
    %v8087 = vunpack.c.l.b16 %v7906
    %v8088 = vunpack.c.h.b16 %v7906
    %v8089 = vunpack.c.l.b16 %v7907
    %v8090 = vunpack.c.h.b16 %v7907
    %v8091 = vunpack.c.l.b16 %v7908
    %v8092 = vunpack.c.h.b16 %v7908
    %v8093 = vunpack.c.l.b16 %v7909
    %v8094 = vunpack.c.h.b16 %v7909
    %v8095 = vunpack.c.l.b16 %v7910
    %v8096 = vunpack.c.h.b16 %v7910
    %v8097 = vunpack.c.l.b16 %v7911
    %v8098 = vunpack.c.h.b16 %v7911
    %v8099 = vunpack.c.l.b16 %v7912
    %v8100 = vunpack.c.h.b16 %v7912
    %v8101 = vunpack.c.l.b16 %v7913
    %v8102 = vunpack.c.h.b16 %v7913
    %v8103 = vunpack.c.l.b16 %v7914
    %v8104 = vunpack.c.h.b16 %v7914
    %v8105 = vunpack.c.l.b16 %v7915
    %v8106 = vunpack.c.h.b16 %v7915
    %v8107 = vunpack.c.l.b16 %v7916
    %v8108 = vunpack.c.h.b16 %v7916
    %v8109 = vpack.c.b16 %v7985, %v7981
    %v8110 = vpack.c.b16 %v7986, %v7982
    %v8111 = vpack.c.b16 %v7987, %v7983
    %v8112 = vpack.c.b16 %v7988, %v7984
    %v8113 = vpack.c.b16 %v7993, %v7989
    %v8114 = vpack.c.b16 %v7994, %v7990
    %v8115 = vpack.c.b16 %v7995, %v7991
    %v8116 = vpack.c.b16 %v7996, %v7992
    %v8117 = vpack.c.b16 %v8001, %v7997
    %v8118 = vpack.c.b16 %v8002, %v7998
    %v8119 = vpack.c.b16 %v8003, %v7999
    %v8120 = vpack.c.b16 %v8004, %v8000
    %v8121 = vpack.c.b16 %v8009, %v8005
    %v8122 = vpack.c.b16 %v8010, %v8006
    %v8123 = vpack.c.b16 %v8011, %v8007
    %v8124 = vpack.c.b16 %v8012, %v8008
    %v8125 = vpack.c.b16 %v8017, %v8013
    %v8126 = vpack.c.b16 %v8018, %v8014
    %v8127 = vpack.c.b16 %v8019, %v8015
    %v8128 = vpack.c.b16 %v8020, %v8016
    %v8129 = vpack.c.b16 %v8025, %v8021
    %v8130 = vpack.c.b16 %v8026, %v8022
    %v8131 = vpack.c.b16 %v8027, %v8023
    %v8132 = vpack.c.b16 %v8028, %v8024
    %v8133 = vpack.c.b16 %v8033, %v8029
    %v8134 = vpack.c.b16 %v8034, %v8030
    %v8135 = vpack.c.b16 %v8035, %v8031
    %v8136 = vpack.c.b16 %v8036, %v8032
    %v8137 = vpack.c.b16 %v8041, %v8037
    %v8138 = vpack.c.b16 %v8042, %v8038
    %v8139 = vpack.c.b16 %v8043, %v8039
    %v8140 = vpack.c.b16 %v8044, %v8040
    %v8141 = vpack.c.b16 %v8049, %v8045
    %v8142 = vpack.c.b16 %v8050, %v8046
    %v8143 = vpack.c.b16 %v8051, %v8047
    %v8144 = vpack.c.b16 %v8052, %v8048
    %v8145 = vpack.c.b16 %v8057, %v8053
    %v8146 = vpack.c.b16 %v8058, %v8054
    %v8147 = vpack.c.b16 %v8059, %v8055
    %v8148 = vpack.c.b16 %v8060, %v8056
    %v8149 = vpack.c.b16 %v8065, %v8061
    %v8150 = vpack.c.b16 %v8066, %v8062
    %v8151 = vpack.c.b16 %v8067, %v8063
    %v8152 = vpack.c.b16 %v8068, %v8064
    %v8153 = vpack.c.b16 %v8073, %v8069
    %v8154 = vpack.c.b16 %v8074, %v8070
    %v8155 = vpack.c.b16 %v8075, %v8071
    %v8156 = vpack.c.b16 %v8076, %v8072
    %v8157 = vpack.c.b16 %v8081, %v8077
    %v8158 = vpack.c.b16 %v8082, %v8078
    %v8159 = vpack.c.b16 %v8083, %v8079
    %v8160 = vpack.c.b16 %v8084, %v8080
    %v8161 = vpack.c.b16 %v8089, %v8085
    %v8162 = vpack.c.b16 %v8090, %v8086
    %v8163 = vpack.c.b16 %v8091, %v8087
    %v8164 = vpack.c.b16 %v8092, %v8088
    %v8165 = vpack.c.b16 %v8097, %v8093
    %v8166 = vpack.c.b16 %v8098, %v8094
    %v8167 = vpack.c.b16 %v8099, %v8095
    %v8168 = vpack.c.b16 %v8100, %v8096
    %v8169 = vpack.c.b16 %v8105, %v8101
    %v8170 = vpack.c.b16 %v8106, %v8102
    %v8171 = vpack.c.b16 %v8107, %v8103
    %v8172 = vpack.c.b16 %v8108, %v8104
    %8237 = vmatpush.bf16.msra.mxu0 %v8137
    %8238 = vmatpush.bf16.msra.mxu0 %v8133
    %8239 = vmatpush.bf16.msra.mxu0 %v8129
    %8240 = vmatpush.bf16.msra.mxu0 %v8125
    %8241 = vmatpush.bf16.msra.mxu0 %v8121
    %8242 = vmatpush.bf16.msra.mxu0 %v8117
    %8243 = vmatpush.bf16.msra.mxu0 %v8113
    %8244 = vmatpush.bf16.msra.mxu0 %v8109
    %8245 = vmatmul.bf16.gmra.mxu0 %v7301
    %v8246 = vpop.f32.mrf.mxu0
    %v8247 = vadd.f32 %v1907, %v8246
    %v8248 = vpop.f32.mrf.mxu0
    %8249 = vdwg.mxu0
    %8250 = vmatpush.bf16.msra.mxu0 %v8169
    %8251 = vmatpush.bf16.msra.mxu0 %v8165
    %8252 = vmatpush.bf16.msra.mxu0 %v8161
    %8253 = vmatpush.bf16.msra.mxu0 %v8157
    %8254 = vmatpush.bf16.msra.mxu0 %v8153
    %8255 = vmatpush.bf16.msra.mxu0 %v8149
    %8256 = vmatpush.bf16.msra.mxu0 %v8145
    %8257 = vmatpush.bf16.msra.mxu0 %v8141
    %8258 = vmatmul.bf16.gmra.mxu0 %v6904
    %v8259 = vpop.f32.mrf.mxu0
    %v8260 = vadd.f32 %v8247, %v8259
    %v8261 = vpop.f32.mrf.mxu0
    %8262 = vdwg.mxu0
    %8263 = vmatpush.bf16.msra.mxu0 %v8138
    %8264 = vmatpush.bf16.msra.mxu0 %v8134
    %8265 = vmatpush.bf16.msra.mxu0 %v8130
    %8266 = vmatpush.bf16.msra.mxu0 %v8126
    %8267 = vmatpush.bf16.msra.mxu0 %v8122
    %8268 = vmatpush.bf16.msra.mxu0 %v8118
    %8269 = vmatpush.bf16.msra.mxu0 %v8114
    %8270 = vmatpush.bf16.msra.mxu0 %v8110
    %8271 = vmatmul.bf16.gmra.mxu0 %v7301
    %v8272 = vpop.f32.mrf.mxu0
    %v8273 = vadd.f32 %v1908, %v8272
    %v8274 = vpop.f32.mrf.mxu0
    %8275 = vdwg.mxu0
    %8276 = vmatpush.bf16.msra.mxu0 %v8170
    %8277 = vmatpush.bf16.msra.mxu0 %v8166
    %8278 = vmatpush.bf16.msra.mxu0 %v8162
    %8279 = vmatpush.bf16.msra.mxu0 %v8158
    %8280 = vmatpush.bf16.msra.mxu0 %v8154
    %8281 = vmatpush.bf16.msra.mxu0 %v8150
    %8282 = vmatpush.bf16.msra.mxu0 %v8146
    %8283 = vmatpush.bf16.msra.mxu0 %v8142
    %8284 = vmatmul.bf16.gmra.mxu0 %v6904
    %v8285 = vpop.f32.mrf.mxu0
    %v8286 = vadd.f32 %v8273, %v8285
    %v8287 = vpop.f32.mrf.mxu0
    %8288 = vdwg.mxu0
    %8289 = vmatpush.bf16.msra.mxu0 %v8139
    %8290 = vmatpush.bf16.msra.mxu0 %v8135
    %8291 = vmatpush.bf16.msra.mxu0 %v8131
    %8292 = vmatpush.bf16.msra.mxu0 %v8127
    %8293 = vmatpush.bf16.msra.mxu0 %v8123
    %8294 = vmatpush.bf16.msra.mxu0 %v8119
    %8295 = vmatpush.bf16.msra.mxu0 %v8115
    %8296 = vmatpush.bf16.msra.mxu0 %v8111
    %8297 = vmatmul.bf16.gmra.mxu0 %v7301
    %v8298 = vpop.f32.mrf.mxu0
    %v8299 = vadd.f32 %v1909, %v8298
    %v8300 = vpop.f32.mrf.mxu0
    %8301 = vdwg.mxu0
    %8302 = vmatpush.bf16.msra.mxu0 %v8171
    %8303 = vmatpush.bf16.msra.mxu0 %v8167
    %8304 = vmatpush.bf16.msra.mxu0 %v8163
    %8305 = vmatpush.bf16.msra.mxu0 %v8159
    %8306 = vmatpush.bf16.msra.mxu0 %v8155
    %8307 = vmatpush.bf16.msra.mxu0 %v8151
    %8308 = vmatpush.bf16.msra.mxu0 %v8147
    %8309 = vmatpush.bf16.msra.mxu0 %v8143
    %8310 = vmatmul.bf16.gmra.mxu0 %v6904
    %v8311 = vpop.f32.mrf.mxu0
    %v8312 = vadd.f32 %v8299, %v8311
    %v8313 = vpop.f32.mrf.mxu0
    %8314 = vdwg.mxu0
    %8315 = vmatpush.bf16.msra.mxu0 %v8140
    %8316 = vmatpush.bf16.msra.mxu0 %v8136
    %8317 = vmatpush.bf16.msra.mxu0 %v8132
    %8318 = vmatpush.bf16.msra.mxu0 %v8128
    %8319 = vmatpush.bf16.msra.mxu0 %v8124
    %8320 = vmatpush.bf16.msra.mxu0 %v8120
    %8321 = vmatpush.bf16.msra.mxu0 %v8116
    %8322 = vmatpush.bf16.msra.mxu0 %v8112
    %8323 = vmatmul.bf16.gmra.mxu0 %v7301
    %v8324 = vpop.f32.mrf.mxu0
    %v8325 = vadd.f32 %v1910, %v8324
    %v8326 = vpop.f32.mrf.mxu0
    %8327 = vdwg.mxu0
    %8328 = vmatpush.bf16.msra.mxu0 %v8172
    %8329 = vmatpush.bf16.msra.mxu0 %v8168
    %8330 = vmatpush.bf16.msra.mxu0 %v8164
    %8331 = vmatpush.bf16.msra.mxu0 %v8160
    %8332 = vmatpush.bf16.msra.mxu0 %v8156
    %8333 = vmatpush.bf16.msra.mxu0 %v8152
    %8334 = vmatpush.bf16.msra.mxu0 %v8148
    %8335 = vmatpush.bf16.msra.mxu0 %v8144
    %8336 = vmatmul.bf16.gmra.mxu0 %v6904
    %v8337 = vpop.f32.mrf.mxu0
    %v8338 = vadd.f32 %v8325, %v8337
    %v8339 = vpop.f32.mrf.mxu0
    %8340 = vdwg.mxu0
    %v8341 = vxor.u32 %v8260, 2147483648
    %v8342 = vxor.u32 %v8286, 2147483648
    %v8343 = vxor.u32 %v8312, 2147483648
    %v8344 = vmul.f32 %v8341, 1.442695
    %v8345 = vpow.pop %v8344
    %v8346 = vmul.f32 %v8342, 1.442695
    %v8347 = vpow.pop %v8346
    %v8348 = vmul.f32 %v8343, 1.442695
    %v8349 = vpow.pop %v8348
    %v8350 = vadd.f32 %v8345, 1.0
    %v8351 = vadd.f32 %v8347, 1.0
    %v8352 = vadd.f32 %v8349, 1.0
    %v8353 = vrcp.pop %v8350
    %v8354 = vmul.f32 %v8350, %v8353
    %v8355 = vsub.f32 1.0, %v8354
    %v8356 = vmul.f32 %v8353, %v8355
    %v8357 = vadd.f32 %v8353, %v8356
    %vm8358 = vweird.f32 %v8350
    %vm8359 = vweird.f32 %v8353
    %vm8360 = vmor %vm8358, %vm8359
    %v8361 = vsel %vm8360, %v8353, %v8357
    %v8362 = vand.u32 2147483647, %v8350
    %vm8363 = vcmp.eq.f32.partialorder %v8362, 8.507059e+37
    %v8364 = vand.u32 %v8350, 2147483648
    %v8365 = vor.u32 1.1754944e-38, %v8364
    %v8366 = vsel %vm8363, %v8365, %v8361
    %v8367 = vmul.f32 1.0, %v8366
    %v8368 = vrcp.pop %v8351
    %v8369 = vmul.f32 %v8351, %v8368
    %v8370 = vsub.f32 1.0, %v8369
    %v8371 = vmul.f32 %v8368, %v8370
    %v8372 = vadd.f32 %v8368, %v8371
    %vm8373 = vweird.f32 %v8351
    %vm8374 = vweird.f32 %v8368
    %vm8375 = vmor %vm8373, %vm8374
    %v8376 = vsel %vm8375, %v8368, %v8372
    %v8377 = vand.u32 2147483647, %v8351
    %vm8378 = vcmp.eq.f32.partialorder %v8377, 8.507059e+37
    %v8379 = vand.u32 %v8351, 2147483648
    %v8380 = vor.u32 1.1754944e-38, %v8379
    %v8381 = vsel %vm8378, %v8380, %v8376
    %v8382 = vmul.f32 1.0, %v8381
    %v8383 = vrcp.pop %v8352
    %v8384 = vmul.f32 %v8352, %v8383
    %v8385 = vsub.f32 1.0, %v8384
    %v8386 = vmul.f32 %v8383, %v8385
    %v8387 = vadd.f32 %v8383, %v8386
    %vm8388 = vweird.f32 %v8352
    %vm8389 = vweird.f32 %v8383
    %vm8390 = vmor %vm8388, %vm8389
    %v8391 = vsel %vm8390, %v8383, %v8387
    %v8392 = vand.u32 2147483647, %v8352
    %vm8393 = vcmp.eq.f32.partialorder %v8392, 8.507059e+37
    %v8394 = vand.u32 %v8352, 2147483648
    %v8395 = vor.u32 1.1754944e-38, %v8394
    %v8396 = vsel %vm8393, %v8395, %v8391
    %v8397 = vmul.f32 1.0, %v8396
    %v8398 = vtanh.pop %v8338
    %v8399 = vmul.f32 %v8382, %v6901
    %v8400 = vmul.f32 %v8367, %v8398
    %v8401 = vadd.f32 %v8399, %v8400
    %v8402 = vtanh.pop %v8401
    %v8403 = vmul.f32 %v8397, %v8402
    %v8404 = vpack.c.bf16 %v8403, %v8403
    %v8405 = vld [vmem:[%s7] sm:$0xf]
    %v8406 = vld [vmem:[%s7 + $0x4] sm:$0xf]
    %v8407 = vld [vmem:[%s7 + $0x8] sm:$0xf]
    %v8408 = vld [vmem:[%s7 + $0xc] sm:$0xf]
    %v8409 = vld [vmem:[%s7 + $0x10] sm:$0xf]
    %v8410 = vld [vmem:[%s7 + $0x14] sm:$0xf]
    %v8411 = vld [vmem:[%s7 + $0x18] sm:$0xf]
    %v8412 = vld [vmem:[%s7 + $0x1c] sm:$0xf]
    %v8413 = vld [vmem:[%s7 + $0x20] sm:$0xf]
    %v8414 = vld [vmem:[%s7 + $0x24] sm:$0xf]
    %v8415 = vld [vmem:[%s7 + $0x28] sm:$0xf]
    %v8416 = vld [vmem:[%s7 + $0x2c] sm:$0xf]
    %v8417 = vld [vmem:[%s7 + $0x30] sm:$0xf]
    %v8418 = vld [vmem:[%s7 + $0x34] sm:$0xf]
    %v8419 = vld [vmem:[%s7 + $0x38] sm:$0xf]
    %v8420 = vld [vmem:[%s7 + $0x3c] sm:$0xf]
    %v8437 = vunpack.c.l.b16 %v8405
    %v8438 = vunpack.c.l.b16 %v8406
    %v8439 = vunpack.c.l.b16 %v8407
    %v8440 = vunpack.c.l.b16 %v8408
    %v8441 = vunpack.c.l.b16 %v8409
    %v8442 = vunpack.c.l.b16 %v8410
    %v8443 = vunpack.c.l.b16 %v8411
    %v8444 = vunpack.c.l.b16 %v8412
    %v8445 = vunpack.c.l.b16 %v8413
    %v8446 = vunpack.c.l.b16 %v8414
    %v8447 = vunpack.c.l.b16 %v8415
    %v8448 = vunpack.c.l.b16 %v8416
    %v8449 = vunpack.c.l.b16 %v8417
    %v8450 = vunpack.c.l.b16 %v8418
    %v8451 = vunpack.c.l.b16 %v8419
    %v8452 = vunpack.c.l.b16 %v8420
    %v8453 = vpack.c.b16 %v8438, %v8437
    %v8454 = vpack.c.b16 %v8440, %v8439
    %v8455 = vpack.c.b16 %v8442, %v8441
    %v8456 = vpack.c.b16 %v8444, %v8443
    %v8457 = vpack.c.b16 %v8446, %v8445
    %v8458 = vpack.c.b16 %v8448, %v8447
    %v8459 = vpack.c.b16 %v8450, %v8449
    %v8460 = vpack.c.b16 %v8452, %v8451
    %8469 = vmatpush.bf16.msra.mxu0 %v8460
    %8470 = vmatpush.bf16.msra.mxu0 %v8459
    %8471 = vmatpush.bf16.msra.mxu0 %v8458
    %8472 = vmatpush.bf16.msra.mxu0 %v8457
    %8473 = vmatpush.bf16.msra.mxu0 %v8456
    %8474 = vmatpush.bf16.msra.mxu0 %v8455
    %8475 = vmatpush.bf16.msra.mxu0 %v8454
    %8476 = vmatpush.bf16.msra.mxu0 %v8453
    %8477 = vmatmul.bf16.gmra.mxu0 %v8404
    %v8478 = vpop.f32.mrf.mxu0
    %v8479 = vadd.f32 %v2420, %v8478
    %v8480 = vpop.f32.mrf.mxu0
    %8481 = vdwg.mxu0
    %s8482 = scalar_lea.vmem %s11, 32
    %8483 = vst [vmem:[%s8482] sm:$0xff] %v8479
    %s8484 = scalar_lea.vmem [#allocation2], 224
    %v8485 = vld [vmem:[%s8484] sm:$0xff]
    %v8486 = vld [vmem:[%s8484 + $0x8] sm:$0xff]
    %v8487 = vld [vmem:[%s8484 + $0x10] sm:$0xff]
    %v8488 = vld [vmem:[%s8484 + $0x18] sm:$0xff]
    %v8489 = vpack.c.bf16 %v7300, %v7300
    %v8490 = vld [vmem:[#allocation5] sm:$0xff]
    %v8491 = vld [vmem:[#allocation5 + $0x8] sm:$0xff]
    %v8492 = vld [vmem:[#allocation5 + $0x10] sm:$0xff]
    %v8493 = vld [vmem:[#allocation5 + $0x18] sm:$0xff]
    %v8494 = vld [vmem:[#allocation5 + $0x20] sm:$0xff]
    %v8495 = vld [vmem:[#allocation5 + $0x28] sm:$0xff]
    %v8496 = vld [vmem:[#allocation5 + $0x30] sm:$0xff]
    %v8497 = vld [vmem:[#allocation5 + $0x38] sm:$0xff]
    %v8498 = vld [vmem:[#allocation5 + $0x40] sm:$0xff]
    %v8499 = vld [vmem:[#allocation5 + $0x48] sm:$0xff]
    %v8500 = vld [vmem:[#allocation5 + $0x50] sm:$0xff]
    %v8501 = vld [vmem:[#allocation5 + $0x58] sm:$0xff]
    %v8502 = vld [vmem:[#allocation5 + $0x60] sm:$0xff]
    %v8503 = vld [vmem:[#allocation5 + $0x68] sm:$0xff]
    %v8504 = vld [vmem:[#allocation5 + $0x70] sm:$0xff]
    %v8505 = vld [vmem:[#allocation5 + $0x78] sm:$0xff]
    %v8506 = vld [vmem:[#allocation5 + $0x80] sm:$0xff]
    %v8507 = vld [vmem:[#allocation5 + $0x88] sm:$0xff]
    %v8508 = vld [vmem:[#allocation5 + $0x90] sm:$0xff]
    %v8509 = vld [vmem:[#allocation5 + $0x98] sm:$0xff]
    %v8510 = vld [vmem:[#allocation5 + $0xa0] sm:$0xff]
    %v8511 = vld [vmem:[#allocation5 + $0xa8] sm:$0xff]
    %v8512 = vld [vmem:[#allocation5 + $0xb0] sm:$0xff]
    %v8513 = vld [vmem:[#allocation5 + $0xb8] sm:$0xff]
    %v8514 = vld [vmem:[#allocation5 + $0xc0] sm:$0xff]
    %v8515 = vld [vmem:[#allocation5 + $0xc8] sm:$0xff]
    %v8516 = vld [vmem:[#allocation5 + $0xd0] sm:$0xff]
    %v8517 = vld [vmem:[#allocation5 + $0xd8] sm:$0xff]
    %v8518 = vld [vmem:[#allocation5 + $0xe0] sm:$0xff]
    %v8519 = vld [vmem:[#allocation5 + $0xe8] sm:$0xff]
    %v8520 = vld [vmem:[#allocation5 + $0xf0] sm:$0xff]
    %v8521 = vld [vmem:[#allocation5 + $0xf8] sm:$0xff]
    %v8554 = vunpack.c.l.b16 %v8490
    %v8555 = vunpack.c.h.b16 %v8490
    %v8556 = vunpack.c.l.b16 %v8491
    %v8557 = vunpack.c.h.b16 %v8491
    %v8558 = vunpack.c.l.b16 %v8492
    %v8559 = vunpack.c.h.b16 %v8492
    %v8560 = vunpack.c.l.b16 %v8493
    %v8561 = vunpack.c.h.b16 %v8493
    %v8562 = vunpack.c.l.b16 %v8494
    %v8563 = vunpack.c.h.b16 %v8494
    %v8564 = vunpack.c.l.b16 %v8495
    %v8565 = vunpack.c.h.b16 %v8495
    %v8566 = vunpack.c.l.b16 %v8496
    %v8567 = vunpack.c.h.b16 %v8496
    %v8568 = vunpack.c.l.b16 %v8497
    %v8569 = vunpack.c.h.b16 %v8497
    %v8570 = vunpack.c.l.b16 %v8498
    %v8571 = vunpack.c.h.b16 %v8498
    %v8572 = vunpack.c.l.b16 %v8499
    %v8573 = vunpack.c.h.b16 %v8499
    %v8574 = vunpack.c.l.b16 %v8500
    %v8575 = vunpack.c.h.b16 %v8500
    %v8576 = vunpack.c.l.b16 %v8501
    %v8577 = vunpack.c.h.b16 %v8501
    %v8578 = vunpack.c.l.b16 %v8502
    %v8579 = vunpack.c.h.b16 %v8502
    %v8580 = vunpack.c.l.b16 %v8503
    %v8581 = vunpack.c.h.b16 %v8503
    %v8582 = vunpack.c.l.b16 %v8504
    %v8583 = vunpack.c.h.b16 %v8504
    %v8584 = vunpack.c.l.b16 %v8505
    %v8585 = vunpack.c.h.b16 %v8505
    %v8586 = vunpack.c.l.b16 %v8506
    %v8587 = vunpack.c.h.b16 %v8506
    %v8588 = vunpack.c.l.b16 %v8507
    %v8589 = vunpack.c.h.b16 %v8507
    %v8590 = vunpack.c.l.b16 %v8508
    %v8591 = vunpack.c.h.b16 %v8508
    %v8592 = vunpack.c.l.b16 %v8509
    %v8593 = vunpack.c.h.b16 %v8509
    %v8594 = vunpack.c.l.b16 %v8510
    %v8595 = vunpack.c.h.b16 %v8510
    %v8596 = vunpack.c.l.b16 %v8511
    %v8597 = vunpack.c.h.b16 %v8511
    %v8598 = vunpack.c.l.b16 %v8512
    %v8599 = vunpack.c.h.b16 %v8512
    %v8600 = vunpack.c.l.b16 %v8513
    %v8601 = vunpack.c.h.b16 %v8513
    %v8602 = vunpack.c.l.b16 %v8514
    %v8603 = vunpack.c.h.b16 %v8514
    %v8604 = vunpack.c.l.b16 %v8515
    %v8605 = vunpack.c.h.b16 %v8515
    %v8606 = vunpack.c.l.b16 %v8516
    %v8607 = vunpack.c.h.b16 %v8516
    %v8608 = vunpack.c.l.b16 %v8517
    %v8609 = vunpack.c.h.b16 %v8517
    %v8610 = vunpack.c.l.b16 %v8518
    %v8611 = vunpack.c.h.b16 %v8518
    %v8612 = vunpack.c.l.b16 %v8519
    %v8613 = vunpack.c.h.b16 %v8519
    %v8614 = vunpack.c.l.b16 %v8520
    %v8615 = vunpack.c.h.b16 %v8520
    %v8616 = vunpack.c.l.b16 %v8521
    %v8617 = vunpack.c.h.b16 %v8521
    %v8618 = vpack.c.b16 %v8558, %v8554
    %v8619 = vpack.c.b16 %v8559, %v8555
    %v8620 = vpack.c.b16 %v8560, %v8556
    %v8621 = vpack.c.b16 %v8561, %v8557
    %v8622 = vpack.c.b16 %v8566, %v8562
    %v8623 = vpack.c.b16 %v8567, %v8563
    %v8624 = vpack.c.b16 %v8568, %v8564
    %v8625 = vpack.c.b16 %v8569, %v8565
    %v8626 = vpack.c.b16 %v8574, %v8570
    %v8627 = vpack.c.b16 %v8575, %v8571
    %v8628 = vpack.c.b16 %v8576, %v8572
    %v8629 = vpack.c.b16 %v8577, %v8573
    %v8630 = vpack.c.b16 %v8582, %v8578
    %v8631 = vpack.c.b16 %v8583, %v8579
    %v8632 = vpack.c.b16 %v8584, %v8580
    %v8633 = vpack.c.b16 %v8585, %v8581
    %v8634 = vpack.c.b16 %v8590, %v8586
    %v8635 = vpack.c.b16 %v8591, %v8587
    %v8636 = vpack.c.b16 %v8592, %v8588
    %v8637 = vpack.c.b16 %v8593, %v8589
    %v8638 = vpack.c.b16 %v8598, %v8594
    %v8639 = vpack.c.b16 %v8599, %v8595
    %v8640 = vpack.c.b16 %v8600, %v8596
    %v8641 = vpack.c.b16 %v8601, %v8597
    %v8642 = vpack.c.b16 %v8606, %v8602
    %v8643 = vpack.c.b16 %v8607, %v8603
    %v8644 = vpack.c.b16 %v8608, %v8604
    %v8645 = vpack.c.b16 %v8609, %v8605
    %v8646 = vpack.c.b16 %v8614, %v8610
    %v8647 = vpack.c.b16 %v8615, %v8611
    %v8648 = vpack.c.b16 %v8616, %v8612
    %v8649 = vpack.c.b16 %v8617, %v8613
    %8682 = vmatpush.bf16.msra.mxu0 %v8646
    %8683 = vmatpush.bf16.msra.mxu0 %v8642
    %8684 = vmatpush.bf16.msra.mxu0 %v8638
    %8685 = vmatpush.bf16.msra.mxu0 %v8634
    %8686 = vmatpush.bf16.msra.mxu0 %v8630
    %8687 = vmatpush.bf16.msra.mxu0 %v8626
    %8688 = vmatpush.bf16.msra.mxu0 %v8622
    %8689 = vmatpush.bf16.msra.mxu0 %v8618
    %8690 = vmatmul.bf16.gmra.mxu0 %v8489
    %v8691 = vpop.f32.mrf.mxu0
    %v8692 = vadd.f32 0.0, %v8691
    %v8693 = vpop.f32.mrf.mxu0
    %8694 = vdwg.mxu0
    %8695 = vmatpush.bf16.msra.mxu0 %v8647
    %8696 = vmatpush.bf16.msra.mxu0 %v8643
    %8697 = vmatpush.bf16.msra.mxu0 %v8639
    %8698 = vmatpush.bf16.msra.mxu0 %v8635
    %8699 = vmatpush.bf16.msra.mxu0 %v8631
    %8700 = vmatpush.bf16.msra.mxu0 %v8627
    %8701 = vmatpush.bf16.msra.mxu0 %v8623
    %8702 = vmatpush.bf16.msra.mxu0 %v8619
    %8703 = vmatmul.bf16.gmra.mxu0 %v8489
    %v8704 = vpop.f32.mrf.mxu0
    %v8705 = vadd.f32 0.0, %v8704
    %v8706 = vpop.f32.mrf.mxu0
    %8707 = vdwg.mxu0
    %8708 = vmatpush.bf16.msra.mxu0 %v8648
    %8709 = vmatpush.bf16.msra.mxu0 %v8644
    %8710 = vmatpush.bf16.msra.mxu0 %v8640
    %8711 = vmatpush.bf16.msra.mxu0 %v8636
    %8712 = vmatpush.bf16.msra.mxu0 %v8632
    %8713 = vmatpush.bf16.msra.mxu0 %v8628
    %8714 = vmatpush.bf16.msra.mxu0 %v8624
    %8715 = vmatpush.bf16.msra.mxu0 %v8620
    %8716 = vmatmul.bf16.gmra.mxu0 %v8489
    %v8717 = vpop.f32.mrf.mxu0
    %v8718 = vadd.f32 0.0, %v8717
    %v8719 = vpop.f32.mrf.mxu0
    %8720 = vdwg.mxu0
    %8721 = vmatpush.bf16.msra.mxu0 %v8649
    %8722 = vmatpush.bf16.msra.mxu0 %v8645
    %8723 = vmatpush.bf16.msra.mxu0 %v8641
    %8724 = vmatpush.bf16.msra.mxu0 %v8637
    %8725 = vmatpush.bf16.msra.mxu0 %v8633
    %8726 = vmatpush.bf16.msra.mxu0 %v8629
    %8727 = vmatpush.bf16.msra.mxu0 %v8625
    %8728 = vmatpush.bf16.msra.mxu0 %v8621
    %8729 = vmatmul.bf16.gmra.mxu0 %v8489
    %v8730 = vpop.f32.mrf.mxu0
    %v8731 = vadd.f32 0.0, %v8730
    %v8732 = vpop.f32.mrf.mxu0
    %8733 = vdwg.mxu0
    %v8734 = vadd.f32 %v8485, %v8692
    %v8735 = vadd.f32 %v8486, %v8705
    %v8736 = vadd.f32 %v8487, %v8718
    %v8737 = vadd.f32 %v8488, %v8731
    %v8738 = vxor.u32 %v8734, 2147483648
    %v8739 = vxor.u32 %v8735, 2147483648
    %v8740 = vxor.u32 %v8736, 2147483648
    %v8741 = vmul.f32 %v8738, 1.442695
    %v8742 = vpow.pop %v8741
    %v8743 = vmul.f32 %v8739, 1.442695
    %v8744 = vpow.pop %v8743
    %v8745 = vmul.f32 %v8740, 1.442695
    %v8746 = vpow.pop %v8745
    %v8747 = vadd.f32 %v8742, 1.0
    %v8748 = vadd.f32 %v8744, 1.0
    %v8749 = vadd.f32 %v8746, 1.0
    %v8750 = vrcp.pop %v8747
    %v8751 = vmul.f32 %v8747, %v8750
    %v8752 = vsub.f32 1.0, %v8751
    %v8753 = vmul.f32 %v8750, %v8752
    %v8754 = vadd.f32 %v8750, %v8753
    %vm8755 = vweird.f32 %v8747
    %vm8756 = vweird.f32 %v8750
    %vm8757 = vmor %vm8755, %vm8756
    %v8758 = vsel %vm8757, %v8750, %v8754
    %v8759 = vand.u32 2147483647, %v8747
    %vm8760 = vcmp.eq.f32.partialorder %v8759, 8.507059e+37
    %v8761 = vand.u32 %v8747, 2147483648
    %v8762 = vor.u32 1.1754944e-38, %v8761
    %v8763 = vsel %vm8760, %v8762, %v8758
    %v8764 = vmul.f32 1.0, %v8763
    %v8765 = vrcp.pop %v8748
    %v8766 = vmul.f32 %v8748, %v8765
    %v8767 = vsub.f32 1.0, %v8766
    %v8768 = vmul.f32 %v8765, %v8767
    %v8769 = vadd.f32 %v8765, %v8768
    %vm8770 = vweird.f32 %v8748
    %vm8771 = vweird.f32 %v8765
    %vm8772 = vmor %vm8770, %vm8771
    %v8773 = vsel %vm8772, %v8765, %v8769
    %v8774 = vand.u32 2147483647, %v8748
    %vm8775 = vcmp.eq.f32.partialorder %v8774, 8.507059e+37
    %v8776 = vand.u32 %v8748, 2147483648
    %v8777 = vor.u32 1.1754944e-38, %v8776
    %v8778 = vsel %vm8775, %v8777, %v8773
    %v8779 = vmul.f32 1.0, %v8778
    %v8780 = vrcp.pop %v8749
    %v8781 = vmul.f32 %v8749, %v8780
    %v8782 = vsub.f32 1.0, %v8781
    %v8783 = vmul.f32 %v8780, %v8782
    %v8784 = vadd.f32 %v8780, %v8783
    %vm8785 = vweird.f32 %v8749
    %vm8786 = vweird.f32 %v8780
    %vm8787 = vmor %vm8785, %vm8786
    %v8788 = vsel %vm8787, %v8780, %v8784
    %v8789 = vand.u32 2147483647, %v8749
    %vm8790 = vcmp.eq.f32.partialorder %v8789, 8.507059e+37
    %v8791 = vand.u32 %v8749, 2147483648
    %v8792 = vor.u32 1.1754944e-38, %v8791
    %v8793 = vsel %vm8790, %v8792, %v8788
    %v8794 = vmul.f32 1.0, %v8793
    %v8795 = vtanh.pop %v8737
    %v8796 = vmul.f32 %v8779, %v7298
    %v8797 = vmul.f32 %v8764, %v8795
    %v8798 = vadd.f32 %v8796, %v8797
    %v8799 = vtanh.pop %v8798
    %v8800 = vmul.f32 %v8794, %v8799
    %v8801 = vpack.c.bf16 %v7852, %v7852
    %v8802 = vld [vmem:[#allocation7] sm:$0xff]
    %v8803 = vld [vmem:[#allocation7 + $0x8] sm:$0xff]
    %v8804 = vld [vmem:[#allocation7 + $0x10] sm:$0xff]
    %v8805 = vld [vmem:[#allocation7 + $0x18] sm:$0xff]
    %v8806 = vld [vmem:[#allocation7 + $0x20] sm:$0xff]
    %v8807 = vld [vmem:[#allocation7 + $0x28] sm:$0xff]
    %v8808 = vld [vmem:[#allocation7 + $0x30] sm:$0xff]
    %v8809 = vld [vmem:[#allocation7 + $0x38] sm:$0xff]
    %v8810 = vld [vmem:[#allocation7 + $0x40] sm:$0xff]
    %v8811 = vld [vmem:[#allocation7 + $0x48] sm:$0xff]
    %v8812 = vld [vmem:[#allocation7 + $0x50] sm:$0xff]
    %v8813 = vld [vmem:[#allocation7 + $0x58] sm:$0xff]
    %v8814 = vld [vmem:[#allocation7 + $0x60] sm:$0xff]
    %v8815 = vld [vmem:[#allocation7 + $0x68] sm:$0xff]
    %v8816 = vld [vmem:[#allocation7 + $0x70] sm:$0xff]
    %v8817 = vld [vmem:[#allocation7 + $0x78] sm:$0xff]
    %v8818 = vld [vmem:[#allocation7 + $0x80] sm:$0xff]
    %v8819 = vld [vmem:[#allocation7 + $0x88] sm:$0xff]
    %v8820 = vld [vmem:[#allocation7 + $0x90] sm:$0xff]
    %v8821 = vld [vmem:[#allocation7 + $0x98] sm:$0xff]
    %v8822 = vld [vmem:[#allocation7 + $0xa0] sm:$0xff]
    %v8823 = vld [vmem:[#allocation7 + $0xa8] sm:$0xff]
    %v8824 = vld [vmem:[#allocation7 + $0xb0] sm:$0xff]
    %v8825 = vld [vmem:[#allocation7 + $0xb8] sm:$0xff]
    %v8826 = vld [vmem:[#allocation7 + $0xc0] sm:$0xff]
    %v8827 = vld [vmem:[#allocation7 + $0xc8] sm:$0xff]
    %v8828 = vld [vmem:[#allocation7 + $0xd0] sm:$0xff]
    %v8829 = vld [vmem:[#allocation7 + $0xd8] sm:$0xff]
    %v8830 = vld [vmem:[#allocation7 + $0xe0] sm:$0xff]
    %v8831 = vld [vmem:[#allocation7 + $0xe8] sm:$0xff]
    %v8832 = vld [vmem:[#allocation7 + $0xf0] sm:$0xff]
    %v8833 = vld [vmem:[#allocation7 + $0xf8] sm:$0xff]
    %v8834 = vld [vmem:[#allocation7 + $0x100] sm:$0xff]
    %v8835 = vld [vmem:[#allocation7 + $0x108] sm:$0xff]
    %v8836 = vld [vmem:[#allocation7 + $0x110] sm:$0xff]
    %v8837 = vld [vmem:[#allocation7 + $0x118] sm:$0xff]
    %v8838 = vld [vmem:[#allocation7 + $0x120] sm:$0xff]
    %v8839 = vld [vmem:[#allocation7 + $0x128] sm:$0xff]
    %v8840 = vld [vmem:[#allocation7 + $0x130] sm:$0xff]
    %v8841 = vld [vmem:[#allocation7 + $0x138] sm:$0xff]
    %v8842 = vld [vmem:[#allocation7 + $0x140] sm:$0xff]
    %v8843 = vld [vmem:[#allocation7 + $0x148] sm:$0xff]
    %v8844 = vld [vmem:[#allocation7 + $0x150] sm:$0xff]
    %v8845 = vld [vmem:[#allocation7 + $0x158] sm:$0xff]
    %v8846 = vld [vmem:[#allocation7 + $0x160] sm:$0xff]
    %v8847 = vld [vmem:[#allocation7 + $0x168] sm:$0xff]
    %v8848 = vld [vmem:[#allocation7 + $0x170] sm:$0xff]
    %v8849 = vld [vmem:[#allocation7 + $0x178] sm:$0xff]
    %v8850 = vld [vmem:[#allocation7 + $0x180] sm:$0xff]
    %v8851 = vld [vmem:[#allocation7 + $0x188] sm:$0xff]
    %v8852 = vld [vmem:[#allocation7 + $0x190] sm:$0xff]
    %v8853 = vld [vmem:[#allocation7 + $0x198] sm:$0xff]
    %v8854 = vld [vmem:[#allocation7 + $0x1a0] sm:$0xff]
    %v8855 = vld [vmem:[#allocation7 + $0x1a8] sm:$0xff]
    %v8856 = vld [vmem:[#allocation7 + $0x1b0] sm:$0xff]
    %v8857 = vld [vmem:[#allocation7 + $0x1b8] sm:$0xff]
    %v8858 = vld [vmem:[#allocation7 + $0x1c0] sm:$0xff]
    %v8859 = vld [vmem:[#allocation7 + $0x1c8] sm:$0xff]
    %v8860 = vld [vmem:[#allocation7 + $0x1d0] sm:$0xff]
    %v8861 = vld [vmem:[#allocation7 + $0x1d8] sm:$0xff]
    %v8862 = vld [vmem:[#allocation7 + $0x1e0] sm:$0xff]
    %v8863 = vld [vmem:[#allocation7 + $0x1e8] sm:$0xff]
    %v8864 = vld [vmem:[#allocation7 + $0x1f0] sm:$0xff]
    %v8865 = vld [vmem:[#allocation7 + $0x1f8] sm:$0xff]
    %v8930 = vunpack.c.l.b16 %v8802
    %v8931 = vunpack.c.h.b16 %v8802
    %v8932 = vunpack.c.l.b16 %v8803
    %v8933 = vunpack.c.h.b16 %v8803
    %v8934 = vunpack.c.l.b16 %v8804
    %v8935 = vunpack.c.h.b16 %v8804
    %v8936 = vunpack.c.l.b16 %v8805
    %v8937 = vunpack.c.h.b16 %v8805
    %v8938 = vunpack.c.l.b16 %v8806
    %v8939 = vunpack.c.h.b16 %v8806
    %v8940 = vunpack.c.l.b16 %v8807
    %v8941 = vunpack.c.h.b16 %v8807
    %v8942 = vunpack.c.l.b16 %v8808
    %v8943 = vunpack.c.h.b16 %v8808
    %v8944 = vunpack.c.l.b16 %v8809
    %v8945 = vunpack.c.h.b16 %v8809
    %v8946 = vunpack.c.l.b16 %v8810
    %v8947 = vunpack.c.h.b16 %v8810
    %v8948 = vunpack.c.l.b16 %v8811
    %v8949 = vunpack.c.h.b16 %v8811
    %v8950 = vunpack.c.l.b16 %v8812
    %v8951 = vunpack.c.h.b16 %v8812
    %v8952 = vunpack.c.l.b16 %v8813
    %v8953 = vunpack.c.h.b16 %v8813
    %v8954 = vunpack.c.l.b16 %v8814
    %v8955 = vunpack.c.h.b16 %v8814
    %v8956 = vunpack.c.l.b16 %v8815
    %v8957 = vunpack.c.h.b16 %v8815
    %v8958 = vunpack.c.l.b16 %v8816
    %v8959 = vunpack.c.h.b16 %v8816
    %v8960 = vunpack.c.l.b16 %v8817
    %v8961 = vunpack.c.h.b16 %v8817
    %v8962 = vunpack.c.l.b16 %v8818
    %v8963 = vunpack.c.h.b16 %v8818
    %v8964 = vunpack.c.l.b16 %v8819
    %v8965 = vunpack.c.h.b16 %v8819
    %v8966 = vunpack.c.l.b16 %v8820
    %v8967 = vunpack.c.h.b16 %v8820
    %v8968 = vunpack.c.l.b16 %v8821
    %v8969 = vunpack.c.h.b16 %v8821
    %v8970 = vunpack.c.l.b16 %v8822
    %v8971 = vunpack.c.h.b16 %v8822
    %v8972 = vunpack.c.l.b16 %v8823
    %v8973 = vunpack.c.h.b16 %v8823
    %v8974 = vunpack.c.l.b16 %v8824
    %v8975 = vunpack.c.h.b16 %v8824
    %v8976 = vunpack.c.l.b16 %v8825
    %v8977 = vunpack.c.h.b16 %v8825
    %v8978 = vunpack.c.l.b16 %v8826
    %v8979 = vunpack.c.h.b16 %v8826
    %v8980 = vunpack.c.l.b16 %v8827
    %v8981 = vunpack.c.h.b16 %v8827
    %v8982 = vunpack.c.l.b16 %v8828
    %v8983 = vunpack.c.h.b16 %v8828
    %v8984 = vunpack.c.l.b16 %v8829
    %v8985 = vunpack.c.h.b16 %v8829
    %v8986 = vunpack.c.l.b16 %v8830
    %v8987 = vunpack.c.h.b16 %v8830
    %v8988 = vunpack.c.l.b16 %v8831
    %v8989 = vunpack.c.h.b16 %v8831
    %v8990 = vunpack.c.l.b16 %v8832
    %v8991 = vunpack.c.h.b16 %v8832
    %v8992 = vunpack.c.l.b16 %v8833
    %v8993 = vunpack.c.h.b16 %v8833
    %v8994 = vunpack.c.l.b16 %v8834
    %v8995 = vunpack.c.h.b16 %v8834
    %v8996 = vunpack.c.l.b16 %v8835
    %v8997 = vunpack.c.h.b16 %v8835
    %v8998 = vunpack.c.l.b16 %v8836
    %v8999 = vunpack.c.h.b16 %v8836
    %v9000 = vunpack.c.l.b16 %v8837
    %v9001 = vunpack.c.h.b16 %v8837
    %v9002 = vunpack.c.l.b16 %v8838
    %v9003 = vunpack.c.h.b16 %v8838
    %v9004 = vunpack.c.l.b16 %v8839
    %v9005 = vunpack.c.h.b16 %v8839
    %v9006 = vunpack.c.l.b16 %v8840
    %v9007 = vunpack.c.h.b16 %v8840
    %v9008 = vunpack.c.l.b16 %v8841
    %v9009 = vunpack.c.h.b16 %v8841
    %v9010 = vunpack.c.l.b16 %v8842
    %v9011 = vunpack.c.h.b16 %v8842
    %v9012 = vunpack.c.l.b16 %v8843
    %v9013 = vunpack.c.h.b16 %v8843
    %v9014 = vunpack.c.l.b16 %v8844
    %v9015 = vunpack.c.h.b16 %v8844
    %v9016 = vunpack.c.l.b16 %v8845
    %v9017 = vunpack.c.h.b16 %v8845
    %v9018 = vunpack.c.l.b16 %v8846
    %v9019 = vunpack.c.h.b16 %v8846
    %v9020 = vunpack.c.l.b16 %v8847
    %v9021 = vunpack.c.h.b16 %v8847
    %v9022 = vunpack.c.l.b16 %v8848
    %v9023 = vunpack.c.h.b16 %v8848
    %v9024 = vunpack.c.l.b16 %v8849
    %v9025 = vunpack.c.h.b16 %v8849
    %v9026 = vunpack.c.l.b16 %v8850
    %v9027 = vunpack.c.h.b16 %v8850
    %v9028 = vunpack.c.l.b16 %v8851
    %v9029 = vunpack.c.h.b16 %v8851
    %v9030 = vunpack.c.l.b16 %v8852
    %v9031 = vunpack.c.h.b16 %v8852
    %v9032 = vunpack.c.l.b16 %v8853
    %v9033 = vunpack.c.h.b16 %v8853
    %v9034 = vunpack.c.l.b16 %v8854
    %v9035 = vunpack.c.h.b16 %v8854
    %v9036 = vunpack.c.l.b16 %v8855
    %v9037 = vunpack.c.h.b16 %v8855
    %v9038 = vunpack.c.l.b16 %v8856
    %v9039 = vunpack.c.h.b16 %v8856
    %v9040 = vunpack.c.l.b16 %v8857
    %v9041 = vunpack.c.h.b16 %v8857
    %v9042 = vunpack.c.l.b16 %v8858
    %v9043 = vunpack.c.h.b16 %v8858
    %v9044 = vunpack.c.l.b16 %v8859
    %v9045 = vunpack.c.h.b16 %v8859
    %v9046 = vunpack.c.l.b16 %v8860
    %v9047 = vunpack.c.h.b16 %v8860
    %v9048 = vunpack.c.l.b16 %v8861
    %v9049 = vunpack.c.h.b16 %v8861
    %v9050 = vunpack.c.l.b16 %v8862
    %v9051 = vunpack.c.h.b16 %v8862
    %v9052 = vunpack.c.l.b16 %v8863
    %v9053 = vunpack.c.h.b16 %v8863
    %v9054 = vunpack.c.l.b16 %v8864
    %v9055 = vunpack.c.h.b16 %v8864
    %v9056 = vunpack.c.l.b16 %v8865
    %v9057 = vunpack.c.h.b16 %v8865
    %v9058 = vpack.c.b16 %v8934, %v8930
    %v9059 = vpack.c.b16 %v8935, %v8931
    %v9060 = vpack.c.b16 %v8936, %v8932
    %v9061 = vpack.c.b16 %v8937, %v8933
    %v9062 = vpack.c.b16 %v8942, %v8938
    %v9063 = vpack.c.b16 %v8943, %v8939
    %v9064 = vpack.c.b16 %v8944, %v8940
    %v9065 = vpack.c.b16 %v8945, %v8941
    %v9066 = vpack.c.b16 %v8950, %v8946
    %v9067 = vpack.c.b16 %v8951, %v8947
    %v9068 = vpack.c.b16 %v8952, %v8948
    %v9069 = vpack.c.b16 %v8953, %v8949
    %v9070 = vpack.c.b16 %v8958, %v8954
    %v9071 = vpack.c.b16 %v8959, %v8955
    %v9072 = vpack.c.b16 %v8960, %v8956
    %v9073 = vpack.c.b16 %v8961, %v8957
    %v9074 = vpack.c.b16 %v8966, %v8962
    %v9075 = vpack.c.b16 %v8967, %v8963
    %v9076 = vpack.c.b16 %v8968, %v8964
    %v9077 = vpack.c.b16 %v8969, %v8965
    %v9078 = vpack.c.b16 %v8974, %v8970
    %v9079 = vpack.c.b16 %v8975, %v8971
    %v9080 = vpack.c.b16 %v8976, %v8972
    %v9081 = vpack.c.b16 %v8977, %v8973
    %v9082 = vpack.c.b16 %v8982, %v8978
    %v9083 = vpack.c.b16 %v8983, %v8979
    %v9084 = vpack.c.b16 %v8984, %v8980
    %v9085 = vpack.c.b16 %v8985, %v8981
    %v9086 = vpack.c.b16 %v8990, %v8986
    %v9087 = vpack.c.b16 %v8991, %v8987
    %v9088 = vpack.c.b16 %v8992, %v8988
    %v9089 = vpack.c.b16 %v8993, %v8989
    %v9090 = vpack.c.b16 %v8998, %v8994
    %v9091 = vpack.c.b16 %v8999, %v8995
    %v9092 = vpack.c.b16 %v9000, %v8996
    %v9093 = vpack.c.b16 %v9001, %v8997
    %v9094 = vpack.c.b16 %v9006, %v9002
    %v9095 = vpack.c.b16 %v9007, %v9003
    %v9096 = vpack.c.b16 %v9008, %v9004
    %v9097 = vpack.c.b16 %v9009, %v9005
    %v9098 = vpack.c.b16 %v9014, %v9010
    %v9099 = vpack.c.b16 %v9015, %v9011
    %v9100 = vpack.c.b16 %v9016, %v9012
    %v9101 = vpack.c.b16 %v9017, %v9013
    %v9102 = vpack.c.b16 %v9022, %v9018
    %v9103 = vpack.c.b16 %v9023, %v9019
    %v9104 = vpack.c.b16 %v9024, %v9020
    %v9105 = vpack.c.b16 %v9025, %v9021
    %v9106 = vpack.c.b16 %v9030, %v9026
    %v9107 = vpack.c.b16 %v9031, %v9027
    %v9108 = vpack.c.b16 %v9032, %v9028
    %v9109 = vpack.c.b16 %v9033, %v9029
    %v9110 = vpack.c.b16 %v9038, %v9034
    %v9111 = vpack.c.b16 %v9039, %v9035
    %v9112 = vpack.c.b16 %v9040, %v9036
    %v9113 = vpack.c.b16 %v9041, %v9037
    %v9114 = vpack.c.b16 %v9046, %v9042
    %v9115 = vpack.c.b16 %v9047, %v9043
    %v9116 = vpack.c.b16 %v9048, %v9044
    %v9117 = vpack.c.b16 %v9049, %v9045
    %v9118 = vpack.c.b16 %v9054, %v9050
    %v9119 = vpack.c.b16 %v9055, %v9051
    %v9120 = vpack.c.b16 %v9056, %v9052
    %v9121 = vpack.c.b16 %v9057, %v9053
    %9186 = vmatpush.bf16.msra.mxu0 %v9086
    %9187 = vmatpush.bf16.msra.mxu0 %v9082
    %9188 = vmatpush.bf16.msra.mxu0 %v9078
    %9189 = vmatpush.bf16.msra.mxu0 %v9074
    %9190 = vmatpush.bf16.msra.mxu0 %v9070
    %9191 = vmatpush.bf16.msra.mxu0 %v9066
    %9192 = vmatpush.bf16.msra.mxu0 %v9062
    %9193 = vmatpush.bf16.msra.mxu0 %v9058
    %9194 = vmatmul.bf16.gmra.mxu0 %v8489
    %v9195 = vpop.f32.mrf.mxu0
    %v9196 = vadd.f32 %v1052, %v9195
    %v9197 = vpop.f32.mrf.mxu0
    %9198 = vdwg.mxu0
    %9199 = vmatpush.bf16.msra.mxu0 %v9118
    %9200 = vmatpush.bf16.msra.mxu0 %v9114
    %9201 = vmatpush.bf16.msra.mxu0 %v9110
    %9202 = vmatpush.bf16.msra.mxu0 %v9106
    %9203 = vmatpush.bf16.msra.mxu0 %v9102
    %9204 = vmatpush.bf16.msra.mxu0 %v9098
    %9205 = vmatpush.bf16.msra.mxu0 %v9094
    %9206 = vmatpush.bf16.msra.mxu0 %v9090
    %9207 = vmatmul.bf16.gmra.mxu0 %v8801
    %v9208 = vpop.f32.mrf.mxu0
    %v9209 = vadd.f32 %v9196, %v9208
    %v9210 = vpop.f32.mrf.mxu0
    %9211 = vdwg.mxu0
    %9212 = vmatpush.bf16.msra.mxu0 %v9087
    %9213 = vmatpush.bf16.msra.mxu0 %v9083
    %9214 = vmatpush.bf16.msra.mxu0 %v9079
    %9215 = vmatpush.bf16.msra.mxu0 %v9075
    %9216 = vmatpush.bf16.msra.mxu0 %v9071
    %9217 = vmatpush.bf16.msra.mxu0 %v9067
    %9218 = vmatpush.bf16.msra.mxu0 %v9063
    %9219 = vmatpush.bf16.msra.mxu0 %v9059
    %9220 = vmatmul.bf16.gmra.mxu0 %v8489
    %v9221 = vpop.f32.mrf.mxu0
    %v9222 = vadd.f32 %v1053, %v9221
    %v9223 = vpop.f32.mrf.mxu0
    %9224 = vdwg.mxu0
    %9225 = vmatpush.bf16.msra.mxu0 %v9119
    %9226 = vmatpush.bf16.msra.mxu0 %v9115
    %9227 = vmatpush.bf16.msra.mxu0 %v9111
    %9228 = vmatpush.bf16.msra.mxu0 %v9107
    %9229 = vmatpush.bf16.msra.mxu0 %v9103
    %9230 = vmatpush.bf16.msra.mxu0 %v9099
    %9231 = vmatpush.bf16.msra.mxu0 %v9095
    %9232 = vmatpush.bf16.msra.mxu0 %v9091
    %9233 = vmatmul.bf16.gmra.mxu0 %v8801
    %v9234 = vpop.f32.mrf.mxu0
    %v9235 = vadd.f32 %v9222, %v9234
    %v9236 = vpop.f32.mrf.mxu0
    %9237 = vdwg.mxu0
    %9238 = vmatpush.bf16.msra.mxu0 %v9088
    %9239 = vmatpush.bf16.msra.mxu0 %v9084
    %9240 = vmatpush.bf16.msra.mxu0 %v9080
    %9241 = vmatpush.bf16.msra.mxu0 %v9076
    %9242 = vmatpush.bf16.msra.mxu0 %v9072
    %9243 = vmatpush.bf16.msra.mxu0 %v9068
    %9244 = vmatpush.bf16.msra.mxu0 %v9064
    %9245 = vmatpush.bf16.msra.mxu0 %v9060
    %9246 = vmatmul.bf16.gmra.mxu0 %v8489
    %v9247 = vpop.f32.mrf.mxu0
    %v9248 = vadd.f32 %v1054, %v9247
    %v9249 = vpop.f32.mrf.mxu0
    %9250 = vdwg.mxu0
    %9251 = vmatpush.bf16.msra.mxu0 %v9120
    %9252 = vmatpush.bf16.msra.mxu0 %v9116
    %9253 = vmatpush.bf16.msra.mxu0 %v9112
    %9254 = vmatpush.bf16.msra.mxu0 %v9108
    %9255 = vmatpush.bf16.msra.mxu0 %v9104
    %9256 = vmatpush.bf16.msra.mxu0 %v9100
    %9257 = vmatpush.bf16.msra.mxu0 %v9096
    %9258 = vmatpush.bf16.msra.mxu0 %v9092
    %9259 = vmatmul.bf16.gmra.mxu0 %v8801
    %v9260 = vpop.f32.mrf.mxu0
    %v9261 = vadd.f32 %v9248, %v9260
    %v9262 = vpop.f32.mrf.mxu0
    %9263 = vdwg.mxu0
    %9264 = vmatpush.bf16.msra.mxu0 %v9089
    %9265 = vmatpush.bf16.msra.mxu0 %v9085
    %9266 = vmatpush.bf16.msra.mxu0 %v9081
    %9267 = vmatpush.bf16.msra.mxu0 %v9077
    %9268 = vmatpush.bf16.msra.mxu0 %v9073
    %9269 = vmatpush.bf16.msra.mxu0 %v9069
    %9270 = vmatpush.bf16.msra.mxu0 %v9065
    %9271 = vmatpush.bf16.msra.mxu0 %v9061
    %9272 = vmatmul.bf16.gmra.mxu0 %v8489
    %v9273 = vpop.f32.mrf.mxu0
    %v9274 = vadd.f32 %v1055, %v9273
    %v9275 = vpop.f32.mrf.mxu0
    %9276 = vdwg.mxu0
    %9277 = vmatpush.bf16.msra.mxu0 %v9121
    %9278 = vmatpush.bf16.msra.mxu0 %v9117
    %9279 = vmatpush.bf16.msra.mxu0 %v9113
    %9280 = vmatpush.bf16.msra.mxu0 %v9109
    %9281 = vmatpush.bf16.msra.mxu0 %v9105
    %9282 = vmatpush.bf16.msra.mxu0 %v9101
    %9283 = vmatpush.bf16.msra.mxu0 %v9097
    %9284 = vmatpush.bf16.msra.mxu0 %v9093
    %9285 = vmatmul.bf16.gmra.mxu0 %v8801
    %v9286 = vpop.f32.mrf.mxu0
    %v9287 = vadd.f32 %v9274, %v9286
    %v9288 = vpop.f32.mrf.mxu0
    %9289 = vdwg.mxu0
    %v9290 = vxor.u32 %v9209, 2147483648
    %v9291 = vxor.u32 %v9235, 2147483648
    %v9292 = vxor.u32 %v9261, 2147483648
    %v9293 = vmul.f32 %v9290, 1.442695
    %v9294 = vpow.pop %v9293
    %v9295 = vmul.f32 %v9291, 1.442695
    %v9296 = vpow.pop %v9295
    %v9297 = vmul.f32 %v9292, 1.442695
    %v9298 = vpow.pop %v9297
    %v9299 = vadd.f32 %v9294, 1.0
    %v9300 = vadd.f32 %v9296, 1.0
    %v9301 = vadd.f32 %v9298, 1.0
    %v9302 = vrcp.pop %v9299
    %v9303 = vmul.f32 %v9299, %v9302
    %v9304 = vsub.f32 1.0, %v9303
    %v9305 = vmul.f32 %v9302, %v9304
    %v9306 = vadd.f32 %v9302, %v9305
    %vm9307 = vweird.f32 %v9299
    %vm9308 = vweird.f32 %v9302
    %vm9309 = vmor %vm9307, %vm9308
    %v9310 = vsel %vm9309, %v9302, %v9306
    %v9311 = vand.u32 2147483647, %v9299
    %vm9312 = vcmp.eq.f32.partialorder %v9311, 8.507059e+37
    %v9313 = vand.u32 %v9299, 2147483648
    %v9314 = vor.u32 1.1754944e-38, %v9313
    %v9315 = vsel %vm9312, %v9314, %v9310
    %v9316 = vmul.f32 1.0, %v9315
    %v9317 = vrcp.pop %v9300
    %v9318 = vmul.f32 %v9300, %v9317
    %v9319 = vsub.f32 1.0, %v9318
    %v9320 = vmul.f32 %v9317, %v9319
    %v9321 = vadd.f32 %v9317, %v9320
    %vm9322 = vweird.f32 %v9300
    %vm9323 = vweird.f32 %v9317
    %vm9324 = vmor %vm9322, %vm9323
    %v9325 = vsel %vm9324, %v9317, %v9321
    %v9326 = vand.u32 2147483647, %v9300
    %vm9327 = vcmp.eq.f32.partialorder %v9326, 8.507059e+37
    %v9328 = vand.u32 %v9300, 2147483648
    %v9329 = vor.u32 1.1754944e-38, %v9328
    %v9330 = vsel %vm9327, %v9329, %v9325
    %v9331 = vmul.f32 1.0, %v9330
    %v9332 = vrcp.pop %v9301
    %v9333 = vmul.f32 %v9301, %v9332
    %v9334 = vsub.f32 1.0, %v9333
    %v9335 = vmul.f32 %v9332, %v9334
    %v9336 = vadd.f32 %v9332, %v9335
    %vm9337 = vweird.f32 %v9301
    %vm9338 = vweird.f32 %v9332
    %vm9339 = vmor %vm9337, %vm9338
    %v9340 = vsel %vm9339, %v9332, %v9336
    %v9341 = vand.u32 2147483647, %v9301
    %vm9342 = vcmp.eq.f32.partialorder %v9341, 8.507059e+37
    %v9343 = vand.u32 %v9301, 2147483648
    %v9344 = vor.u32 1.1754944e-38, %v9343
    %v9345 = vsel %vm9342, %v9344, %v9340
    %v9346 = vmul.f32 1.0, %v9345
    %v9347 = vtanh.pop %v9287
    %v9348 = vmul.f32 %v9331, %v7850
    %v9349 = vmul.f32 %v9316, %v9347
    %v9350 = vadd.f32 %v9348, %v9349
    %v9351 = vtanh.pop %v9350
    %v9352 = vmul.f32 %v9346, %v9351
    %v9353 = vld [vmem:[%s1841] sm:$0xff]
    %v9354 = vld [vmem:[%s1841 + $0x8] sm:$0xff]
    %v9355 = vld [vmem:[%s1841 + $0x10] sm:$0xff]
    %v9356 = vld [vmem:[%s1841 + $0x18] sm:$0xff]
    %v9357 = vld [vmem:[%s1841 + $0x20] sm:$0xff]
    %v9358 = vld [vmem:[%s1841 + $0x28] sm:$0xff]
    %v9359 = vld [vmem:[%s1841 + $0x30] sm:$0xff]
    %v9360 = vld [vmem:[%s1841 + $0x38] sm:$0xff]
    %v9361 = vld [vmem:[%s1841 + $0x40] sm:$0xff]
    %v9362 = vld [vmem:[%s1841 + $0x48] sm:$0xff]
    %v9363 = vld [vmem:[%s1841 + $0x50] sm:$0xff]
    %v9364 = vld [vmem:[%s1841 + $0x58] sm:$0xff]
    %v9365 = vld [vmem:[%s1841 + $0x60] sm:$0xff]
    %v9366 = vld [vmem:[%s1841 + $0x68] sm:$0xff]
    %v9367 = vld [vmem:[%s1841 + $0x70] sm:$0xff]
    %v9368 = vld [vmem:[%s1841 + $0x78] sm:$0xff]
    %v9369 = vld [vmem:[%s1841 + $0x80] sm:$0xff]
    %v9370 = vld [vmem:[%s1841 + $0x88] sm:$0xff]
    %v9371 = vld [vmem:[%s1841 + $0x90] sm:$0xff]
    %v9372 = vld [vmem:[%s1841 + $0x98] sm:$0xff]
    %v9373 = vld [vmem:[%s1841 + $0xa0] sm:$0xff]
    %v9374 = vld [vmem:[%s1841 + $0xa8] sm:$0xff]
    %v9375 = vld [vmem:[%s1841 + $0xb0] sm:$0xff]
    %v9376 = vld [vmem:[%s1841 + $0xb8] sm:$0xff]
    %v9377 = vld [vmem:[%s1841 + $0xc0] sm:$0xff]
    %v9378 = vld [vmem:[%s1841 + $0xc8] sm:$0xff]
    %v9379 = vld [vmem:[%s1841 + $0xd0] sm:$0xff]
    %v9380 = vld [vmem:[%s1841 + $0xd8] sm:$0xff]
    %v9381 = vld [vmem:[%s1841 + $0xe0] sm:$0xff]
    %v9382 = vld [vmem:[%s1841 + $0xe8] sm:$0xff]
    %v9383 = vld [vmem:[%s1841 + $0xf0] sm:$0xff]
    %v9384 = vld [vmem:[%s1841 + $0xf8] sm:$0xff]
    %v9385 = vld [vmem:[%s1841 + $0x100] sm:$0xff]
    %v9386 = vld [vmem:[%s1841 + $0x108] sm:$0xff]
    %v9387 = vld [vmem:[%s1841 + $0x110] sm:$0xff]
    %v9388 = vld [vmem:[%s1841 + $0x118] sm:$0xff]
    %v9389 = vld [vmem:[%s1841 + $0x120] sm:$0xff]
    %v9390 = vld [vmem:[%s1841 + $0x128] sm:$0xff]
    %v9391 = vld [vmem:[%s1841 + $0x130] sm:$0xff]
    %v9392 = vld [vmem:[%s1841 + $0x138] sm:$0xff]
    %v9393 = vld [vmem:[%s1841 + $0x140] sm:$0xff]
    %v9394 = vld [vmem:[%s1841 + $0x148] sm:$0xff]
    %v9395 = vld [vmem:[%s1841 + $0x150] sm:$0xff]
    %v9396 = vld [vmem:[%s1841 + $0x158] sm:$0xff]
    %v9397 = vld [vmem:[%s1841 + $0x160] sm:$0xff]
    %v9398 = vld [vmem:[%s1841 + $0x168] sm:$0xff]
    %v9399 = vld [vmem:[%s1841 + $0x170] sm:$0xff]
    %v9400 = vld [vmem:[%s1841 + $0x178] sm:$0xff]
    %v9401 = vld [vmem:[%s1841 + $0x180] sm:$0xff]
    %v9402 = vld [vmem:[%s1841 + $0x188] sm:$0xff]
    %v9403 = vld [vmem:[%s1841 + $0x190] sm:$0xff]
    %v9404 = vld [vmem:[%s1841 + $0x198] sm:$0xff]
    %v9405 = vld [vmem:[%s1841 + $0x1a0] sm:$0xff]
    %v9406 = vld [vmem:[%s1841 + $0x1a8] sm:$0xff]
    %v9407 = vld [vmem:[%s1841 + $0x1b0] sm:$0xff]
    %v9408 = vld [vmem:[%s1841 + $0x1b8] sm:$0xff]
    %v9409 = vld [vmem:[%s1841 + $0x1c0] sm:$0xff]
    %v9410 = vld [vmem:[%s1841 + $0x1c8] sm:$0xff]
    %v9411 = vld [vmem:[%s1841 + $0x1d0] sm:$0xff]
    %v9412 = vld [vmem:[%s1841 + $0x1d8] sm:$0xff]
    %v9413 = vld [vmem:[%s1841 + $0x1e0] sm:$0xff]
    %v9414 = vld [vmem:[%s1841 + $0x1e8] sm:$0xff]
    %v9415 = vld [vmem:[%s1841 + $0x1f0] sm:$0xff]
    %v9416 = vld [vmem:[%s1841 + $0x1f8] sm:$0xff]
    %v9481 = vunpack.c.l.b16 %v9353
    %v9482 = vunpack.c.h.b16 %v9353
    %v9483 = vunpack.c.l.b16 %v9354
    %v9484 = vunpack.c.h.b16 %v9354
    %v9485 = vunpack.c.l.b16 %v9355
    %v9486 = vunpack.c.h.b16 %v9355
    %v9487 = vunpack.c.l.b16 %v9356
    %v9488 = vunpack.c.h.b16 %v9356
    %v9489 = vunpack.c.l.b16 %v9357
    %v9490 = vunpack.c.h.b16 %v9357
    %v9491 = vunpack.c.l.b16 %v9358
    %v9492 = vunpack.c.h.b16 %v9358
    %v9493 = vunpack.c.l.b16 %v9359
    %v9494 = vunpack.c.h.b16 %v9359
    %v9495 = vunpack.c.l.b16 %v9360
    %v9496 = vunpack.c.h.b16 %v9360
    %v9497 = vunpack.c.l.b16 %v9361
    %v9498 = vunpack.c.h.b16 %v9361
    %v9499 = vunpack.c.l.b16 %v9362
    %v9500 = vunpack.c.h.b16 %v9362
    %v9501 = vunpack.c.l.b16 %v9363
    %v9502 = vunpack.c.h.b16 %v9363
    %v9503 = vunpack.c.l.b16 %v9364
    %v9504 = vunpack.c.h.b16 %v9364
    %v9505 = vunpack.c.l.b16 %v9365
    %v9506 = vunpack.c.h.b16 %v9365
    %v9507 = vunpack.c.l.b16 %v9366
    %v9508 = vunpack.c.h.b16 %v9366
    %v9509 = vunpack.c.l.b16 %v9367
    %v9510 = vunpack.c.h.b16 %v9367
    %v9511 = vunpack.c.l.b16 %v9368
    %v9512 = vunpack.c.h.b16 %v9368
    %v9513 = vunpack.c.l.b16 %v9369
    %v9514 = vunpack.c.h.b16 %v9369
    %v9515 = vunpack.c.l.b16 %v9370
    %v9516 = vunpack.c.h.b16 %v9370
    %v9517 = vunpack.c.l.b16 %v9371
    %v9518 = vunpack.c.h.b16 %v9371
    %v9519 = vunpack.c.l.b16 %v9372
    %v9520 = vunpack.c.h.b16 %v9372
    %v9521 = vunpack.c.l.b16 %v9373
    %v9522 = vunpack.c.h.b16 %v9373
    %v9523 = vunpack.c.l.b16 %v9374
    %v9524 = vunpack.c.h.b16 %v9374
    %v9525 = vunpack.c.l.b16 %v9375
    %v9526 = vunpack.c.h.b16 %v9375
    %v9527 = vunpack.c.l.b16 %v9376
    %v9528 = vunpack.c.h.b16 %v9376
    %v9529 = vunpack.c.l.b16 %v9377
    %v9530 = vunpack.c.h.b16 %v9377
    %v9531 = vunpack.c.l.b16 %v9378
    %v9532 = vunpack.c.h.b16 %v9378
    %v9533 = vunpack.c.l.b16 %v9379
    %v9534 = vunpack.c.h.b16 %v9379
    %v9535 = vunpack.c.l.b16 %v9380
    %v9536 = vunpack.c.h.b16 %v9380
    %v9537 = vunpack.c.l.b16 %v9381
    %v9538 = vunpack.c.h.b16 %v9381
    %v9539 = vunpack.c.l.b16 %v9382
    %v9540 = vunpack.c.h.b16 %v9382
    %v9541 = vunpack.c.l.b16 %v9383
    %v9542 = vunpack.c.h.b16 %v9383
    %v9543 = vunpack.c.l.b16 %v9384
    %v9544 = vunpack.c.h.b16 %v9384
    %v9545 = vunpack.c.l.b16 %v9385
    %v9546 = vunpack.c.h.b16 %v9385
    %v9547 = vunpack.c.l.b16 %v9386
    %v9548 = vunpack.c.h.b16 %v9386
    %v9549 = vunpack.c.l.b16 %v9387
    %v9550 = vunpack.c.h.b16 %v9387
    %v9551 = vunpack.c.l.b16 %v9388
    %v9552 = vunpack.c.h.b16 %v9388
    %v9553 = vunpack.c.l.b16 %v9389
    %v9554 = vunpack.c.h.b16 %v9389
    %v9555 = vunpack.c.l.b16 %v9390
    %v9556 = vunpack.c.h.b16 %v9390
    %v9557 = vunpack.c.l.b16 %v9391
    %v9558 = vunpack.c.h.b16 %v9391
    %v9559 = vunpack.c.l.b16 %v9392
    %v9560 = vunpack.c.h.b16 %v9392
    %v9561 = vunpack.c.l.b16 %v9393
    %v9562 = vunpack.c.h.b16 %v9393
    %v9563 = vunpack.c.l.b16 %v9394
    %v9564 = vunpack.c.h.b16 %v9394
    %v9565 = vunpack.c.l.b16 %v9395
    %v9566 = vunpack.c.h.b16 %v9395
    %v9567 = vunpack.c.l.b16 %v9396
    %v9568 = vunpack.c.h.b16 %v9396
    %v9569 = vunpack.c.l.b16 %v9397
    %v9570 = vunpack.c.h.b16 %v9397
    %v9571 = vunpack.c.l.b16 %v9398
    %v9572 = vunpack.c.h.b16 %v9398
    %v9573 = vunpack.c.l.b16 %v9399
    %v9574 = vunpack.c.h.b16 %v9399
    %v9575 = vunpack.c.l.b16 %v9400
    %v9576 = vunpack.c.h.b16 %v9400
    %v9577 = vunpack.c.l.b16 %v9401
    %v9578 = vunpack.c.h.b16 %v9401
    %v9579 = vunpack.c.l.b16 %v9402
    %v9580 = vunpack.c.h.b16 %v9402
    %v9581 = vunpack.c.l.b16 %v9403
    %v9582 = vunpack.c.h.b16 %v9403
    %v9583 = vunpack.c.l.b16 %v9404
    %v9584 = vunpack.c.h.b16 %v9404
    %v9585 = vunpack.c.l.b16 %v9405
    %v9586 = vunpack.c.h.b16 %v9405
    %v9587 = vunpack.c.l.b16 %v9406
    %v9588 = vunpack.c.h.b16 %v9406
    %v9589 = vunpack.c.l.b16 %v9407
    %v9590 = vunpack.c.h.b16 %v9407
    %v9591 = vunpack.c.l.b16 %v9408
    %v9592 = vunpack.c.h.b16 %v9408
    %v9593 = vunpack.c.l.b16 %v9409
    %v9594 = vunpack.c.h.b16 %v9409
    %v9595 = vunpack.c.l.b16 %v9410
    %v9596 = vunpack.c.h.b16 %v9410
    %v9597 = vunpack.c.l.b16 %v9411
    %v9598 = vunpack.c.h.b16 %v9411
    %v9599 = vunpack.c.l.b16 %v9412
    %v9600 = vunpack.c.h.b16 %v9412
    %v9601 = vunpack.c.l.b16 %v9413
    %v9602 = vunpack.c.h.b16 %v9413
    %v9603 = vunpack.c.l.b16 %v9414
    %v9604 = vunpack.c.h.b16 %v9414
    %v9605 = vunpack.c.l.b16 %v9415
    %v9606 = vunpack.c.h.b16 %v9415
    %v9607 = vunpack.c.l.b16 %v9416
    %v9608 = vunpack.c.h.b16 %v9416
    %v9609 = vpack.c.b16 %v9485, %v9481
    %v9610 = vpack.c.b16 %v9486, %v9482
    %v9611 = vpack.c.b16 %v9487, %v9483
    %v9612 = vpack.c.b16 %v9488, %v9484
    %v9613 = vpack.c.b16 %v9493, %v9489
    %v9614 = vpack.c.b16 %v9494, %v9490
    %v9615 = vpack.c.b16 %v9495, %v9491
    %v9616 = vpack.c.b16 %v9496, %v9492
    %v9617 = vpack.c.b16 %v9501, %v9497
    %v9618 = vpack.c.b16 %v9502, %v9498
    %v9619 = vpack.c.b16 %v9503, %v9499
    %v9620 = vpack.c.b16 %v9504, %v9500
    %v9621 = vpack.c.b16 %v9509, %v9505
    %v9622 = vpack.c.b16 %v9510, %v9506
    %v9623 = vpack.c.b16 %v9511, %v9507
    %v9624 = vpack.c.b16 %v9512, %v9508
    %v9625 = vpack.c.b16 %v9517, %v9513
    %v9626 = vpack.c.b16 %v9518, %v9514
    %v9627 = vpack.c.b16 %v9519, %v9515
    %v9628 = vpack.c.b16 %v9520, %v9516
    %v9629 = vpack.c.b16 %v9525, %v9521
    %v9630 = vpack.c.b16 %v9526, %v9522
    %v9631 = vpack.c.b16 %v9527, %v9523
    %v9632 = vpack.c.b16 %v9528, %v9524
    %v9633 = vpack.c.b16 %v9533, %v9529
    %v9634 = vpack.c.b16 %v9534, %v9530
    %v9635 = vpack.c.b16 %v9535, %v9531
    %v9636 = vpack.c.b16 %v9536, %v9532
    %v9637 = vpack.c.b16 %v9541, %v9537
    %v9638 = vpack.c.b16 %v9542, %v9538
    %v9639 = vpack.c.b16 %v9543, %v9539
    %v9640 = vpack.c.b16 %v9544, %v9540
    %v9641 = vpack.c.b16 %v9549, %v9545
    %v9642 = vpack.c.b16 %v9550, %v9546
    %v9643 = vpack.c.b16 %v9551, %v9547
    %v9644 = vpack.c.b16 %v9552, %v9548
    %v9645 = vpack.c.b16 %v9557, %v9553
    %v9646 = vpack.c.b16 %v9558, %v9554
    %v9647 = vpack.c.b16 %v9559, %v9555
    %v9648 = vpack.c.b16 %v9560, %v9556
    %v9649 = vpack.c.b16 %v9565, %v9561
    %v9650 = vpack.c.b16 %v9566, %v9562
    %v9651 = vpack.c.b16 %v9567, %v9563
    %v9652 = vpack.c.b16 %v9568, %v9564
    %v9653 = vpack.c.b16 %v9573, %v9569
    %v9654 = vpack.c.b16 %v9574, %v9570
    %v9655 = vpack.c.b16 %v9575, %v9571
    %v9656 = vpack.c.b16 %v9576, %v9572
    %v9657 = vpack.c.b16 %v9581, %v9577
    %v9658 = vpack.c.b16 %v9582, %v9578
    %v9659 = vpack.c.b16 %v9583, %v9579
    %v9660 = vpack.c.b16 %v9584, %v9580
    %v9661 = vpack.c.b16 %v9589, %v9585
    %v9662 = vpack.c.b16 %v9590, %v9586
    %v9663 = vpack.c.b16 %v9591, %v9587
    %v9664 = vpack.c.b16 %v9592, %v9588
    %v9665 = vpack.c.b16 %v9597, %v9593
    %v9666 = vpack.c.b16 %v9598, %v9594
    %v9667 = vpack.c.b16 %v9599, %v9595
    %v9668 = vpack.c.b16 %v9600, %v9596
    %v9669 = vpack.c.b16 %v9605, %v9601
    %v9670 = vpack.c.b16 %v9606, %v9602
    %v9671 = vpack.c.b16 %v9607, %v9603
    %v9672 = vpack.c.b16 %v9608, %v9604
    %9737 = vmatpush.bf16.msra.mxu0 %v9637
    %9738 = vmatpush.bf16.msra.mxu0 %v9633
    %9739 = vmatpush.bf16.msra.mxu0 %v9629
    %9740 = vmatpush.bf16.msra.mxu0 %v9625
    %9741 = vmatpush.bf16.msra.mxu0 %v9621
    %9742 = vmatpush.bf16.msra.mxu0 %v9617
    %9743 = vmatpush.bf16.msra.mxu0 %v9613
    %9744 = vmatpush.bf16.msra.mxu0 %v9609
    %9745 = vmatmul.bf16.gmra.mxu0 %v8801
    %v9746 = vpop.f32.mrf.mxu0
    %v9747 = vadd.f32 %v1907, %v9746
    %v9748 = vpop.f32.mrf.mxu0
    %9749 = vdwg.mxu0
    %9750 = vmatpush.bf16.msra.mxu0 %v9669
    %9751 = vmatpush.bf16.msra.mxu0 %v9665
    %9752 = vmatpush.bf16.msra.mxu0 %v9661
    %9753 = vmatpush.bf16.msra.mxu0 %v9657
    %9754 = vmatpush.bf16.msra.mxu0 %v9653
    %9755 = vmatpush.bf16.msra.mxu0 %v9649
    %9756 = vmatpush.bf16.msra.mxu0 %v9645
    %9757 = vmatpush.bf16.msra.mxu0 %v9641
    %9758 = vmatmul.bf16.gmra.mxu0 %v8404
    %v9759 = vpop.f32.mrf.mxu0
    %v9760 = vadd.f32 %v9747, %v9759
    %v9761 = vpop.f32.mrf.mxu0
    %9762 = vdwg.mxu0
    %9763 = vmatpush.bf16.msra.mxu0 %v9638
    %9764 = vmatpush.bf16.msra.mxu0 %v9634
    %9765 = vmatpush.bf16.msra.mxu0 %v9630
    %9766 = vmatpush.bf16.msra.mxu0 %v9626
    %9767 = vmatpush.bf16.msra.mxu0 %v9622
    %9768 = vmatpush.bf16.msra.mxu0 %v9618
    %9769 = vmatpush.bf16.msra.mxu0 %v9614
    %9770 = vmatpush.bf16.msra.mxu0 %v9610
    %9771 = vmatmul.bf16.gmra.mxu0 %v8801
    %v9772 = vpop.f32.mrf.mxu0
    %v9773 = vadd.f32 %v1908, %v9772
    %v9774 = vpop.f32.mrf.mxu0
    %9775 = vdwg.mxu0
    %9776 = vmatpush.bf16.msra.mxu0 %v9670
    %9777 = vmatpush.bf16.msra.mxu0 %v9666
    %9778 = vmatpush.bf16.msra.mxu0 %v9662
    %9779 = vmatpush.bf16.msra.mxu0 %v9658
    %9780 = vmatpush.bf16.msra.mxu0 %v9654
    %9781 = vmatpush.bf16.msra.mxu0 %v9650
    %9782 = vmatpush.bf16.msra.mxu0 %v9646
    %9783 = vmatpush.bf16.msra.mxu0 %v9642
    %9784 = vmatmul.bf16.gmra.mxu0 %v8404
    %v9785 = vpop.f32.mrf.mxu0
    %v9786 = vadd.f32 %v9773, %v9785
    %v9787 = vpop.f32.mrf.mxu0
    %9788 = vdwg.mxu0
    %9789 = vmatpush.bf16.msra.mxu0 %v9639
    %9790 = vmatpush.bf16.msra.mxu0 %v9635
    %9791 = vmatpush.bf16.msra.mxu0 %v9631
    %9792 = vmatpush.bf16.msra.mxu0 %v9627
    %9793 = vmatpush.bf16.msra.mxu0 %v9623
    %9794 = vmatpush.bf16.msra.mxu0 %v9619
    %9795 = vmatpush.bf16.msra.mxu0 %v9615
    %9796 = vmatpush.bf16.msra.mxu0 %v9611
    %9797 = vmatmul.bf16.gmra.mxu0 %v8801
    %v9798 = vpop.f32.mrf.mxu0
    %v9799 = vadd.f32 %v1909, %v9798
    %v9800 = vpop.f32.mrf.mxu0
    %9801 = vdwg.mxu0
    %9802 = vmatpush.bf16.msra.mxu0 %v9671
    %9803 = vmatpush.bf16.msra.mxu0 %v9667
    %9804 = vmatpush.bf16.msra.mxu0 %v9663
    %9805 = vmatpush.bf16.msra.mxu0 %v9659
    %9806 = vmatpush.bf16.msra.mxu0 %v9655
    %9807 = vmatpush.bf16.msra.mxu0 %v9651
    %9808 = vmatpush.bf16.msra.mxu0 %v9647
    %9809 = vmatpush.bf16.msra.mxu0 %v9643
    %9810 = vmatmul.bf16.gmra.mxu0 %v8404
    %v9811 = vpop.f32.mrf.mxu0
    %v9812 = vadd.f32 %v9799, %v9811
    %v9813 = vpop.f32.mrf.mxu0
    %9814 = vdwg.mxu0
    %9815 = vmatpush.bf16.msra.mxu0 %v9640
    %9816 = vmatpush.bf16.msra.mxu0 %v9636
    %9817 = vmatpush.bf16.msra.mxu0 %v9632
    %9818 = vmatpush.bf16.msra.mxu0 %v9628
    %9819 = vmatpush.bf16.msra.mxu0 %v9624
    %9820 = vmatpush.bf16.msra.mxu0 %v9620
    %9821 = vmatpush.bf16.msra.mxu0 %v9616
    %9822 = vmatpush.bf16.msra.mxu0 %v9612
    %9823 = vmatmul.bf16.gmra.mxu0 %v8801
    %v9824 = vpop.f32.mrf.mxu0
    %v9825 = vadd.f32 %v1910, %v9824
    %v9826 = vpop.f32.mrf.mxu0
    %9827 = vdwg.mxu0
    %9828 = vmatpush.bf16.msra.mxu0 %v9672
    %9829 = vmatpush.bf16.msra.mxu0 %v9668
    %9830 = vmatpush.bf16.msra.mxu0 %v9664
    %9831 = vmatpush.bf16.msra.mxu0 %v9660
    %9832 = vmatpush.bf16.msra.mxu0 %v9656
    %9833 = vmatpush.bf16.msra.mxu0 %v9652
    %9834 = vmatpush.bf16.msra.mxu0 %v9648
    %9835 = vmatpush.bf16.msra.mxu0 %v9644
    %9836 = vmatmul.bf16.gmra.mxu0 %v8404
    %v9837 = vpop.f32.mrf.mxu0
    %v9838 = vadd.f32 %v9825, %v9837
    %v9839 = vpop.f32.mrf.mxu0
    %9840 = vdwg.mxu0
    %v9841 = vxor.u32 %v9760, 2147483648
    %v9842 = vxor.u32 %v9786, 2147483648
    %v9843 = vxor.u32 %v9812, 2147483648
    %v9844 = vmul.f32 %v9841, 1.442695
    %v9845 = vpow.pop %v9844
    %v9846 = vmul.f32 %v9842, 1.442695
    %v9847 = vpow.pop %v9846
    %v9848 = vmul.f32 %v9843, 1.442695
    %v9849 = vpow.pop %v9848
    %v9850 = vadd.f32 %v9845, 1.0
    %v9851 = vadd.f32 %v9847, 1.0
    %v9852 = vadd.f32 %v9849, 1.0
    %v9853 = vrcp.pop %v9850
    %v9854 = vmul.f32 %v9850, %v9853
    %v9855 = vsub.f32 1.0, %v9854
    %v9856 = vmul.f32 %v9853, %v9855
    %v9857 = vadd.f32 %v9853, %v9856
    %vm9858 = vweird.f32 %v9850
    %vm9859 = vweird.f32 %v9853
    %vm9860 = vmor %vm9858, %vm9859
    %v9861 = vsel %vm9860, %v9853, %v9857
    %v9862 = vand.u32 2147483647, %v9850
    %vm9863 = vcmp.eq.f32.partialorder %v9862, 8.507059e+37
    %v9864 = vand.u32 %v9850, 2147483648
    %v9865 = vor.u32 1.1754944e-38, %v9864
    %v9866 = vsel %vm9863, %v9865, %v9861
    %v9867 = vmul.f32 1.0, %v9866
    %v9868 = vrcp.pop %v9851
    %v9869 = vmul.f32 %v9851, %v9868
    %v9870 = vsub.f32 1.0, %v9869
    %v9871 = vmul.f32 %v9868, %v9870
    %v9872 = vadd.f32 %v9868, %v9871
    %vm9873 = vweird.f32 %v9851
    %vm9874 = vweird.f32 %v9868
    %vm9875 = vmor %vm9873, %vm9874
    %v9876 = vsel %vm9875, %v9868, %v9872
    %v9877 = vand.u32 2147483647, %v9851
    %vm9878 = vcmp.eq.f32.partialorder %v9877, 8.507059e+37
    %v9879 = vand.u32 %v9851, 2147483648
    %v9880 = vor.u32 1.1754944e-38, %v9879
    %v9881 = vsel %vm9878, %v9880, %v9876
    %v9882 = vmul.f32 1.0, %v9881
    %v9883 = vrcp.pop %v9852
    %v9884 = vmul.f32 %v9852, %v9883
    %v9885 = vsub.f32 1.0, %v9884
    %v9886 = vmul.f32 %v9883, %v9885
    %v9887 = vadd.f32 %v9883, %v9886
    %vm9888 = vweird.f32 %v9852
    %vm9889 = vweird.f32 %v9883
    %vm9890 = vmor %vm9888, %vm9889
    %v9891 = vsel %vm9890, %v9883, %v9887
    %v9892 = vand.u32 2147483647, %v9852
    %vm9893 = vcmp.eq.f32.partialorder %v9892, 8.507059e+37
    %v9894 = vand.u32 %v9852, 2147483648
    %v9895 = vor.u32 1.1754944e-38, %v9894
    %v9896 = vsel %vm9893, %v9895, %v9891
    %v9897 = vmul.f32 1.0, %v9896
    %v9898 = vtanh.pop %v9838
    %v9899 = vmul.f32 %v9882, %v8401
    %v9900 = vmul.f32 %v9867, %v9898
    %v9901 = vadd.f32 %v9899, %v9900
    %v9902 = vtanh.pop %v9901
    %v9903 = vmul.f32 %v9897, %v9902
    %v9904 = vpack.c.bf16 %v9903, %v9903
    %v9905 = vld [vmem:[%s7] sm:$0xf]
    %v9906 = vld [vmem:[%s7 + $0x4] sm:$0xf]
    %v9907 = vld [vmem:[%s7 + $0x8] sm:$0xf]
    %v9908 = vld [vmem:[%s7 + $0xc] sm:$0xf]
    %v9909 = vld [vmem:[%s7 + $0x10] sm:$0xf]
    %v9910 = vld [vmem:[%s7 + $0x14] sm:$0xf]
    %v9911 = vld [vmem:[%s7 + $0x18] sm:$0xf]
    %v9912 = vld [vmem:[%s7 + $0x1c] sm:$0xf]
    %v9913 = vld [vmem:[%s7 + $0x20] sm:$0xf]
    %v9914 = vld [vmem:[%s7 + $0x24] sm:$0xf]
    %v9915 = vld [vmem:[%s7 + $0x28] sm:$0xf]
    %v9916 = vld [vmem:[%s7 + $0x2c] sm:$0xf]
    %v9917 = vld [vmem:[%s7 + $0x30] sm:$0xf]
    %v9918 = vld [vmem:[%s7 + $0x34] sm:$0xf]
    %v9919 = vld [vmem:[%s7 + $0x38] sm:$0xf]
    %v9920 = vld [vmem:[%s7 + $0x3c] sm:$0xf]
    %v9937 = vunpack.c.l.b16 %v9905
    %v9938 = vunpack.c.l.b16 %v9906
    %v9939 = vunpack.c.l.b16 %v9907
    %v9940 = vunpack.c.l.b16 %v9908
    %v9941 = vunpack.c.l.b16 %v9909
    %v9942 = vunpack.c.l.b16 %v9910
    %v9943 = vunpack.c.l.b16 %v9911
    %v9944 = vunpack.c.l.b16 %v9912
    %v9945 = vunpack.c.l.b16 %v9913
    %v9946 = vunpack.c.l.b16 %v9914
    %v9947 = vunpack.c.l.b16 %v9915
    %v9948 = vunpack.c.l.b16 %v9916
    %v9949 = vunpack.c.l.b16 %v9917
    %v9950 = vunpack.c.l.b16 %v9918
    %v9951 = vunpack.c.l.b16 %v9919
    %v9952 = vunpack.c.l.b16 %v9920
    %v9953 = vpack.c.b16 %v9938, %v9937
    %v9954 = vpack.c.b16 %v9940, %v9939
    %v9955 = vpack.c.b16 %v9942, %v9941
    %v9956 = vpack.c.b16 %v9944, %v9943
    %v9957 = vpack.c.b16 %v9946, %v9945
    %v9958 = vpack.c.b16 %v9948, %v9947
    %v9959 = vpack.c.b16 %v9950, %v9949
    %v9960 = vpack.c.b16 %v9952, %v9951
    %9969 = vmatpush.bf16.msra.mxu0 %v9960
    %9970 = vmatpush.bf16.msra.mxu0 %v9959
    %9971 = vmatpush.bf16.msra.mxu0 %v9958
    %9972 = vmatpush.bf16.msra.mxu0 %v9957
    %9973 = vmatpush.bf16.msra.mxu0 %v9956
    %9974 = vmatpush.bf16.msra.mxu0 %v9955
    %9975 = vmatpush.bf16.msra.mxu0 %v9954
    %9976 = vmatpush.bf16.msra.mxu0 %v9953
    %9977 = vmatmul.bf16.gmra.mxu0 %v9904
    %v9978 = vpop.f32.mrf.mxu0
    %v9979 = vadd.f32 %v2420, %v9978
    %v9980 = vpop.f32.mrf.mxu0
    %9981 = vdwg.mxu0
    %s9982 = scalar_lea.vmem %s11, 40
    %9983 = vst [vmem:[%s9982] sm:$0xff] %v9979
    %v9984 = vpack.c.bf16 %v8800, %v8800
    %v9985 = vpack.c.bf16 %v9352, %v9352
    %v9986 = vld [vmem:[#allocation7] sm:$0xff]
    %v9987 = vld [vmem:[#allocation7 + $0x8] sm:$0xff]
    %v9988 = vld [vmem:[#allocation7 + $0x10] sm:$0xff]
    %v9989 = vld [vmem:[#allocation7 + $0x18] sm:$0xff]
    %v9990 = vld [vmem:[#allocation7 + $0x20] sm:$0xff]
    %v9991 = vld [vmem:[#allocation7 + $0x28] sm:$0xff]
    %v9992 = vld [vmem:[#allocation7 + $0x30] sm:$0xff]
    %v9993 = vld [vmem:[#allocation7 + $0x38] sm:$0xff]
    %v9994 = vld [vmem:[#allocation7 + $0x40] sm:$0xff]
    %v9995 = vld [vmem:[#allocation7 + $0x48] sm:$0xff]
    %v9996 = vld [vmem:[#allocation7 + $0x50] sm:$0xff]
    %v9997 = vld [vmem:[#allocation7 + $0x58] sm:$0xff]
    %v9998 = vld [vmem:[#allocation7 + $0x60] sm:$0xff]
    %v9999 = vld [vmem:[#allocation7 + $0x68] sm:$0xff]
    %v10000 = vld [vmem:[#allocation7 + $0x70] sm:$0xff]
    %v10001 = vld [vmem:[#allocation7 + $0x78] sm:$0xff]
    %v10002 = vld [vmem:[#allocation7 + $0x80] sm:$0xff]
    %v10003 = vld [vmem:[#allocation7 + $0x88] sm:$0xff]
    %v10004 = vld [vmem:[#allocation7 + $0x90] sm:$0xff]
    %v10005 = vld [vmem:[#allocation7 + $0x98] sm:$0xff]
    %v10006 = vld [vmem:[#allocation7 + $0xa0] sm:$0xff]
    %v10007 = vld [vmem:[#allocation7 + $0xa8] sm:$0xff]
    %v10008 = vld [vmem:[#allocation7 + $0xb0] sm:$0xff]
    %v10009 = vld [vmem:[#allocation7 + $0xb8] sm:$0xff]
    %v10010 = vld [vmem:[#allocation7 + $0xc0] sm:$0xff]
    %v10011 = vld [vmem:[#allocation7 + $0xc8] sm:$0xff]
    %v10012 = vld [vmem:[#allocation7 + $0xd0] sm:$0xff]
    %v10013 = vld [vmem:[#allocation7 + $0xd8] sm:$0xff]
    %v10014 = vld [vmem:[#allocation7 + $0xe0] sm:$0xff]
    %v10015 = vld [vmem:[#allocation7 + $0xe8] sm:$0xff]
    %v10016 = vld [vmem:[#allocation7 + $0xf0] sm:$0xff]
    %v10017 = vld [vmem:[#allocation7 + $0xf8] sm:$0xff]
    %v10018 = vld [vmem:[#allocation7 + $0x100] sm:$0xff]
    %v10019 = vld [vmem:[#allocation7 + $0x108] sm:$0xff]
    %v10020 = vld [vmem:[#allocation7 + $0x110] sm:$0xff]
    %v10021 = vld [vmem:[#allocation7 + $0x118] sm:$0xff]
    %v10022 = vld [vmem:[#allocation7 + $0x120] sm:$0xff]
    %v10023 = vld [vmem:[#allocation7 + $0x128] sm:$0xff]
    %v10024 = vld [vmem:[#allocation7 + $0x130] sm:$0xff]
    %v10025 = vld [vmem:[#allocation7 + $0x138] sm:$0xff]
    %v10026 = vld [vmem:[#allocation7 + $0x140] sm:$0xff]
    %v10027 = vld [vmem:[#allocation7 + $0x148] sm:$0xff]
    %v10028 = vld [vmem:[#allocation7 + $0x150] sm:$0xff]
    %v10029 = vld [vmem:[#allocation7 + $0x158] sm:$0xff]
    %v10030 = vld [vmem:[#allocation7 + $0x160] sm:$0xff]
    %v10031 = vld [vmem:[#allocation7 + $0x168] sm:$0xff]
    %v10032 = vld [vmem:[#allocation7 + $0x170] sm:$0xff]
    %v10033 = vld [vmem:[#allocation7 + $0x178] sm:$0xff]
    %v10034 = vld [vmem:[#allocation7 + $0x180] sm:$0xff]
    %v10035 = vld [vmem:[#allocation7 + $0x188] sm:$0xff]
    %v10036 = vld [vmem:[#allocation7 + $0x190] sm:$0xff]
    %v10037 = vld [vmem:[#allocation7 + $0x198] sm:$0xff]
    %v10038 = vld [vmem:[#allocation7 + $0x1a0] sm:$0xff]
    %v10039 = vld [vmem:[#allocation7 + $0x1a8] sm:$0xff]
    %v10040 = vld [vmem:[#allocation7 + $0x1b0] sm:$0xff]
    %v10041 = vld [vmem:[#allocation7 + $0x1b8] sm:$0xff]
    %v10042 = vld [vmem:[#allocation7 + $0x1c0] sm:$0xff]
    %v10043 = vld [vmem:[#allocation7 + $0x1c8] sm:$0xff]
    %v10044 = vld [vmem:[#allocation7 + $0x1d0] sm:$0xff]
    %v10045 = vld [vmem:[#allocation7 + $0x1d8] sm:$0xff]
    %v10046 = vld [vmem:[#allocation7 + $0x1e0] sm:$0xff]
    %v10047 = vld [vmem:[#allocation7 + $0x1e8] sm:$0xff]
    %v10048 = vld [vmem:[#allocation7 + $0x1f0] sm:$0xff]
    %v10049 = vld [vmem:[#allocation7 + $0x1f8] sm:$0xff]
    %v10114 = vunpack.c.l.b16 %v9986
    %v10115 = vunpack.c.h.b16 %v9986
    %v10116 = vunpack.c.l.b16 %v9987
    %v10117 = vunpack.c.h.b16 %v9987
    %v10118 = vunpack.c.l.b16 %v9988
    %v10119 = vunpack.c.h.b16 %v9988
    %v10120 = vunpack.c.l.b16 %v9989
    %v10121 = vunpack.c.h.b16 %v9989
    %v10122 = vunpack.c.l.b16 %v9990
    %v10123 = vunpack.c.h.b16 %v9990
    %v10124 = vunpack.c.l.b16 %v9991
    %v10125 = vunpack.c.h.b16 %v9991
    %v10126 = vunpack.c.l.b16 %v9992
    %v10127 = vunpack.c.h.b16 %v9992
    %v10128 = vunpack.c.l.b16 %v9993
    %v10129 = vunpack.c.h.b16 %v9993
    %v10130 = vunpack.c.l.b16 %v9994
    %v10131 = vunpack.c.h.b16 %v9994
    %v10132 = vunpack.c.l.b16 %v9995
    %v10133 = vunpack.c.h.b16 %v9995
    %v10134 = vunpack.c.l.b16 %v9996
    %v10135 = vunpack.c.h.b16 %v9996
    %v10136 = vunpack.c.l.b16 %v9997
    %v10137 = vunpack.c.h.b16 %v9997
    %v10138 = vunpack.c.l.b16 %v9998
    %v10139 = vunpack.c.h.b16 %v9998
    %v10140 = vunpack.c.l.b16 %v9999
    %v10141 = vunpack.c.h.b16 %v9999
    %v10142 = vunpack.c.l.b16 %v10000
    %v10143 = vunpack.c.h.b16 %v10000
    %v10144 = vunpack.c.l.b16 %v10001
    %v10145 = vunpack.c.h.b16 %v10001
    %v10146 = vunpack.c.l.b16 %v10002
    %v10147 = vunpack.c.h.b16 %v10002
    %v10148 = vunpack.c.l.b16 %v10003
    %v10149 = vunpack.c.h.b16 %v10003
    %v10150 = vunpack.c.l.b16 %v10004
    %v10151 = vunpack.c.h.b16 %v10004
    %v10152 = vunpack.c.l.b16 %v10005
    %v10153 = vunpack.c.h.b16 %v10005
    %v10154 = vunpack.c.l.b16 %v10006
    %v10155 = vunpack.c.h.b16 %v10006
    %v10156 = vunpack.c.l.b16 %v10007
    %v10157 = vunpack.c.h.b16 %v10007
    %v10158 = vunpack.c.l.b16 %v10008
    %v10159 = vunpack.c.h.b16 %v10008
    %v10160 = vunpack.c.l.b16 %v10009
    %v10161 = vunpack.c.h.b16 %v10009
    %v10162 = vunpack.c.l.b16 %v10010
    %v10163 = vunpack.c.h.b16 %v10010
    %v10164 = vunpack.c.l.b16 %v10011
    %v10165 = vunpack.c.h.b16 %v10011
    %v10166 = vunpack.c.l.b16 %v10012
    %v10167 = vunpack.c.h.b16 %v10012
    %v10168 = vunpack.c.l.b16 %v10013
    %v10169 = vunpack.c.h.b16 %v10013
    %v10170 = vunpack.c.l.b16 %v10014
    %v10171 = vunpack.c.h.b16 %v10014
    %v10172 = vunpack.c.l.b16 %v10015
    %v10173 = vunpack.c.h.b16 %v10015
    %v10174 = vunpack.c.l.b16 %v10016
    %v10175 = vunpack.c.h.b16 %v10016
    %v10176 = vunpack.c.l.b16 %v10017
    %v10177 = vunpack.c.h.b16 %v10017
    %v10178 = vunpack.c.l.b16 %v10018
    %v10179 = vunpack.c.h.b16 %v10018
    %v10180 = vunpack.c.l.b16 %v10019
    %v10181 = vunpack.c.h.b16 %v10019
    %v10182 = vunpack.c.l.b16 %v10020
    %v10183 = vunpack.c.h.b16 %v10020
    %v10184 = vunpack.c.l.b16 %v10021
    %v10185 = vunpack.c.h.b16 %v10021
    %v10186 = vunpack.c.l.b16 %v10022
    %v10187 = vunpack.c.h.b16 %v10022
    %v10188 = vunpack.c.l.b16 %v10023
    %v10189 = vunpack.c.h.b16 %v10023
    %v10190 = vunpack.c.l.b16 %v10024
    %v10191 = vunpack.c.h.b16 %v10024
    %v10192 = vunpack.c.l.b16 %v10025
    %v10193 = vunpack.c.h.b16 %v10025
    %v10194 = vunpack.c.l.b16 %v10026
    %v10195 = vunpack.c.h.b16 %v10026
    %v10196 = vunpack.c.l.b16 %v10027
    %v10197 = vunpack.c.h.b16 %v10027
    %v10198 = vunpack.c.l.b16 %v10028
    %v10199 = vunpack.c.h.b16 %v10028
    %v10200 = vunpack.c.l.b16 %v10029
    %v10201 = vunpack.c.h.b16 %v10029
    %v10202 = vunpack.c.l.b16 %v10030
    %v10203 = vunpack.c.h.b16 %v10030
    %v10204 = vunpack.c.l.b16 %v10031
    %v10205 = vunpack.c.h.b16 %v10031
    %v10206 = vunpack.c.l.b16 %v10032
    %v10207 = vunpack.c.h.b16 %v10032
    %v10208 = vunpack.c.l.b16 %v10033
    %v10209 = vunpack.c.h.b16 %v10033
    %v10210 = vunpack.c.l.b16 %v10034
    %v10211 = vunpack.c.h.b16 %v10034
    %v10212 = vunpack.c.l.b16 %v10035
    %v10213 = vunpack.c.h.b16 %v10035
    %v10214 = vunpack.c.l.b16 %v10036
    %v10215 = vunpack.c.h.b16 %v10036
    %v10216 = vunpack.c.l.b16 %v10037
    %v10217 = vunpack.c.h.b16 %v10037
    %v10218 = vunpack.c.l.b16 %v10038
    %v10219 = vunpack.c.h.b16 %v10038
    %v10220 = vunpack.c.l.b16 %v10039
    %v10221 = vunpack.c.h.b16 %v10039
    %v10222 = vunpack.c.l.b16 %v10040
    %v10223 = vunpack.c.h.b16 %v10040
    %v10224 = vunpack.c.l.b16 %v10041
    %v10225 = vunpack.c.h.b16 %v10041
    %v10226 = vunpack.c.l.b16 %v10042
    %v10227 = vunpack.c.h.b16 %v10042
    %v10228 = vunpack.c.l.b16 %v10043
    %v10229 = vunpack.c.h.b16 %v10043
    %v10230 = vunpack.c.l.b16 %v10044
    %v10231 = vunpack.c.h.b16 %v10044
    %v10232 = vunpack.c.l.b16 %v10045
    %v10233 = vunpack.c.h.b16 %v10045
    %v10234 = vunpack.c.l.b16 %v10046
    %v10235 = vunpack.c.h.b16 %v10046
    %v10236 = vunpack.c.l.b16 %v10047
    %v10237 = vunpack.c.h.b16 %v10047
    %v10238 = vunpack.c.l.b16 %v10048
    %v10239 = vunpack.c.h.b16 %v10048
    %v10240 = vunpack.c.l.b16 %v10049
    %v10241 = vunpack.c.h.b16 %v10049
    %v10242 = vpack.c.b16 %v10118, %v10114
    %v10243 = vpack.c.b16 %v10119, %v10115
    %v10244 = vpack.c.b16 %v10120, %v10116
    %v10245 = vpack.c.b16 %v10121, %v10117
    %v10246 = vpack.c.b16 %v10126, %v10122
    %v10247 = vpack.c.b16 %v10127, %v10123
    %v10248 = vpack.c.b16 %v10128, %v10124
    %v10249 = vpack.c.b16 %v10129, %v10125
    %v10250 = vpack.c.b16 %v10134, %v10130
    %v10251 = vpack.c.b16 %v10135, %v10131
    %v10252 = vpack.c.b16 %v10136, %v10132
    %v10253 = vpack.c.b16 %v10137, %v10133
    %v10254 = vpack.c.b16 %v10142, %v10138
    %v10255 = vpack.c.b16 %v10143, %v10139
    %v10256 = vpack.c.b16 %v10144, %v10140
    %v10257 = vpack.c.b16 %v10145, %v10141
    %v10258 = vpack.c.b16 %v10150, %v10146
    %v10259 = vpack.c.b16 %v10151, %v10147
    %v10260 = vpack.c.b16 %v10152, %v10148
    %v10261 = vpack.c.b16 %v10153, %v10149
    %v10262 = vpack.c.b16 %v10158, %v10154
    %v10263 = vpack.c.b16 %v10159, %v10155
    %v10264 = vpack.c.b16 %v10160, %v10156
    %v10265 = vpack.c.b16 %v10161, %v10157
    %v10266 = vpack.c.b16 %v10166, %v10162
    %v10267 = vpack.c.b16 %v10167, %v10163
    %v10268 = vpack.c.b16 %v10168, %v10164
    %v10269 = vpack.c.b16 %v10169, %v10165
    %v10270 = vpack.c.b16 %v10174, %v10170
    %v10271 = vpack.c.b16 %v10175, %v10171
    %v10272 = vpack.c.b16 %v10176, %v10172
    %v10273 = vpack.c.b16 %v10177, %v10173
    %v10274 = vpack.c.b16 %v10182, %v10178
    %v10275 = vpack.c.b16 %v10183, %v10179
    %v10276 = vpack.c.b16 %v10184, %v10180
    %v10277 = vpack.c.b16 %v10185, %v10181
    %v10278 = vpack.c.b16 %v10190, %v10186
    %v10279 = vpack.c.b16 %v10191, %v10187
    %v10280 = vpack.c.b16 %v10192, %v10188
    %v10281 = vpack.c.b16 %v10193, %v10189
    %v10282 = vpack.c.b16 %v10198, %v10194
    %v10283 = vpack.c.b16 %v10199, %v10195
    %v10284 = vpack.c.b16 %v10200, %v10196
    %v10285 = vpack.c.b16 %v10201, %v10197
    %v10286 = vpack.c.b16 %v10206, %v10202
    %v10287 = vpack.c.b16 %v10207, %v10203
    %v10288 = vpack.c.b16 %v10208, %v10204
    %v10289 = vpack.c.b16 %v10209, %v10205
    %v10290 = vpack.c.b16 %v10214, %v10210
    %v10291 = vpack.c.b16 %v10215, %v10211
    %v10292 = vpack.c.b16 %v10216, %v10212
    %v10293 = vpack.c.b16 %v10217, %v10213
    %v10294 = vpack.c.b16 %v10222, %v10218
    %v10295 = vpack.c.b16 %v10223, %v10219
    %v10296 = vpack.c.b16 %v10224, %v10220
    %v10297 = vpack.c.b16 %v10225, %v10221
    %v10298 = vpack.c.b16 %v10230, %v10226
    %v10299 = vpack.c.b16 %v10231, %v10227
    %v10300 = vpack.c.b16 %v10232, %v10228
    %v10301 = vpack.c.b16 %v10233, %v10229
    %v10302 = vpack.c.b16 %v10238, %v10234
    %v10303 = vpack.c.b16 %v10239, %v10235
    %v10304 = vpack.c.b16 %v10240, %v10236
    %v10305 = vpack.c.b16 %v10241, %v10237
    %10370 = vmatpush.bf16.msra.mxu0 %v10270
    %10371 = vmatpush.bf16.msra.mxu0 %v10266
    %10372 = vmatpush.bf16.msra.mxu0 %v10262
    %10373 = vmatpush.bf16.msra.mxu0 %v10258
    %10374 = vmatpush.bf16.msra.mxu0 %v10254
    %10375 = vmatpush.bf16.msra.mxu0 %v10250
    %10376 = vmatpush.bf16.msra.mxu0 %v10246
    %10377 = vmatpush.bf16.msra.mxu0 %v10242
    %10378 = vmatmul.bf16.gmra.mxu0 %v9984
    %v10379 = vpop.f32.mrf.mxu0
    %v10380 = vadd.f32 %v1052, %v10379
    %v10381 = vpop.f32.mrf.mxu0
    %10382 = vdwg.mxu0
    %10383 = vmatpush.bf16.msra.mxu0 %v10302
    %10384 = vmatpush.bf16.msra.mxu0 %v10298
    %10385 = vmatpush.bf16.msra.mxu0 %v10294
    %10386 = vmatpush.bf16.msra.mxu0 %v10290
    %10387 = vmatpush.bf16.msra.mxu0 %v10286
    %10388 = vmatpush.bf16.msra.mxu0 %v10282
    %10389 = vmatpush.bf16.msra.mxu0 %v10278
    %10390 = vmatpush.bf16.msra.mxu0 %v10274
    %10391 = vmatmul.bf16.gmra.mxu0 %v9985
    %v10392 = vpop.f32.mrf.mxu0
    %v10393 = vadd.f32 %v10380, %v10392
    %v10394 = vpop.f32.mrf.mxu0
    %10395 = vdwg.mxu0
    %10396 = vmatpush.bf16.msra.mxu0 %v10271
    %10397 = vmatpush.bf16.msra.mxu0 %v10267
    %10398 = vmatpush.bf16.msra.mxu0 %v10263
    %10399 = vmatpush.bf16.msra.mxu0 %v10259
    %10400 = vmatpush.bf16.msra.mxu0 %v10255
    %10401 = vmatpush.bf16.msra.mxu0 %v10251
    %10402 = vmatpush.bf16.msra.mxu0 %v10247
    %10403 = vmatpush.bf16.msra.mxu0 %v10243
    %10404 = vmatmul.bf16.gmra.mxu0 %v9984
    %v10405 = vpop.f32.mrf.mxu0
    %v10406 = vadd.f32 %v1053, %v10405
    %v10407 = vpop.f32.mrf.mxu0
    %10408 = vdwg.mxu0
    %10409 = vmatpush.bf16.msra.mxu0 %v10303
    %10410 = vmatpush.bf16.msra.mxu0 %v10299
    %10411 = vmatpush.bf16.msra.mxu0 %v10295
    %10412 = vmatpush.bf16.msra.mxu0 %v10291
    %10413 = vmatpush.bf16.msra.mxu0 %v10287
    %10414 = vmatpush.bf16.msra.mxu0 %v10283
    %10415 = vmatpush.bf16.msra.mxu0 %v10279
    %10416 = vmatpush.bf16.msra.mxu0 %v10275
    %10417 = vmatmul.bf16.gmra.mxu0 %v9985
    %v10418 = vpop.f32.mrf.mxu0
    %v10419 = vadd.f32 %v10406, %v10418
    %v10420 = vpop.f32.mrf.mxu0
    %10421 = vdwg.mxu0
    %10422 = vmatpush.bf16.msra.mxu0 %v10272
    %10423 = vmatpush.bf16.msra.mxu0 %v10268
    %10424 = vmatpush.bf16.msra.mxu0 %v10264
    %10425 = vmatpush.bf16.msra.mxu0 %v10260
    %10426 = vmatpush.bf16.msra.mxu0 %v10256
    %10427 = vmatpush.bf16.msra.mxu0 %v10252
    %10428 = vmatpush.bf16.msra.mxu0 %v10248
    %10429 = vmatpush.bf16.msra.mxu0 %v10244
    %10430 = vmatmul.bf16.gmra.mxu0 %v9984
    %v10431 = vpop.f32.mrf.mxu0
    %v10432 = vadd.f32 %v1054, %v10431
    %v10433 = vpop.f32.mrf.mxu0
    %10434 = vdwg.mxu0
    %10435 = vmatpush.bf16.msra.mxu0 %v10304
    %10436 = vmatpush.bf16.msra.mxu0 %v10300
    %10437 = vmatpush.bf16.msra.mxu0 %v10296
    %10438 = vmatpush.bf16.msra.mxu0 %v10292
    %10439 = vmatpush.bf16.msra.mxu0 %v10288
    %10440 = vmatpush.bf16.msra.mxu0 %v10284
    %10441 = vmatpush.bf16.msra.mxu0 %v10280
    %10442 = vmatpush.bf16.msra.mxu0 %v10276
    %10443 = vmatmul.bf16.gmra.mxu0 %v9985
    %v10444 = vpop.f32.mrf.mxu0
    %v10445 = vadd.f32 %v10432, %v10444
    %v10446 = vpop.f32.mrf.mxu0
    %10447 = vdwg.mxu0
    %10448 = vmatpush.bf16.msra.mxu0 %v10273
    %10449 = vmatpush.bf16.msra.mxu0 %v10269
    %10450 = vmatpush.bf16.msra.mxu0 %v10265
    %10451 = vmatpush.bf16.msra.mxu0 %v10261
    %10452 = vmatpush.bf16.msra.mxu0 %v10257
    %10453 = vmatpush.bf16.msra.mxu0 %v10253
    %10454 = vmatpush.bf16.msra.mxu0 %v10249
    %10455 = vmatpush.bf16.msra.mxu0 %v10245
    %10456 = vmatmul.bf16.gmra.mxu0 %v9984
    %v10457 = vpop.f32.mrf.mxu0
    %v10458 = vadd.f32 %v1055, %v10457
    %v10459 = vpop.f32.mrf.mxu0
    %10460 = vdwg.mxu0
    %10461 = vmatpush.bf16.msra.mxu0 %v10305
    %10462 = vmatpush.bf16.msra.mxu0 %v10301
    %10463 = vmatpush.bf16.msra.mxu0 %v10297
    %10464 = vmatpush.bf16.msra.mxu0 %v10293
    %10465 = vmatpush.bf16.msra.mxu0 %v10289
    %10466 = vmatpush.bf16.msra.mxu0 %v10285
    %10467 = vmatpush.bf16.msra.mxu0 %v10281
    %10468 = vmatpush.bf16.msra.mxu0 %v10277
    %10469 = vmatmul.bf16.gmra.mxu0 %v9985
    %v10470 = vpop.f32.mrf.mxu0
    %v10471 = vadd.f32 %v10458, %v10470
    %v10472 = vpop.f32.mrf.mxu0
    %10473 = vdwg.mxu0
    %v10474 = vxor.u32 %v10393, 2147483648
    %v10475 = vxor.u32 %v10419, 2147483648
    %v10476 = vxor.u32 %v10445, 2147483648
    %v10477 = vmul.f32 %v10474, 1.442695
    %v10478 = vpow.pop %v10477
    %v10479 = vmul.f32 %v10475, 1.442695
    %v10480 = vpow.pop %v10479
    %v10481 = vmul.f32 %v10476, 1.442695
    %v10482 = vpow.pop %v10481
    %v10483 = vadd.f32 %v10478, 1.0
    %v10484 = vadd.f32 %v10480, 1.0
    %v10485 = vadd.f32 %v10482, 1.0
    %v10486 = vrcp.pop %v10483
    %v10487 = vmul.f32 %v10483, %v10486
    %v10488 = vsub.f32 1.0, %v10487
    %v10489 = vmul.f32 %v10486, %v10488
    %v10490 = vadd.f32 %v10486, %v10489
    %vm10491 = vweird.f32 %v10483
    %vm10492 = vweird.f32 %v10486
    %vm10493 = vmor %vm10491, %vm10492
    %v10494 = vsel %vm10493, %v10486, %v10490
    %v10495 = vand.u32 2147483647, %v10483
    %vm10496 = vcmp.eq.f32.partialorder %v10495, 8.507059e+37
    %v10497 = vand.u32 %v10483, 2147483648
    %v10498 = vor.u32 1.1754944e-38, %v10497
    %v10499 = vsel %vm10496, %v10498, %v10494
    %v10500 = vmul.f32 1.0, %v10499
    %v10501 = vrcp.pop %v10484
    %v10502 = vmul.f32 %v10484, %v10501
    %v10503 = vsub.f32 1.0, %v10502
    %v10504 = vmul.f32 %v10501, %v10503
    %v10505 = vadd.f32 %v10501, %v10504
    %vm10506 = vweird.f32 %v10484
    %vm10507 = vweird.f32 %v10501
    %vm10508 = vmor %vm10506, %vm10507
    %v10509 = vsel %vm10508, %v10501, %v10505
    %v10510 = vand.u32 2147483647, %v10484
    %vm10511 = vcmp.eq.f32.partialorder %v10510, 8.507059e+37
    %v10512 = vand.u32 %v10484, 2147483648
    %v10513 = vor.u32 1.1754944e-38, %v10512
    %v10514 = vsel %vm10511, %v10513, %v10509
    %v10515 = vmul.f32 1.0, %v10514
    %v10516 = vrcp.pop %v10485
    %v10517 = vmul.f32 %v10485, %v10516
    %v10518 = vsub.f32 1.0, %v10517
    %v10519 = vmul.f32 %v10516, %v10518
    %v10520 = vadd.f32 %v10516, %v10519
    %vm10521 = vweird.f32 %v10485
    %vm10522 = vweird.f32 %v10516
    %vm10523 = vmor %vm10521, %vm10522
    %v10524 = vsel %vm10523, %v10516, %v10520
    %v10525 = vand.u32 2147483647, %v10485
    %vm10526 = vcmp.eq.f32.partialorder %v10525, 8.507059e+37
    %v10527 = vand.u32 %v10485, 2147483648
    %v10528 = vor.u32 1.1754944e-38, %v10527
    %v10529 = vsel %vm10526, %v10528, %v10524
    %v10530 = vmul.f32 1.0, %v10529
    %v10531 = vtanh.pop %v10471
    %v10532 = vmul.f32 %v10515, %v9350
    %v10533 = vmul.f32 %v10500, %v10531
    %v10534 = vadd.f32 %v10532, %v10533
    %v10535 = vtanh.pop %v10534
    %v10536 = vmul.f32 %v10530, %v10535
    %v10537 = vld [vmem:[%s1841] sm:$0xff]
    %v10538 = vld [vmem:[%s1841 + $0x8] sm:$0xff]
    %v10539 = vld [vmem:[%s1841 + $0x10] sm:$0xff]
    %v10540 = vld [vmem:[%s1841 + $0x18] sm:$0xff]
    %v10541 = vld [vmem:[%s1841 + $0x20] sm:$0xff]
    %v10542 = vld [vmem:[%s1841 + $0x28] sm:$0xff]
    %v10543 = vld [vmem:[%s1841 + $0x30] sm:$0xff]
    %v10544 = vld [vmem:[%s1841 + $0x38] sm:$0xff]
    %v10545 = vld [vmem:[%s1841 + $0x40] sm:$0xff]
    %v10546 = vld [vmem:[%s1841 + $0x48] sm:$0xff]
    %v10547 = vld [vmem:[%s1841 + $0x50] sm:$0xff]
    %v10548 = vld [vmem:[%s1841 + $0x58] sm:$0xff]
    %v10549 = vld [vmem:[%s1841 + $0x60] sm:$0xff]
    %v10550 = vld [vmem:[%s1841 + $0x68] sm:$0xff]
    %v10551 = vld [vmem:[%s1841 + $0x70] sm:$0xff]
    %v10552 = vld [vmem:[%s1841 + $0x78] sm:$0xff]
    %v10553 = vld [vmem:[%s1841 + $0x80] sm:$0xff]
    %v10554 = vld [vmem:[%s1841 + $0x88] sm:$0xff]
    %v10555 = vld [vmem:[%s1841 + $0x90] sm:$0xff]
    %v10556 = vld [vmem:[%s1841 + $0x98] sm:$0xff]
    %v10557 = vld [vmem:[%s1841 + $0xa0] sm:$0xff]
    %v10558 = vld [vmem:[%s1841 + $0xa8] sm:$0xff]
    %v10559 = vld [vmem:[%s1841 + $0xb0] sm:$0xff]
    %v10560 = vld [vmem:[%s1841 + $0xb8] sm:$0xff]
    %v10561 = vld [vmem:[%s1841 + $0xc0] sm:$0xff]
    %v10562 = vld [vmem:[%s1841 + $0xc8] sm:$0xff]
    %v10563 = vld [vmem:[%s1841 + $0xd0] sm:$0xff]
    %v10564 = vld [vmem:[%s1841 + $0xd8] sm:$0xff]
    %v10565 = vld [vmem:[%s1841 + $0xe0] sm:$0xff]
    %v10566 = vld [vmem:[%s1841 + $0xe8] sm:$0xff]
    %v10567 = vld [vmem:[%s1841 + $0xf0] sm:$0xff]
    %v10568 = vld [vmem:[%s1841 + $0xf8] sm:$0xff]
    %v10569 = vld [vmem:[%s1841 + $0x100] sm:$0xff]
    %v10570 = vld [vmem:[%s1841 + $0x108] sm:$0xff]
    %v10571 = vld [vmem:[%s1841 + $0x110] sm:$0xff]
    %v10572 = vld [vmem:[%s1841 + $0x118] sm:$0xff]
    %v10573 = vld [vmem:[%s1841 + $0x120] sm:$0xff]
    %v10574 = vld [vmem:[%s1841 + $0x128] sm:$0xff]
    %v10575 = vld [vmem:[%s1841 + $0x130] sm:$0xff]
    %v10576 = vld [vmem:[%s1841 + $0x138] sm:$0xff]
    %v10577 = vld [vmem:[%s1841 + $0x140] sm:$0xff]
    %v10578 = vld [vmem:[%s1841 + $0x148] sm:$0xff]
    %v10579 = vld [vmem:[%s1841 + $0x150] sm:$0xff]
    %v10580 = vld [vmem:[%s1841 + $0x158] sm:$0xff]
    %v10581 = vld [vmem:[%s1841 + $0x160] sm:$0xff]
    %v10582 = vld [vmem:[%s1841 + $0x168] sm:$0xff]
    %v10583 = vld [vmem:[%s1841 + $0x170] sm:$0xff]
    %v10584 = vld [vmem:[%s1841 + $0x178] sm:$0xff]
    %v10585 = vld [vmem:[%s1841 + $0x180] sm:$0xff]
    %v10586 = vld [vmem:[%s1841 + $0x188] sm:$0xff]
    %v10587 = vld [vmem:[%s1841 + $0x190] sm:$0xff]
    %v10588 = vld [vmem:[%s1841 + $0x198] sm:$0xff]
    %v10589 = vld [vmem:[%s1841 + $0x1a0] sm:$0xff]
    %v10590 = vld [vmem:[%s1841 + $0x1a8] sm:$0xff]
    %v10591 = vld [vmem:[%s1841 + $0x1b0] sm:$0xff]
    %v10592 = vld [vmem:[%s1841 + $0x1b8] sm:$0xff]
    %v10593 = vld [vmem:[%s1841 + $0x1c0] sm:$0xff]
    %v10594 = vld [vmem:[%s1841 + $0x1c8] sm:$0xff]
    %v10595 = vld [vmem:[%s1841 + $0x1d0] sm:$0xff]
    %v10596 = vld [vmem:[%s1841 + $0x1d8] sm:$0xff]
    %v10597 = vld [vmem:[%s1841 + $0x1e0] sm:$0xff]
    %v10598 = vld [vmem:[%s1841 + $0x1e8] sm:$0xff]
    %v10599 = vld [vmem:[%s1841 + $0x1f0] sm:$0xff]
    %v10600 = vld [vmem:[%s1841 + $0x1f8] sm:$0xff]
    %v10665 = vunpack.c.l.b16 %v10537
    %v10666 = vunpack.c.h.b16 %v10537
    %v10667 = vunpack.c.l.b16 %v10538
    %v10668 = vunpack.c.h.b16 %v10538
    %v10669 = vunpack.c.l.b16 %v10539
    %v10670 = vunpack.c.h.b16 %v10539
    %v10671 = vunpack.c.l.b16 %v10540
    %v10672 = vunpack.c.h.b16 %v10540
    %v10673 = vunpack.c.l.b16 %v10541
    %v10674 = vunpack.c.h.b16 %v10541
    %v10675 = vunpack.c.l.b16 %v10542
    %v10676 = vunpack.c.h.b16 %v10542
    %v10677 = vunpack.c.l.b16 %v10543
    %v10678 = vunpack.c.h.b16 %v10543
    %v10679 = vunpack.c.l.b16 %v10544
    %v10680 = vunpack.c.h.b16 %v10544
    %v10681 = vunpack.c.l.b16 %v10545
    %v10682 = vunpack.c.h.b16 %v10545
    %v10683 = vunpack.c.l.b16 %v10546
    %v10684 = vunpack.c.h.b16 %v10546
    %v10685 = vunpack.c.l.b16 %v10547
    %v10686 = vunpack.c.h.b16 %v10547
    %v10687 = vunpack.c.l.b16 %v10548
    %v10688 = vunpack.c.h.b16 %v10548
    %v10689 = vunpack.c.l.b16 %v10549
    %v10690 = vunpack.c.h.b16 %v10549
    %v10691 = vunpack.c.l.b16 %v10550
    %v10692 = vunpack.c.h.b16 %v10550
    %v10693 = vunpack.c.l.b16 %v10551
    %v10694 = vunpack.c.h.b16 %v10551
    %v10695 = vunpack.c.l.b16 %v10552
    %v10696 = vunpack.c.h.b16 %v10552
    %v10697 = vunpack.c.l.b16 %v10553
    %v10698 = vunpack.c.h.b16 %v10553
    %v10699 = vunpack.c.l.b16 %v10554
    %v10700 = vunpack.c.h.b16 %v10554
    %v10701 = vunpack.c.l.b16 %v10555
    %v10702 = vunpack.c.h.b16 %v10555
    %v10703 = vunpack.c.l.b16 %v10556
    %v10704 = vunpack.c.h.b16 %v10556
    %v10705 = vunpack.c.l.b16 %v10557
    %v10706 = vunpack.c.h.b16 %v10557
    %v10707 = vunpack.c.l.b16 %v10558
    %v10708 = vunpack.c.h.b16 %v10558
    %v10709 = vunpack.c.l.b16 %v10559
    %v10710 = vunpack.c.h.b16 %v10559
    %v10711 = vunpack.c.l.b16 %v10560
    %v10712 = vunpack.c.h.b16 %v10560
    %v10713 = vunpack.c.l.b16 %v10561
    %v10714 = vunpack.c.h.b16 %v10561
    %v10715 = vunpack.c.l.b16 %v10562
    %v10716 = vunpack.c.h.b16 %v10562
    %v10717 = vunpack.c.l.b16 %v10563
    %v10718 = vunpack.c.h.b16 %v10563
    %v10719 = vunpack.c.l.b16 %v10564
    %v10720 = vunpack.c.h.b16 %v10564
    %v10721 = vunpack.c.l.b16 %v10565
    %v10722 = vunpack.c.h.b16 %v10565
    %v10723 = vunpack.c.l.b16 %v10566
    %v10724 = vunpack.c.h.b16 %v10566
    %v10725 = vunpack.c.l.b16 %v10567
    %v10726 = vunpack.c.h.b16 %v10567
    %v10727 = vunpack.c.l.b16 %v10568
    %v10728 = vunpack.c.h.b16 %v10568
    %v10729 = vunpack.c.l.b16 %v10569
    %v10730 = vunpack.c.h.b16 %v10569
    %v10731 = vunpack.c.l.b16 %v10570
    %v10732 = vunpack.c.h.b16 %v10570
    %v10733 = vunpack.c.l.b16 %v10571
    %v10734 = vunpack.c.h.b16 %v10571
    %v10735 = vunpack.c.l.b16 %v10572
    %v10736 = vunpack.c.h.b16 %v10572
    %v10737 = vunpack.c.l.b16 %v10573
    %v10738 = vunpack.c.h.b16 %v10573
    %v10739 = vunpack.c.l.b16 %v10574
    %v10740 = vunpack.c.h.b16 %v10574
    %v10741 = vunpack.c.l.b16 %v10575
    %v10742 = vunpack.c.h.b16 %v10575
    %v10743 = vunpack.c.l.b16 %v10576
    %v10744 = vunpack.c.h.b16 %v10576
    %v10745 = vunpack.c.l.b16 %v10577
    %v10746 = vunpack.c.h.b16 %v10577
    %v10747 = vunpack.c.l.b16 %v10578
    %v10748 = vunpack.c.h.b16 %v10578
    %v10749 = vunpack.c.l.b16 %v10579
    %v10750 = vunpack.c.h.b16 %v10579
    %v10751 = vunpack.c.l.b16 %v10580
    %v10752 = vunpack.c.h.b16 %v10580
    %v10753 = vunpack.c.l.b16 %v10581
    %v10754 = vunpack.c.h.b16 %v10581
    %v10755 = vunpack.c.l.b16 %v10582
    %v10756 = vunpack.c.h.b16 %v10582
    %v10757 = vunpack.c.l.b16 %v10583
    %v10758 = vunpack.c.h.b16 %v10583
    %v10759 = vunpack.c.l.b16 %v10584
    %v10760 = vunpack.c.h.b16 %v10584
    %v10761 = vunpack.c.l.b16 %v10585
    %v10762 = vunpack.c.h.b16 %v10585
    %v10763 = vunpack.c.l.b16 %v10586
    %v10764 = vunpack.c.h.b16 %v10586
    %v10765 = vunpack.c.l.b16 %v10587
    %v10766 = vunpack.c.h.b16 %v10587
    %v10767 = vunpack.c.l.b16 %v10588
    %v10768 = vunpack.c.h.b16 %v10588
    %v10769 = vunpack.c.l.b16 %v10589
    %v10770 = vunpack.c.h.b16 %v10589
    %v10771 = vunpack.c.l.b16 %v10590
    %v10772 = vunpack.c.h.b16 %v10590
    %v10773 = vunpack.c.l.b16 %v10591
    %v10774 = vunpack.c.h.b16 %v10591
    %v10775 = vunpack.c.l.b16 %v10592
    %v10776 = vunpack.c.h.b16 %v10592
    %v10777 = vunpack.c.l.b16 %v10593
    %v10778 = vunpack.c.h.b16 %v10593
    %v10779 = vunpack.c.l.b16 %v10594
    %v10780 = vunpack.c.h.b16 %v10594
    %v10781 = vunpack.c.l.b16 %v10595
    %v10782 = vunpack.c.h.b16 %v10595
    %v10783 = vunpack.c.l.b16 %v10596
    %v10784 = vunpack.c.h.b16 %v10596
    %v10785 = vunpack.c.l.b16 %v10597
    %v10786 = vunpack.c.h.b16 %v10597
    %v10787 = vunpack.c.l.b16 %v10598
    %v10788 = vunpack.c.h.b16 %v10598
    %v10789 = vunpack.c.l.b16 %v10599
    %v10790 = vunpack.c.h.b16 %v10599
    %v10791 = vunpack.c.l.b16 %v10600
    %v10792 = vunpack.c.h.b16 %v10600
    %v10793 = vpack.c.b16 %v10669, %v10665
    %v10794 = vpack.c.b16 %v10670, %v10666
    %v10795 = vpack.c.b16 %v10671, %v10667
    %v10796 = vpack.c.b16 %v10672, %v10668
    %v10797 = vpack.c.b16 %v10677, %v10673
    %v10798 = vpack.c.b16 %v10678, %v10674
    %v10799 = vpack.c.b16 %v10679, %v10675
    %v10800 = vpack.c.b16 %v10680, %v10676
    %v10801 = vpack.c.b16 %v10685, %v10681
    %v10802 = vpack.c.b16 %v10686, %v10682
    %v10803 = vpack.c.b16 %v10687, %v10683
    %v10804 = vpack.c.b16 %v10688, %v10684
    %v10805 = vpack.c.b16 %v10693, %v10689
    %v10806 = vpack.c.b16 %v10694, %v10690
    %v10807 = vpack.c.b16 %v10695, %v10691
    %v10808 = vpack.c.b16 %v10696, %v10692
    %v10809 = vpack.c.b16 %v10701, %v10697
    %v10810 = vpack.c.b16 %v10702, %v10698
    %v10811 = vpack.c.b16 %v10703, %v10699
    %v10812 = vpack.c.b16 %v10704, %v10700
    %v10813 = vpack.c.b16 %v10709, %v10705
    %v10814 = vpack.c.b16 %v10710, %v10706
    %v10815 = vpack.c.b16 %v10711, %v10707
    %v10816 = vpack.c.b16 %v10712, %v10708
    %v10817 = vpack.c.b16 %v10717, %v10713
    %v10818 = vpack.c.b16 %v10718, %v10714
    %v10819 = vpack.c.b16 %v10719, %v10715
    %v10820 = vpack.c.b16 %v10720, %v10716
    %v10821 = vpack.c.b16 %v10725, %v10721
    %v10822 = vpack.c.b16 %v10726, %v10722
    %v10823 = vpack.c.b16 %v10727, %v10723
    %v10824 = vpack.c.b16 %v10728, %v10724
    %v10825 = vpack.c.b16 %v10733, %v10729
    %v10826 = vpack.c.b16 %v10734, %v10730
    %v10827 = vpack.c.b16 %v10735, %v10731
    %v10828 = vpack.c.b16 %v10736, %v10732
    %v10829 = vpack.c.b16 %v10741, %v10737
    %v10830 = vpack.c.b16 %v10742, %v10738
    %v10831 = vpack.c.b16 %v10743, %v10739
    %v10832 = vpack.c.b16 %v10744, %v10740
    %v10833 = vpack.c.b16 %v10749, %v10745
    %v10834 = vpack.c.b16 %v10750, %v10746
    %v10835 = vpack.c.b16 %v10751, %v10747
    %v10836 = vpack.c.b16 %v10752, %v10748
    %v10837 = vpack.c.b16 %v10757, %v10753
    %v10838 = vpack.c.b16 %v10758, %v10754
    %v10839 = vpack.c.b16 %v10759, %v10755
    %v10840 = vpack.c.b16 %v10760, %v10756
    %v10841 = vpack.c.b16 %v10765, %v10761
    %v10842 = vpack.c.b16 %v10766, %v10762
    %v10843 = vpack.c.b16 %v10767, %v10763
    %v10844 = vpack.c.b16 %v10768, %v10764
    %v10845 = vpack.c.b16 %v10773, %v10769
    %v10846 = vpack.c.b16 %v10774, %v10770
    %v10847 = vpack.c.b16 %v10775, %v10771
    %v10848 = vpack.c.b16 %v10776, %v10772
    %v10849 = vpack.c.b16 %v10781, %v10777
    %v10850 = vpack.c.b16 %v10782, %v10778
    %v10851 = vpack.c.b16 %v10783, %v10779
    %v10852 = vpack.c.b16 %v10784, %v10780
    %v10853 = vpack.c.b16 %v10789, %v10785
    %v10854 = vpack.c.b16 %v10790, %v10786
    %v10855 = vpack.c.b16 %v10791, %v10787
    %v10856 = vpack.c.b16 %v10792, %v10788
    %10921 = vmatpush.bf16.msra.mxu0 %v10821
    %10922 = vmatpush.bf16.msra.mxu0 %v10817
    %10923 = vmatpush.bf16.msra.mxu0 %v10813
    %10924 = vmatpush.bf16.msra.mxu0 %v10809
    %10925 = vmatpush.bf16.msra.mxu0 %v10805
    %10926 = vmatpush.bf16.msra.mxu0 %v10801
    %10927 = vmatpush.bf16.msra.mxu0 %v10797
    %10928 = vmatpush.bf16.msra.mxu0 %v10793
    %10929 = vmatmul.bf16.gmra.mxu0 %v9985
    %v10930 = vpop.f32.mrf.mxu0
    %v10931 = vadd.f32 %v1907, %v10930
    %v10932 = vpop.f32.mrf.mxu0
    %10933 = vdwg.mxu0
    %10934 = vmatpush.bf16.msra.mxu0 %v10853
    %10935 = vmatpush.bf16.msra.mxu0 %v10849
    %10936 = vmatpush.bf16.msra.mxu0 %v10845
    %10937 = vmatpush.bf16.msra.mxu0 %v10841
    %10938 = vmatpush.bf16.msra.mxu0 %v10837
    %10939 = vmatpush.bf16.msra.mxu0 %v10833
    %10940 = vmatpush.bf16.msra.mxu0 %v10829
    %10941 = vmatpush.bf16.msra.mxu0 %v10825
    %10942 = vmatmul.bf16.gmra.mxu0 %v9904
    %v10943 = vpop.f32.mrf.mxu0
    %v10944 = vadd.f32 %v10931, %v10943
    %v10945 = vpop.f32.mrf.mxu0
    %10946 = vdwg.mxu0
    %10947 = vmatpush.bf16.msra.mxu0 %v10822
    %10948 = vmatpush.bf16.msra.mxu0 %v10818
    %10949 = vmatpush.bf16.msra.mxu0 %v10814
    %10950 = vmatpush.bf16.msra.mxu0 %v10810
    %10951 = vmatpush.bf16.msra.mxu0 %v10806
    %10952 = vmatpush.bf16.msra.mxu0 %v10802
    %10953 = vmatpush.bf16.msra.mxu0 %v10798
    %10954 = vmatpush.bf16.msra.mxu0 %v10794
    %10955 = vmatmul.bf16.gmra.mxu0 %v9985
    %v10956 = vpop.f32.mrf.mxu0
    %v10957 = vadd.f32 %v1908, %v10956
    %v10958 = vpop.f32.mrf.mxu0
    %10959 = vdwg.mxu0
    %10960 = vmatpush.bf16.msra.mxu0 %v10854
    %10961 = vmatpush.bf16.msra.mxu0 %v10850
    %10962 = vmatpush.bf16.msra.mxu0 %v10846
    %10963 = vmatpush.bf16.msra.mxu0 %v10842
    %10964 = vmatpush.bf16.msra.mxu0 %v10838
    %10965 = vmatpush.bf16.msra.mxu0 %v10834
    %10966 = vmatpush.bf16.msra.mxu0 %v10830
    %10967 = vmatpush.bf16.msra.mxu0 %v10826
    %10968 = vmatmul.bf16.gmra.mxu0 %v9904
    %v10969 = vpop.f32.mrf.mxu0
    %v10970 = vadd.f32 %v10957, %v10969
    %v10971 = vpop.f32.mrf.mxu0
    %10972 = vdwg.mxu0
    %10973 = vmatpush.bf16.msra.mxu0 %v10823
    %10974 = vmatpush.bf16.msra.mxu0 %v10819
    %10975 = vmatpush.bf16.msra.mxu0 %v10815
    %10976 = vmatpush.bf16.msra.mxu0 %v10811
    %10977 = vmatpush.bf16.msra.mxu0 %v10807
    %10978 = vmatpush.bf16.msra.mxu0 %v10803
    %10979 = vmatpush.bf16.msra.mxu0 %v10799
    %10980 = vmatpush.bf16.msra.mxu0 %v10795
    %10981 = vmatmul.bf16.gmra.mxu0 %v9985
    %v10982 = vpop.f32.mrf.mxu0
    %v10983 = vadd.f32 %v1909, %v10982
    %v10984 = vpop.f32.mrf.mxu0
    %10985 = vdwg.mxu0
    %10986 = vmatpush.bf16.msra.mxu0 %v10855
    %10987 = vmatpush.bf16.msra.mxu0 %v10851
    %10988 = vmatpush.bf16.msra.mxu0 %v10847
    %10989 = vmatpush.bf16.msra.mxu0 %v10843
    %10990 = vmatpush.bf16.msra.mxu0 %v10839
    %10991 = vmatpush.bf16.msra.mxu0 %v10835
    %10992 = vmatpush.bf16.msra.mxu0 %v10831
    %10993 = vmatpush.bf16.msra.mxu0 %v10827
    %10994 = vmatmul.bf16.gmra.mxu0 %v9904
    %v10995 = vpop.f32.mrf.mxu0
    %v10996 = vadd.f32 %v10983, %v10995
    %v10997 = vpop.f32.mrf.mxu0
    %10998 = vdwg.mxu0
    %10999 = vmatpush.bf16.msra.mxu0 %v10824
    %11000 = vmatpush.bf16.msra.mxu0 %v10820
    %11001 = vmatpush.bf16.msra.mxu0 %v10816
    %11002 = vmatpush.bf16.msra.mxu0 %v10812
    %11003 = vmatpush.bf16.msra.mxu0 %v10808
    %11004 = vmatpush.bf16.msra.mxu0 %v10804
    %11005 = vmatpush.bf16.msra.mxu0 %v10800
    %11006 = vmatpush.bf16.msra.mxu0 %v10796
    %11007 = vmatmul.bf16.gmra.mxu0 %v9985
    %v11008 = vpop.f32.mrf.mxu0
    %v11009 = vadd.f32 %v1910, %v11008
    %v11010 = vpop.f32.mrf.mxu0
    %11011 = vdwg.mxu0
    %11012 = vmatpush.bf16.msra.mxu0 %v10856
    %11013 = vmatpush.bf16.msra.mxu0 %v10852
    %11014 = vmatpush.bf16.msra.mxu0 %v10848
    %11015 = vmatpush.bf16.msra.mxu0 %v10844
    %11016 = vmatpush.bf16.msra.mxu0 %v10840
    %11017 = vmatpush.bf16.msra.mxu0 %v10836
    %11018 = vmatpush.bf16.msra.mxu0 %v10832
    %11019 = vmatpush.bf16.msra.mxu0 %v10828
    %11020 = vmatmul.bf16.gmra.mxu0 %v9904
    %v11021 = vpop.f32.mrf.mxu0
    %v11022 = vadd.f32 %v11009, %v11021
    %v11023 = vpop.f32.mrf.mxu0
    %11024 = vdwg.mxu0
    %v11025 = vxor.u32 %v10944, 2147483648
    %v11026 = vxor.u32 %v10970, 2147483648
    %v11027 = vxor.u32 %v10996, 2147483648
    %v11028 = vmul.f32 %v11025, 1.442695
    %v11029 = vpow.pop %v11028
    %v11030 = vmul.f32 %v11026, 1.442695
    %v11031 = vpow.pop %v11030
    %v11032 = vmul.f32 %v11027, 1.442695
    %v11033 = vpow.pop %v11032
    %v11034 = vadd.f32 %v11029, 1.0
    %v11035 = vadd.f32 %v11031, 1.0
    %v11036 = vadd.f32 %v11033, 1.0
    %v11037 = vrcp.pop %v11034
    %v11038 = vmul.f32 %v11034, %v11037
    %v11039 = vsub.f32 1.0, %v11038
    %v11040 = vmul.f32 %v11037, %v11039
    %v11041 = vadd.f32 %v11037, %v11040
    %vm11042 = vweird.f32 %v11034
    %vm11043 = vweird.f32 %v11037
    %vm11044 = vmor %vm11042, %vm11043
    %v11045 = vsel %vm11044, %v11037, %v11041
    %v11046 = vand.u32 2147483647, %v11034
    %vm11047 = vcmp.eq.f32.partialorder %v11046, 8.507059e+37
    %v11048 = vand.u32 %v11034, 2147483648
    %v11049 = vor.u32 1.1754944e-38, %v11048
    %v11050 = vsel %vm11047, %v11049, %v11045
    %v11051 = vmul.f32 1.0, %v11050
    %v11052 = vrcp.pop %v11035
    %v11053 = vmul.f32 %v11035, %v11052
    %v11054 = vsub.f32 1.0, %v11053
    %v11055 = vmul.f32 %v11052, %v11054
    %v11056 = vadd.f32 %v11052, %v11055
    %vm11057 = vweird.f32 %v11035
    %vm11058 = vweird.f32 %v11052
    %vm11059 = vmor %vm11057, %vm11058
    %v11060 = vsel %vm11059, %v11052, %v11056
    %v11061 = vand.u32 2147483647, %v11035
    %vm11062 = vcmp.eq.f32.partialorder %v11061, 8.507059e+37
    %v11063 = vand.u32 %v11035, 2147483648
    %v11064 = vor.u32 1.1754944e-38, %v11063
    %v11065 = vsel %vm11062, %v11064, %v11060
    %v11066 = vmul.f32 1.0, %v11065
    %v11067 = vrcp.pop %v11036
    %v11068 = vmul.f32 %v11036, %v11067
    %v11069 = vsub.f32 1.0, %v11068
    %v11070 = vmul.f32 %v11067, %v11069
    %v11071 = vadd.f32 %v11067, %v11070
    %vm11072 = vweird.f32 %v11036
    %vm11073 = vweird.f32 %v11067
    %vm11074 = vmor %vm11072, %vm11073
    %v11075 = vsel %vm11074, %v11067, %v11071
    %v11076 = vand.u32 2147483647, %v11036
    %vm11077 = vcmp.eq.f32.partialorder %v11076, 8.507059e+37
    %v11078 = vand.u32 %v11036, 2147483648
    %v11079 = vor.u32 1.1754944e-38, %v11078
    %v11080 = vsel %vm11077, %v11079, %v11075
    %v11081 = vmul.f32 1.0, %v11080
    %v11082 = vtanh.pop %v11022
    %v11083 = vmul.f32 %v11066, %v9901
    %v11084 = vmul.f32 %v11051, %v11082
    %v11085 = vadd.f32 %v11083, %v11084
    %v11086 = vtanh.pop %v11085
    %v11087 = vmul.f32 %v11081, %v11086
    %v11088 = vpack.c.bf16 %v11087, %v11087
    %v11089 = vld [vmem:[%s7] sm:$0xf]
    %v11090 = vld [vmem:[%s7 + $0x4] sm:$0xf]
    %v11091 = vld [vmem:[%s7 + $0x8] sm:$0xf]
    %v11092 = vld [vmem:[%s7 + $0xc] sm:$0xf]
    %v11093 = vld [vmem:[%s7 + $0x10] sm:$0xf]
    %v11094 = vld [vmem:[%s7 + $0x14] sm:$0xf]
    %v11095 = vld [vmem:[%s7 + $0x18] sm:$0xf]
    %v11096 = vld [vmem:[%s7 + $0x1c] sm:$0xf]
    %v11097 = vld [vmem:[%s7 + $0x20] sm:$0xf]
    %v11098 = vld [vmem:[%s7 + $0x24] sm:$0xf]
    %v11099 = vld [vmem:[%s7 + $0x28] sm:$0xf]
    %v11100 = vld [vmem:[%s7 + $0x2c] sm:$0xf]
    %v11101 = vld [vmem:[%s7 + $0x30] sm:$0xf]
    %v11102 = vld [vmem:[%s7 + $0x34] sm:$0xf]
    %v11103 = vld [vmem:[%s7 + $0x38] sm:$0xf]
    %v11104 = vld [vmem:[%s7 + $0x3c] sm:$0xf]
    %v11121 = vunpack.c.l.b16 %v11089
    %v11122 = vunpack.c.l.b16 %v11090
    %v11123 = vunpack.c.l.b16 %v11091
    %v11124 = vunpack.c.l.b16 %v11092
    %v11125 = vunpack.c.l.b16 %v11093
    %v11126 = vunpack.c.l.b16 %v11094
    %v11127 = vunpack.c.l.b16 %v11095
    %v11128 = vunpack.c.l.b16 %v11096
    %v11129 = vunpack.c.l.b16 %v11097
    %v11130 = vunpack.c.l.b16 %v11098
    %v11131 = vunpack.c.l.b16 %v11099
    %v11132 = vunpack.c.l.b16 %v11100
    %v11133 = vunpack.c.l.b16 %v11101
    %v11134 = vunpack.c.l.b16 %v11102
    %v11135 = vunpack.c.l.b16 %v11103
    %v11136 = vunpack.c.l.b16 %v11104
    %v11137 = vpack.c.b16 %v11122, %v11121
    %v11138 = vpack.c.b16 %v11124, %v11123
    %v11139 = vpack.c.b16 %v11126, %v11125
    %v11140 = vpack.c.b16 %v11128, %v11127
    %v11141 = vpack.c.b16 %v11130, %v11129
    %v11142 = vpack.c.b16 %v11132, %v11131
    %v11143 = vpack.c.b16 %v11134, %v11133
    %v11144 = vpack.c.b16 %v11136, %v11135
    %11153 = vmatpush.bf16.msra.mxu0 %v11144
    %11154 = vmatpush.bf16.msra.mxu0 %v11143
    %11155 = vmatpush.bf16.msra.mxu0 %v11142
    %11156 = vmatpush.bf16.msra.mxu0 %v11141
    %11157 = vmatpush.bf16.msra.mxu0 %v11140
    %11158 = vmatpush.bf16.msra.mxu0 %v11139
    %11159 = vmatpush.bf16.msra.mxu0 %v11138
    %11160 = vmatpush.bf16.msra.mxu0 %v11137
    %11161 = vmatmul.bf16.gmra.mxu0 %v11088
    %v11162 = vpop.f32.mrf.mxu0
    %v11163 = vadd.f32 %v2420, %v11162
    %v11164 = vpop.f32.mrf.mxu0
    %11165 = vdwg.mxu0
    %s11166 = scalar_lea.vmem %s11, 48
    %11167 = vst [vmem:[%s11166] sm:$0xff] %v11163
    %v11168 = vpack.c.bf16 %v10536, %v10536
    %v11169 = vld [vmem:[%s1841] sm:$0xff]
    %v11170 = vld [vmem:[%s1841 + $0x8] sm:$0xff]
    %v11171 = vld [vmem:[%s1841 + $0x10] sm:$0xff]
    %v11172 = vld [vmem:[%s1841 + $0x18] sm:$0xff]
    %v11173 = vld [vmem:[%s1841 + $0x20] sm:$0xff]
    %v11174 = vld [vmem:[%s1841 + $0x28] sm:$0xff]
    %v11175 = vld [vmem:[%s1841 + $0x30] sm:$0xff]
    %v11176 = vld [vmem:[%s1841 + $0x38] sm:$0xff]
    %v11177 = vld [vmem:[%s1841 + $0x40] sm:$0xff]
    %v11178 = vld [vmem:[%s1841 + $0x48] sm:$0xff]
    %v11179 = vld [vmem:[%s1841 + $0x50] sm:$0xff]
    %v11180 = vld [vmem:[%s1841 + $0x58] sm:$0xff]
    %v11181 = vld [vmem:[%s1841 + $0x60] sm:$0xff]
    %v11182 = vld [vmem:[%s1841 + $0x68] sm:$0xff]
    %v11183 = vld [vmem:[%s1841 + $0x70] sm:$0xff]
    %v11184 = vld [vmem:[%s1841 + $0x78] sm:$0xff]
    %v11185 = vld [vmem:[%s1841 + $0x80] sm:$0xff]
    %v11186 = vld [vmem:[%s1841 + $0x88] sm:$0xff]
    %v11187 = vld [vmem:[%s1841 + $0x90] sm:$0xff]
    %v11188 = vld [vmem:[%s1841 + $0x98] sm:$0xff]
    %v11189 = vld [vmem:[%s1841 + $0xa0] sm:$0xff]
    %v11190 = vld [vmem:[%s1841 + $0xa8] sm:$0xff]
    %v11191 = vld [vmem:[%s1841 + $0xb0] sm:$0xff]
    %v11192 = vld [vmem:[%s1841 + $0xb8] sm:$0xff]
    %v11193 = vld [vmem:[%s1841 + $0xc0] sm:$0xff]
    %v11194 = vld [vmem:[%s1841 + $0xc8] sm:$0xff]
    %v11195 = vld [vmem:[%s1841 + $0xd0] sm:$0xff]
    %v11196 = vld [vmem:[%s1841 + $0xd8] sm:$0xff]
    %v11197 = vld [vmem:[%s1841 + $0xe0] sm:$0xff]
    %v11198 = vld [vmem:[%s1841 + $0xe8] sm:$0xff]
    %v11199 = vld [vmem:[%s1841 + $0xf0] sm:$0xff]
    %v11200 = vld [vmem:[%s1841 + $0xf8] sm:$0xff]
    %v11201 = vld [vmem:[%s1841 + $0x100] sm:$0xff]
    %v11202 = vld [vmem:[%s1841 + $0x108] sm:$0xff]
    %v11203 = vld [vmem:[%s1841 + $0x110] sm:$0xff]
    %v11204 = vld [vmem:[%s1841 + $0x118] sm:$0xff]
    %v11205 = vld [vmem:[%s1841 + $0x120] sm:$0xff]
    %v11206 = vld [vmem:[%s1841 + $0x128] sm:$0xff]
    %v11207 = vld [vmem:[%s1841 + $0x130] sm:$0xff]
    %v11208 = vld [vmem:[%s1841 + $0x138] sm:$0xff]
    %v11209 = vld [vmem:[%s1841 + $0x140] sm:$0xff]
    %v11210 = vld [vmem:[%s1841 + $0x148] sm:$0xff]
    %v11211 = vld [vmem:[%s1841 + $0x150] sm:$0xff]
    %v11212 = vld [vmem:[%s1841 + $0x158] sm:$0xff]
    %v11213 = vld [vmem:[%s1841 + $0x160] sm:$0xff]
    %v11214 = vld [vmem:[%s1841 + $0x168] sm:$0xff]
    %v11215 = vld [vmem:[%s1841 + $0x170] sm:$0xff]
    %v11216 = vld [vmem:[%s1841 + $0x178] sm:$0xff]
    %v11217 = vld [vmem:[%s1841 + $0x180] sm:$0xff]
    %v11218 = vld [vmem:[%s1841 + $0x188] sm:$0xff]
    %v11219 = vld [vmem:[%s1841 + $0x190] sm:$0xff]
    %v11220 = vld [vmem:[%s1841 + $0x198] sm:$0xff]
    %v11221 = vld [vmem:[%s1841 + $0x1a0] sm:$0xff]
    %v11222 = vld [vmem:[%s1841 + $0x1a8] sm:$0xff]
    %v11223 = vld [vmem:[%s1841 + $0x1b0] sm:$0xff]
    %v11224 = vld [vmem:[%s1841 + $0x1b8] sm:$0xff]
    %v11225 = vld [vmem:[%s1841 + $0x1c0] sm:$0xff]
    %v11226 = vld [vmem:[%s1841 + $0x1c8] sm:$0xff]
    %v11227 = vld [vmem:[%s1841 + $0x1d0] sm:$0xff]
    %v11228 = vld [vmem:[%s1841 + $0x1d8] sm:$0xff]
    %v11229 = vld [vmem:[%s1841 + $0x1e0] sm:$0xff]
    %v11230 = vld [vmem:[%s1841 + $0x1e8] sm:$0xff]
    %v11231 = vld [vmem:[%s1841 + $0x1f0] sm:$0xff]
    %v11232 = vld [vmem:[%s1841 + $0x1f8] sm:$0xff]
    %v11297 = vunpack.c.l.b16 %v11169
    %v11298 = vunpack.c.h.b16 %v11169
    %v11299 = vunpack.c.l.b16 %v11170
    %v11300 = vunpack.c.h.b16 %v11170
    %v11301 = vunpack.c.l.b16 %v11171
    %v11302 = vunpack.c.h.b16 %v11171
    %v11303 = vunpack.c.l.b16 %v11172
    %v11304 = vunpack.c.h.b16 %v11172
    %v11305 = vunpack.c.l.b16 %v11173
    %v11306 = vunpack.c.h.b16 %v11173
    %v11307 = vunpack.c.l.b16 %v11174
    %v11308 = vunpack.c.h.b16 %v11174
    %v11309 = vunpack.c.l.b16 %v11175
    %v11310 = vunpack.c.h.b16 %v11175
    %v11311 = vunpack.c.l.b16 %v11176
    %v11312 = vunpack.c.h.b16 %v11176
    %v11313 = vunpack.c.l.b16 %v11177
    %v11314 = vunpack.c.h.b16 %v11177
    %v11315 = vunpack.c.l.b16 %v11178
    %v11316 = vunpack.c.h.b16 %v11178
    %v11317 = vunpack.c.l.b16 %v11179
    %v11318 = vunpack.c.h.b16 %v11179
    %v11319 = vunpack.c.l.b16 %v11180
    %v11320 = vunpack.c.h.b16 %v11180
    %v11321 = vunpack.c.l.b16 %v11181
    %v11322 = vunpack.c.h.b16 %v11181
    %v11323 = vunpack.c.l.b16 %v11182
    %v11324 = vunpack.c.h.b16 %v11182
    %v11325 = vunpack.c.l.b16 %v11183
    %v11326 = vunpack.c.h.b16 %v11183
    %v11327 = vunpack.c.l.b16 %v11184
    %v11328 = vunpack.c.h.b16 %v11184
    %v11329 = vunpack.c.l.b16 %v11185
    %v11330 = vunpack.c.h.b16 %v11185
    %v11331 = vunpack.c.l.b16 %v11186
    %v11332 = vunpack.c.h.b16 %v11186
    %v11333 = vunpack.c.l.b16 %v11187
    %v11334 = vunpack.c.h.b16 %v11187
    %v11335 = vunpack.c.l.b16 %v11188
    %v11336 = vunpack.c.h.b16 %v11188
    %v11337 = vunpack.c.l.b16 %v11189
    %v11338 = vunpack.c.h.b16 %v11189
    %v11339 = vunpack.c.l.b16 %v11190
    %v11340 = vunpack.c.h.b16 %v11190
    %v11341 = vunpack.c.l.b16 %v11191
    %v11342 = vunpack.c.h.b16 %v11191
    %v11343 = vunpack.c.l.b16 %v11192
    %v11344 = vunpack.c.h.b16 %v11192
    %v11345 = vunpack.c.l.b16 %v11193
    %v11346 = vunpack.c.h.b16 %v11193
    %v11347 = vunpack.c.l.b16 %v11194
    %v11348 = vunpack.c.h.b16 %v11194
    %v11349 = vunpack.c.l.b16 %v11195
    %v11350 = vunpack.c.h.b16 %v11195
    %v11351 = vunpack.c.l.b16 %v11196
    %v11352 = vunpack.c.h.b16 %v11196
    %v11353 = vunpack.c.l.b16 %v11197
    %v11354 = vunpack.c.h.b16 %v11197
    %v11355 = vunpack.c.l.b16 %v11198
    %v11356 = vunpack.c.h.b16 %v11198
    %v11357 = vunpack.c.l.b16 %v11199
    %v11358 = vunpack.c.h.b16 %v11199
    %v11359 = vunpack.c.l.b16 %v11200
    %v11360 = vunpack.c.h.b16 %v11200
    %v11361 = vunpack.c.l.b16 %v11201
    %v11362 = vunpack.c.h.b16 %v11201
    %v11363 = vunpack.c.l.b16 %v11202
    %v11364 = vunpack.c.h.b16 %v11202
    %v11365 = vunpack.c.l.b16 %v11203
    %v11366 = vunpack.c.h.b16 %v11203
    %v11367 = vunpack.c.l.b16 %v11204
    %v11368 = vunpack.c.h.b16 %v11204
    %v11369 = vunpack.c.l.b16 %v11205
    %v11370 = vunpack.c.h.b16 %v11205
    %v11371 = vunpack.c.l.b16 %v11206
    %v11372 = vunpack.c.h.b16 %v11206
    %v11373 = vunpack.c.l.b16 %v11207
    %v11374 = vunpack.c.h.b16 %v11207
    %v11375 = vunpack.c.l.b16 %v11208
    %v11376 = vunpack.c.h.b16 %v11208
    %v11377 = vunpack.c.l.b16 %v11209
    %v11378 = vunpack.c.h.b16 %v11209
    %v11379 = vunpack.c.l.b16 %v11210
    %v11380 = vunpack.c.h.b16 %v11210
    %v11381 = vunpack.c.l.b16 %v11211
    %v11382 = vunpack.c.h.b16 %v11211
    %v11383 = vunpack.c.l.b16 %v11212
    %v11384 = vunpack.c.h.b16 %v11212
    %v11385 = vunpack.c.l.b16 %v11213
    %v11386 = vunpack.c.h.b16 %v11213
    %v11387 = vunpack.c.l.b16 %v11214
    %v11388 = vunpack.c.h.b16 %v11214
    %v11389 = vunpack.c.l.b16 %v11215
    %v11390 = vunpack.c.h.b16 %v11215
    %v11391 = vunpack.c.l.b16 %v11216
    %v11392 = vunpack.c.h.b16 %v11216
    %v11393 = vunpack.c.l.b16 %v11217
    %v11394 = vunpack.c.h.b16 %v11217
    %v11395 = vunpack.c.l.b16 %v11218
    %v11396 = vunpack.c.h.b16 %v11218
    %v11397 = vunpack.c.l.b16 %v11219
    %v11398 = vunpack.c.h.b16 %v11219
    %v11399 = vunpack.c.l.b16 %v11220
    %v11400 = vunpack.c.h.b16 %v11220
    %v11401 = vunpack.c.l.b16 %v11221
    %v11402 = vunpack.c.h.b16 %v11221
    %v11403 = vunpack.c.l.b16 %v11222
    %v11404 = vunpack.c.h.b16 %v11222
    %v11405 = vunpack.c.l.b16 %v11223
    %v11406 = vunpack.c.h.b16 %v11223
    %v11407 = vunpack.c.l.b16 %v11224
    %v11408 = vunpack.c.h.b16 %v11224
    %v11409 = vunpack.c.l.b16 %v11225
    %v11410 = vunpack.c.h.b16 %v11225
    %v11411 = vunpack.c.l.b16 %v11226
    %v11412 = vunpack.c.h.b16 %v11226
    %v11413 = vunpack.c.l.b16 %v11227
    %v11414 = vunpack.c.h.b16 %v11227
    %v11415 = vunpack.c.l.b16 %v11228
    %v11416 = vunpack.c.h.b16 %v11228
    %v11417 = vunpack.c.l.b16 %v11229
    %v11418 = vunpack.c.h.b16 %v11229
    %v11419 = vunpack.c.l.b16 %v11230
    %v11420 = vunpack.c.h.b16 %v11230
    %v11421 = vunpack.c.l.b16 %v11231
    %v11422 = vunpack.c.h.b16 %v11231
    %v11423 = vunpack.c.l.b16 %v11232
    %v11424 = vunpack.c.h.b16 %v11232
    %v11425 = vpack.c.b16 %v11301, %v11297
    %v11426 = vpack.c.b16 %v11302, %v11298
    %v11427 = vpack.c.b16 %v11303, %v11299
    %v11428 = vpack.c.b16 %v11304, %v11300
    %v11429 = vpack.c.b16 %v11309, %v11305
    %v11430 = vpack.c.b16 %v11310, %v11306
    %v11431 = vpack.c.b16 %v11311, %v11307
    %v11432 = vpack.c.b16 %v11312, %v11308
    %v11433 = vpack.c.b16 %v11317, %v11313
    %v11434 = vpack.c.b16 %v11318, %v11314
    %v11435 = vpack.c.b16 %v11319, %v11315
    %v11436 = vpack.c.b16 %v11320, %v11316
    %v11437 = vpack.c.b16 %v11325, %v11321
    %v11438 = vpack.c.b16 %v11326, %v11322
    %v11439 = vpack.c.b16 %v11327, %v11323
    %v11440 = vpack.c.b16 %v11328, %v11324
    %v11441 = vpack.c.b16 %v11333, %v11329
    %v11442 = vpack.c.b16 %v11334, %v11330
    %v11443 = vpack.c.b16 %v11335, %v11331
    %v11444 = vpack.c.b16 %v11336, %v11332
    %v11445 = vpack.c.b16 %v11341, %v11337
    %v11446 = vpack.c.b16 %v11342, %v11338
    %v11447 = vpack.c.b16 %v11343, %v11339
    %v11448 = vpack.c.b16 %v11344, %v11340
    %v11449 = vpack.c.b16 %v11349, %v11345
    %v11450 = vpack.c.b16 %v11350, %v11346
    %v11451 = vpack.c.b16 %v11351, %v11347
    %v11452 = vpack.c.b16 %v11352, %v11348
    %v11453 = vpack.c.b16 %v11357, %v11353
    %v11454 = vpack.c.b16 %v11358, %v11354
    %v11455 = vpack.c.b16 %v11359, %v11355
    %v11456 = vpack.c.b16 %v11360, %v11356
    %v11457 = vpack.c.b16 %v11365, %v11361
    %v11458 = vpack.c.b16 %v11366, %v11362
    %v11459 = vpack.c.b16 %v11367, %v11363
    %v11460 = vpack.c.b16 %v11368, %v11364
    %v11461 = vpack.c.b16 %v11373, %v11369
    %v11462 = vpack.c.b16 %v11374, %v11370
    %v11463 = vpack.c.b16 %v11375, %v11371
    %v11464 = vpack.c.b16 %v11376, %v11372
    %v11465 = vpack.c.b16 %v11381, %v11377
    %v11466 = vpack.c.b16 %v11382, %v11378
    %v11467 = vpack.c.b16 %v11383, %v11379
    %v11468 = vpack.c.b16 %v11384, %v11380
    %v11469 = vpack.c.b16 %v11389, %v11385
    %v11470 = vpack.c.b16 %v11390, %v11386
    %v11471 = vpack.c.b16 %v11391, %v11387
    %v11472 = vpack.c.b16 %v11392, %v11388
    %v11473 = vpack.c.b16 %v11397, %v11393
    %v11474 = vpack.c.b16 %v11398, %v11394
    %v11475 = vpack.c.b16 %v11399, %v11395
    %v11476 = vpack.c.b16 %v11400, %v11396
    %v11477 = vpack.c.b16 %v11405, %v11401
    %v11478 = vpack.c.b16 %v11406, %v11402
    %v11479 = vpack.c.b16 %v11407, %v11403
    %v11480 = vpack.c.b16 %v11408, %v11404
    %v11481 = vpack.c.b16 %v11413, %v11409
    %v11482 = vpack.c.b16 %v11414, %v11410
    %v11483 = vpack.c.b16 %v11415, %v11411
    %v11484 = vpack.c.b16 %v11416, %v11412
    %v11485 = vpack.c.b16 %v11421, %v11417
    %v11486 = vpack.c.b16 %v11422, %v11418
    %v11487 = vpack.c.b16 %v11423, %v11419
    %v11488 = vpack.c.b16 %v11424, %v11420
    %11553 = vmatpush.bf16.msra.mxu0 %v11453
    %11554 = vmatpush.bf16.msra.mxu0 %v11449
    %11555 = vmatpush.bf16.msra.mxu0 %v11445
    %11556 = vmatpush.bf16.msra.mxu0 %v11441
    %11557 = vmatpush.bf16.msra.mxu0 %v11437
    %11558 = vmatpush.bf16.msra.mxu0 %v11433
    %11559 = vmatpush.bf16.msra.mxu0 %v11429
    %11560 = vmatpush.bf16.msra.mxu0 %v11425
    %11561 = vmatmul.bf16.gmra.mxu0 %v11168
    %v11562 = vpop.f32.mrf.mxu0
    %v11563 = vadd.f32 %v1907, %v11562
    %v11564 = vpop.f32.mrf.mxu0
    %11565 = vdwg.mxu0
    %11566 = vmatpush.bf16.msra.mxu0 %v11485
    %11567 = vmatpush.bf16.msra.mxu0 %v11481
    %11568 = vmatpush.bf16.msra.mxu0 %v11477
    %11569 = vmatpush.bf16.msra.mxu0 %v11473
    %11570 = vmatpush.bf16.msra.mxu0 %v11469
    %11571 = vmatpush.bf16.msra.mxu0 %v11465
    %11572 = vmatpush.bf16.msra.mxu0 %v11461
    %11573 = vmatpush.bf16.msra.mxu0 %v11457
    %11574 = vmatmul.bf16.gmra.mxu0 %v11088
    %v11575 = vpop.f32.mrf.mxu0
    %v11576 = vadd.f32 %v11563, %v11575
    %v11577 = vpop.f32.mrf.mxu0
    %11578 = vdwg.mxu0
    %11579 = vmatpush.bf16.msra.mxu0 %v11454
    %11580 = vmatpush.bf16.msra.mxu0 %v11450
    %11581 = vmatpush.bf16.msra.mxu0 %v11446
    %11582 = vmatpush.bf16.msra.mxu0 %v11442
    %11583 = vmatpush.bf16.msra.mxu0 %v11438
    %11584 = vmatpush.bf16.msra.mxu0 %v11434
    %11585 = vmatpush.bf16.msra.mxu0 %v11430
    %11586 = vmatpush.bf16.msra.mxu0 %v11426
    %11587 = vmatmul.bf16.gmra.mxu0 %v11168
    %v11588 = vpop.f32.mrf.mxu0
    %v11589 = vadd.f32 %v1908, %v11588
    %v11590 = vpop.f32.mrf.mxu0
    %11591 = vdwg.mxu0
    %11592 = vmatpush.bf16.msra.mxu0 %v11486
    %11593 = vmatpush.bf16.msra.mxu0 %v11482
    %11594 = vmatpush.bf16.msra.mxu0 %v11478
    %11595 = vmatpush.bf16.msra.mxu0 %v11474
    %11596 = vmatpush.bf16.msra.mxu0 %v11470
    %11597 = vmatpush.bf16.msra.mxu0 %v11466
    %11598 = vmatpush.bf16.msra.mxu0 %v11462
    %11599 = vmatpush.bf16.msra.mxu0 %v11458
    %11600 = vmatmul.bf16.gmra.mxu0 %v11088
    %v11601 = vpop.f32.mrf.mxu0
    %v11602 = vadd.f32 %v11589, %v11601
    %v11603 = vpop.f32.mrf.mxu0
    %11604 = vdwg.mxu0
    %11605 = vmatpush.bf16.msra.mxu0 %v11455
    %11606 = vmatpush.bf16.msra.mxu0 %v11451
    %11607 = vmatpush.bf16.msra.mxu0 %v11447
    %11608 = vmatpush.bf16.msra.mxu0 %v11443
    %11609 = vmatpush.bf16.msra.mxu0 %v11439
    %11610 = vmatpush.bf16.msra.mxu0 %v11435
    %11611 = vmatpush.bf16.msra.mxu0 %v11431
    %11612 = vmatpush.bf16.msra.mxu0 %v11427
    %11613 = vmatmul.bf16.gmra.mxu0 %v11168
    %v11614 = vpop.f32.mrf.mxu0
    %v11615 = vadd.f32 %v1909, %v11614
    %v11616 = vpop.f32.mrf.mxu0
    %11617 = vdwg.mxu0
    %11618 = vmatpush.bf16.msra.mxu0 %v11487
    %11619 = vmatpush.bf16.msra.mxu0 %v11483
    %11620 = vmatpush.bf16.msra.mxu0 %v11479
    %11621 = vmatpush.bf16.msra.mxu0 %v11475
    %11622 = vmatpush.bf16.msra.mxu0 %v11471
    %11623 = vmatpush.bf16.msra.mxu0 %v11467
    %11624 = vmatpush.bf16.msra.mxu0 %v11463
    %11625 = vmatpush.bf16.msra.mxu0 %v11459
    %11626 = vmatmul.bf16.gmra.mxu0 %v11088
    %v11627 = vpop.f32.mrf.mxu0
    %v11628 = vadd.f32 %v11615, %v11627
    %v11629 = vpop.f32.mrf.mxu0
    %11630 = vdwg.mxu0
    %11631 = vmatpush.bf16.msra.mxu0 %v11456
    %11632 = vmatpush.bf16.msra.mxu0 %v11452
    %11633 = vmatpush.bf16.msra.mxu0 %v11448
    %11634 = vmatpush.bf16.msra.mxu0 %v11444
    %11635 = vmatpush.bf16.msra.mxu0 %v11440
    %11636 = vmatpush.bf16.msra.mxu0 %v11436
    %11637 = vmatpush.bf16.msra.mxu0 %v11432
    %11638 = vmatpush.bf16.msra.mxu0 %v11428
    %11639 = vmatmul.bf16.gmra.mxu0 %v11168
    %v11640 = vpop.f32.mrf.mxu0
    %v11641 = vadd.f32 %v1910, %v11640
    %v11642 = vpop.f32.mrf.mxu0
    %11643 = vdwg.mxu0
    %11644 = vmatpush.bf16.msra.mxu0 %v11488
    %11645 = vmatpush.bf16.msra.mxu0 %v11484
    %11646 = vmatpush.bf16.msra.mxu0 %v11480
    %11647 = vmatpush.bf16.msra.mxu0 %v11476
    %11648 = vmatpush.bf16.msra.mxu0 %v11472
    %11649 = vmatpush.bf16.msra.mxu0 %v11468
    %11650 = vmatpush.bf16.msra.mxu0 %v11464
    %11651 = vmatpush.bf16.msra.mxu0 %v11460
    %11652 = vmatmul.bf16.gmra.mxu0 %v11088
    %v11653 = vpop.f32.mrf.mxu0
    %v11654 = vadd.f32 %v11641, %v11653
    %v11655 = vpop.f32.mrf.mxu0
    %11656 = vdwg.mxu0
    %v11657 = vxor.u32 %v11576, 2147483648
    %v11658 = vxor.u32 %v11602, 2147483648
    %v11659 = vxor.u32 %v11628, 2147483648
    %v11660 = vmul.f32 %v11657, 1.442695
    %v11661 = vpow.pop %v11660
    %v11662 = vmul.f32 %v11658, 1.442695
    %v11663 = vpow.pop %v11662
    %v11664 = vmul.f32 %v11659, 1.442695
    %v11665 = vpow.pop %v11664
    %v11666 = vadd.f32 %v11661, 1.0
    %v11667 = vadd.f32 %v11663, 1.0
    %v11668 = vadd.f32 %v11665, 1.0
    %v11669 = vrcp.pop %v11666
    %v11670 = vmul.f32 %v11666, %v11669
    %v11671 = vsub.f32 1.0, %v11670
    %v11672 = vmul.f32 %v11669, %v11671
    %v11673 = vadd.f32 %v11669, %v11672
    %vm11674 = vweird.f32 %v11666
    %vm11675 = vweird.f32 %v11669
    %vm11676 = vmor %vm11674, %vm11675
    %v11677 = vsel %vm11676, %v11669, %v11673
    %v11678 = vand.u32 2147483647, %v11666
    %vm11679 = vcmp.eq.f32.partialorder %v11678, 8.507059e+37
    %v11680 = vand.u32 %v11666, 2147483648
    %v11681 = vor.u32 1.1754944e-38, %v11680
    %v11682 = vsel %vm11679, %v11681, %v11677
    %v11683 = vmul.f32 1.0, %v11682
    %v11684 = vrcp.pop %v11667
    %v11685 = vmul.f32 %v11667, %v11684
    %v11686 = vsub.f32 1.0, %v11685
    %v11687 = vmul.f32 %v11684, %v11686
    %v11688 = vadd.f32 %v11684, %v11687
    %vm11689 = vweird.f32 %v11667
    %vm11690 = vweird.f32 %v11684
    %vm11691 = vmor %vm11689, %vm11690
    %v11692 = vsel %vm11691, %v11684, %v11688
    %v11693 = vand.u32 2147483647, %v11667
    %vm11694 = vcmp.eq.f32.partialorder %v11693, 8.507059e+37
    %v11695 = vand.u32 %v11667, 2147483648
    %v11696 = vor.u32 1.1754944e-38, %v11695
    %v11697 = vsel %vm11694, %v11696, %v11692
    %v11698 = vmul.f32 1.0, %v11697
    %v11699 = vrcp.pop %v11668
    %v11700 = vmul.f32 %v11668, %v11699
    %v11701 = vsub.f32 1.0, %v11700
    %v11702 = vmul.f32 %v11699, %v11701
    %v11703 = vadd.f32 %v11699, %v11702
    %vm11704 = vweird.f32 %v11668
    %vm11705 = vweird.f32 %v11699
    %vm11706 = vmor %vm11704, %vm11705
    %v11707 = vsel %vm11706, %v11699, %v11703
    %v11708 = vand.u32 2147483647, %v11668
    %vm11709 = vcmp.eq.f32.partialorder %v11708, 8.507059e+37
    %v11710 = vand.u32 %v11668, 2147483648
    %v11711 = vor.u32 1.1754944e-38, %v11710
    %v11712 = vsel %vm11709, %v11711, %v11707
    %v11713 = vmul.f32 1.0, %v11712
    %v11714 = vtanh.pop %v11654
    %v11715 = vmul.f32 %v11698, %v11085
    %v11716 = vmul.f32 %v11683, %v11714
    %v11717 = vadd.f32 %v11715, %v11716
    %v11718 = vtanh.pop %v11717
    %v11719 = vmul.f32 %v11713, %v11718
    %v11720 = vpack.c.bf16 %v11719, %v11719
    %v11721 = vld [vmem:[%s7] sm:$0xf]
    %v11722 = vld [vmem:[%s7 + $0x4] sm:$0xf]
    %v11723 = vld [vmem:[%s7 + $0x8] sm:$0xf]
    %v11724 = vld [vmem:[%s7 + $0xc] sm:$0xf]
    %v11725 = vld [vmem:[%s7 + $0x10] sm:$0xf]
    %v11726 = vld [vmem:[%s7 + $0x14] sm:$0xf]
    %v11727 = vld [vmem:[%s7 + $0x18] sm:$0xf]
    %v11728 = vld [vmem:[%s7 + $0x1c] sm:$0xf]
    %v11729 = vld [vmem:[%s7 + $0x20] sm:$0xf]
    %v11730 = vld [vmem:[%s7 + $0x24] sm:$0xf]
    %v11731 = vld [vmem:[%s7 + $0x28] sm:$0xf]
    %v11732 = vld [vmem:[%s7 + $0x2c] sm:$0xf]
    %v11733 = vld [vmem:[%s7 + $0x30] sm:$0xf]
    %v11734 = vld [vmem:[%s7 + $0x34] sm:$0xf]
    %v11735 = vld [vmem:[%s7 + $0x38] sm:$0xf]
    %v11736 = vld [vmem:[%s7 + $0x3c] sm:$0xf]
    %v11753 = vunpack.c.l.b16 %v11721
    %v11754 = vunpack.c.l.b16 %v11722
    %v11755 = vunpack.c.l.b16 %v11723
    %v11756 = vunpack.c.l.b16 %v11724
    %v11757 = vunpack.c.l.b16 %v11725
    %v11758 = vunpack.c.l.b16 %v11726
    %v11759 = vunpack.c.l.b16 %v11727
    %v11760 = vunpack.c.l.b16 %v11728
    %v11761 = vunpack.c.l.b16 %v11729
    %v11762 = vunpack.c.l.b16 %v11730
    %v11763 = vunpack.c.l.b16 %v11731
    %v11764 = vunpack.c.l.b16 %v11732
    %v11765 = vunpack.c.l.b16 %v11733
    %v11766 = vunpack.c.l.b16 %v11734
    %v11767 = vunpack.c.l.b16 %v11735
    %v11768 = vunpack.c.l.b16 %v11736
    %v11769 = vpack.c.b16 %v11754, %v11753
    %v11770 = vpack.c.b16 %v11756, %v11755
    %v11771 = vpack.c.b16 %v11758, %v11757
    %v11772 = vpack.c.b16 %v11760, %v11759
    %v11773 = vpack.c.b16 %v11762, %v11761
    %v11774 = vpack.c.b16 %v11764, %v11763
    %v11775 = vpack.c.b16 %v11766, %v11765
    %v11776 = vpack.c.b16 %v11768, %v11767
    %11785 = vmatpush.bf16.msra.mxu0 %v11776
    %11786 = vmatpush.bf16.msra.mxu0 %v11775
    %11787 = vmatpush.bf16.msra.mxu0 %v11774
    %11788 = vmatpush.bf16.msra.mxu0 %v11773
    %11789 = vmatpush.bf16.msra.mxu0 %v11772
    %11790 = vmatpush.bf16.msra.mxu0 %v11771
    %11791 = vmatpush.bf16.msra.mxu0 %v11770
    %11792 = vmatpush.bf16.msra.mxu0 %v11769
    %11793 = vmatmul.bf16.gmra.mxu0 %v11720
    %v11794 = vpop.f32.mrf.mxu0
    %v11795 = vadd.f32 %v2420, %v11794
    %v11796 = vpop.f32.mrf.mxu0
    %11797 = vdwg.mxu0
    %s11798 = scalar_lea.vmem %s11, 56
    %11799 = vst [vmem:[%s11798] sm:$0xff] %v11795
    %11800 = vst [vmem:[%s12] sm:$0xff] %v8800
    %11801 = vst [vmem:[%s13] sm:$0xff] %v8798
    %s11802 = scalar_lea.vmem %s12, 8
    %11803 = vst [vmem:[%s11802] sm:$0xff] %v10536
    %s11804 = scalar_lea.vmem %s13, 8
    %11805 = vst [vmem:[%s11804] sm:$0xff] %v10534
    %s11806 = scalar_lea.vmem %s12, 16
    %11807 = vst [vmem:[%s11806] sm:$0xff] %v11719
    %s11808 = scalar_lea.vmem %s13, 16
    %11809 = vst [vmem:[%s11808] sm:$0xff] %v11717
    // Predicated region
    $region58: #{olstm_forward.1} parent=1 // pred_check
      _
    $region59: #{olstm_forward.1} parent=1 // pred_check_branch
      %11811 = sbr.rel (0) target = $region61
    $region60: #{olstm_forward.1} parent=1 // pred_region
      _
    $region61: #{olstm_forward.1} parent=1 // pred_fallthru
      _
    // Predicated region
    $region62: #{olstm_forward.1} parent=1 // pred_check
      _
    $region63: #{olstm_forward.1} parent=1 // pred_check_branch
      %11813 = sbr.rel (0) target = $region65
    $region64: #{olstm_forward.1} parent=1 // pred_region
      _
    $region65: #{olstm_forward.1} parent=1 // pred_fallthru
      _
    // Predicated region
    $region66: #{olstm_forward.1} parent=1 // pred_check
      _
    $region67: #{olstm_forward.1} parent=1 // pred_check_branch
      %11815 = sbr.rel (0) target = $region69
    $region68: #{olstm_forward.1} parent=1 // pred_region
      _
    $region69: #{olstm_forward.1} parent=1 // pred_fallthru
      _
    // Predicated region
    $region70: #{olstm_forward.1} parent=1 // pred_check
      _
    $region71: #{olstm_forward.1} parent=1 // pred_check_branch
      %11817 = sbr.rel (0) target = $region73
    $region72: #{olstm_forward.1} parent=1 // pred_region
      _
    $region73: #{olstm_forward.1} parent=1 // pred_fallthru
      _
    // Predicated region
    $region74: #{olstm_forward.1} parent=1 // pred_check
      _
    $region75: #{olstm_forward.1} parent=1 // pred_check_branch
      %11819 = sbr.rel (0) target = $region77
    $region76: #{olstm_forward.1} parent=1 // pred_region
      _
    $region77: #{olstm_forward.1} parent=1 // pred_fallthru
      _
    // Predicated region
    $region78: #{olstm_forward.1} parent=1 // pred_check
      _
    $region79: #{olstm_forward.1} parent=1 // pred_check_branch
      %11821 = sbr.rel (0) target = $region81
    $region80: #{olstm_forward.1} parent=1 // pred_region
      _
    $region81: #{olstm_forward.1} parent=1 // pred_fallthru
      _
    %11822 = vsyncpa [#allocation4], 1
    %11823 = vsyncpa [#allocation6], 1

</llo_original>
